<compile_context>
chip_gen: v6e
topology: v6e:2x2x1
jax: 0.10.0
libtpu: 0.0.40
codegen_flags: <defaults>
</compile_context>

<pallas_src>
import functools

import numpy as np
import jax
import jax.numpy as jnp
from jax import lax
from jax.experimental import pallas as pl
from jax.experimental.pallas import tpu as pltpu

# ----------------------------------------------------------------------------
# hard-coded channel grouping from the PyTorch module
# ----------------------------------------------------------------------------
ELEMENTS_TO_REMOVE = [
    [3, 5, 10, 13, 22, 23, 24, 26, 33, 35, 40, 44, 47, 49, 51, 53, 56, 60, 61,
     62, 63, 65, 66, 67, 74, 77, 79, 80],
    [34, 38, 7, 72, 41, 73, 45, 14, 15, 48, 78, 18, 19, 55, 58, 286, 31],
    [75, 12, 68],
    [32, 21],
    [88, 89, 90, 91, 93, 94, 95, 100, 101, 102, 108, 109, 110, 135, 136, 137,
     138, 139, 140, 141, 142, 143, 144, 145, 148, 149, 150, 151, 152, 153, 154,
     155, 156, 157, 158, 159, 160, 161, 162, 163, 164, 165, 166, 167, 168, 169,
     170, 171, 172, 173, 174, 175, 176, 177, 179, 180, 181, 183, 184, 185, 186,
     187, 188, 189, 190, 191, 192, 193, 194, 195, 196, 197, 198, 199, 200, 201,
     202, 203, 204, 205, 206, 208, 209, 210, 211, 212, 213, 214, 215, 216, 217,
     218, 219, 220, 221, 222, 223, 224, 225, 226, 227, 228, 229, 230, 231, 232,
     233, 234, 235, 236, 237, 238, 239, 240, 241, 242, 243, 244, 246, 247, 248,
     249, 250, 251, 252, 253, 254, 255, 256, 257, 258, 259, 260, 261, 262, 263,
     264, 265, 266, 267, 268, 269, 271, 272, 273, 274, 275, 276, 277, 278, 279,
     280, 281, 282, 283, 284, 285, 287, 288, 289, 290, 291, 292, 293, 294, 295,
     296, 297, 300, 301, 302, 303, 304, 305, 306, 307, 308, 309, 311, 312, 313,
     314, 315, 316],
    [123, 124, 126, 103],
    [120, 117, 119],
    [129, 132, 319],
    [147, 270],
]
ELEMENTS_TO_REMOVE1 = [
    0, 1, 2, 4, 6, 8, 9, 11, 16, 17, 20, 25, 27, 28, 29, 30, 36, 37, 39, 42,
    43, 46, 50, 52, 54, 57, 59, 64, 69, 70, 71, 76, 81, 82, 83, 84, 85, 86, 87,
    92, 96, 97, 98, 99, 104, 105, 106, 107, 111, 112, 113, 114, 115, 116, 118,
    121, 122, 125, 127, 128, 130, 131, 133, 134, 146, 178, 182, 207, 245, 298,
    299, 310, 317, 318, 320,
]


def _silu(x):
    return x * jax.nn.sigmoid(x)


def _mm_t(a, w):
    """a @ w.T (weights stored PyTorch-style as (out, in)); f32 MXU accumulate."""
    return lax.dot_general(a, w, (((1,), (1,)), ((), ())),
                           preferred_element_type=jnp.float32)


# ----------------------------------------------------------------------------
# static channel packing: permute covered channels so channels sharing an MLP
# are contiguous, pad each MLP's run to a multiple of SUB_BLOCK channels.
# Padding slots point at an appended all-zero channel (bias-free MLP(0) == 0),
# which also gives uncovered channels their required zero output for free.
# ----------------------------------------------------------------------------
def build_packing(enc_in, sub_block=8, sub_blocks_per_step=8):
    n_groups = len(ELEMENTS_TO_REMOVE)
    n_single = len(ELEMENTS_TO_REMOVE1)
    n_mlps = n_groups + n_single

    # last-write-wins channel -> MLP map (matches the sequential writes in
    # the PyTorch forward: groups first, then singles)
    chan2mlp = {}
    for j, grp in enumerate(ELEMENTS_TO_REMOVE):
        for ch in grp:
            if ch < enc_in:
                chan2mlp[ch] = j
    for k, ch in enumerate(ELEMENTS_TO_REMOVE1):
        if ch < enc_in:
            chan2mlp[ch] = n_groups + k

    mlp_channels = [[] for _ in range(n_mlps)]
    for ch in sorted(chan2mlp):
        mlp_channels[chan2mlp[ch]].append(ch)

    zero_chan = enc_in  # sentinel -> appended all-zero channel
    slot_to_chan, subblock_mlp = [], []
    for m in range(n_mlps):
        chans = mlp_channels[m]
        if not chans:
            continue
        n_sub = -(-len(chans) // sub_block)
        padded = chans + [zero_chan] * (n_sub * sub_block - len(chans))
        slot_to_chan.extend(padded)
        subblock_mlp.extend([m] * n_sub)

    # guarantee at least one padding slot (needed for uncovered channels)
    if zero_chan not in slot_to_chan:
        slot_to_chan.extend([zero_chan] * sub_block)
        subblock_mlp.append(0)
    # pad sub-block count to a multiple of the per-grid-step chunk size
    while len(subblock_mlp) % sub_blocks_per_step != 0:
        slot_to_chan.extend([zero_chan] * sub_block)
        subblock_mlp.append(0)

    slot_to_chan = np.asarray(slot_to_chan, np.int32)
    subblock_mlp = np.asarray(subblock_mlp, np.int32)

    pad_slot = int(np.argmax(slot_to_chan == zero_chan))
    chan_to_slot = np.full((enc_in,), pad_slot, np.int32)
    for slot, ch in enumerate(slot_to_chan):
        if ch < enc_in:
            chan_to_slot[ch] = slot

    chan_map_full = np.zeros((enc_in,), np.int32)
    covered = np.zeros((enc_in,), np.float32)
    for ch, m in chan2mlp.items():
        chan_map_full[ch] = m
        covered[ch] = 1.0

    return dict(
        n_mlps=n_mlps,
        slot_to_chan=slot_to_chan,
        subblock_mlp=subblock_mlp,
        chan_to_slot=chan_to_slot,
        chan_map_full=chan_map_full,
        covered=covered,
        sub_block=sub_block,
        sub_blocks_per_step=sub_blocks_per_step,
    )


# ----------------------------------------------------------------------------
# Pallas kernel 1: fused per-channel predict MLPs on the packed layout.
#   grid = (n_sources, n_chunks); each step handles KB sub-blocks of SB
#   channels (SB*B rows each).  Weight tables for ALL sources stay resident in
#   VMEM; the sub-block -> MLP map is scalar-prefetched into SMEM.
# ----------------------------------------------------------------------------
def _predict_kernel(meta_ref, x_ref, w0_ref, w1_ref, w2_ref, w3_ref, o_ref,
                    *, kb, sbb, n_mlps):
    src = pl.program_id(0)
    chunk = pl.program_id(1)
    base = src * n_mlps
    for t in range(kb):                              # static, unrolled
        m = base + meta_ref[chunk * kb + t]          # MLP id for this sub-block
        r0 = t * sbb
        x = x_ref[0, r0:r0 + sbb, :]                 # (sbb, S)
        h = _mm_t(x, w0_ref[m])                      # (sbb, D)   Linear(S, D)
        u = _silu(_mm_t(h, w1_ref[m]))               # (sbb, 2D)  ResBlock.linear1+SiLU
        r = _silu(h + _mm_t(u, w2_ref[m]))           # (sbb, D)   linear2 + skip, SiLU
        o_ref[0, r0:r0 + sbb, :] = _mm_t(r, w3_ref[m])   # (sbb, P)  Linear(D, P)


def predict_packed(xp, subblock_mlp, w0_all, w1_all, w2_all, w3_all,
                   *, kb, sbb, n_mlps):
    n_src, n_rows, S = xp.shape
    nm_all, D, _ = w0_all.shape
    P = w3_all.shape[1]
    rb = kb * sbb
    n_chunks = n_rows // rb

    kern = functools.partial(_predict_kernel, kb=kb, sbb=sbb, n_mlps=n_mlps)
    grid_spec = pltpu.PrefetchScalarGridSpec(
        num_scalar_prefetch=1,
        grid=(n_src, n_chunks),
        in_specs=[
            pl.BlockSpec((1, rb, S), lambda s, c, meta: (s, c, 0)),
            # full weight tables: VMEM-resident, fetched once (constant index)
            pl.BlockSpec((nm_all, D, S), lambda s, c, meta: (0, 0, 0)),
            pl.BlockSpec((nm_all, 2 * D, D), lambda s, c, meta: (0, 0, 0)),
            pl.BlockSpec((nm_all, D, 2 * D), lambda s, c, meta: (0, 0, 0)),
            pl.BlockSpec((nm_all, P, D), lambda s, c, meta: (0, 0, 0)),
        ],
        out_specs=pl.BlockSpec((1, rb, P), lambda s, c, meta: (s, c, 0)),
    )
    return pl.pallas_call(
        kern,
        grid_spec=grid_spec,
        out_shape=jax.ShapeDtypeStruct((n_src, n_rows, P), jnp.float32),
        compiler_params=pltpu.CompilerParams(
            dimension_semantics=("parallel", "parallel")),
    )(subblock_mlp, xp, w0_all, w1_all, w2_all, w3_all)


# ----------------------------------------------------------------------------
# Pallas kernel 2: dense channel-mixing MLPs (channel_layer), one call for all
# C layers via grid=(C,).
#   enc_in -> 2*enc_in -> (ResidualBlock over 2*enc_in) -> SiLU -> enc_in
# ----------------------------------------------------------------------------
def _channel_kernel(x_ref, w0_ref, w1_ref, w2_ref, w3_ref, o_ref):
    x = x_ref[...]                              # (N, E)
    h = _mm_t(x, w0_ref[0])                     # (N, 2E)
    u = _silu(_mm_t(h, w1_ref[0]))              # (N, 4E)
    r = _silu(h + _mm_t(u, w2_ref[0]))          # (N, 2E)
    o_ref[0] = _mm_t(r, w3_ref[0])              # (N, E)


def channel_mix_all(x_ne, cw0, cw1, cw2, cw3):
    C = cw0.shape[0]
    N, E = x_ne.shape
    return pl.pallas_call(
        _channel_kernel,
        grid=(C,),
        in_specs=[
            pl.BlockSpec((N, E), lambda c: (0, 0)),
            pl.BlockSpec((1, 2 * E, E), lambda c: (c, 0, 0)),
            pl.BlockSpec((1, 4 * E, 2 * E), lambda c: (c, 0, 0)),
            pl.BlockSpec((1, 2 * E, 4 * E), lambda c: (c, 0, 0)),
            pl.BlockSpec((1, E, 2 * E), lambda c: (c, 0, 0)),
        ],
        out_specs=pl.BlockSpec((1, N, E), lambda c: (c, 0, 0)),
        out_shape=jax.ShapeDtypeStruct((C, N, E), jnp.float32),
        compiler_params=pltpu.CompilerParams(
            dimension_semantics=("parallel",),
            # modest limit (weights ~8 MB double-buffered); leaves headroom on
            # every generation, incl. v7x's 64 MiB physical VMEM.
            vmem_limit_bytes=32 * 1024 * 1024),
    )(x_ne, cw0, cw1, cw2, cw3)


# ----------------------------------------------------------------------------
# full forward (glue in plain JAX, hot paths in the kernels above)
# ----------------------------------------------------------------------------
def model_forward(x, params):
    B, S, E = x.shape
    pk = params["packing"]
    sb = pk["sub_block"]
    kb = pk["sub_blocks_per_step"]
    n_mlps = pk["n_mlps"]
    sbb = sb * B
    C = params["c_layers"]

    slot_to_chan = params["slot_to_chan"]       # (n_slots,)
    chan_to_slot = params["chan_to_slot"]       # (E,)
    subblock_mlp = params["subblock_mlp"]       # (n_subblocks,)
    n_slots = int(slot_to_chan.shape[0])

    seq_last = x[:, -1:, :]                     # (B, 1, E)
    x0 = x - seq_last                           # (B, S, E)

    # fused channel-mixing MLPs (one pallas_call, grid over the C layers)
    if C > 0:
        cw0, cw1, cw2, cw3 = params["cw"]
        xc_all = channel_mix_all(x0.reshape(B * S, E), cw0, cw1, cw2, cw3)

    # static channel permutation / packing (drops uncovered channels, appends
    # a zero channel for padding slots)
    zero_col = jnp.zeros((1, B, S), x.dtype)

    def pack(xbse):                             # (B,S,E) -> (n_slots*B, S)
        xt = jnp.transpose(xbse, (2, 0, 1))     # (E, B, S)
        xt = jnp.concatenate([xt, zero_col], axis=0)
        return xt[slot_to_chan].reshape(-1, S)

    sources = [pack(x0)]
    for i in range(C):
        sources.append(pack(xc_all[i].reshape(B, S, E)))
    xp = jnp.stack(sources, axis=0)             # (1+C, n_slots*B, S)

    # one fused predict pallas_call for all sources and all channels
    w0a, w1a, w2a, w3a = params["pw"]
    y_packed = predict_packed(xp, subblock_mlp, w0a, w1a, w2a, w3a,
                              kb=kb, sbb=sbb, n_mlps=n_mlps)  # (1+C, rows, P)
    P = y_packed.shape[-1]

    if C > 0:
        y = (y_packed[0] + jnp.mean(y_packed[1:], axis=0)) * 0.5
    else:
        y = y_packed[0] * 0.5

    # un-pack: covered channels pull their slot, uncovered channels pull an
    # all-zero padding slot (replaces the old `y * covered` mask)
    y = y.reshape(n_slots, B, P)[chan_to_slot]  # (E, B, P)
    y = jnp.transpose(y, (1, 2, 0))             # (B, P, E)
    return y + seq_last


# ----------------------------------------------------------------------------
# pure-JAX reference (for verification; mirrors the PyTorch forward)
# ----------------------------------------------------------------------------
def ref_forward(x, params):
    B, S, E = x.shape
    C = params["c_layers"]
    n_mlps = params["packing"]["n_mlps"]
    cm = params["chan_map_full"]
    cov = params["covered"]
    w0a, w1a, w2a, w3a = params["pw"]

    seq_last = x[:, -1:, :]
    x0 = x - seq_last
    x_ebs = jnp.transpose(x0, (2, 0, 1))        # (E, B, S)

    def predict_ref(xe, s):
        w0 = w0a[s * n_mlps + cm]
        w1 = w1a[s * n_mlps + cm]
        w2 = w2a[s * n_mlps + cm]
        w3 = w3a[s * n_mlps + cm]
        h = jnp.einsum("ebs,eds->ebd", xe, w0)
        t = _silu(jnp.einsum("ebd,efd->ebf", h, w1))
        r = _silu(h + jnp.einsum("ebf,edf->ebd", t, w2))
        return jnp.einsum("ebd,epd->ebp", r, w3)

    y = predict_ref(x_ebs, 0)
    if C > 0:
        cw0, cw1, cw2, cw3 = params["cw"]
        for i in range(C):
            h = x0 @ cw0[i].T
            t = _silu(h @ cw1[i].T)
            r = _silu(h + t @ cw2[i].T)
            xc = r @ cw3[i].T                   # (B, S, E)
            y = y + predict_ref(jnp.transpose(xc, (2, 0, 1)), 1 + i) / C
    y = y * 0.5
    y = y * cov[:, None, None]                  # uncovered channels stay 0
    return jnp.transpose(y, (1, 2, 0)) + seq_last


# ----------------------------------------------------------------------------
# deterministic parameter construction
# ----------------------------------------------------------------------------
def build_params(key, *, enc_in, seq_len, pred_len, d_model, c_layers,
                 sub_block=8, sub_blocks_per_step=8):
    E, S, P, D, C = enc_in, seq_len, pred_len, d_model, c_layers
    pk = build_packing(E, sub_block, sub_blocks_per_step)
    n_mlps = pk["n_mlps"]
    n_src = 1 + C

    def uinit(k, shape, fan_in):
        bound = 1.0 / np.sqrt(fan_in)
        return jax.random.uniform(k, shape, jnp.float32, -bound, bound)

    keys = jax.random.split(key, 4 * n_src + max(4 * C, 1))
    ki = 0
    w0l, w1l, w2l, w3l = [], [], [], []
    for _ in range(n_src):
        w0l.append(uinit(keys[ki + 0], (n_mlps, D, S), S))
        w1l.append(uinit(keys[ki + 1], (n_mlps, 2 * D, D), D))
        w2l.append(uinit(keys[ki + 2], (n_mlps, D, 2 * D), 2 * D))
        w3l.append(uinit(keys[ki + 3], (n_mlps, P, D), D))
        ki += 4
    pw = (jnp.concatenate(w0l, 0), jnp.concatenate(w1l, 0),
          jnp.concatenate(w2l, 0), jnp.concatenate(w3l, 0))

    if C > 0:
        cw0l, cw1l, cw2l, cw3l = [], [], [], []
        for _ in range(C):
            cw0l.append(uinit(keys[ki + 0], (1, 2 * E, E), E))
            cw1l.append(uinit(keys[ki + 1], (1, 4 * E, 2 * E), 2 * E))
            cw2l.append(uinit(keys[ki + 2], (1, 2 * E, 4 * E), 4 * E))
            cw3l.append(uinit(keys[ki + 3], (1, E, 2 * E), 2 * E))
            ki += 4
        cw = (jnp.concatenate(cw0l, 0), jnp.concatenate(cw1l, 0),
              jnp.concatenate(cw2l, 0), jnp.concatenate(cw3l, 0))
    else:
        cw = (jnp.zeros((0, 2 * E, E), jnp.float32),
              jnp.zeros((0, 4 * E, 2 * E), jnp.float32),
              jnp.zeros((0, 2 * E, 4 * E), jnp.float32),
              jnp.zeros((0, E, 2 * E), jnp.float32))

    return {
        "packing": pk,
        "slot_to_chan": jnp.asarray(pk["slot_to_chan"]),
        "chan_to_slot": jnp.asarray(pk["chan_to_slot"]),
        "subblock_mlp": jnp.asarray(pk["subblock_mlp"]),
        "chan_map_full": jnp.asarray(pk["chan_map_full"]),
        "covered": jnp.asarray(pk["covered"]),
        "pw": pw,
        "cw": cw,
        "c_layers": C,
    }


if __name__ == "__main__":
    # small config consistent with the module (enc_in must cover index 320)
    B, S, P, D, C = 2, 32, 8, 32, 1
    E = 321

    key = jax.random.PRNGKey(0)
    kx, kp = jax.random.split(key)
    x = jax.random.normal(kx, (B, S, E), jnp.float32)
    params = build_params(kp, enc_in=E, seq_len=S, pred_len=P, d_model=D,
                          c_layers=C)

    out = jax.block_until_ready(model_forward(x, params))
    assert out.shape == (B, P, E), out.shape

    ref = jax.block_until_ready(ref_forward(x, params))
    np.testing.assert_allclose(np.asarray(out), np.asarray(ref),
                               rtol=1e-2, atol=1e-2)
    print("KERNEL_OK")
</pallas_src>

<mosaic_0001>
module attributes {stable_mosaic.version = 11 : i64} {
  func.func @_channel_kernel(%arg0: i32, %arg1: memref<64x321xf32, #tpu.memory_space<vmem>>, %arg2: memref<1x642x321xf32, #tpu.memory_space<vmem>>, %arg3: memref<1x1284x642xf32, #tpu.memory_space<vmem>>, %arg4: memref<1x642x1284xf32, #tpu.memory_space<vmem>>, %arg5: memref<1x321x642xf32, #tpu.memory_space<vmem>>, %arg6: memref<1x64x321xf32, #tpu.memory_space<vmem>>) attributes {dimension_semantics = [#tpu.dimension_semantics<parallel>], iteration_bounds = array<i64: 1>, scalar_prefetch = 0 : i64, scratch_operands = 0 : i64, tpu.core_type = #tpu.core_type<tc>, window_params = [{pipeline_mode = #tpu.pipeline_mode<synchronous>, transform_indices = @transform_0, window_bounds = array<i64: 64, 321>}, {transform_indices = @transform_1, window_bounds = array<i64: 1, 642, 321>}, {transform_indices = @transform_2, window_bounds = array<i64: 1, 1284, 642>}, {transform_indices = @transform_3, window_bounds = array<i64: 1, 642, 1284>}, {transform_indices = @transform_4, window_bounds = array<i64: 1, 321, 642>}, {transform_indices = @transform_5, window_bounds = array<i64: 1, 64, 321>}]} {
    %c0 = arith.constant 0 : index
    %c0_0 = arith.constant 0 : index
    %0 = vector.load %arg1[%c0, %c0_0] : memref<64x321xf32, #tpu.memory_space<vmem>>, vector<64x321xf32>
    %c0_1 = arith.constant 0 : index
    %c0_2 = arith.constant 0 : index
    %c0_3 = arith.constant 0 : index
    %1 = vector.load %arg2[%c0_1, %c0_2, %c0_3] : memref<1x642x321xf32, #tpu.memory_space<vmem>>, vector<1x642x321xf32>
    %2 = vector.shape_cast %1 : vector<1x642x321xf32> to vector<642x321xf32>
    %cst = arith.constant dense<0.000000e+00> : vector<64x642xf32>
    %3 = tpu.matmul %0, %2, %cst {dimension_numbers = #tpu.dot_dimension_numbers<[1], [1], [0], [0], [0, 0, 1, 0], [], []>} : vector<64x321xf32>, vector<642x321xf32>, vector<64x642xf32> -> vector<64x642xf32>
    %c0_4 = arith.constant 0 : index
    %c0_5 = arith.constant 0 : index
    %c0_6 = arith.constant 0 : index
    %4 = vector.load %arg3[%c0_4, %c0_5, %c0_6] : memref<1x1284x642xf32, #tpu.memory_space<vmem>>, vector<1x1284x642xf32>
    %5 = vector.shape_cast %4 : vector<1x1284x642xf32> to vector<1284x642xf32>
    %cst_7 = arith.constant dense<0.000000e+00> : vector<64x1284xf32>
    %6 = tpu.matmul %3, %5, %cst_7 {dimension_numbers = #tpu.dot_dimension_numbers<[1], [1], [0], [0], [0, 0, 1, 0], [], []>} : vector<64x642xf32>, vector<1284x642xf32>, vector<64x1284xf32> -> vector<64x1284xf32>
    %7 = arith.negf %6 : vector<64x1284xf32>
    %8 = math.exp %7 : vector<64x1284xf32>
    %cst_8 = arith.constant 1.000000e+00 : f32
    %9 = vector.broadcast %cst_8 : f32 to vector<64x1284xf32>
    %10 = arith.addf %9, %8 : vector<64x1284xf32>
    %11 = arith.divf %9, %10 : vector<64x1284xf32>
    %12 = arith.mulf %6, %11 : vector<64x1284xf32>
    %c0_9 = arith.constant 0 : index
    %c0_10 = arith.constant 0 : index
    %c0_11 = arith.constant 0 : index
    %13 = vector.load %arg4[%c0_9, %c0_10, %c0_11] : memref<1x642x1284xf32, #tpu.memory_space<vmem>>, vector<1x642x1284xf32>
    %14 = vector.shape_cast %13 : vector<1x642x1284xf32> to vector<642x1284xf32>
    %cst_12 = arith.constant dense<0.000000e+00> : vector<64x642xf32>
    %15 = tpu.matmul %12, %14, %cst_12 {dimension_numbers = #tpu.dot_dimension_numbers<[1], [1], [0], [0], [0, 0, 1, 0], [], []>} : vector<64x1284xf32>, vector<642x1284xf32>, vector<64x642xf32> -> vector<64x642xf32>
    %16 = arith.addf %3, %15 : vector<64x642xf32>
    %17 = arith.negf %16 : vector<64x642xf32>
    %18 = math.exp %17 : vector<64x642xf32>
    %cst_13 = arith.constant 1.000000e+00 : f32
    %19 = vector.broadcast %cst_13 : f32 to vector<64x642xf32>
    %20 = arith.addf %19, %18 : vector<64x642xf32>
    %21 = arith.divf %19, %20 : vector<64x642xf32>
    %22 = arith.mulf %16, %21 : vector<64x642xf32>
    %c0_14 = arith.constant 0 : index
    %c0_15 = arith.constant 0 : index
    %c0_16 = arith.constant 0 : index
    %23 = vector.load %arg5[%c0_14, %c0_15, %c0_16] : memref<1x321x642xf32, #tpu.memory_space<vmem>>, vector<1x321x642xf32>
    %24 = vector.shape_cast %23 : vector<1x321x642xf32> to vector<321x642xf32>
    %cst_17 = arith.constant dense<0.000000e+00> : vector<64x321xf32>
    %25 = tpu.matmul %22, %24, %cst_17 {dimension_numbers = #tpu.dot_dimension_numbers<[1], [1], [0], [0], [0, 0, 1, 0], [], []>} : vector<64x642xf32>, vector<321x642xf32>, vector<64x321xf32> -> vector<64x321xf32>
    %c0_18 = arith.constant 0 : index
    %c0_19 = arith.constant 0 : index
    %c0_20 = arith.constant 0 : index
    %26 = vector.load %arg6[%c0_18, %c0_19, %c0_20] : memref<1x64x321xf32, #tpu.memory_space<vmem>>, vector<1x64x321xf32>
    %27 = vector.shape_cast %26 : vector<1x64x321xf32> to vector<64x321xf32>
    %28 = vector.shape_cast %25 : vector<64x321xf32> to vector<1x64x321xf32>
    tpu.vector_store %arg6[%c0_18, %c0_19, %c0_20], %28 {strides = array<i32>} : memref<1x64x321xf32, #tpu.memory_space<vmem>>, vector<1x64x321xf32>,
    return
  }
  func.func @transform_0(%arg0: i32) -> (i32, i32) {
    %c0_i32 = arith.constant 0 : i32
    %c0_i32_0 = arith.constant 0 : i32
    %c0_i32_1 = arith.constant 0 : i32
    return %c0_i32, %c0_i32_0 : i32, i32
  }
  func.func @transform_1(%arg0: i32) -> (i32, i32, i32) {
    %c0_i32 = arith.constant 0 : i32
    %c0_i32_0 = arith.constant 0 : i32
    %c0_i32_1 = arith.constant 0 : i32
    return %arg0, %c0_i32, %c0_i32_0 : i32, i32, i32
  }
  func.func @transform_2(%arg0: i32) -> (i32, i32, i32) {
    %c0_i32 = arith.constant 0 : i32
    %c0_i32_0 = arith.constant 0 : i32
    %c0_i32_1 = arith.constant 0 : i32
    return %arg0, %c0_i32, %c0_i32_0 : i32, i32, i32
  }
  func.func @transform_3(%arg0: i32) -> (i32, i32, i32) {
    %c0_i32 = arith.constant 0 : i32
    %c0_i32_0 = arith.constant 0 : i32
    %c0_i32_1 = arith.constant 0 : i32
    return %arg0, %c0_i32, %c0_i32_0 : i32, i32, i32
  }
  func.func @transform_4(%arg0: i32) -> (i32, i32, i32) {
    %c0_i32 = arith.constant 0 : i32
    %c0_i32_0 = arith.constant 0 : i32
    %c0_i32_1 = arith.constant 0 : i32
    return %arg0, %c0_i32, %c0_i32_0 : i32, i32, i32
  }
  func.func @transform_5(%arg0: i32) -> (i32, i32, i32) {
    %c0_i32 = arith.constant 0 : i32
    %c0_i32_0 = arith.constant 0 : i32
    %c0_i32_1 = arith.constant 0 : i32
    return %arg0, %c0_i32, %c0_i32_0 : i32, i32, i32
  }
}

</mosaic_0001>

<llo_original>
// kernel: tpu_custom_call.1
$region0: #{tpu_custom_call.1}
  #allocation0 [shape = 'u32[]', space=smem, size = 0x4, offset = 0x4, fixed_abs, tag = 'smem constant byte address 0x4 - core index']
  #allocation1 [shape = 'u32[144,128]{1,0:T(1,128)}', space=vmem, size = 0x12000, scoped, tag = 'internal scratch']
  %s0 = inlined_call_operand.vmem [shape: f32[64,321], index: 0, kind: input, shape index: {}]
  %s1 = inlined_call_operand.vmem [shape: f32[1,642,321], index: 1, kind: input, shape index: {}]
  %s2 = inlined_call_operand.vmem [shape: f32[1,1284,642], index: 2, kind: input, shape index: {}]
  %s3 = inlined_call_operand.vmem [shape: f32[1,642,1284], index: 3, kind: input, shape index: {}]
  %s4 = inlined_call_operand.vmem [shape: f32[1,321,642], index: 4, kind: input, shape index: {}]
  %s5 = inlined_call_operand.hbm [shape: f32[1,64,321], index: 5, kind: output, shape index: {}]
  %s6 = sld [smem:[#allocation0]]
  $region30: #{tpu_custom_call.1} parent=0
    _
  %s8 = ssub.s32 1, %s6
  %s9 = scalar_select 0, %s8, %s6
  $region1: #{tpu_custom_call.1} parent=0
    #allocation2 [shape = 'u8[98304]{0}', space=vmem, size = 0x18000, scoped, tag = 'output window, operand 0, single buffered']
    #allocation3 [shape = 's32[1]{0}', space=sflag, size = 0x4, scoped, tag = 'scoped memory for tpu_custom_call.1']
    %10 = vsyncpa [#allocation3], 0
    // Predicated region
    $region2: #{tpu_custom_call.1} parent=1 // pred_check
      _
    $region3: #{tpu_custom_call.1} parent=1 // pred_check_branch
      %12 = sbr.rel (0) target = $region5
    $region4: #{tpu_custom_call.1} parent=1 // pred_region
      _
    $region5: #{tpu_custom_call.1} parent=1 // pred_fallthru
      _
    // Predicated region
    $region6: #{tpu_custom_call.1} parent=1 // pred_check
      _
    $region7: #{tpu_custom_call.1} parent=1 // pred_check_branch
      %14 = sbr.rel (0) target = $region9
    $region8: #{tpu_custom_call.1} parent=1 // pred_region
      _
    $region9: #{tpu_custom_call.1} parent=1 // pred_fallthru
      _
    // Predicated region
    $region10: #{tpu_custom_call.1} parent=1 // pred_check
      _
    $region11: #{tpu_custom_call.1} parent=1 // pred_check_branch
      %16 = sbr.rel (0) target = $region13
    $region12: #{tpu_custom_call.1} parent=1 // pred_region
      _
    $region13: #{tpu_custom_call.1} parent=1 // pred_fallthru
      _
    // Predicated region
    $region14: #{tpu_custom_call.1} parent=1 // pred_check
      _
    $region15: #{tpu_custom_call.1} parent=1 // pred_check_branch
      %18 = sbr.rel (0) target = $region17
    $region16: #{tpu_custom_call.1} parent=1 // pred_region
      _
    $region17: #{tpu_custom_call.1} parent=1 // pred_fallthru
      _
    // Predicated region
    $region18: #{tpu_custom_call.1} parent=1 // pred_check
      _
    $region19: #{tpu_custom_call.1} parent=1 // pred_check_branch
      %20 = sbr.rel (0) target = $region21
    $region20: #{tpu_custom_call.1} parent=1 // pred_region
      _
    $region21: #{tpu_custom_call.1} parent=1 // pred_fallthru
      _
    %v21 = vld [vmem:[%s0] sm:$0xff]
    %v22 = vld [vmem:[%s0 + $0x8] sm:$0xff]
    %v23 = vld [vmem:[%s0 + $0x10] sm:$0xff]
    %v24 = vld [vmem:[%s0 + $0x18] sm:$0xff]
    %v25 = vld [vmem:[%s0 + $0x20] sm:$0xff]
    %v26 = vld [vmem:[%s0 + $0x28] sm:$0xff]
    %v27 = vld [vmem:[%s0 + $0x30] sm:$0xff]
    %v28 = vld [vmem:[%s0 + $0x38] sm:$0xff]
    %v29 = vld [vmem:[%s0 + $0x40] sm:$0xff]
    %v30 = vld [vmem:[%s0 + $0x48] sm:$0xff]
    %v31 = vld [vmem:[%s0 + $0x50] sm:$0xff]
    %v32 = vld [vmem:[%s0 + $0x58] sm:$0xff]
    %v33 = vld [vmem:[%s0 + $0x60] sm:$0xff]
    %v34 = vld [vmem:[%s0 + $0x68] sm:$0xff]
    %v35 = vld [vmem:[%s0 + $0x70] sm:$0xff]
    %v36 = vld [vmem:[%s0 + $0x78] sm:$0xff]
    %v37 = vld [vmem:[%s0 + $0x80] sm:$0xff]
    %v38 = vld [vmem:[%s0 + $0x88] sm:$0xff]
    %v39 = vld [vmem:[%s0 + $0x90] sm:$0xff]
    %v40 = vld [vmem:[%s0 + $0x98] sm:$0xff]
    %v41 = vld [vmem:[%s0 + $0xa0] sm:$0xff]
    %v42 = vld [vmem:[%s0 + $0xa8] sm:$0xff]
    %v43 = vld [vmem:[%s0 + $0xb0] sm:$0xff]
    %v44 = vld [vmem:[%s0 + $0xb8] sm:$0xff]
    %v45 = vld [vmem:[%s1] sm:$0xff]
    %v46 = vld [vmem:[%s1 + $0x8] sm:$0xff]
    %v47 = vld [vmem:[%s1 + $0x10] sm:$0xff]
    %v48 = vld [vmem:[%s1 + $0x18] sm:$0xff]
    %v49 = vld [vmem:[%s1 + $0x20] sm:$0xff]
    %v50 = vld [vmem:[%s1 + $0x28] sm:$0xff]
    %v51 = vld [vmem:[%s1 + $0x30] sm:$0xff]
    %v52 = vld [vmem:[%s1 + $0x38] sm:$0xff]
    %v53 = vld [vmem:[%s1 + $0x40] sm:$0xff]
    %v54 = vld [vmem:[%s1 + $0x48] sm:$0xff]
    %v55 = vld [vmem:[%s1 + $0x50] sm:$0xff]
    %v56 = vld [vmem:[%s1 + $0x58] sm:$0xff]
    %v57 = vld [vmem:[%s1 + $0x60] sm:$0xff]
    %v58 = vld [vmem:[%s1 + $0x68] sm:$0xff]
    %v59 = vld [vmem:[%s1 + $0x70] sm:$0xff]
    %v60 = vld [vmem:[%s1 + $0x78] sm:$0xff]
    %v61 = vld [vmem:[%s1 + $0x80] sm:$0xff]
    %v62 = vld [vmem:[%s1 + $0x88] sm:$0xff]
    %v63 = vld [vmem:[%s1 + $0x90] sm:$0xff]
    %v64 = vld [vmem:[%s1 + $0x98] sm:$0xff]
    %v65 = vld [vmem:[%s1 + $0xa0] sm:$0xff]
    %v66 = vld [vmem:[%s1 + $0xa8] sm:$0xff]
    %v67 = vld [vmem:[%s1 + $0xb0] sm:$0xff]
    %v68 = vld [vmem:[%s1 + $0xb8] sm:$0xff]
    %v69 = vld [vmem:[%s1 + $0xc0] sm:$0xff]
    %v70 = vld [vmem:[%s1 + $0xc8] sm:$0xff]
    %v71 = vld [vmem:[%s1 + $0xd0] sm:$0xff]
    %v72 = vld [vmem:[%s1 + $0xd8] sm:$0xff]
    %v73 = vld [vmem:[%s1 + $0xe0] sm:$0xff]
    %v74 = vld [vmem:[%s1 + $0xe8] sm:$0xff]
    %v75 = vld [vmem:[%s1 + $0xf0] sm:$0xff]
    %v76 = vld [vmem:[%s1 + $0xf8] sm:$0xff]
    %v77 = vld [vmem:[%s1 + $0x100] sm:$0xff]
    %v78 = vld [vmem:[%s1 + $0x108] sm:$0xff]
    %v79 = vld [vmem:[%s1 + $0x110] sm:$0xff]
    %v80 = vld [vmem:[%s1 + $0x118] sm:$0xff]
    %v81 = vld [vmem:[%s1 + $0x120] sm:$0xff]
    %v82 = vld [vmem:[%s1 + $0x128] sm:$0xff]
    %v83 = vld [vmem:[%s1 + $0x130] sm:$0xff]
    %v84 = vld [vmem:[%s1 + $0x138] sm:$0xff]
    %v85 = vld [vmem:[%s1 + $0x140] sm:$0xff]
    %v86 = vld [vmem:[%s1 + $0x148] sm:$0xff]
    %v87 = vld [vmem:[%s1 + $0x150] sm:$0xff]
    %v88 = vld [vmem:[%s1 + $0x158] sm:$0xff]
    %v89 = vld [vmem:[%s1 + $0x160] sm:$0xff]
    %v90 = vld [vmem:[%s1 + $0x168] sm:$0xff]
    %v91 = vld [vmem:[%s1 + $0x170] sm:$0xff]
    %v92 = vld [vmem:[%s1 + $0x178] sm:$0xff]
    %v93 = vld [vmem:[%s1 + $0x180] sm:$0xff]
    %v94 = vld [vmem:[%s1 + $0x188] sm:$0xff]
    %v95 = vld [vmem:[%s1 + $0x190] sm:$0xff]
    %v96 = vld [vmem:[%s1 + $0x198] sm:$0xff]
    %v97 = vld [vmem:[%s1 + $0x1a0] sm:$0xff]
    %v98 = vld [vmem:[%s1 + $0x1a8] sm:$0xff]
    %v99 = vld [vmem:[%s1 + $0x1b0] sm:$0xff]
    %v100 = vld [vmem:[%s1 + $0x1b8] sm:$0xff]
    %v101 = vld [vmem:[%s1 + $0x1c0] sm:$0xff]
    %v102 = vld [vmem:[%s1 + $0x1c8] sm:$0xff]
    %v103 = vld [vmem:[%s1 + $0x1d0] sm:$0xff]
    %v104 = vld [vmem:[%s1 + $0x1d8] sm:$0xff]
    %v105 = vld [vmem:[%s1 + $0x1e0] sm:$0xff]
    %v106 = vld [vmem:[%s1 + $0x1e8] sm:$0xff]
    %v107 = vld [vmem:[%s1 + $0x1f0] sm:$0xff]
    %v108 = vld [vmem:[%s1 + $0x1f8] sm:$0xff]
    %v109 = vld [vmem:[%s1 + $0x200] sm:$0xff]
    %v110 = vld [vmem:[%s1 + $0x208] sm:$0xff]
    %v111 = vld [vmem:[%s1 + $0x210] sm:$0xff]
    %v112 = vld [vmem:[%s1 + $0x218] sm:$0xff]
    %v113 = vld [vmem:[%s1 + $0x220] sm:$0xff]
    %v114 = vld [vmem:[%s1 + $0x228] sm:$0xff]
    %v115 = vld [vmem:[%s1 + $0x230] sm:$0xff]
    %v116 = vld [vmem:[%s1 + $0x238] sm:$0xff]
    %v117 = vld [vmem:[%s1 + $0x240] sm:$0xff]
    %v118 = vld [vmem:[%s1 + $0x248] sm:$0xff]
    %v119 = vld [vmem:[%s1 + $0x250] sm:$0xff]
    %v120 = vld [vmem:[%s1 + $0x258] sm:$0xff]
    %v121 = vld [vmem:[%s1 + $0x260] sm:$0xff]
    %v122 = vld [vmem:[%s1 + $0x268] sm:$0xff]
    %v123 = vld [vmem:[%s1 + $0x270] sm:$0xff]
    %v124 = vld [vmem:[%s1 + $0x278] sm:$0xff]
    %v125 = vld [vmem:[%s1 + $0x280] sm:$0xff]
    %v126 = vld [vmem:[%s1 + $0x288] sm:$0xff]
    %v127 = vld [vmem:[%s1 + $0x290] sm:$0xff]
    %v128 = vld [vmem:[%s1 + $0x298] sm:$0xff]
    %v129 = vld [vmem:[%s1 + $0x2a0] sm:$0xff]
    %v130 = vld [vmem:[%s1 + $0x2a8] sm:$0xff]
    %v131 = vld [vmem:[%s1 + $0x2b0] sm:$0xff]
    %v132 = vld [vmem:[%s1 + $0x2b8] sm:$0xff]
    %v133 = vld [vmem:[%s1 + $0x2c0] sm:$0xff]
    %v134 = vld [vmem:[%s1 + $0x2c8] sm:$0xff]
    %v135 = vld [vmem:[%s1 + $0x2d0] sm:$0xff]
    %v136 = vld [vmem:[%s1 + $0x2d8] sm:$0xff]
    %v137 = vld [vmem:[%s1 + $0x2e0] sm:$0xff]
    %v138 = vld [vmem:[%s1 + $0x2e8] sm:$0xff]
    %v139 = vld [vmem:[%s1 + $0x2f0] sm:$0xff]
    %v140 = vld [vmem:[%s1 + $0x2f8] sm:$0xff]
    %v141 = vld [vmem:[%s1 + $0x300] sm:$0xff]
    %v142 = vld [vmem:[%s1 + $0x308] sm:$0xff]
    %v143 = vld [vmem:[%s1 + $0x310] sm:$0xff]
    %v144 = vld [vmem:[%s1 + $0x318] sm:$0xff]
    %v145 = vld [vmem:[%s1 + $0x320] sm:$0xff]
    %v146 = vld [vmem:[%s1 + $0x328] sm:$0xff]
    %v147 = vld [vmem:[%s1 + $0x330] sm:$0xff]
    %v148 = vld [vmem:[%s1 + $0x338] sm:$0xff]
    %v149 = vld [vmem:[%s1 + $0x340] sm:$0xff]
    %v150 = vld [vmem:[%s1 + $0x348] sm:$0xff]
    %v151 = vld [vmem:[%s1 + $0x350] sm:$0xff]
    %v152 = vld [vmem:[%s1 + $0x358] sm:$0xff]
    %v153 = vld [vmem:[%s1 + $0x360] sm:$0xff]
    %v154 = vld [vmem:[%s1 + $0x368] sm:$0xff]
    %v155 = vld [vmem:[%s1 + $0x370] sm:$0xff]
    %v156 = vld [vmem:[%s1 + $0x378] sm:$0xff]
    %v157 = vld [vmem:[%s1 + $0x380] sm:$0xff]
    %v158 = vld [vmem:[%s1 + $0x388] sm:$0xff]
    %v159 = vld [vmem:[%s1 + $0x390] sm:$0xff]
    %v160 = vld [vmem:[%s1 + $0x398] sm:$0xff]
    %v161 = vld [vmem:[%s1 + $0x3a0] sm:$0xff]
    %v162 = vld [vmem:[%s1 + $0x3a8] sm:$0xff]
    %v163 = vld [vmem:[%s1 + $0x3b0] sm:$0xff]
    %v164 = vld [vmem:[%s1 + $0x3b8] sm:$0xff]
    %v165 = vld [vmem:[%s1 + $0x3c0] sm:$0xff]
    %v166 = vld [vmem:[%s1 + $0x3c8] sm:$0xff]
    %v167 = vld [vmem:[%s1 + $0x3d0] sm:$0xff]
    %v168 = vld [vmem:[%s1 + $0x3d8] sm:$0xff]
    %v169 = vld [vmem:[%s1 + $0x3e0] sm:$0xff]
    %v170 = vld [vmem:[%s1 + $0x3e8] sm:$0xff]
    %v171 = vld [vmem:[%s1 + $0x3f0] sm:$0xff]
    %v172 = vld [vmem:[%s1 + $0x3f8] sm:$0xff]
    %v173 = vld [vmem:[%s1 + $0x400] sm:$0xff]
    %v174 = vld [vmem:[%s1 + $0x408] sm:$0xff]
    %v175 = vld [vmem:[%s1 + $0x410] sm:$0xff]
    %v176 = vld [vmem:[%s1 + $0x418] sm:$0xff]
    %v177 = vld [vmem:[%s1 + $0x420] sm:$0xff]
    %v178 = vld [vmem:[%s1 + $0x428] sm:$0xff]
    %v179 = vld [vmem:[%s1 + $0x430] sm:$0xff]
    %v180 = vld [vmem:[%s1 + $0x438] sm:$0xff]
    %v181 = vld [vmem:[%s1 + $0x440] sm:$0xff]
    %v182 = vld [vmem:[%s1 + $0x448] sm:$0xff]
    %v183 = vld [vmem:[%s1 + $0x450] sm:$0xff]
    %v184 = vld [vmem:[%s1 + $0x458] sm:$0xff]
    %v185 = vld [vmem:[%s1 + $0x460] sm:$0xff]
    %v186 = vld [vmem:[%s1 + $0x468] sm:$0xff]
    %v187 = vld [vmem:[%s1 + $0x470] sm:$0xff]
    %v188 = vld [vmem:[%s1 + $0x478] sm:$0xff]
    %v189 = vld [vmem:[%s1 + $0x480] sm:$0xff]
    %v190 = vld [vmem:[%s1 + $0x488] sm:$0xff]
    %v191 = vld [vmem:[%s1 + $0x490] sm:$0xff]
    %v192 = vld [vmem:[%s1 + $0x498] sm:$0xff]
    %v193 = vld [vmem:[%s1 + $0x4a0] sm:$0xff]
    %v194 = vld [vmem:[%s1 + $0x4a8] sm:$0xff]
    %v195 = vld [vmem:[%s1 + $0x4b0] sm:$0xff]
    %v196 = vld [vmem:[%s1 + $0x4b8] sm:$0xff]
    %v197 = vld [vmem:[%s1 + $0x4c0] sm:$0xff]
    %v198 = vld [vmem:[%s1 + $0x4c8] sm:$0xff]
    %v199 = vld [vmem:[%s1 + $0x4d0] sm:$0xff]
    %v200 = vld [vmem:[%s1 + $0x4d8] sm:$0xff]
    %v201 = vld [vmem:[%s1 + $0x4e0] sm:$0xff]
    %v202 = vld [vmem:[%s1 + $0x4e8] sm:$0xff]
    %v203 = vld [vmem:[%s1 + $0x4f0] sm:$0xff]
    %v204 = vld [vmem:[%s1 + $0x4f8] sm:$0xff]
    %v205 = vld [vmem:[%s1 + $0x500] sm:$0xff]
    %v206 = vld [vmem:[%s1 + $0x508] sm:$0xff]
    %v207 = vld [vmem:[%s1 + $0x510] sm:$0xff]
    %v208 = vld [vmem:[%s1 + $0x518] sm:$0xff]
    %v209 = vld [vmem:[%s1 + $0x520] sm:$0xff]
    %v210 = vld [vmem:[%s1 + $0x528] sm:$0xff]
    %v211 = vld [vmem:[%s1 + $0x530] sm:$0xff]
    %v212 = vld [vmem:[%s1 + $0x538] sm:$0xff]
    %v213 = vld [vmem:[%s1 + $0x540] sm:$0xff]
    %v214 = vld [vmem:[%s1 + $0x548] sm:$0xff]
    %v215 = vld [vmem:[%s1 + $0x550] sm:$0xff]
    %v216 = vld [vmem:[%s1 + $0x558] sm:$0xff]
    %v217 = vld [vmem:[%s1 + $0x560] sm:$0xff]
    %v218 = vld [vmem:[%s1 + $0x568] sm:$0xff]
    %v219 = vld [vmem:[%s1 + $0x570] sm:$0xff]
    %v220 = vld [vmem:[%s1 + $0x578] sm:$0xff]
    %v221 = vld [vmem:[%s1 + $0x580] sm:$0xff]
    %v222 = vld [vmem:[%s1 + $0x588] sm:$0xff]
    %v223 = vld [vmem:[%s1 + $0x590] sm:$0xff]
    %v224 = vld [vmem:[%s1 + $0x598] sm:$0xff]
    %v225 = vld [vmem:[%s1 + $0x5a0] sm:$0xff]
    %v226 = vld [vmem:[%s1 + $0x5a8] sm:$0xff]
    %v227 = vld [vmem:[%s1 + $0x5b0] sm:$0xff]
    %v228 = vld [vmem:[%s1 + $0x5b8] sm:$0xff]
    %v229 = vld [vmem:[%s1 + $0x5c0] sm:$0xff]
    %v230 = vld [vmem:[%s1 + $0x5c8] sm:$0xff]
    %v231 = vld [vmem:[%s1 + $0x5d0] sm:$0xff]
    %v232 = vld [vmem:[%s1 + $0x5d8] sm:$0xff]
    %v233 = vld [vmem:[%s1 + $0x5e0] sm:$0xff]
    %v234 = vld [vmem:[%s1 + $0x5e8] sm:$0xff]
    %v235 = vld [vmem:[%s1 + $0x5f0] sm:$0xff]
    %v236 = vld [vmem:[%s1 + $0x5f8] sm:$0xff]
    %v237 = vld [vmem:[%s1 + $0x600] sm:$0xff]
    %v238 = vld [vmem:[%s1 + $0x608] sm:$0xff]
    %v239 = vld [vmem:[%s1 + $0x610] sm:$0xff]
    %v240 = vld [vmem:[%s1 + $0x618] sm:$0xff]
    %v241 = vld [vmem:[%s1 + $0x620] sm:$0xff]
    %v242 = vld [vmem:[%s1 + $0x628] sm:$0xff]
    %v243 = vld [vmem:[%s1 + $0x630] sm:$0xff]
    %v244 = vld [vmem:[%s1 + $0x638] sm:$0xff]
    %v245 = vld [vmem:[%s1 + $0x640] sm:$0xff]
    %v246 = vld [vmem:[%s1 + $0x648] sm:$0xff]
    %v247 = vld [vmem:[%s1 + $0x650] sm:$0xff]
    %v248 = vld [vmem:[%s1 + $0x658] sm:$0xff]
    %v249 = vld [vmem:[%s1 + $0x660] sm:$0xff]
    %v250 = vld [vmem:[%s1 + $0x668] sm:$0xff]
    %v251 = vld [vmem:[%s1 + $0x670] sm:$0xff]
    %v252 = vld [vmem:[%s1 + $0x678] sm:$0xff]
    %v253 = vld [vmem:[%s1 + $0x680] sm:$0xff]
    %v254 = vld [vmem:[%s1 + $0x688] sm:$0xff]
    %v255 = vld [vmem:[%s1 + $0x690] sm:$0xff]
    %v256 = vld [vmem:[%s1 + $0x698] sm:$0xff]
    %v257 = vld [vmem:[%s1 + $0x6a0] sm:$0xff]
    %v258 = vld [vmem:[%s1 + $0x6a8] sm:$0xff]
    %v259 = vld [vmem:[%s1 + $0x6b0] sm:$0xff]
    %v260 = vld [vmem:[%s1 + $0x6b8] sm:$0xff]
    %v261 = vld [vmem:[%s1 + $0x6c0] sm:$0xff]
    %v262 = vld [vmem:[%s1 + $0x6c8] sm:$0xff]
    %v263 = vld [vmem:[%s1 + $0x6d0] sm:$0xff]
    %v264 = vld [vmem:[%s1 + $0x6d8] sm:$0xff]
    %v265 = vld [vmem:[%s1 + $0x6e0] sm:$0xff]
    %v266 = vld [vmem:[%s1 + $0x6e8] sm:$0xff]
    %v267 = vld [vmem:[%s1 + $0x6f0] sm:$0xff]
    %v268 = vld [vmem:[%s1 + $0x6f8] sm:$0xff]
    %v269 = vld [vmem:[%s1 + $0x700] sm:$0xff]
    %v270 = vld [vmem:[%s1 + $0x708] sm:$0xff]
    %v271 = vld [vmem:[%s1 + $0x710] sm:$0xff]
    %v272 = vld [vmem:[%s1 + $0x718] sm:$0xff]
    %v273 = vld [vmem:[%s1 + $0x720] sm:$0xff]
    %v274 = vld [vmem:[%s1 + $0x728] sm:$0xff]
    %v275 = vld [vmem:[%s1 + $0x730] sm:$0xff]
    %v276 = vld [vmem:[%s1 + $0x738] sm:$0xff]
    %v277 = vld [vmem:[%s1 + $0x740] sm:$0xff]
    %v278 = vld [vmem:[%s1 + $0x748] sm:$0xff]
    %v279 = vld [vmem:[%s1 + $0x750] sm:$0xff]
    %v280 = vld [vmem:[%s1 + $0x758] sm:$0xff]
    %v281 = vld [vmem:[%s1 + $0x760] sm:$0xff]
    %v282 = vld [vmem:[%s1 + $0x768] sm:$0xff]
    %v283 = vld [vmem:[%s1 + $0x770] sm:$0xff]
    %v284 = vld [vmem:[%s1 + $0x778] sm:$0xff]
    %v285 = vld [vmem:[%s1 + $0x780] sm:$0x3]
    %v286 = vld [vmem:[%s1 + $0x788] sm:$0x3]
    %v287 = vld [vmem:[%s1 + $0x790] sm:$0x3]
    %vm288 = vcmask 531456
    %v290 = vsel %vm288, %v23, 0
    %v293 = vsel %vm288, %v26, 0
    %v296 = vsel %vm288, %v29, 0
    %v299 = vsel %vm288, %v32, 0
    %v302 = vsel %vm288, %v35, 0
    %v305 = vsel %vm288, %v38, 0
    %v308 = vsel %vm288, %v41, 0
    %v311 = vsel %vm288, %v44, 0
    %v314 = vsel %vm288, %v47, 0
    %v317 = vsel %vm288, %v50, 0
    %v320 = vsel %vm288, %v53, 0
    %v323 = vsel %vm288, %v56, 0
    %v326 = vsel %vm288, %v59, 0
    %v329 = vsel %vm288, %v62, 0
    %v332 = vsel %vm288, %v65, 0
    %v335 = vsel %vm288, %v68, 0
    %v338 = vsel %vm288, %v71, 0
    %v341 = vsel %vm288, %v74, 0
    %v344 = vsel %vm288, %v77, 0
    %v347 = vsel %vm288, %v80, 0
    %v350 = vsel %vm288, %v83, 0
    %v353 = vsel %vm288, %v86, 0
    %v356 = vsel %vm288, %v89, 0
    %v359 = vsel %vm288, %v92, 0
    %v362 = vsel %vm288, %v95, 0
    %v365 = vsel %vm288, %v98, 0
    %v368 = vsel %vm288, %v101, 0
    %v371 = vsel %vm288, %v104, 0
    %v374 = vsel %vm288, %v107, 0
    %v377 = vsel %vm288, %v110, 0
    %v380 = vsel %vm288, %v113, 0
    %v383 = vsel %vm288, %v116, 0
    %v386 = vsel %vm288, %v119, 0
    %v389 = vsel %vm288, %v122, 0
    %v392 = vsel %vm288, %v125, 0
    %v395 = vsel %vm288, %v128, 0
    %v398 = vsel %vm288, %v131, 0
    %v401 = vsel %vm288, %v134, 0
    %v404 = vsel %vm288, %v137, 0
    %v407 = vsel %vm288, %v140, 0
    %v410 = vsel %vm288, %v143, 0
    %v413 = vsel %vm288, %v146, 0
    %v416 = vsel %vm288, %v149, 0
    %v419 = vsel %vm288, %v152, 0
    %v422 = vsel %vm288, %v155, 0
    %v425 = vsel %vm288, %v158, 0
    %v428 = vsel %vm288, %v161, 0
    %v431 = vsel %vm288, %v164, 0
    %v434 = vsel %vm288, %v167, 0
    %v437 = vsel %vm288, %v170, 0
    %v440 = vsel %vm288, %v173, 0
    %v443 = vsel %vm288, %v176, 0
    %v446 = vsel %vm288, %v179, 0
    %v449 = vsel %vm288, %v182, 0
    %v452 = vsel %vm288, %v185, 0
    %v455 = vsel %vm288, %v188, 0
    %v458 = vsel %vm288, %v191, 0
    %v461 = vsel %vm288, %v194, 0
    %v464 = vsel %vm288, %v197, 0
    %v467 = vsel %vm288, %v200, 0
    %v470 = vsel %vm288, %v203, 0
    %v473 = vsel %vm288, %v206, 0
    %v476 = vsel %vm288, %v209, 0
    %v479 = vsel %vm288, %v212, 0
    %v482 = vsel %vm288, %v215, 0
    %v485 = vsel %vm288, %v218, 0
    %v488 = vsel %vm288, %v221, 0
    %v491 = vsel %vm288, %v224, 0
    %v494 = vsel %vm288, %v227, 0
    %v497 = vsel %vm288, %v230, 0
    %v500 = vsel %vm288, %v233, 0
    %v503 = vsel %vm288, %v236, 0
    %v506 = vsel %vm288, %v239, 0
    %v509 = vsel %vm288, %v242, 0
    %v512 = vsel %vm288, %v245, 0
    %v515 = vsel %vm288, %v248, 0
    %v518 = vsel %vm288, %v251, 0
    %v521 = vsel %vm288, %v254, 0
    %v524 = vsel %vm288, %v257, 0
    %v527 = vsel %vm288, %v260, 0
    %v530 = vsel %vm288, %v263, 0
    %v533 = vsel %vm288, %v266, 0
    %v536 = vsel %vm288, %v269, 0
    %v539 = vsel %vm288, %v272, 0
    %v542 = vsel %vm288, %v275, 0
    %v545 = vsel %vm288, %v278, 0
    %v548 = vsel %vm288, %v281, 0
    %v551 = vsel %vm288, %v284, 0
    %v554 = vsel %vm288, %v287, 0
    %556 = vmatprep.subr.mxu0 %v91
    %557 = vmatpush1.xpose.msra.mxu0 %v90
    %558 = vmatprep.subr.mxu0 %v88
    %559 = vmatpush1.xpose.msra.mxu0 %v87
    %560 = vmatprep.subr.mxu0 %v85
    %561 = vmatpush1.xpose.msra.mxu0 %v84
    %562 = vmatprep.subr.mxu0 %v82
    %563 = vmatpush1.xpose.msra.mxu0 %v81
    %564 = vmatprep.subr.mxu0 %v79
    %565 = vmatpush1.xpose.msra.mxu0 %v78
    %566 = vmatprep.subr.mxu0 %v76
    %567 = vmatpush1.xpose.msra.mxu0 %v75
    %568 = vmatprep.subr.mxu0 %v73
    %569 = vmatpush1.xpose.msra.mxu0 %v72
    %570 = vmatprep.subr.mxu0 %v70
    %571 = vmatpush1.xpose.msra.mxu0 %v69
    %572 = vmatprep.subr.mxu0 %v67
    %573 = vmatpush1.xpose.msra.mxu0 %v66
    %574 = vmatprep.subr.mxu0 %v64
    %575 = vmatpush1.xpose.msra.mxu0 %v63
    %576 = vmatprep.subr.mxu0 %v61
    %577 = vmatpush1.xpose.msra.mxu0 %v60
    %578 = vmatprep.subr.mxu0 %v58
    %579 = vmatpush1.xpose.msra.mxu0 %v57
    %580 = vmatprep.subr.mxu0 %v55
    %581 = vmatpush1.xpose.msra.mxu0 %v54
    %582 = vmatprep.subr.mxu0 %v52
    %583 = vmatpush1.xpose.msra.mxu0 %v51
    %584 = vmatprep.subr.mxu0 %v49
    %585 = vmatpush1.xpose.msra.mxu0 %v48
    %586 = vmatprep.subr.mxu0 %v46
    %587 = vmatpush1.xpose.msra.mxu0 %v45
    %588 = vmatprep.subr.mxu0 %v139
    %589 = vmatpush2.xpose.msra.mxu0 %v138
    %590 = vmatprep.subr.mxu0 %v136
    %591 = vmatpush2.xpose.msra.mxu0 %v135
    %592 = vmatprep.subr.mxu0 %v133
    %593 = vmatpush2.xpose.msra.mxu0 %v132
    %594 = vmatprep.subr.mxu0 %v130
    %595 = vmatpush2.xpose.msra.mxu0 %v129
    %596 = vmatprep.subr.mxu0 %v127
    %597 = vmatpush2.xpose.msra.mxu0 %v126
    %598 = vmatprep.subr.mxu0 %v124
    %599 = vmatpush2.xpose.msra.mxu0 %v123
    %600 = vmatprep.subr.mxu0 %v121
    %601 = vmatpush2.xpose.msra.mxu0 %v120
    %602 = vmatprep.subr.mxu0 %v118
    %603 = vmatpush2.xpose.msra.mxu0 %v117
    %604 = vmatprep.subr.mxu0 %v115
    %605 = vmatpush2.xpose.msra.mxu0 %v114
    %606 = vmatprep.subr.mxu0 %v112
    %607 = vmatpush2.xpose.msra.mxu0 %v111
    %608 = vmatprep.subr.mxu0 %v109
    %609 = vmatpush2.xpose.msra.mxu0 %v108
    %610 = vmatprep.subr.mxu0 %v106
    %611 = vmatpush2.xpose.msra.mxu0 %v105
    %612 = vmatprep.subr.mxu0 %v103
    %613 = vmatpush2.xpose.msra.mxu0 %v102
    %614 = vmatprep.subr.mxu0 %v100
    %615 = vmatpush2.xpose.msra.mxu0 %v99
    %616 = vmatprep.subr.mxu0 %v97
    %617 = vmatpush2.xpose.msra.mxu0 %v96
    %618 = vmatprep.subr.mxu0 %v94
    %619 = vmatpush2.xpose.msra.mxu0 %v93
    %620 = vmatprep.mubr.f32.mxu0 %v22
    %621 = vmatmul.mubr.f32.gmra.mxu0 %v21
    %v622 = vpop.f32.mrf.mxu0
    %v623 = vadd.f32 0.0, %v622
    %v624 = vpop.f32.mrf.mxu0
    %v625 = vadd.f32 0.0, %v624
    %626 = vmatprep.mubr.f32.mxu0 %v25
    %627 = vmatmul.mubr.f32.gmra.mxu0 %v24
    %v628 = vpop.f32.mrf.mxu0
    %v629 = vadd.f32 0.0, %v628
    %v630 = vpop.f32.mrf.mxu0
    %v631 = vadd.f32 0.0, %v630
    %632 = vmatprep.mubr.f32.mxu0 %v28
    %633 = vmatmul.mubr.f32.gmra.mxu0 %v27
    %v634 = vpop.f32.mrf.mxu0
    %v635 = vadd.f32 0.0, %v634
    %v636 = vpop.f32.mrf.mxu0
    %v637 = vadd.f32 0.0, %v636
    %638 = vmatprep.mubr.f32.mxu0 %v31
    %639 = vmatmul.mubr.f32.gmra.mxu0 %v30
    %v640 = vpop.f32.mrf.mxu0
    %v641 = vadd.f32 0.0, %v640
    %v642 = vpop.f32.mrf.mxu0
    %v643 = vadd.f32 0.0, %v642
    %644 = vmatprep.mubr.f32.mxu0 %v34
    %645 = vmatmul.mubr.f32.gmra.mxu0 %v33
    %v646 = vpop.f32.mrf.mxu0
    %v647 = vadd.f32 0.0, %v646
    %v648 = vpop.f32.mrf.mxu0
    %v649 = vadd.f32 0.0, %v648
    %650 = vmatprep.mubr.f32.mxu0 %v37
    %651 = vmatmul.mubr.f32.gmra.mxu0 %v36
    %v652 = vpop.f32.mrf.mxu0
    %v653 = vadd.f32 0.0, %v652
    %v654 = vpop.f32.mrf.mxu0
    %v655 = vadd.f32 0.0, %v654
    %656 = vmatprep.mubr.f32.mxu0 %v40
    %657 = vmatmul.mubr.f32.gmra.mxu0 %v39
    %v658 = vpop.f32.mrf.mxu0
    %v659 = vadd.f32 0.0, %v658
    %v660 = vpop.f32.mrf.mxu0
    %v661 = vadd.f32 0.0, %v660
    %662 = vmatprep.mubr.f32.mxu0 %v43
    %663 = vmatmul.mubr.f32.gmra.mxu0 %v42
    %v664 = vpop.f32.mrf.mxu0
    %v665 = vadd.f32 0.0, %v664
    %v666 = vpop.f32.mrf.mxu0
    %v667 = vadd.f32 0.0, %v666
    %668 = vdwg.mxu0
    %669 = vmatprep.subr.mxu0 0.0
    %670 = vmatpush1.xpose.msra.mxu0 %v359
    %671 = vmatprep.subr.mxu0 0.0
    %672 = vmatpush1.xpose.msra.mxu0 %v356
    %673 = vmatprep.subr.mxu0 0.0
    %674 = vmatpush1.xpose.msra.mxu0 %v353
    %675 = vmatprep.subr.mxu0 0.0
    %676 = vmatpush1.xpose.msra.mxu0 %v350
    %677 = vmatprep.subr.mxu0 0.0
    %678 = vmatpush1.xpose.msra.mxu0 %v347
    %679 = vmatprep.subr.mxu0 0.0
    %680 = vmatpush1.xpose.msra.mxu0 %v344
    %681 = vmatprep.subr.mxu0 0.0
    %682 = vmatpush1.xpose.msra.mxu0 %v341
    %683 = vmatprep.subr.mxu0 0.0
    %684 = vmatpush1.xpose.msra.mxu0 %v338
    %685 = vmatprep.subr.mxu0 0.0
    %686 = vmatpush1.xpose.msra.mxu0 %v335
    %687 = vmatprep.subr.mxu0 0.0
    %688 = vmatpush1.xpose.msra.mxu0 %v332
    %689 = vmatprep.subr.mxu0 0.0
    %690 = vmatpush1.xpose.msra.mxu0 %v329
    %691 = vmatprep.subr.mxu0 0.0
    %692 = vmatpush1.xpose.msra.mxu0 %v326
    %693 = vmatprep.subr.mxu0 0.0
    %694 = vmatpush1.xpose.msra.mxu0 %v323
    %695 = vmatprep.subr.mxu0 0.0
    %696 = vmatpush1.xpose.msra.mxu0 %v320
    %697 = vmatprep.subr.mxu0 0.0
    %698 = vmatpush1.xpose.msra.mxu0 %v317
    %699 = vmatprep.subr.mxu0 0.0
    %700 = vmatpush1.xpose.msra.mxu0 %v314
    %701 = vmatprep.subr.mxu0 0.0
    %702 = vmatpush2.xpose.msra.mxu0 %v407
    %703 = vmatprep.subr.mxu0 0.0
    %704 = vmatpush2.xpose.msra.mxu0 %v404
    %705 = vmatprep.subr.mxu0 0.0
    %706 = vmatpush2.xpose.msra.mxu0 %v401
    %707 = vmatprep.subr.mxu0 0.0
    %708 = vmatpush2.xpose.msra.mxu0 %v398
    %709 = vmatprep.subr.mxu0 0.0
    %710 = vmatpush2.xpose.msra.mxu0 %v395
    %711 = vmatprep.subr.mxu0 0.0
    %712 = vmatpush2.xpose.msra.mxu0 %v392
    %713 = vmatprep.subr.mxu0 0.0
    %714 = vmatpush2.xpose.msra.mxu0 %v389
    %715 = vmatprep.subr.mxu0 0.0
    %716 = vmatpush2.xpose.msra.mxu0 %v386
    %717 = vmatprep.subr.mxu0 0.0
    %718 = vmatpush2.xpose.msra.mxu0 %v383
    %719 = vmatprep.subr.mxu0 0.0
    %720 = vmatpush2.xpose.msra.mxu0 %v380
    %721 = vmatprep.subr.mxu0 0.0
    %722 = vmatpush2.xpose.msra.mxu0 %v377
    %723 = vmatprep.subr.mxu0 0.0
    %724 = vmatpush2.xpose.msra.mxu0 %v374
    %725 = vmatprep.subr.mxu0 0.0
    %726 = vmatpush2.xpose.msra.mxu0 %v371
    %727 = vmatprep.subr.mxu0 0.0
    %728 = vmatpush2.xpose.msra.mxu0 %v368
    %729 = vmatprep.subr.mxu0 0.0
    %730 = vmatpush2.xpose.msra.mxu0 %v365
    %731 = vmatprep.subr.mxu0 0.0
    %732 = vmatpush2.xpose.msra.mxu0 %v362
    %733 = vmatprep.mubr.f32.mxu0 0.0
    %734 = vmatmul.mubr.f32.gmra.mxu0 %v290
    %v735 = vpop.f32.mrf.mxu0
    %v736 = vadd.f32 %v623, %v735
    %v737 = vpop.f32.mrf.mxu0
    %v738 = vadd.f32 %v625, %v737
    %739 = vmatprep.mubr.f32.mxu0 0.0
    %740 = vmatmul.mubr.f32.gmra.mxu0 %v293
    %v741 = vpop.f32.mrf.mxu0
    %v742 = vadd.f32 %v629, %v741
    %v743 = vpop.f32.mrf.mxu0
    %v744 = vadd.f32 %v631, %v743
    %745 = vmatprep.mubr.f32.mxu0 0.0
    %746 = vmatmul.mubr.f32.gmra.mxu0 %v296
    %v747 = vpop.f32.mrf.mxu0
    %v748 = vadd.f32 %v635, %v747
    %v749 = vpop.f32.mrf.mxu0
    %v750 = vadd.f32 %v637, %v749
    %751 = vmatprep.mubr.f32.mxu0 0.0
    %752 = vmatmul.mubr.f32.gmra.mxu0 %v299
    %v753 = vpop.f32.mrf.mxu0
    %v754 = vadd.f32 %v641, %v753
    %v755 = vpop.f32.mrf.mxu0
    %v756 = vadd.f32 %v643, %v755
    %757 = vmatprep.mubr.f32.mxu0 0.0
    %758 = vmatmul.mubr.f32.gmra.mxu0 %v302
    %v759 = vpop.f32.mrf.mxu0
    %v760 = vadd.f32 %v647, %v759
    %v761 = vpop.f32.mrf.mxu0
    %v762 = vadd.f32 %v649, %v761
    %763 = vmatprep.mubr.f32.mxu0 0.0
    %764 = vmatmul.mubr.f32.gmra.mxu0 %v305
    %v765 = vpop.f32.mrf.mxu0
    %v766 = vadd.f32 %v653, %v765
    %v767 = vpop.f32.mrf.mxu0
    %v768 = vadd.f32 %v655, %v767
    %769 = vmatprep.mubr.f32.mxu0 0.0
    %770 = vmatmul.mubr.f32.gmra.mxu0 %v308
    %v771 = vpop.f32.mrf.mxu0
    %v772 = vadd.f32 %v659, %v771
    %v773 = vpop.f32.mrf.mxu0
    %v774 = vadd.f32 %v661, %v773
    %775 = vmatprep.mubr.f32.mxu0 0.0
    %776 = vmatmul.mubr.f32.gmra.mxu0 %v311
    %v777 = vpop.f32.mrf.mxu0
    %v778 = vadd.f32 %v665, %v777
    %v779 = vpop.f32.mrf.mxu0
    %v780 = vadd.f32 %v667, %v779
    %781 = vdwg.mxu0
    %782 = vmatprep.subr.mxu0 %v187
    %783 = vmatpush1.xpose.msra.mxu0 %v186
    %784 = vmatprep.subr.mxu0 %v184
    %785 = vmatpush1.xpose.msra.mxu0 %v183
    %786 = vmatprep.subr.mxu0 %v181
    %787 = vmatpush1.xpose.msra.mxu0 %v180
    %788 = vmatprep.subr.mxu0 %v178
    %789 = vmatpush1.xpose.msra.mxu0 %v177
    %790 = vmatprep.subr.mxu0 %v175
    %791 = vmatpush1.xpose.msra.mxu0 %v174
    %792 = vmatprep.subr.mxu0 %v172
    %793 = vmatpush1.xpose.msra.mxu0 %v171
    %794 = vmatprep.subr.mxu0 %v169
    %795 = vmatpush1.xpose.msra.mxu0 %v168
    %796 = vmatprep.subr.mxu0 %v166
    %797 = vmatpush1.xpose.msra.mxu0 %v165
    %798 = vmatprep.subr.mxu0 %v163
    %799 = vmatpush1.xpose.msra.mxu0 %v162
    %800 = vmatprep.subr.mxu0 %v160
    %801 = vmatpush1.xpose.msra.mxu0 %v159
    %802 = vmatprep.subr.mxu0 %v157
    %803 = vmatpush1.xpose.msra.mxu0 %v156
    %804 = vmatprep.subr.mxu0 %v154
    %805 = vmatpush1.xpose.msra.mxu0 %v153
    %806 = vmatprep.subr.mxu0 %v151
    %807 = vmatpush1.xpose.msra.mxu0 %v150
    %808 = vmatprep.subr.mxu0 %v148
    %809 = vmatpush1.xpose.msra.mxu0 %v147
    %810 = vmatprep.subr.mxu0 %v145
    %811 = vmatpush1.xpose.msra.mxu0 %v144
    %812 = vmatprep.subr.mxu0 %v142
    %813 = vmatpush1.xpose.msra.mxu0 %v141
    %814 = vmatprep.subr.mxu0 %v235
    %815 = vmatpush2.xpose.msra.mxu0 %v234
    %816 = vmatprep.subr.mxu0 %v232
    %817 = vmatpush2.xpose.msra.mxu0 %v231
    %818 = vmatprep.subr.mxu0 %v229
    %819 = vmatpush2.xpose.msra.mxu0 %v228
    %820 = vmatprep.subr.mxu0 %v226
    %821 = vmatpush2.xpose.msra.mxu0 %v225
    %822 = vmatprep.subr.mxu0 %v223
    %823 = vmatpush2.xpose.msra.mxu0 %v222
    %824 = vmatprep.subr.mxu0 %v220
    %825 = vmatpush2.xpose.msra.mxu0 %v219
    %826 = vmatprep.subr.mxu0 %v217
    %827 = vmatpush2.xpose.msra.mxu0 %v216
    %828 = vmatprep.subr.mxu0 %v214
    %829 = vmatpush2.xpose.msra.mxu0 %v213
    %830 = vmatprep.subr.mxu0 %v211
    %831 = vmatpush2.xpose.msra.mxu0 %v210
    %832 = vmatprep.subr.mxu0 %v208
    %833 = vmatpush2.xpose.msra.mxu0 %v207
    %834 = vmatprep.subr.mxu0 %v205
    %835 = vmatpush2.xpose.msra.mxu0 %v204
    %836 = vmatprep.subr.mxu0 %v202
    %837 = vmatpush2.xpose.msra.mxu0 %v201
    %838 = vmatprep.subr.mxu0 %v199
    %839 = vmatpush2.xpose.msra.mxu0 %v198
    %840 = vmatprep.subr.mxu0 %v196
    %841 = vmatpush2.xpose.msra.mxu0 %v195
    %842 = vmatprep.subr.mxu0 %v193
    %843 = vmatpush2.xpose.msra.mxu0 %v192
    %844 = vmatprep.subr.mxu0 %v190
    %845 = vmatpush2.xpose.msra.mxu0 %v189
    %846 = vmatprep.mubr.f32.mxu0 %v22
    %847 = vmatmul.mubr.f32.gmra.mxu0 %v21
    %v848 = vpop.f32.mrf.mxu0
    %v849 = vadd.f32 0.0, %v848
    %v850 = vpop.f32.mrf.mxu0
    %v851 = vadd.f32 0.0, %v850
    %852 = vmatprep.mubr.f32.mxu0 %v25
    %853 = vmatmul.mubr.f32.gmra.mxu0 %v24
    %v854 = vpop.f32.mrf.mxu0
    %v855 = vadd.f32 0.0, %v854
    %v856 = vpop.f32.mrf.mxu0
    %v857 = vadd.f32 0.0, %v856
    %858 = vmatprep.mubr.f32.mxu0 %v28
    %859 = vmatmul.mubr.f32.gmra.mxu0 %v27
    %v860 = vpop.f32.mrf.mxu0
    %v861 = vadd.f32 0.0, %v860
    %v862 = vpop.f32.mrf.mxu0
    %v863 = vadd.f32 0.0, %v862
    %864 = vmatprep.mubr.f32.mxu0 %v31
    %865 = vmatmul.mubr.f32.gmra.mxu0 %v30
    %v866 = vpop.f32.mrf.mxu0
    %v867 = vadd.f32 0.0, %v866
    %v868 = vpop.f32.mrf.mxu0
    %v869 = vadd.f32 0.0, %v868
    %870 = vmatprep.mubr.f32.mxu0 %v34
    %871 = vmatmul.mubr.f32.gmra.mxu0 %v33
    %v872 = vpop.f32.mrf.mxu0
    %v873 = vadd.f32 0.0, %v872
    %v874 = vpop.f32.mrf.mxu0
    %v875 = vadd.f32 0.0, %v874
    %876 = vmatprep.mubr.f32.mxu0 %v37
    %877 = vmatmul.mubr.f32.gmra.mxu0 %v36
    %v878 = vpop.f32.mrf.mxu0
    %v879 = vadd.f32 0.0, %v878
    %v880 = vpop.f32.mrf.mxu0
    %v881 = vadd.f32 0.0, %v880
    %882 = vmatprep.mubr.f32.mxu0 %v40
    %883 = vmatmul.mubr.f32.gmra.mxu0 %v39
    %v884 = vpop.f32.mrf.mxu0
    %v885 = vadd.f32 0.0, %v884
    %v886 = vpop.f32.mrf.mxu0
    %v887 = vadd.f32 0.0, %v886
    %888 = vmatprep.mubr.f32.mxu0 %v43
    %889 = vmatmul.mubr.f32.gmra.mxu0 %v42
    %v890 = vpop.f32.mrf.mxu0
    %v891 = vadd.f32 0.0, %v890
    %v892 = vpop.f32.mrf.mxu0
    %v893 = vadd.f32 0.0, %v892
    %894 = vdwg.mxu0
    %895 = vmatprep.subr.mxu0 0.0
    %896 = vmatpush1.xpose.msra.mxu0 %v455
    %897 = vmatprep.subr.mxu0 0.0
    %898 = vmatpush1.xpose.msra.mxu0 %v452
    %899 = vmatprep.subr.mxu0 0.0
    %900 = vmatpush1.xpose.msra.mxu0 %v449
    %901 = vmatprep.subr.mxu0 0.0
    %902 = vmatpush1.xpose.msra.mxu0 %v446
    %903 = vmatprep.subr.mxu0 0.0
    %904 = vmatpush1.xpose.msra.mxu0 %v443
    %905 = vmatprep.subr.mxu0 0.0
    %906 = vmatpush1.xpose.msra.mxu0 %v440
    %907 = vmatprep.subr.mxu0 0.0
    %908 = vmatpush1.xpose.msra.mxu0 %v437
    %909 = vmatprep.subr.mxu0 0.0
    %910 = vmatpush1.xpose.msra.mxu0 %v434
    %911 = vmatprep.subr.mxu0 0.0
    %912 = vmatpush1.xpose.msra.mxu0 %v431
    %913 = vmatprep.subr.mxu0 0.0
    %914 = vmatpush1.xpose.msra.mxu0 %v428
    %915 = vmatprep.subr.mxu0 0.0
    %916 = vmatpush1.xpose.msra.mxu0 %v425
    %917 = vmatprep.subr.mxu0 0.0
    %918 = vmatpush1.xpose.msra.mxu0 %v422
    %919 = vmatprep.subr.mxu0 0.0
    %920 = vmatpush1.xpose.msra.mxu0 %v419
    %921 = vmatprep.subr.mxu0 0.0
    %922 = vmatpush1.xpose.msra.mxu0 %v416
    %923 = vmatprep.subr.mxu0 0.0
    %924 = vmatpush1.xpose.msra.mxu0 %v413
    %925 = vmatprep.subr.mxu0 0.0
    %926 = vmatpush1.xpose.msra.mxu0 %v410
    %927 = vmatprep.subr.mxu0 0.0
    %928 = vmatpush2.xpose.msra.mxu0 %v503
    %929 = vmatprep.subr.mxu0 0.0
    %930 = vmatpush2.xpose.msra.mxu0 %v500
    %931 = vmatprep.subr.mxu0 0.0
    %932 = vmatpush2.xpose.msra.mxu0 %v497
    %933 = vmatprep.subr.mxu0 0.0
    %934 = vmatpush2.xpose.msra.mxu0 %v494
    %935 = vmatprep.subr.mxu0 0.0
    %936 = vmatpush2.xpose.msra.mxu0 %v491
    %937 = vmatprep.subr.mxu0 0.0
    %938 = vmatpush2.xpose.msra.mxu0 %v488
    %939 = vmatprep.subr.mxu0 0.0
    %940 = vmatpush2.xpose.msra.mxu0 %v485
    %941 = vmatprep.subr.mxu0 0.0
    %942 = vmatpush2.xpose.msra.mxu0 %v482
    %943 = vmatprep.subr.mxu0 0.0
    %944 = vmatpush2.xpose.msra.mxu0 %v479
    %945 = vmatprep.subr.mxu0 0.0
    %946 = vmatpush2.xpose.msra.mxu0 %v476
    %947 = vmatprep.subr.mxu0 0.0
    %948 = vmatpush2.xpose.msra.mxu0 %v473
    %949 = vmatprep.subr.mxu0 0.0
    %950 = vmatpush2.xpose.msra.mxu0 %v470
    %951 = vmatprep.subr.mxu0 0.0
    %952 = vmatpush2.xpose.msra.mxu0 %v467
    %953 = vmatprep.subr.mxu0 0.0
    %954 = vmatpush2.xpose.msra.mxu0 %v464
    %955 = vmatprep.subr.mxu0 0.0
    %956 = vmatpush2.xpose.msra.mxu0 %v461
    %957 = vmatprep.subr.mxu0 0.0
    %958 = vmatpush2.xpose.msra.mxu0 %v458
    %959 = vmatprep.mubr.f32.mxu0 0.0
    %960 = vmatmul.mubr.f32.gmra.mxu0 %v290
    %v961 = vpop.f32.mrf.mxu0
    %v962 = vadd.f32 %v849, %v961
    %v963 = vpop.f32.mrf.mxu0
    %v964 = vadd.f32 %v851, %v963
    %965 = vmatprep.mubr.f32.mxu0 0.0
    %966 = vmatmul.mubr.f32.gmra.mxu0 %v293
    %v967 = vpop.f32.mrf.mxu0
    %v968 = vadd.f32 %v855, %v967
    %v969 = vpop.f32.mrf.mxu0
    %v970 = vadd.f32 %v857, %v969
    %971 = vmatprep.mubr.f32.mxu0 0.0
    %972 = vmatmul.mubr.f32.gmra.mxu0 %v296
    %v973 = vpop.f32.mrf.mxu0
    %v974 = vadd.f32 %v861, %v973
    %v975 = vpop.f32.mrf.mxu0
    %v976 = vadd.f32 %v863, %v975
    %977 = vmatprep.mubr.f32.mxu0 0.0
    %978 = vmatmul.mubr.f32.gmra.mxu0 %v299
    %v979 = vpop.f32.mrf.mxu0
    %v980 = vadd.f32 %v867, %v979
    %v981 = vpop.f32.mrf.mxu0
    %v982 = vadd.f32 %v869, %v981
    %983 = vmatprep.mubr.f32.mxu0 0.0
    %984 = vmatmul.mubr.f32.gmra.mxu0 %v302
    %v985 = vpop.f32.mrf.mxu0
    %v986 = vadd.f32 %v873, %v985
    %v987 = vpop.f32.mrf.mxu0
    %v988 = vadd.f32 %v875, %v987
    %989 = vmatprep.mubr.f32.mxu0 0.0
    %990 = vmatmul.mubr.f32.gmra.mxu0 %v305
    %v991 = vpop.f32.mrf.mxu0
    %v992 = vadd.f32 %v879, %v991
    %v993 = vpop.f32.mrf.mxu0
    %v994 = vadd.f32 %v881, %v993
    %995 = vmatprep.mubr.f32.mxu0 0.0
    %996 = vmatmul.mubr.f32.gmra.mxu0 %v308
    %v997 = vpop.f32.mrf.mxu0
    %v998 = vadd.f32 %v885, %v997
    %v999 = vpop.f32.mrf.mxu0
    %v1000 = vadd.f32 %v887, %v999
    %1001 = vmatprep.mubr.f32.mxu0 0.0
    %1002 = vmatmul.mubr.f32.gmra.mxu0 %v311
    %v1003 = vpop.f32.mrf.mxu0
    %v1004 = vadd.f32 %v891, %v1003
    %v1005 = vpop.f32.mrf.mxu0
    %v1006 = vadd.f32 %v893, %v1005
    %1007 = vdwg.mxu0
    %1008 = vmatprep.subr.mxu0 %v283
    %1009 = vmatpush1.xpose.msra.mxu0 %v282
    %1010 = vmatprep.subr.mxu0 %v280
    %1011 = vmatpush1.xpose.msra.mxu0 %v279
    %1012 = vmatprep.subr.mxu0 %v277
    %1013 = vmatpush1.xpose.msra.mxu0 %v276
    %1014 = vmatprep.subr.mxu0 %v274
    %1015 = vmatpush1.xpose.msra.mxu0 %v273
    %1016 = vmatprep.subr.mxu0 %v271
    %1017 = vmatpush1.xpose.msra.mxu0 %v270
    %1018 = vmatprep.subr.mxu0 %v268
    %1019 = vmatpush1.xpose.msra.mxu0 %v267
    %1020 = vmatprep.subr.mxu0 %v265
    %1021 = vmatpush1.xpose.msra.mxu0 %v264
    %1022 = vmatprep.subr.mxu0 %v262
    %1023 = vmatpush1.xpose.msra.mxu0 %v261
    %1024 = vmatprep.subr.mxu0 %v259
    %1025 = vmatpush1.xpose.msra.mxu0 %v258
    %1026 = vmatprep.subr.mxu0 %v256
    %1027 = vmatpush1.xpose.msra.mxu0 %v255
    %1028 = vmatprep.subr.mxu0 %v253
    %1029 = vmatpush1.xpose.msra.mxu0 %v252
    %1030 = vmatprep.subr.mxu0 %v250
    %1031 = vmatpush1.xpose.msra.mxu0 %v249
    %1032 = vmatprep.subr.mxu0 %v247
    %1033 = vmatpush1.xpose.msra.mxu0 %v246
    %1034 = vmatprep.subr.mxu0 %v244
    %1035 = vmatpush1.xpose.msra.mxu0 %v243
    %1036 = vmatprep.subr.mxu0 %v241
    %1037 = vmatpush1.xpose.msra.mxu0 %v240
    %1038 = vmatprep.subr.mxu0 %v238
    %1039 = vmatpush1.xpose.msra.mxu0 %v237
    %1040 = vmatprep.subr.mxu0 0.0
    %1041 = vmatpush2.xpose.msra.mxu0 0.0
    %1042 = vmatprep.subr.mxu0 0.0
    %1043 = vmatpush2.xpose.msra.mxu0 0.0
    %1044 = vmatprep.subr.mxu0 0.0
    %1045 = vmatpush2.xpose.msra.mxu0 0.0
    %1046 = vmatprep.subr.mxu0 0.0
    %1047 = vmatpush2.xpose.msra.mxu0 0.0
    %1048 = vmatprep.subr.mxu0 0.0
    %1049 = vmatpush2.xpose.msra.mxu0 0.0
    %1050 = vmatprep.subr.mxu0 0.0
    %1051 = vmatpush2.xpose.msra.mxu0 0.0
    %1052 = vmatprep.subr.mxu0 0.0
    %1053 = vmatpush2.xpose.msra.mxu0 0.0
    %1054 = vmatprep.subr.mxu0 0.0
    %1055 = vmatpush2.xpose.msra.mxu0 0.0
    %1056 = vmatprep.subr.mxu0 0.0
    %1057 = vmatpush2.xpose.msra.mxu0 0.0
    %1058 = vmatprep.subr.mxu0 0.0
    %1059 = vmatpush2.xpose.msra.mxu0 0.0
    %1060 = vmatprep.subr.mxu0 0.0
    %1061 = vmatpush2.xpose.msra.mxu0 0.0
    %1062 = vmatprep.subr.mxu0 0.0
    %1063 = vmatpush2.xpose.msra.mxu0 0.0
    %1064 = vmatprep.subr.mxu0 0.0
    %1065 = vmatpush2.xpose.msra.mxu0 0.0
    %1066 = vmatprep.subr.mxu0 0.0
    %1067 = vmatpush2.xpose.msra.mxu0 0.0
    %1068 = vmatprep.subr.mxu0 0.0
    %1069 = vmatpush2.xpose.msra.mxu0 0.0
    %1070 = vmatprep.subr.mxu0 %v286
    %1071 = vmatpush2.xpose.msra.mxu0 %v285
    %1072 = vmatprep.mubr.f32.mxu0 %v22
    %1073 = vmatmul.mubr.f32.gmra.mxu0 %v21
    %v1074 = vpop.f32.mrf.mxu0
    %v1075 = vadd.f32 0.0, %v1074
    %v1076 = vpop.f32.mrf.mxu0
    %v1077 = vadd.f32 0.0, %v1076
    %1078 = vmatprep.mubr.f32.mxu0 %v25
    %1079 = vmatmul.mubr.f32.gmra.mxu0 %v24
    %v1080 = vpop.f32.mrf.mxu0
    %v1081 = vadd.f32 0.0, %v1080
    %v1082 = vpop.f32.mrf.mxu0
    %v1083 = vadd.f32 0.0, %v1082
    %1084 = vmatprep.mubr.f32.mxu0 %v28
    %1085 = vmatmul.mubr.f32.gmra.mxu0 %v27
    %v1086 = vpop.f32.mrf.mxu0
    %v1087 = vadd.f32 0.0, %v1086
    %v1088 = vpop.f32.mrf.mxu0
    %v1089 = vadd.f32 0.0, %v1088
    %1090 = vmatprep.mubr.f32.mxu0 %v31
    %1091 = vmatmul.mubr.f32.gmra.mxu0 %v30
    %v1092 = vpop.f32.mrf.mxu0
    %v1093 = vadd.f32 0.0, %v1092
    %v1094 = vpop.f32.mrf.mxu0
    %v1095 = vadd.f32 0.0, %v1094
    %1096 = vmatprep.mubr.f32.mxu0 %v34
    %1097 = vmatmul.mubr.f32.gmra.mxu0 %v33
    %v1098 = vpop.f32.mrf.mxu0
    %v1099 = vadd.f32 0.0, %v1098
    %v1100 = vpop.f32.mrf.mxu0
    %v1101 = vadd.f32 0.0, %v1100
    %1102 = vmatprep.mubr.f32.mxu0 %v37
    %1103 = vmatmul.mubr.f32.gmra.mxu0 %v36
    %v1104 = vpop.f32.mrf.mxu0
    %v1105 = vadd.f32 0.0, %v1104
    %v1106 = vpop.f32.mrf.mxu0
    %v1107 = vadd.f32 0.0, %v1106
    %1108 = vmatprep.mubr.f32.mxu0 %v40
    %1109 = vmatmul.mubr.f32.gmra.mxu0 %v39
    %v1110 = vpop.f32.mrf.mxu0
    %v1111 = vadd.f32 0.0, %v1110
    %v1112 = vpop.f32.mrf.mxu0
    %v1113 = vadd.f32 0.0, %v1112
    %1114 = vmatprep.mubr.f32.mxu0 %v43
    %1115 = vmatmul.mubr.f32.gmra.mxu0 %v42
    %v1116 = vpop.f32.mrf.mxu0
    %v1117 = vadd.f32 0.0, %v1116
    %v1118 = vpop.f32.mrf.mxu0
    %v1119 = vadd.f32 0.0, %v1118
    %1120 = vdwg.mxu0
    %1121 = vmatprep.subr.mxu0 0.0
    %1122 = vmatpush1.xpose.msra.mxu0 %v551
    %1123 = vmatprep.subr.mxu0 0.0
    %1124 = vmatpush1.xpose.msra.mxu0 %v548
    %1125 = vmatprep.subr.mxu0 0.0
    %1126 = vmatpush1.xpose.msra.mxu0 %v545
    %1127 = vmatprep.subr.mxu0 0.0
    %1128 = vmatpush1.xpose.msra.mxu0 %v542
    %1129 = vmatprep.subr.mxu0 0.0
    %1130 = vmatpush1.xpose.msra.mxu0 %v539
    %1131 = vmatprep.subr.mxu0 0.0
    %1132 = vmatpush1.xpose.msra.mxu0 %v536
    %1133 = vmatprep.subr.mxu0 0.0
    %1134 = vmatpush1.xpose.msra.mxu0 %v533
    %1135 = vmatprep.subr.mxu0 0.0
    %1136 = vmatpush1.xpose.msra.mxu0 %v530
    %1137 = vmatprep.subr.mxu0 0.0
    %1138 = vmatpush1.xpose.msra.mxu0 %v527
    %1139 = vmatprep.subr.mxu0 0.0
    %1140 = vmatpush1.xpose.msra.mxu0 %v524
    %1141 = vmatprep.subr.mxu0 0.0
    %1142 = vmatpush1.xpose.msra.mxu0 %v521
    %1143 = vmatprep.subr.mxu0 0.0
    %1144 = vmatpush1.xpose.msra.mxu0 %v518
    %1145 = vmatprep.subr.mxu0 0.0
    %1146 = vmatpush1.xpose.msra.mxu0 %v515
    %1147 = vmatprep.subr.mxu0 0.0
    %1148 = vmatpush1.xpose.msra.mxu0 %v512
    %1149 = vmatprep.subr.mxu0 0.0
    %1150 = vmatpush1.xpose.msra.mxu0 %v509
    %1151 = vmatprep.subr.mxu0 0.0
    %1152 = vmatpush1.xpose.msra.mxu0 %v506
    %1153 = vmatprep.subr.mxu0 0.0
    %1154 = vmatpush2.xpose.msra.mxu0 0.0
    %1155 = vmatprep.subr.mxu0 0.0
    %1156 = vmatpush2.xpose.msra.mxu0 0.0
    %1157 = vmatprep.subr.mxu0 0.0
    %1158 = vmatpush2.xpose.msra.mxu0 0.0
    %1159 = vmatprep.subr.mxu0 0.0
    %1160 = vmatpush2.xpose.msra.mxu0 0.0
    %1161 = vmatprep.subr.mxu0 0.0
    %1162 = vmatpush2.xpose.msra.mxu0 0.0
    %1163 = vmatprep.subr.mxu0 0.0
    %1164 = vmatpush2.xpose.msra.mxu0 0.0
    %1165 = vmatprep.subr.mxu0 0.0
    %1166 = vmatpush2.xpose.msra.mxu0 0.0
    %1167 = vmatprep.subr.mxu0 0.0
    %1168 = vmatpush2.xpose.msra.mxu0 0.0
    %1169 = vmatprep.subr.mxu0 0.0
    %1170 = vmatpush2.xpose.msra.mxu0 0.0
    %1171 = vmatprep.subr.mxu0 0.0
    %1172 = vmatpush2.xpose.msra.mxu0 0.0
    %1173 = vmatprep.subr.mxu0 0.0
    %1174 = vmatpush2.xpose.msra.mxu0 0.0
    %1175 = vmatprep.subr.mxu0 0.0
    %1176 = vmatpush2.xpose.msra.mxu0 0.0
    %1177 = vmatprep.subr.mxu0 0.0
    %1178 = vmatpush2.xpose.msra.mxu0 0.0
    %1179 = vmatprep.subr.mxu0 0.0
    %1180 = vmatpush2.xpose.msra.mxu0 0.0
    %1181 = vmatprep.subr.mxu0 0.0
    %1182 = vmatpush2.xpose.msra.mxu0 0.0
    %1183 = vmatprep.subr.mxu0 0.0
    %1184 = vmatpush2.xpose.msra.mxu0 %v554
    %1185 = vmatprep.mubr.f32.mxu0 0.0
    %1186 = vmatmul.mubr.f32.gmra.mxu0 %v290
    %v1187 = vpop.f32.mrf.mxu0
    %v1188 = vadd.f32 %v1075, %v1187
    %v1189 = vpop.f32.mrf.mxu0
    %v1190 = vadd.f32 %v1077, %v1189
    %1191 = vmatprep.mubr.f32.mxu0 0.0
    %1192 = vmatmul.mubr.f32.gmra.mxu0 %v293
    %v1193 = vpop.f32.mrf.mxu0
    %v1194 = vadd.f32 %v1081, %v1193
    %v1195 = vpop.f32.mrf.mxu0
    %v1196 = vadd.f32 %v1083, %v1195
    %1197 = vmatprep.mubr.f32.mxu0 0.0
    %1198 = vmatmul.mubr.f32.gmra.mxu0 %v296
    %v1199 = vpop.f32.mrf.mxu0
    %v1200 = vadd.f32 %v1087, %v1199
    %v1201 = vpop.f32.mrf.mxu0
    %v1202 = vadd.f32 %v1089, %v1201
    %1203 = vmatprep.mubr.f32.mxu0 0.0
    %1204 = vmatmul.mubr.f32.gmra.mxu0 %v299
    %v1205 = vpop.f32.mrf.mxu0
    %v1206 = vadd.f32 %v1093, %v1205
    %v1207 = vpop.f32.mrf.mxu0
    %v1208 = vadd.f32 %v1095, %v1207
    %1209 = vmatprep.mubr.f32.mxu0 0.0
    %1210 = vmatmul.mubr.f32.gmra.mxu0 %v302
    %v1211 = vpop.f32.mrf.mxu0
    %v1212 = vadd.f32 %v1099, %v1211
    %v1213 = vpop.f32.mrf.mxu0
    %v1214 = vadd.f32 %v1101, %v1213
    %1215 = vmatprep.mubr.f32.mxu0 0.0
    %1216 = vmatmul.mubr.f32.gmra.mxu0 %v305
    %v1217 = vpop.f32.mrf.mxu0
    %v1218 = vadd.f32 %v1105, %v1217
    %v1219 = vpop.f32.mrf.mxu0
    %v1220 = vadd.f32 %v1107, %v1219
    %1221 = vmatprep.mubr.f32.mxu0 0.0
    %1222 = vmatmul.mubr.f32.gmra.mxu0 %v308
    %v1223 = vpop.f32.mrf.mxu0
    %v1224 = vadd.f32 %v1111, %v1223
    %v1225 = vpop.f32.mrf.mxu0
    %v1226 = vadd.f32 %v1113, %v1225
    %1227 = vmatprep.mubr.f32.mxu0 0.0
    %1228 = vmatmul.mubr.f32.gmra.mxu0 %v311
    %v1229 = vpop.f32.mrf.mxu0
    %v1230 = vadd.f32 %v1117, %v1229
    %v1231 = vpop.f32.mrf.mxu0
    %v1232 = vadd.f32 %v1119, %v1231
    %1233 = vdwg.mxu0
    %v1234 = vld [vmem:[%s2] sm:$0xff]
    %v1235 = vld [vmem:[%s2 + $0x8] sm:$0xff]
    %v1236 = vld [vmem:[%s2 + $0x10] sm:$0xff]
    %v1237 = vld [vmem:[%s2 + $0x18] sm:$0xff]
    %v1238 = vld [vmem:[%s2 + $0x20] sm:$0xff]
    %v1239 = vld [vmem:[%s2 + $0x28] sm:$0xff]
    %v1240 = vld [vmem:[%s2 + $0x30] sm:$0xff]
    %v1241 = vld [vmem:[%s2 + $0x38] sm:$0xff]
    %v1242 = vld [vmem:[%s2 + $0x40] sm:$0xff]
    %v1243 = vld [vmem:[%s2 + $0x48] sm:$0xff]
    %v1244 = vld [vmem:[%s2 + $0x50] sm:$0xff]
    %v1245 = vld [vmem:[%s2 + $0x58] sm:$0xff]
    %v1246 = vld [vmem:[%s2 + $0x60] sm:$0xff]
    %v1247 = vld [vmem:[%s2 + $0x68] sm:$0xff]
    %v1248 = vld [vmem:[%s2 + $0x70] sm:$0xff]
    %v1249 = vld [vmem:[%s2 + $0x78] sm:$0xff]
    %v1250 = vld [vmem:[%s2 + $0x80] sm:$0xff]
    %v1251 = vld [vmem:[%s2 + $0x88] sm:$0xff]
    %v1252 = vld [vmem:[%s2 + $0x90] sm:$0xff]
    %v1253 = vld [vmem:[%s2 + $0x98] sm:$0xff]
    %v1254 = vld [vmem:[%s2 + $0xa0] sm:$0xff]
    %v1255 = vld [vmem:[%s2 + $0xa8] sm:$0xff]
    %v1256 = vld [vmem:[%s2 + $0xb0] sm:$0xff]
    %v1257 = vld [vmem:[%s2 + $0xb8] sm:$0xff]
    %v1258 = vld [vmem:[%s2 + $0xc0] sm:$0xff]
    %v1259 = vld [vmem:[%s2 + $0xc8] sm:$0xff]
    %v1260 = vld [vmem:[%s2 + $0xd0] sm:$0xff]
    %v1261 = vld [vmem:[%s2 + $0xd8] sm:$0xff]
    %v1262 = vld [vmem:[%s2 + $0xe0] sm:$0xff]
    %v1263 = vld [vmem:[%s2 + $0xe8] sm:$0xff]
    %v1264 = vld [vmem:[%s2 + $0xf0] sm:$0xff]
    %v1265 = vld [vmem:[%s2 + $0xf8] sm:$0xff]
    %v1266 = vld [vmem:[%s2 + $0x100] sm:$0xff]
    %v1267 = vld [vmem:[%s2 + $0x108] sm:$0xff]
    %v1268 = vld [vmem:[%s2 + $0x110] sm:$0xff]
    %v1269 = vld [vmem:[%s2 + $0x118] sm:$0xff]
    %v1270 = vld [vmem:[%s2 + $0x120] sm:$0xff]
    %v1271 = vld [vmem:[%s2 + $0x128] sm:$0xff]
    %v1272 = vld [vmem:[%s2 + $0x130] sm:$0xff]
    %v1273 = vld [vmem:[%s2 + $0x138] sm:$0xff]
    %v1274 = vld [vmem:[%s2 + $0x140] sm:$0xff]
    %v1275 = vld [vmem:[%s2 + $0x148] sm:$0xff]
    %v1276 = vld [vmem:[%s2 + $0x150] sm:$0xff]
    %v1277 = vld [vmem:[%s2 + $0x158] sm:$0xff]
    %v1278 = vld [vmem:[%s2 + $0x160] sm:$0xff]
    %v1279 = vld [vmem:[%s2 + $0x168] sm:$0xff]
    %v1280 = vld [vmem:[%s2 + $0x170] sm:$0xff]
    %v1281 = vld [vmem:[%s2 + $0x178] sm:$0xff]
    %v1282 = vld [vmem:[%s2 + $0x180] sm:$0xff]
    %v1283 = vld [vmem:[%s2 + $0x188] sm:$0xff]
    %v1284 = vld [vmem:[%s2 + $0x190] sm:$0xff]
    %v1285 = vld [vmem:[%s2 + $0x198] sm:$0xff]
    %v1286 = vld [vmem:[%s2 + $0x1a0] sm:$0xff]
    %v1287 = vld [vmem:[%s2 + $0x1a8] sm:$0xff]
    %v1288 = vld [vmem:[%s2 + $0x1b0] sm:$0xff]
    %v1289 = vld [vmem:[%s2 + $0x1b8] sm:$0xff]
    %v1290 = vld [vmem:[%s2 + $0x1c0] sm:$0xff]
    %v1291 = vld [vmem:[%s2 + $0x1c8] sm:$0xff]
    %v1292 = vld [vmem:[%s2 + $0x1d0] sm:$0xff]
    %v1293 = vld [vmem:[%s2 + $0x1d8] sm:$0xff]
    %v1294 = vld [vmem:[%s2 + $0x1e0] sm:$0xff]
    %v1295 = vld [vmem:[%s2 + $0x1e8] sm:$0xff]
    %v1296 = vld [vmem:[%s2 + $0x1f0] sm:$0xff]
    %v1297 = vld [vmem:[%s2 + $0x1f8] sm:$0xff]
    %v1298 = vld [vmem:[%s2 + $0x200] sm:$0xff]
    %v1299 = vld [vmem:[%s2 + $0x208] sm:$0xff]
    %v1300 = vld [vmem:[%s2 + $0x210] sm:$0xff]
    %v1301 = vld [vmem:[%s2 + $0x218] sm:$0xff]
    %v1302 = vld [vmem:[%s2 + $0x220] sm:$0xff]
    %v1303 = vld [vmem:[%s2 + $0x228] sm:$0xff]
    %v1304 = vld [vmem:[%s2 + $0x230] sm:$0xff]
    %v1305 = vld [vmem:[%s2 + $0x238] sm:$0xff]
    %v1306 = vld [vmem:[%s2 + $0x240] sm:$0xff]
    %v1307 = vld [vmem:[%s2 + $0x248] sm:$0xff]
    %v1308 = vld [vmem:[%s2 + $0x250] sm:$0xff]
    %v1309 = vld [vmem:[%s2 + $0x258] sm:$0xff]
    %v1310 = vld [vmem:[%s2 + $0x260] sm:$0xff]
    %v1311 = vld [vmem:[%s2 + $0x268] sm:$0xff]
    %v1312 = vld [vmem:[%s2 + $0x270] sm:$0xff]
    %v1313 = vld [vmem:[%s2 + $0x278] sm:$0xff]
    %v1314 = vld [vmem:[%s2 + $0x280] sm:$0xff]
    %v1315 = vld [vmem:[%s2 + $0x288] sm:$0xff]
    %v1316 = vld [vmem:[%s2 + $0x290] sm:$0xff]
    %v1317 = vld [vmem:[%s2 + $0x298] sm:$0xff]
    %v1318 = vld [vmem:[%s2 + $0x2a0] sm:$0xff]
    %v1319 = vld [vmem:[%s2 + $0x2a8] sm:$0xff]
    %v1320 = vld [vmem:[%s2 + $0x2b0] sm:$0xff]
    %v1321 = vld [vmem:[%s2 + $0x2b8] sm:$0xff]
    %v1322 = vld [vmem:[%s2 + $0x2c0] sm:$0xff]
    %v1323 = vld [vmem:[%s2 + $0x2c8] sm:$0xff]
    %v1324 = vld [vmem:[%s2 + $0x2d0] sm:$0xff]
    %v1325 = vld [vmem:[%s2 + $0x2d8] sm:$0xff]
    %v1326 = vld [vmem:[%s2 + $0x2e0] sm:$0xff]
    %v1327 = vld [vmem:[%s2 + $0x2e8] sm:$0xff]
    %v1328 = vld [vmem:[%s2 + $0x2f0] sm:$0xff]
    %v1329 = vld [vmem:[%s2 + $0x2f8] sm:$0xff]
    %v1330 = vld [vmem:[%s2 + $0x300] sm:$0xff]
    %v1331 = vld [vmem:[%s2 + $0x308] sm:$0xff]
    %v1332 = vld [vmem:[%s2 + $0x310] sm:$0xff]
    %v1333 = vld [vmem:[%s2 + $0x318] sm:$0xff]
    %v1334 = vld [vmem:[%s2 + $0x320] sm:$0xff]
    %v1335 = vld [vmem:[%s2 + $0x328] sm:$0xff]
    %v1336 = vld [vmem:[%s2 + $0x330] sm:$0xff]
    %v1337 = vld [vmem:[%s2 + $0x338] sm:$0xff]
    %v1338 = vld [vmem:[%s2 + $0x340] sm:$0xff]
    %v1339 = vld [vmem:[%s2 + $0x348] sm:$0xff]
    %v1340 = vld [vmem:[%s2 + $0x350] sm:$0xff]
    %v1341 = vld [vmem:[%s2 + $0x358] sm:$0xff]
    %v1342 = vld [vmem:[%s2 + $0x360] sm:$0xff]
    %v1343 = vld [vmem:[%s2 + $0x368] sm:$0xff]
    %v1344 = vld [vmem:[%s2 + $0x370] sm:$0xff]
    %v1345 = vld [vmem:[%s2 + $0x378] sm:$0xff]
    %v1346 = vld [vmem:[%s2 + $0x380] sm:$0xff]
    %v1347 = vld [vmem:[%s2 + $0x388] sm:$0xff]
    %v1348 = vld [vmem:[%s2 + $0x390] sm:$0xff]
    %v1349 = vld [vmem:[%s2 + $0x398] sm:$0xff]
    %v1350 = vld [vmem:[%s2 + $0x3a0] sm:$0xff]
    %v1351 = vld [vmem:[%s2 + $0x3a8] sm:$0xff]
    %v1352 = vld [vmem:[%s2 + $0x3b0] sm:$0xff]
    %v1353 = vld [vmem:[%s2 + $0x3b8] sm:$0xff]
    %v1354 = vld [vmem:[%s2 + $0x3c0] sm:$0xff]
    %v1355 = vld [vmem:[%s2 + $0x3c8] sm:$0xff]
    %v1356 = vld [vmem:[%s2 + $0x3d0] sm:$0xff]
    %v1357 = vld [vmem:[%s2 + $0x3d8] sm:$0xff]
    %v1358 = vld [vmem:[%s2 + $0x3e0] sm:$0xff]
    %v1359 = vld [vmem:[%s2 + $0x3e8] sm:$0xff]
    %v1360 = vld [vmem:[%s2 + $0x3f0] sm:$0xff]
    %v1361 = vld [vmem:[%s2 + $0x3f8] sm:$0xff]
    %v1362 = vld [vmem:[%s2 + $0x400] sm:$0xff]
    %v1363 = vld [vmem:[%s2 + $0x408] sm:$0xff]
    %v1364 = vld [vmem:[%s2 + $0x410] sm:$0xff]
    %v1365 = vld [vmem:[%s2 + $0x418] sm:$0xff]
    %v1366 = vld [vmem:[%s2 + $0x420] sm:$0xff]
    %v1367 = vld [vmem:[%s2 + $0x428] sm:$0xff]
    %v1368 = vld [vmem:[%s2 + $0x430] sm:$0xff]
    %v1369 = vld [vmem:[%s2 + $0x438] sm:$0xff]
    %v1370 = vld [vmem:[%s2 + $0x440] sm:$0xff]
    %v1371 = vld [vmem:[%s2 + $0x448] sm:$0xff]
    %v1372 = vld [vmem:[%s2 + $0x450] sm:$0xff]
    %v1373 = vld [vmem:[%s2 + $0x458] sm:$0xff]
    %v1374 = vld [vmem:[%s2 + $0x460] sm:$0xff]
    %v1375 = vld [vmem:[%s2 + $0x468] sm:$0xff]
    %v1376 = vld [vmem:[%s2 + $0x470] sm:$0xff]
    %v1377 = vld [vmem:[%s2 + $0x478] sm:$0xff]
    %v1378 = vld [vmem:[%s2 + $0x480] sm:$0xff]
    %v1379 = vld [vmem:[%s2 + $0x488] sm:$0xff]
    %v1380 = vld [vmem:[%s2 + $0x490] sm:$0xff]
    %v1381 = vld [vmem:[%s2 + $0x498] sm:$0xff]
    %v1382 = vld [vmem:[%s2 + $0x4a0] sm:$0xff]
    %v1383 = vld [vmem:[%s2 + $0x4a8] sm:$0xff]
    %v1384 = vld [vmem:[%s2 + $0x4b0] sm:$0xff]
    %v1385 = vld [vmem:[%s2 + $0x4b8] sm:$0xff]
    %v1386 = vld [vmem:[%s2 + $0x4c0] sm:$0xff]
    %v1387 = vld [vmem:[%s2 + $0x4c8] sm:$0xff]
    %v1388 = vld [vmem:[%s2 + $0x4d0] sm:$0xff]
    %v1389 = vld [vmem:[%s2 + $0x4d8] sm:$0xff]
    %v1390 = vld [vmem:[%s2 + $0x4e0] sm:$0xff]
    %v1391 = vld [vmem:[%s2 + $0x4e8] sm:$0xff]
    %v1392 = vld [vmem:[%s2 + $0x4f0] sm:$0xff]
    %v1393 = vld [vmem:[%s2 + $0x4f8] sm:$0xff]
    %v1394 = vld [vmem:[%s2 + $0x500] sm:$0xff]
    %v1395 = vld [vmem:[%s2 + $0x508] sm:$0xff]
    %v1396 = vld [vmem:[%s2 + $0x510] sm:$0xff]
    %v1397 = vld [vmem:[%s2 + $0x518] sm:$0xff]
    %v1398 = vld [vmem:[%s2 + $0x520] sm:$0xff]
    %v1399 = vld [vmem:[%s2 + $0x528] sm:$0xff]
    %v1400 = vld [vmem:[%s2 + $0x530] sm:$0xff]
    %v1401 = vld [vmem:[%s2 + $0x538] sm:$0xff]
    %v1402 = vld [vmem:[%s2 + $0x540] sm:$0xff]
    %v1403 = vld [vmem:[%s2 + $0x548] sm:$0xff]
    %v1404 = vld [vmem:[%s2 + $0x550] sm:$0xff]
    %v1405 = vld [vmem:[%s2 + $0x558] sm:$0xff]
    %v1406 = vld [vmem:[%s2 + $0x560] sm:$0xff]
    %v1407 = vld [vmem:[%s2 + $0x568] sm:$0xff]
    %v1408 = vld [vmem:[%s2 + $0x570] sm:$0xff]
    %v1409 = vld [vmem:[%s2 + $0x578] sm:$0xff]
    %v1410 = vld [vmem:[%s2 + $0x580] sm:$0xff]
    %v1411 = vld [vmem:[%s2 + $0x588] sm:$0xff]
    %v1412 = vld [vmem:[%s2 + $0x590] sm:$0xff]
    %v1413 = vld [vmem:[%s2 + $0x598] sm:$0xff]
    %v1414 = vld [vmem:[%s2 + $0x5a0] sm:$0xff]
    %v1415 = vld [vmem:[%s2 + $0x5a8] sm:$0xff]
    %v1416 = vld [vmem:[%s2 + $0x5b0] sm:$0xff]
    %v1417 = vld [vmem:[%s2 + $0x5b8] sm:$0xff]
    %v1418 = vld [vmem:[%s2 + $0x5c0] sm:$0xff]
    %v1419 = vld [vmem:[%s2 + $0x5c8] sm:$0xff]
    %v1420 = vld [vmem:[%s2 + $0x5d0] sm:$0xff]
    %v1421 = vld [vmem:[%s2 + $0x5d8] sm:$0xff]
    %v1422 = vld [vmem:[%s2 + $0x5e0] sm:$0xff]
    %v1423 = vld [vmem:[%s2 + $0x5e8] sm:$0xff]
    %v1424 = vld [vmem:[%s2 + $0x5f0] sm:$0xff]
    %v1425 = vld [vmem:[%s2 + $0x5f8] sm:$0xff]
    %v1426 = vld [vmem:[%s2 + $0x600] sm:$0xff]
    %v1427 = vld [vmem:[%s2 + $0x608] sm:$0xff]
    %v1428 = vld [vmem:[%s2 + $0x610] sm:$0xff]
    %v1429 = vld [vmem:[%s2 + $0x618] sm:$0xff]
    %v1430 = vld [vmem:[%s2 + $0x620] sm:$0xff]
    %v1431 = vld [vmem:[%s2 + $0x628] sm:$0xff]
    %v1432 = vld [vmem:[%s2 + $0x630] sm:$0xff]
    %v1433 = vld [vmem:[%s2 + $0x638] sm:$0xff]
    %v1434 = vld [vmem:[%s2 + $0x640] sm:$0xff]
    %v1435 = vld [vmem:[%s2 + $0x648] sm:$0xff]
    %v1436 = vld [vmem:[%s2 + $0x650] sm:$0xff]
    %v1437 = vld [vmem:[%s2 + $0x658] sm:$0xff]
    %v1438 = vld [vmem:[%s2 + $0x660] sm:$0xff]
    %v1439 = vld [vmem:[%s2 + $0x668] sm:$0xff]
    %v1440 = vld [vmem:[%s2 + $0x670] sm:$0xff]
    %v1441 = vld [vmem:[%s2 + $0x678] sm:$0xff]
    %v1442 = vld [vmem:[%s2 + $0x680] sm:$0xff]
    %v1443 = vld [vmem:[%s2 + $0x688] sm:$0xff]
    %v1444 = vld [vmem:[%s2 + $0x690] sm:$0xff]
    %v1445 = vld [vmem:[%s2 + $0x698] sm:$0xff]
    %v1446 = vld [vmem:[%s2 + $0x6a0] sm:$0xff]
    %v1447 = vld [vmem:[%s2 + $0x6a8] sm:$0xff]
    %v1448 = vld [vmem:[%s2 + $0x6b0] sm:$0xff]
    %v1449 = vld [vmem:[%s2 + $0x6b8] sm:$0xff]
    %v1450 = vld [vmem:[%s2 + $0x6c0] sm:$0xff]
    %v1451 = vld [vmem:[%s2 + $0x6c8] sm:$0xff]
    %v1452 = vld [vmem:[%s2 + $0x6d0] sm:$0xff]
    %v1453 = vld [vmem:[%s2 + $0x6d8] sm:$0xff]
    %v1454 = vld [vmem:[%s2 + $0x6e0] sm:$0xff]
    %v1455 = vld [vmem:[%s2 + $0x6e8] sm:$0xff]
    %v1456 = vld [vmem:[%s2 + $0x6f0] sm:$0xff]
    %v1457 = vld [vmem:[%s2 + $0x6f8] sm:$0xff]
    %v1458 = vld [vmem:[%s2 + $0x700] sm:$0xff]
    %v1459 = vld [vmem:[%s2 + $0x708] sm:$0xff]
    %v1460 = vld [vmem:[%s2 + $0x710] sm:$0xff]
    %v1461 = vld [vmem:[%s2 + $0x718] sm:$0xff]
    %v1462 = vld [vmem:[%s2 + $0x720] sm:$0xff]
    %v1463 = vld [vmem:[%s2 + $0x728] sm:$0xff]
    %v1464 = vld [vmem:[%s2 + $0x730] sm:$0xff]
    %v1465 = vld [vmem:[%s2 + $0x738] sm:$0xff]
    %v1466 = vld [vmem:[%s2 + $0x740] sm:$0xff]
    %v1467 = vld [vmem:[%s2 + $0x748] sm:$0xff]
    %v1468 = vld [vmem:[%s2 + $0x750] sm:$0xff]
    %v1469 = vld [vmem:[%s2 + $0x758] sm:$0xff]
    %v1470 = vld [vmem:[%s2 + $0x760] sm:$0xff]
    %v1471 = vld [vmem:[%s2 + $0x768] sm:$0xff]
    %v1472 = vld [vmem:[%s2 + $0x770] sm:$0xff]
    %v1473 = vld [vmem:[%s2 + $0x778] sm:$0xff]
    %v1474 = vld [vmem:[%s2 + $0x780] sm:$0xff]
    %v1475 = vld [vmem:[%s2 + $0x788] sm:$0xff]
    %v1476 = vld [vmem:[%s2 + $0x790] sm:$0xff]
    %v1477 = vld [vmem:[%s2 + $0x798] sm:$0xff]
    %v1478 = vld [vmem:[%s2 + $0x7a0] sm:$0xff]
    %v1479 = vld [vmem:[%s2 + $0x7a8] sm:$0xff]
    %v1480 = vld [vmem:[%s2 + $0x7b0] sm:$0xff]
    %v1481 = vld [vmem:[%s2 + $0x7b8] sm:$0xff]
    %v1482 = vld [vmem:[%s2 + $0x7c0] sm:$0xff]
    %v1483 = vld [vmem:[%s2 + $0x7c8] sm:$0xff]
    %v1484 = vld [vmem:[%s2 + $0x7d0] sm:$0xff]
    %v1485 = vld [vmem:[%s2 + $0x7d8] sm:$0xff]
    %v1486 = vld [vmem:[%s2 + $0x7e0] sm:$0xff]
    %v1487 = vld [vmem:[%s2 + $0x7e8] sm:$0xff]
    %v1488 = vld [vmem:[%s2 + $0x7f0] sm:$0xff]
    %v1489 = vld [vmem:[%s2 + $0x7f8] sm:$0xff]
    %v1490 = vld [vmem:[%s2 + $0x800] sm:$0xff]
    %v1491 = vld [vmem:[%s2 + $0x808] sm:$0xff]
    %v1492 = vld [vmem:[%s2 + $0x810] sm:$0xff]
    %v1493 = vld [vmem:[%s2 + $0x818] sm:$0xff]
    %v1494 = vld [vmem:[%s2 + $0x820] sm:$0xff]
    %v1495 = vld [vmem:[%s2 + $0x828] sm:$0xff]
    %v1496 = vld [vmem:[%s2 + $0x830] sm:$0xff]
    %v1497 = vld [vmem:[%s2 + $0x838] sm:$0xff]
    %v1498 = vld [vmem:[%s2 + $0x840] sm:$0xff]
    %v1499 = vld [vmem:[%s2 + $0x848] sm:$0xff]
    %v1500 = vld [vmem:[%s2 + $0x850] sm:$0xff]
    %v1501 = vld [vmem:[%s2 + $0x858] sm:$0xff]
    %v1502 = vld [vmem:[%s2 + $0x860] sm:$0xff]
    %v1503 = vld [vmem:[%s2 + $0x868] sm:$0xff]
    %v1504 = vld [vmem:[%s2 + $0x870] sm:$0xff]
    %v1505 = vld [vmem:[%s2 + $0x878] sm:$0xff]
    %v1506 = vld [vmem:[%s2 + $0x880] sm:$0xff]
    %v1507 = vld [vmem:[%s2 + $0x888] sm:$0xff]
    %v1508 = vld [vmem:[%s2 + $0x890] sm:$0xff]
    %v1509 = vld [vmem:[%s2 + $0x898] sm:$0xff]
    %v1510 = vld [vmem:[%s2 + $0x8a0] sm:$0xff]
    %v1511 = vld [vmem:[%s2 + $0x8a8] sm:$0xff]
    %v1512 = vld [vmem:[%s2 + $0x8b0] sm:$0xff]
    %v1513 = vld [vmem:[%s2 + $0x8b8] sm:$0xff]
    %v1514 = vld [vmem:[%s2 + $0x8c0] sm:$0xff]
    %v1515 = vld [vmem:[%s2 + $0x8c8] sm:$0xff]
    %v1516 = vld [vmem:[%s2 + $0x8d0] sm:$0xff]
    %v1517 = vld [vmem:[%s2 + $0x8d8] sm:$0xff]
    %v1518 = vld [vmem:[%s2 + $0x8e0] sm:$0xff]
    %v1519 = vld [vmem:[%s2 + $0x8e8] sm:$0xff]
    %v1520 = vld [vmem:[%s2 + $0x8f0] sm:$0xff]
    %v1521 = vld [vmem:[%s2 + $0x8f8] sm:$0xff]
    %v1522 = vld [vmem:[%s2 + $0x900] sm:$0xff]
    %v1523 = vld [vmem:[%s2 + $0x908] sm:$0xff]
    %v1524 = vld [vmem:[%s2 + $0x910] sm:$0xff]
    %v1525 = vld [vmem:[%s2 + $0x918] sm:$0xff]
    %v1526 = vld [vmem:[%s2 + $0x920] sm:$0xff]
    %v1527 = vld [vmem:[%s2 + $0x928] sm:$0xff]
    %v1528 = vld [vmem:[%s2 + $0x930] sm:$0xff]
    %v1529 = vld [vmem:[%s2 + $0x938] sm:$0xff]
    %v1530 = vld [vmem:[%s2 + $0x940] sm:$0xff]
    %v1531 = vld [vmem:[%s2 + $0x948] sm:$0xff]
    %v1532 = vld [vmem:[%s2 + $0x950] sm:$0xff]
    %v1533 = vld [vmem:[%s2 + $0x958] sm:$0xff]
    %v1534 = vld [vmem:[%s2 + $0x960] sm:$0xff]
    %v1535 = vld [vmem:[%s2 + $0x968] sm:$0xff]
    %v1536 = vld [vmem:[%s2 + $0x970] sm:$0xff]
    %v1537 = vld [vmem:[%s2 + $0x978] sm:$0xff]
    %v1538 = vld [vmem:[%s2 + $0x980] sm:$0xff]
    %v1539 = vld [vmem:[%s2 + $0x988] sm:$0xff]
    %v1540 = vld [vmem:[%s2 + $0x990] sm:$0xff]
    %v1541 = vld [vmem:[%s2 + $0x998] sm:$0xff]
    %v1542 = vld [vmem:[%s2 + $0x9a0] sm:$0xff]
    %v1543 = vld [vmem:[%s2 + $0x9a8] sm:$0xff]
    %v1544 = vld [vmem:[%s2 + $0x9b0] sm:$0xff]
    %v1545 = vld [vmem:[%s2 + $0x9b8] sm:$0xff]
    %v1546 = vld [vmem:[%s2 + $0x9c0] sm:$0xff]
    %v1547 = vld [vmem:[%s2 + $0x9c8] sm:$0xff]
    %v1548 = vld [vmem:[%s2 + $0x9d0] sm:$0xff]
    %v1549 = vld [vmem:[%s2 + $0x9d8] sm:$0xff]
    %v1550 = vld [vmem:[%s2 + $0x9e0] sm:$0xff]
    %v1551 = vld [vmem:[%s2 + $0x9e8] sm:$0xff]
    %v1552 = vld [vmem:[%s2 + $0x9f0] sm:$0xff]
    %v1553 = vld [vmem:[%s2 + $0x9f8] sm:$0xff]
    %v1554 = vld [vmem:[%s2 + $0xa00] sm:$0xff]
    %v1555 = vld [vmem:[%s2 + $0xa08] sm:$0xff]
    %v1556 = vld [vmem:[%s2 + $0xa10] sm:$0xff]
    %v1557 = vld [vmem:[%s2 + $0xa18] sm:$0xff]
    %v1558 = vld [vmem:[%s2 + $0xa20] sm:$0xff]
    %v1559 = vld [vmem:[%s2 + $0xa28] sm:$0xff]
    %v1560 = vld [vmem:[%s2 + $0xa30] sm:$0xff]
    %v1561 = vld [vmem:[%s2 + $0xa38] sm:$0xff]
    %v1562 = vld [vmem:[%s2 + $0xa40] sm:$0xff]
    %v1563 = vld [vmem:[%s2 + $0xa48] sm:$0xff]
    %v1564 = vld [vmem:[%s2 + $0xa50] sm:$0xff]
    %v1565 = vld [vmem:[%s2 + $0xa58] sm:$0xff]
    %v1566 = vld [vmem:[%s2 + $0xa60] sm:$0xff]
    %v1567 = vld [vmem:[%s2 + $0xa68] sm:$0xff]
    %v1568 = vld [vmem:[%s2 + $0xa70] sm:$0xff]
    %v1569 = vld [vmem:[%s2 + $0xa78] sm:$0xff]
    %v1570 = vld [vmem:[%s2 + $0xa80] sm:$0xff]
    %v1571 = vld [vmem:[%s2 + $0xa88] sm:$0xff]
    %v1572 = vld [vmem:[%s2 + $0xa90] sm:$0xff]
    %v1573 = vld [vmem:[%s2 + $0xa98] sm:$0xff]
    %v1574 = vld [vmem:[%s2 + $0xaa0] sm:$0xff]
    %v1575 = vld [vmem:[%s2 + $0xaa8] sm:$0xff]
    %v1576 = vld [vmem:[%s2 + $0xab0] sm:$0xff]
    %v1577 = vld [vmem:[%s2 + $0xab8] sm:$0xff]
    %v1578 = vld [vmem:[%s2 + $0xac0] sm:$0xff]
    %v1579 = vld [vmem:[%s2 + $0xac8] sm:$0xff]
    %v1580 = vld [vmem:[%s2 + $0xad0] sm:$0xff]
    %v1581 = vld [vmem:[%s2 + $0xad8] sm:$0xff]
    %v1582 = vld [vmem:[%s2 + $0xae0] sm:$0xff]
    %v1583 = vld [vmem:[%s2 + $0xae8] sm:$0xff]
    %v1584 = vld [vmem:[%s2 + $0xaf0] sm:$0xff]
    %v1585 = vld [vmem:[%s2 + $0xaf8] sm:$0xff]
    %v1586 = vld [vmem:[%s2 + $0xb00] sm:$0xff]
    %v1587 = vld [vmem:[%s2 + $0xb08] sm:$0xff]
    %v1588 = vld [vmem:[%s2 + $0xb10] sm:$0xff]
    %v1589 = vld [vmem:[%s2 + $0xb18] sm:$0xff]
    %v1590 = vld [vmem:[%s2 + $0xb20] sm:$0xff]
    %v1591 = vld [vmem:[%s2 + $0xb28] sm:$0xff]
    %v1592 = vld [vmem:[%s2 + $0xb30] sm:$0xff]
    %v1593 = vld [vmem:[%s2 + $0xb38] sm:$0xff]
    %v1594 = vld [vmem:[%s2 + $0xb40] sm:$0xff]
    %v1595 = vld [vmem:[%s2 + $0xb48] sm:$0xff]
    %v1596 = vld [vmem:[%s2 + $0xb50] sm:$0xff]
    %v1597 = vld [vmem:[%s2 + $0xb58] sm:$0xff]
    %v1598 = vld [vmem:[%s2 + $0xb60] sm:$0xff]
    %v1599 = vld [vmem:[%s2 + $0xb68] sm:$0xff]
    %v1600 = vld [vmem:[%s2 + $0xb70] sm:$0xff]
    %v1601 = vld [vmem:[%s2 + $0xb78] sm:$0xff]
    %v1602 = vld [vmem:[%s2 + $0xb80] sm:$0xff]
    %v1603 = vld [vmem:[%s2 + $0xb88] sm:$0xff]
    %v1604 = vld [vmem:[%s2 + $0xb90] sm:$0xff]
    %v1605 = vld [vmem:[%s2 + $0xb98] sm:$0xff]
    %v1606 = vld [vmem:[%s2 + $0xba0] sm:$0xff]
    %v1607 = vld [vmem:[%s2 + $0xba8] sm:$0xff]
    %v1608 = vld [vmem:[%s2 + $0xbb0] sm:$0xff]
    %v1609 = vld [vmem:[%s2 + $0xbb8] sm:$0xff]
    %v1610 = vld [vmem:[%s2 + $0xbc0] sm:$0xff]
    %v1611 = vld [vmem:[%s2 + $0xbc8] sm:$0xff]
    %v1612 = vld [vmem:[%s2 + $0xbd0] sm:$0xff]
    %v1613 = vld [vmem:[%s2 + $0xbd8] sm:$0xff]
    %v1614 = vld [vmem:[%s2 + $0xbe0] sm:$0xff]
    %v1615 = vld [vmem:[%s2 + $0xbe8] sm:$0xff]
    %v1616 = vld [vmem:[%s2 + $0xbf0] sm:$0xff]
    %v1617 = vld [vmem:[%s2 + $0xbf8] sm:$0xff]
    %v1618 = vld [vmem:[%s2 + $0xc00] sm:$0xff]
    %v1619 = vld [vmem:[%s2 + $0xc08] sm:$0xff]
    %v1620 = vld [vmem:[%s2 + $0xc10] sm:$0xff]
    %v1621 = vld [vmem:[%s2 + $0xc18] sm:$0xff]
    %v1622 = vld [vmem:[%s2 + $0xc20] sm:$0xff]
    %v1623 = vld [vmem:[%s2 + $0xc28] sm:$0xff]
    %v1624 = vld [vmem:[%s2 + $0xc30] sm:$0xff]
    %v1625 = vld [vmem:[%s2 + $0xc38] sm:$0xff]
    %v1626 = vld [vmem:[%s2 + $0xc40] sm:$0xff]
    %v1627 = vld [vmem:[%s2 + $0xc48] sm:$0xff]
    %v1628 = vld [vmem:[%s2 + $0xc50] sm:$0xff]
    %v1629 = vld [vmem:[%s2 + $0xc58] sm:$0xff]
    %v1630 = vld [vmem:[%s2 + $0xc60] sm:$0xff]
    %v1631 = vld [vmem:[%s2 + $0xc68] sm:$0xff]
    %v1632 = vld [vmem:[%s2 + $0xc70] sm:$0xff]
    %v1633 = vld [vmem:[%s2 + $0xc78] sm:$0xff]
    %v1634 = vld [vmem:[%s2 + $0xc80] sm:$0xff]
    %v1635 = vld [vmem:[%s2 + $0xc88] sm:$0xff]
    %v1636 = vld [vmem:[%s2 + $0xc90] sm:$0xff]
    %v1637 = vld [vmem:[%s2 + $0xc98] sm:$0xff]
    %v1638 = vld [vmem:[%s2 + $0xca0] sm:$0xff]
    %v1639 = vld [vmem:[%s2 + $0xca8] sm:$0xff]
    %v1640 = vld [vmem:[%s2 + $0xcb0] sm:$0xff]
    %v1641 = vld [vmem:[%s2 + $0xcb8] sm:$0xff]
    %v1642 = vld [vmem:[%s2 + $0xcc0] sm:$0xff]
    %v1643 = vld [vmem:[%s2 + $0xcc8] sm:$0xff]
    %v1644 = vld [vmem:[%s2 + $0xcd0] sm:$0xff]
    %v1645 = vld [vmem:[%s2 + $0xcd8] sm:$0xff]
    %v1646 = vld [vmem:[%s2 + $0xce0] sm:$0xff]
    %v1647 = vld [vmem:[%s2 + $0xce8] sm:$0xff]
    %v1648 = vld [vmem:[%s2 + $0xcf0] sm:$0xff]
    %v1649 = vld [vmem:[%s2 + $0xcf8] sm:$0xff]
    %v1650 = vld [vmem:[%s2 + $0xd00] sm:$0xff]
    %v1651 = vld [vmem:[%s2 + $0xd08] sm:$0xff]
    %v1652 = vld [vmem:[%s2 + $0xd10] sm:$0xff]
    %v1653 = vld [vmem:[%s2 + $0xd18] sm:$0xff]
    %v1654 = vld [vmem:[%s2 + $0xd20] sm:$0xff]
    %v1655 = vld [vmem:[%s2 + $0xd28] sm:$0xff]
    %v1656 = vld [vmem:[%s2 + $0xd30] sm:$0xff]
    %v1657 = vld [vmem:[%s2 + $0xd38] sm:$0xff]
    %v1658 = vld [vmem:[%s2 + $0xd40] sm:$0xff]
    %v1659 = vld [vmem:[%s2 + $0xd48] sm:$0xff]
    %v1660 = vld [vmem:[%s2 + $0xd50] sm:$0xff]
    %v1661 = vld [vmem:[%s2 + $0xd58] sm:$0xff]
    %v1662 = vld [vmem:[%s2 + $0xd60] sm:$0xff]
    %v1663 = vld [vmem:[%s2 + $0xd68] sm:$0xff]
    %v1664 = vld [vmem:[%s2 + $0xd70] sm:$0xff]
    %v1665 = vld [vmem:[%s2 + $0xd78] sm:$0xff]
    %v1666 = vld [vmem:[%s2 + $0xd80] sm:$0xff]
    %v1667 = vld [vmem:[%s2 + $0xd88] sm:$0xff]
    %v1668 = vld [vmem:[%s2 + $0xd90] sm:$0xff]
    %v1669 = vld [vmem:[%s2 + $0xd98] sm:$0xff]
    %v1670 = vld [vmem:[%s2 + $0xda0] sm:$0xff]
    %v1671 = vld [vmem:[%s2 + $0xda8] sm:$0xff]
    %v1672 = vld [vmem:[%s2 + $0xdb0] sm:$0xff]
    %v1673 = vld [vmem:[%s2 + $0xdb8] sm:$0xff]
    %v1674 = vld [vmem:[%s2 + $0xdc0] sm:$0xff]
    %v1675 = vld [vmem:[%s2 + $0xdc8] sm:$0xff]
    %v1676 = vld [vmem:[%s2 + $0xdd0] sm:$0xff]
    %v1677 = vld [vmem:[%s2 + $0xdd8] sm:$0xff]
    %v1678 = vld [vmem:[%s2 + $0xde0] sm:$0xff]
    %v1679 = vld [vmem:[%s2 + $0xde8] sm:$0xff]
    %v1680 = vld [vmem:[%s2 + $0xdf0] sm:$0xff]
    %v1681 = vld [vmem:[%s2 + $0xdf8] sm:$0xff]
    %v1682 = vld [vmem:[%s2 + $0xe00] sm:$0xff]
    %v1683 = vld [vmem:[%s2 + $0xe08] sm:$0xff]
    %v1684 = vld [vmem:[%s2 + $0xe10] sm:$0xff]
    %v1685 = vld [vmem:[%s2 + $0xe18] sm:$0xff]
    %v1686 = vld [vmem:[%s2 + $0xe20] sm:$0xff]
    %v1687 = vld [vmem:[%s2 + $0xe28] sm:$0xff]
    %v1688 = vld [vmem:[%s2 + $0xe30] sm:$0xff]
    %v1689 = vld [vmem:[%s2 + $0xe38] sm:$0xff]
    %v1690 = vld [vmem:[%s2 + $0xe40] sm:$0xff]
    %v1691 = vld [vmem:[%s2 + $0xe48] sm:$0xff]
    %v1692 = vld [vmem:[%s2 + $0xe50] sm:$0xff]
    %v1693 = vld [vmem:[%s2 + $0xe58] sm:$0xff]
    %v1694 = vld [vmem:[%s2 + $0xe60] sm:$0xff]
    %v1695 = vld [vmem:[%s2 + $0xe68] sm:$0xff]
    %v1696 = vld [vmem:[%s2 + $0xe70] sm:$0xff]
    %v1697 = vld [vmem:[%s2 + $0xe78] sm:$0xff]
    %v1698 = vld [vmem:[%s2 + $0xe80] sm:$0xff]
    %v1699 = vld [vmem:[%s2 + $0xe88] sm:$0xff]
    %v1700 = vld [vmem:[%s2 + $0xe90] sm:$0xff]
    %v1701 = vld [vmem:[%s2 + $0xe98] sm:$0xff]
    %v1702 = vld [vmem:[%s2 + $0xea0] sm:$0xff]
    %v1703 = vld [vmem:[%s2 + $0xea8] sm:$0xff]
    %v1704 = vld [vmem:[%s2 + $0xeb0] sm:$0xff]
    %v1705 = vld [vmem:[%s2 + $0xeb8] sm:$0xff]
    %v1706 = vld [vmem:[%s2 + $0xec0] sm:$0xff]
    %v1707 = vld [vmem:[%s2 + $0xec8] sm:$0xff]
    %v1708 = vld [vmem:[%s2 + $0xed0] sm:$0xff]
    %v1709 = vld [vmem:[%s2 + $0xed8] sm:$0xff]
    %v1710 = vld [vmem:[%s2 + $0xee0] sm:$0xff]
    %v1711 = vld [vmem:[%s2 + $0xee8] sm:$0xff]
    %v1712 = vld [vmem:[%s2 + $0xef0] sm:$0xff]
    %v1713 = vld [vmem:[%s2 + $0xef8] sm:$0xff]
    %v1714 = vld [vmem:[%s2 + $0xf00] sm:$0xff]
    %v1715 = vld [vmem:[%s2 + $0xf08] sm:$0xff]
    %v1716 = vld [vmem:[%s2 + $0xf10] sm:$0xff]
    %v1717 = vld [vmem:[%s2 + $0xf18] sm:$0xff]
    %v1718 = vld [vmem:[%s2 + $0xf20] sm:$0xff]
    %v1719 = vld [vmem:[%s2 + $0xf28] sm:$0xff]
    %v1720 = vld [vmem:[%s2 + $0xf30] sm:$0xff]
    %v1721 = vld [vmem:[%s2 + $0xf38] sm:$0xff]
    %v1722 = vld [vmem:[%s2 + $0xf40] sm:$0xff]
    %v1723 = vld [vmem:[%s2 + $0xf48] sm:$0xff]
    %v1724 = vld [vmem:[%s2 + $0xf50] sm:$0xff]
    %v1725 = vld [vmem:[%s2 + $0xf58] sm:$0xff]
    %v1726 = vld [vmem:[%s2 + $0xf60] sm:$0xff]
    %v1727 = vld [vmem:[%s2 + $0xf68] sm:$0xff]
    %v1728 = vld [vmem:[%s2 + $0xf70] sm:$0xff]
    %v1729 = vld [vmem:[%s2 + $0xf78] sm:$0xff]
    %v1730 = vld [vmem:[%s2 + $0xf80] sm:$0xff]
    %v1731 = vld [vmem:[%s2 + $0xf88] sm:$0xff]
    %v1732 = vld [vmem:[%s2 + $0xf90] sm:$0xff]
    %v1733 = vld [vmem:[%s2 + $0xf98] sm:$0xff]
    %v1734 = vld [vmem:[%s2 + $0xfa0] sm:$0xff]
    %v1735 = vld [vmem:[%s2 + $0xfa8] sm:$0xff]
    %v1736 = vld [vmem:[%s2 + $0xfb0] sm:$0xff]
    %v1737 = vld [vmem:[%s2 + $0xfb8] sm:$0xff]
    %v1738 = vld [vmem:[%s2 + $0xfc0] sm:$0xff]
    %v1739 = vld [vmem:[%s2 + $0xfc8] sm:$0xff]
    %v1740 = vld [vmem:[%s2 + $0xfd0] sm:$0xff]
    %v1741 = vld [vmem:[%s2 + $0xfd8] sm:$0xff]
    %v1742 = vld [vmem:[%s2 + $0xfe0] sm:$0xff]
    %v1743 = vld [vmem:[%s2 + $0xfe8] sm:$0xff]
    %v1744 = vld [vmem:[%s2 + $0xff0] sm:$0xff]
    %v1745 = vld [vmem:[%s2 + $0xff8] sm:$0xff]
    %v1746 = vld [vmem:[%s2 + $0x1000] sm:$0xff]
    %v1747 = vld [vmem:[%s2 + $0x1008] sm:$0xff]
    %v1748 = vld [vmem:[%s2 + $0x1010] sm:$0xff]
    %v1749 = vld [vmem:[%s2 + $0x1018] sm:$0xff]
    %v1750 = vld [vmem:[%s2 + $0x1020] sm:$0xff]
    %v1751 = vld [vmem:[%s2 + $0x1028] sm:$0xff]
    %v1752 = vld [vmem:[%s2 + $0x1030] sm:$0xff]
    %v1753 = vld [vmem:[%s2 + $0x1038] sm:$0xff]
    %v1754 = vld [vmem:[%s2 + $0x1040] sm:$0xff]
    %v1755 = vld [vmem:[%s2 + $0x1048] sm:$0xff]
    %v1756 = vld [vmem:[%s2 + $0x1050] sm:$0xff]
    %v1757 = vld [vmem:[%s2 + $0x1058] sm:$0xff]
    %v1758 = vld [vmem:[%s2 + $0x1060] sm:$0xff]
    %v1759 = vld [vmem:[%s2 + $0x1068] sm:$0xff]
    %v1760 = vld [vmem:[%s2 + $0x1070] sm:$0xff]
    %v1761 = vld [vmem:[%s2 + $0x1078] sm:$0xff]
    %v1762 = vld [vmem:[%s2 + $0x1080] sm:$0xff]
    %v1763 = vld [vmem:[%s2 + $0x1088] sm:$0xff]
    %v1764 = vld [vmem:[%s2 + $0x1090] sm:$0xff]
    %v1765 = vld [vmem:[%s2 + $0x1098] sm:$0xff]
    %v1766 = vld [vmem:[%s2 + $0x10a0] sm:$0xff]
    %v1767 = vld [vmem:[%s2 + $0x10a8] sm:$0xff]
    %v1768 = vld [vmem:[%s2 + $0x10b0] sm:$0xff]
    %v1769 = vld [vmem:[%s2 + $0x10b8] sm:$0xff]
    %v1770 = vld [vmem:[%s2 + $0x10c0] sm:$0xff]
    %v1771 = vld [vmem:[%s2 + $0x10c8] sm:$0xff]
    %v1772 = vld [vmem:[%s2 + $0x10d0] sm:$0xff]
    %v1773 = vld [vmem:[%s2 + $0x10d8] sm:$0xff]
    %v1774 = vld [vmem:[%s2 + $0x10e0] sm:$0xff]
    %v1775 = vld [vmem:[%s2 + $0x10e8] sm:$0xff]
    %v1776 = vld [vmem:[%s2 + $0x10f0] sm:$0xff]
    %v1777 = vld [vmem:[%s2 + $0x10f8] sm:$0xff]
    %v1778 = vld [vmem:[%s2 + $0x1100] sm:$0xff]
    %v1779 = vld [vmem:[%s2 + $0x1108] sm:$0xff]
    %v1780 = vld [vmem:[%s2 + $0x1110] sm:$0xff]
    %v1781 = vld [vmem:[%s2 + $0x1118] sm:$0xff]
    %v1782 = vld [vmem:[%s2 + $0x1120] sm:$0xff]
    %v1783 = vld [vmem:[%s2 + $0x1128] sm:$0xff]
    %v1784 = vld [vmem:[%s2 + $0x1130] sm:$0xff]
    %v1785 = vld [vmem:[%s2 + $0x1138] sm:$0xff]
    %v1786 = vld [vmem:[%s2 + $0x1140] sm:$0xff]
    %v1787 = vld [vmem:[%s2 + $0x1148] sm:$0xff]
    %v1788 = vld [vmem:[%s2 + $0x1150] sm:$0xff]
    %v1789 = vld [vmem:[%s2 + $0x1158] sm:$0xff]
    %v1790 = vld [vmem:[%s2 + $0x1160] sm:$0xff]
    %v1791 = vld [vmem:[%s2 + $0x1168] sm:$0xff]
    %v1792 = vld [vmem:[%s2 + $0x1170] sm:$0xff]
    %v1793 = vld [vmem:[%s2 + $0x1178] sm:$0xff]
    %v1794 = vld [vmem:[%s2 + $0x1180] sm:$0xff]
    %v1795 = vld [vmem:[%s2 + $0x1188] sm:$0xff]
    %v1796 = vld [vmem:[%s2 + $0x1190] sm:$0xff]
    %v1797 = vld [vmem:[%s2 + $0x1198] sm:$0xff]
    %v1798 = vld [vmem:[%s2 + $0x11a0] sm:$0xff]
    %v1799 = vld [vmem:[%s2 + $0x11a8] sm:$0xff]
    %v1800 = vld [vmem:[%s2 + $0x11b0] sm:$0xff]
    %v1801 = vld [vmem:[%s2 + $0x11b8] sm:$0xff]
    %v1802 = vld [vmem:[%s2 + $0x11c0] sm:$0xff]
    %v1803 = vld [vmem:[%s2 + $0x11c8] sm:$0xff]
    %v1804 = vld [vmem:[%s2 + $0x11d0] sm:$0xff]
    %v1805 = vld [vmem:[%s2 + $0x11d8] sm:$0xff]
    %v1806 = vld [vmem:[%s2 + $0x11e0] sm:$0xff]
    %v1807 = vld [vmem:[%s2 + $0x11e8] sm:$0xff]
    %v1808 = vld [vmem:[%s2 + $0x11f0] sm:$0xff]
    %v1809 = vld [vmem:[%s2 + $0x11f8] sm:$0xff]
    %v1810 = vld [vmem:[%s2 + $0x1200] sm:$0xff]
    %v1811 = vld [vmem:[%s2 + $0x1208] sm:$0xff]
    %v1812 = vld [vmem:[%s2 + $0x1210] sm:$0xff]
    %v1813 = vld [vmem:[%s2 + $0x1218] sm:$0xff]
    %v1814 = vld [vmem:[%s2 + $0x1220] sm:$0xff]
    %v1815 = vld [vmem:[%s2 + $0x1228] sm:$0xff]
    %v1816 = vld [vmem:[%s2 + $0x1230] sm:$0xff]
    %v1817 = vld [vmem:[%s2 + $0x1238] sm:$0xff]
    %v1818 = vld [vmem:[%s2 + $0x1240] sm:$0xff]
    %v1819 = vld [vmem:[%s2 + $0x1248] sm:$0xff]
    %v1820 = vld [vmem:[%s2 + $0x1250] sm:$0xff]
    %v1821 = vld [vmem:[%s2 + $0x1258] sm:$0xff]
    %v1822 = vld [vmem:[%s2 + $0x1260] sm:$0xff]
    %v1823 = vld [vmem:[%s2 + $0x1268] sm:$0xff]
    %v1824 = vld [vmem:[%s2 + $0x1270] sm:$0xff]
    %v1825 = vld [vmem:[%s2 + $0x1278] sm:$0xff]
    %v1826 = vld [vmem:[%s2 + $0x1280] sm:$0xff]
    %v1827 = vld [vmem:[%s2 + $0x1288] sm:$0xff]
    %v1828 = vld [vmem:[%s2 + $0x1290] sm:$0xff]
    %v1829 = vld [vmem:[%s2 + $0x1298] sm:$0xff]
    %v1830 = vld [vmem:[%s2 + $0x12a0] sm:$0xff]
    %v1831 = vld [vmem:[%s2 + $0x12a8] sm:$0xff]
    %v1832 = vld [vmem:[%s2 + $0x12b0] sm:$0xff]
    %v1833 = vld [vmem:[%s2 + $0x12b8] sm:$0xff]
    %v1834 = vld [vmem:[%s2 + $0x12c0] sm:$0xff]
    %v1835 = vld [vmem:[%s2 + $0x12c8] sm:$0xff]
    %v1836 = vld [vmem:[%s2 + $0x12d0] sm:$0xff]
    %v1837 = vld [vmem:[%s2 + $0x12d8] sm:$0xff]
    %v1838 = vld [vmem:[%s2 + $0x12e0] sm:$0xff]
    %v1839 = vld [vmem:[%s2 + $0x12e8] sm:$0xff]
    %v1840 = vld [vmem:[%s2 + $0x12f0] sm:$0xff]
    %v1841 = vld [vmem:[%s2 + $0x12f8] sm:$0xff]
    %v1842 = vld [vmem:[%s2 + $0x1300] sm:$0xff]
    %v1843 = vld [vmem:[%s2 + $0x1308] sm:$0xff]
    %v1844 = vld [vmem:[%s2 + $0x1310] sm:$0xff]
    %v1845 = vld [vmem:[%s2 + $0x1318] sm:$0xff]
    %v1846 = vld [vmem:[%s2 + $0x1320] sm:$0xff]
    %v1847 = vld [vmem:[%s2 + $0x1328] sm:$0xff]
    %v1848 = vld [vmem:[%s2 + $0x1330] sm:$0xff]
    %v1849 = vld [vmem:[%s2 + $0x1338] sm:$0xff]
    %v1850 = vld [vmem:[%s2 + $0x1340] sm:$0xff]
    %v1851 = vld [vmem:[%s2 + $0x1348] sm:$0xff]
    %v1852 = vld [vmem:[%s2 + $0x1350] sm:$0xff]
    %v1853 = vld [vmem:[%s2 + $0x1358] sm:$0xff]
    %v1854 = vld [vmem:[%s2 + $0x1360] sm:$0xff]
    %v1855 = vld [vmem:[%s2 + $0x1368] sm:$0xff]
    %v1856 = vld [vmem:[%s2 + $0x1370] sm:$0xff]
    %v1857 = vld [vmem:[%s2 + $0x1378] sm:$0xff]
    %v1858 = vld [vmem:[%s2 + $0x1380] sm:$0xff]
    %v1859 = vld [vmem:[%s2 + $0x1388] sm:$0xff]
    %v1860 = vld [vmem:[%s2 + $0x1390] sm:$0xff]
    %v1861 = vld [vmem:[%s2 + $0x1398] sm:$0xff]
    %v1862 = vld [vmem:[%s2 + $0x13a0] sm:$0xff]
    %v1863 = vld [vmem:[%s2 + $0x13a8] sm:$0xff]
    %v1864 = vld [vmem:[%s2 + $0x13b0] sm:$0xff]
    %v1865 = vld [vmem:[%s2 + $0x13b8] sm:$0xff]
    %v1866 = vld [vmem:[%s2 + $0x13c0] sm:$0xff]
    %v1867 = vld [vmem:[%s2 + $0x13c8] sm:$0xff]
    %v1868 = vld [vmem:[%s2 + $0x13d0] sm:$0xff]
    %v1869 = vld [vmem:[%s2 + $0x13d8] sm:$0xff]
    %v1870 = vld [vmem:[%s2 + $0x13e0] sm:$0xff]
    %v1871 = vld [vmem:[%s2 + $0x13e8] sm:$0xff]
    %v1872 = vld [vmem:[%s2 + $0x13f0] sm:$0xff]
    %v1873 = vld [vmem:[%s2 + $0x13f8] sm:$0xff]
    %v1874 = vld [vmem:[%s2 + $0x1400] sm:$0xff]
    %v1875 = vld [vmem:[%s2 + $0x1408] sm:$0xff]
    %v1876 = vld [vmem:[%s2 + $0x1410] sm:$0xff]
    %v1877 = vld [vmem:[%s2 + $0x1418] sm:$0xff]
    %v1878 = vld [vmem:[%s2 + $0x1420] sm:$0xff]
    %v1879 = vld [vmem:[%s2 + $0x1428] sm:$0xff]
    %v1880 = vld [vmem:[%s2 + $0x1430] sm:$0xff]
    %v1881 = vld [vmem:[%s2 + $0x1438] sm:$0xff]
    %v1882 = vld [vmem:[%s2 + $0x1440] sm:$0xff]
    %v1883 = vld [vmem:[%s2 + $0x1448] sm:$0xff]
    %v1884 = vld [vmem:[%s2 + $0x1450] sm:$0xff]
    %v1885 = vld [vmem:[%s2 + $0x1458] sm:$0xff]
    %v1886 = vld [vmem:[%s2 + $0x1460] sm:$0xff]
    %v1887 = vld [vmem:[%s2 + $0x1468] sm:$0xff]
    %v1888 = vld [vmem:[%s2 + $0x1470] sm:$0xff]
    %v1889 = vld [vmem:[%s2 + $0x1478] sm:$0xff]
    %v1890 = vld [vmem:[%s2 + $0x1480] sm:$0xff]
    %v1891 = vld [vmem:[%s2 + $0x1488] sm:$0xff]
    %v1892 = vld [vmem:[%s2 + $0x1490] sm:$0xff]
    %v1893 = vld [vmem:[%s2 + $0x1498] sm:$0xff]
    %v1894 = vld [vmem:[%s2 + $0x14a0] sm:$0xff]
    %v1895 = vld [vmem:[%s2 + $0x14a8] sm:$0xff]
    %v1896 = vld [vmem:[%s2 + $0x14b0] sm:$0xff]
    %v1897 = vld [vmem:[%s2 + $0x14b8] sm:$0xff]
    %v1898 = vld [vmem:[%s2 + $0x14c0] sm:$0xff]
    %v1899 = vld [vmem:[%s2 + $0x14c8] sm:$0xff]
    %v1900 = vld [vmem:[%s2 + $0x14d0] sm:$0xff]
    %v1901 = vld [vmem:[%s2 + $0x14d8] sm:$0xff]
    %v1902 = vld [vmem:[%s2 + $0x14e0] sm:$0xff]
    %v1903 = vld [vmem:[%s2 + $0x14e8] sm:$0xff]
    %v1904 = vld [vmem:[%s2 + $0x14f0] sm:$0xff]
    %v1905 = vld [vmem:[%s2 + $0x14f8] sm:$0xff]
    %v1906 = vld [vmem:[%s2 + $0x1500] sm:$0xff]
    %v1907 = vld [vmem:[%s2 + $0x1508] sm:$0xff]
    %v1908 = vld [vmem:[%s2 + $0x1510] sm:$0xff]
    %v1909 = vld [vmem:[%s2 + $0x1518] sm:$0xff]
    %v1910 = vld [vmem:[%s2 + $0x1520] sm:$0xff]
    %v1911 = vld [vmem:[%s2 + $0x1528] sm:$0xff]
    %v1912 = vld [vmem:[%s2 + $0x1530] sm:$0xff]
    %v1913 = vld [vmem:[%s2 + $0x1538] sm:$0xff]
    %v1914 = vld [vmem:[%s2 + $0x1540] sm:$0xff]
    %v1915 = vld [vmem:[%s2 + $0x1548] sm:$0xff]
    %v1916 = vld [vmem:[%s2 + $0x1550] sm:$0xff]
    %v1917 = vld [vmem:[%s2 + $0x1558] sm:$0xff]
    %v1918 = vld [vmem:[%s2 + $0x1560] sm:$0xff]
    %v1919 = vld [vmem:[%s2 + $0x1568] sm:$0xff]
    %v1920 = vld [vmem:[%s2 + $0x1570] sm:$0xff]
    %v1921 = vld [vmem:[%s2 + $0x1578] sm:$0xff]
    %v1922 = vld [vmem:[%s2 + $0x1580] sm:$0xff]
    %v1923 = vld [vmem:[%s2 + $0x1588] sm:$0xff]
    %v1924 = vld [vmem:[%s2 + $0x1590] sm:$0xff]
    %v1925 = vld [vmem:[%s2 + $0x1598] sm:$0xff]
    %v1926 = vld [vmem:[%s2 + $0x15a0] sm:$0xff]
    %v1927 = vld [vmem:[%s2 + $0x15a8] sm:$0xff]
    %v1928 = vld [vmem:[%s2 + $0x15b0] sm:$0xff]
    %v1929 = vld [vmem:[%s2 + $0x15b8] sm:$0xff]
    %v1930 = vld [vmem:[%s2 + $0x15c0] sm:$0xff]
    %v1931 = vld [vmem:[%s2 + $0x15c8] sm:$0xff]
    %v1932 = vld [vmem:[%s2 + $0x15d0] sm:$0xff]
    %v1933 = vld [vmem:[%s2 + $0x15d8] sm:$0xff]
    %v1934 = vld [vmem:[%s2 + $0x15e0] sm:$0xff]
    %v1935 = vld [vmem:[%s2 + $0x15e8] sm:$0xff]
    %v1936 = vld [vmem:[%s2 + $0x15f0] sm:$0xff]
    %v1937 = vld [vmem:[%s2 + $0x15f8] sm:$0xff]
    %v1938 = vld [vmem:[%s2 + $0x1600] sm:$0xff]
    %v1939 = vld [vmem:[%s2 + $0x1608] sm:$0xff]
    %v1940 = vld [vmem:[%s2 + $0x1610] sm:$0xff]
    %v1941 = vld [vmem:[%s2 + $0x1618] sm:$0xff]
    %v1942 = vld [vmem:[%s2 + $0x1620] sm:$0xff]
    %v1943 = vld [vmem:[%s2 + $0x1628] sm:$0xff]
    %v1944 = vld [vmem:[%s2 + $0x1630] sm:$0xff]
    %v1945 = vld [vmem:[%s2 + $0x1638] sm:$0xff]
    %v1946 = vld [vmem:[%s2 + $0x1640] sm:$0xff]
    %v1947 = vld [vmem:[%s2 + $0x1648] sm:$0xff]
    %v1948 = vld [vmem:[%s2 + $0x1650] sm:$0xff]
    %v1949 = vld [vmem:[%s2 + $0x1658] sm:$0xff]
    %v1950 = vld [vmem:[%s2 + $0x1660] sm:$0xff]
    %v1951 = vld [vmem:[%s2 + $0x1668] sm:$0xff]
    %v1952 = vld [vmem:[%s2 + $0x1670] sm:$0xff]
    %v1953 = vld [vmem:[%s2 + $0x1678] sm:$0xff]
    %v1954 = vld [vmem:[%s2 + $0x1680] sm:$0xff]
    %v1955 = vld [vmem:[%s2 + $0x1688] sm:$0xff]
    %v1956 = vld [vmem:[%s2 + $0x1690] sm:$0xff]
    %v1957 = vld [vmem:[%s2 + $0x1698] sm:$0xff]
    %v1958 = vld [vmem:[%s2 + $0x16a0] sm:$0xff]
    %v1959 = vld [vmem:[%s2 + $0x16a8] sm:$0xff]
    %v1960 = vld [vmem:[%s2 + $0x16b0] sm:$0xff]
    %v1961 = vld [vmem:[%s2 + $0x16b8] sm:$0xff]
    %v1962 = vld [vmem:[%s2 + $0x16c0] sm:$0xff]
    %v1963 = vld [vmem:[%s2 + $0x16c8] sm:$0xff]
    %v1964 = vld [vmem:[%s2 + $0x16d0] sm:$0xff]
    %v1965 = vld [vmem:[%s2 + $0x16d8] sm:$0xff]
    %v1966 = vld [vmem:[%s2 + $0x16e0] sm:$0xff]
    %v1967 = vld [vmem:[%s2 + $0x16e8] sm:$0xff]
    %v1968 = vld [vmem:[%s2 + $0x16f0] sm:$0xff]
    %v1969 = vld [vmem:[%s2 + $0x16f8] sm:$0xff]
    %v1970 = vld [vmem:[%s2 + $0x1700] sm:$0xff]
    %v1971 = vld [vmem:[%s2 + $0x1708] sm:$0xff]
    %v1972 = vld [vmem:[%s2 + $0x1710] sm:$0xff]
    %v1973 = vld [vmem:[%s2 + $0x1718] sm:$0xff]
    %v1974 = vld [vmem:[%s2 + $0x1720] sm:$0xff]
    %v1975 = vld [vmem:[%s2 + $0x1728] sm:$0xff]
    %v1976 = vld [vmem:[%s2 + $0x1730] sm:$0xff]
    %v1977 = vld [vmem:[%s2 + $0x1738] sm:$0xff]
    %v1978 = vld [vmem:[%s2 + $0x1740] sm:$0xff]
    %v1979 = vld [vmem:[%s2 + $0x1748] sm:$0xff]
    %v1980 = vld [vmem:[%s2 + $0x1750] sm:$0xff]
    %v1981 = vld [vmem:[%s2 + $0x1758] sm:$0xff]
    %v1982 = vld [vmem:[%s2 + $0x1760] sm:$0xff]
    %v1983 = vld [vmem:[%s2 + $0x1768] sm:$0xff]
    %v1984 = vld [vmem:[%s2 + $0x1770] sm:$0xff]
    %v1985 = vld [vmem:[%s2 + $0x1778] sm:$0xff]
    %v1986 = vld [vmem:[%s2 + $0x1780] sm:$0xff]
    %v1987 = vld [vmem:[%s2 + $0x1788] sm:$0xff]
    %v1988 = vld [vmem:[%s2 + $0x1790] sm:$0xff]
    %v1989 = vld [vmem:[%s2 + $0x1798] sm:$0xff]
    %v1990 = vld [vmem:[%s2 + $0x17a0] sm:$0xff]
    %v1991 = vld [vmem:[%s2 + $0x17a8] sm:$0xff]
    %v1992 = vld [vmem:[%s2 + $0x17b0] sm:$0xff]
    %v1993 = vld [vmem:[%s2 + $0x17b8] sm:$0xff]
    %v1994 = vld [vmem:[%s2 + $0x17c0] sm:$0xff]
    %v1995 = vld [vmem:[%s2 + $0x17c8] sm:$0xff]
    %v1996 = vld [vmem:[%s2 + $0x17d0] sm:$0xff]
    %v1997 = vld [vmem:[%s2 + $0x17d8] sm:$0xff]
    %v1998 = vld [vmem:[%s2 + $0x17e0] sm:$0xff]
    %v1999 = vld [vmem:[%s2 + $0x17e8] sm:$0xff]
    %v2000 = vld [vmem:[%s2 + $0x17f0] sm:$0xff]
    %v2001 = vld [vmem:[%s2 + $0x17f8] sm:$0xff]
    %v2002 = vld [vmem:[%s2 + $0x1800] sm:$0xff]
    %v2003 = vld [vmem:[%s2 + $0x1808] sm:$0xff]
    %v2004 = vld [vmem:[%s2 + $0x1810] sm:$0xff]
    %v2005 = vld [vmem:[%s2 + $0x1818] sm:$0xff]
    %v2006 = vld [vmem:[%s2 + $0x1820] sm:$0xff]
    %v2007 = vld [vmem:[%s2 + $0x1828] sm:$0xff]
    %v2008 = vld [vmem:[%s2 + $0x1830] sm:$0xff]
    %v2009 = vld [vmem:[%s2 + $0x1838] sm:$0xff]
    %v2010 = vld [vmem:[%s2 + $0x1840] sm:$0xff]
    %v2011 = vld [vmem:[%s2 + $0x1848] sm:$0xff]
    %v2012 = vld [vmem:[%s2 + $0x1850] sm:$0xff]
    %v2013 = vld [vmem:[%s2 + $0x1858] sm:$0xff]
    %v2014 = vld [vmem:[%s2 + $0x1860] sm:$0xff]
    %v2015 = vld [vmem:[%s2 + $0x1868] sm:$0xff]
    %v2016 = vld [vmem:[%s2 + $0x1870] sm:$0xff]
    %v2017 = vld [vmem:[%s2 + $0x1878] sm:$0xff]
    %v2018 = vld [vmem:[%s2 + $0x1880] sm:$0xff]
    %v2019 = vld [vmem:[%s2 + $0x1888] sm:$0xff]
    %v2020 = vld [vmem:[%s2 + $0x1890] sm:$0xff]
    %v2021 = vld [vmem:[%s2 + $0x1898] sm:$0xff]
    %v2022 = vld [vmem:[%s2 + $0x18a0] sm:$0xff]
    %v2023 = vld [vmem:[%s2 + $0x18a8] sm:$0xff]
    %v2024 = vld [vmem:[%s2 + $0x18b0] sm:$0xff]
    %v2025 = vld [vmem:[%s2 + $0x18b8] sm:$0xff]
    %v2026 = vld [vmem:[%s2 + $0x18c0] sm:$0xff]
    %v2027 = vld [vmem:[%s2 + $0x18c8] sm:$0xff]
    %v2028 = vld [vmem:[%s2 + $0x18d0] sm:$0xff]
    %v2029 = vld [vmem:[%s2 + $0x18d8] sm:$0xff]
    %v2030 = vld [vmem:[%s2 + $0x18e0] sm:$0xff]
    %v2031 = vld [vmem:[%s2 + $0x18e8] sm:$0xff]
    %v2032 = vld [vmem:[%s2 + $0x18f0] sm:$0xff]
    %v2033 = vld [vmem:[%s2 + $0x18f8] sm:$0xff]
    %v2034 = vld [vmem:[%s2 + $0x1900] sm:$0xff]
    %v2035 = vld [vmem:[%s2 + $0x1908] sm:$0xff]
    %v2036 = vld [vmem:[%s2 + $0x1910] sm:$0xff]
    %v2037 = vld [vmem:[%s2 + $0x1918] sm:$0xff]
    %v2038 = vld [vmem:[%s2 + $0x1920] sm:$0xff]
    %v2039 = vld [vmem:[%s2 + $0x1928] sm:$0xff]
    %v2040 = vld [vmem:[%s2 + $0x1930] sm:$0xff]
    %v2041 = vld [vmem:[%s2 + $0x1938] sm:$0xff]
    %v2042 = vld [vmem:[%s2 + $0x1940] sm:$0xff]
    %v2043 = vld [vmem:[%s2 + $0x1948] sm:$0xff]
    %v2044 = vld [vmem:[%s2 + $0x1950] sm:$0xff]
    %v2045 = vld [vmem:[%s2 + $0x1958] sm:$0xff]
    %v2046 = vld [vmem:[%s2 + $0x1960] sm:$0xff]
    %v2047 = vld [vmem:[%s2 + $0x1968] sm:$0xff]
    %v2048 = vld [vmem:[%s2 + $0x1970] sm:$0xff]
    %v2049 = vld [vmem:[%s2 + $0x1978] sm:$0xff]
    %v2050 = vld [vmem:[%s2 + $0x1980] sm:$0xff]
    %v2051 = vld [vmem:[%s2 + $0x1988] sm:$0xff]
    %v2052 = vld [vmem:[%s2 + $0x1990] sm:$0xff]
    %v2053 = vld [vmem:[%s2 + $0x1998] sm:$0xff]
    %v2054 = vld [vmem:[%s2 + $0x19a0] sm:$0xff]
    %v2055 = vld [vmem:[%s2 + $0x19a8] sm:$0xff]
    %v2056 = vld [vmem:[%s2 + $0x19b0] sm:$0xff]
    %v2057 = vld [vmem:[%s2 + $0x19b8] sm:$0xff]
    %v2058 = vld [vmem:[%s2 + $0x19c0] sm:$0xff]
    %v2059 = vld [vmem:[%s2 + $0x19c8] sm:$0xff]
    %v2060 = vld [vmem:[%s2 + $0x19d0] sm:$0xff]
    %v2061 = vld [vmem:[%s2 + $0x19d8] sm:$0xff]
    %v2062 = vld [vmem:[%s2 + $0x19e0] sm:$0xff]
    %v2063 = vld [vmem:[%s2 + $0x19e8] sm:$0xff]
    %v2064 = vld [vmem:[%s2 + $0x19f0] sm:$0xff]
    %v2065 = vld [vmem:[%s2 + $0x19f8] sm:$0xff]
    %v2066 = vld [vmem:[%s2 + $0x1a00] sm:$0xff]
    %v2067 = vld [vmem:[%s2 + $0x1a08] sm:$0xff]
    %v2068 = vld [vmem:[%s2 + $0x1a10] sm:$0xff]
    %v2069 = vld [vmem:[%s2 + $0x1a18] sm:$0xff]
    %v2070 = vld [vmem:[%s2 + $0x1a20] sm:$0xff]
    %v2071 = vld [vmem:[%s2 + $0x1a28] sm:$0xff]
    %v2072 = vld [vmem:[%s2 + $0x1a30] sm:$0xff]
    %v2073 = vld [vmem:[%s2 + $0x1a38] sm:$0xff]
    %v2074 = vld [vmem:[%s2 + $0x1a40] sm:$0xff]
    %v2075 = vld [vmem:[%s2 + $0x1a48] sm:$0xff]
    %v2076 = vld [vmem:[%s2 + $0x1a50] sm:$0xff]
    %v2077 = vld [vmem:[%s2 + $0x1a58] sm:$0xff]
    %v2078 = vld [vmem:[%s2 + $0x1a60] sm:$0xff]
    %v2079 = vld [vmem:[%s2 + $0x1a68] sm:$0xff]
    %v2080 = vld [vmem:[%s2 + $0x1a70] sm:$0xff]
    %v2081 = vld [vmem:[%s2 + $0x1a78] sm:$0xff]
    %v2082 = vld [vmem:[%s2 + $0x1a80] sm:$0xff]
    %v2083 = vld [vmem:[%s2 + $0x1a88] sm:$0xff]
    %v2084 = vld [vmem:[%s2 + $0x1a90] sm:$0xff]
    %v2085 = vld [vmem:[%s2 + $0x1a98] sm:$0xff]
    %v2086 = vld [vmem:[%s2 + $0x1aa0] sm:$0xff]
    %v2087 = vld [vmem:[%s2 + $0x1aa8] sm:$0xff]
    %v2088 = vld [vmem:[%s2 + $0x1ab0] sm:$0xff]
    %v2089 = vld [vmem:[%s2 + $0x1ab8] sm:$0xff]
    %v2090 = vld [vmem:[%s2 + $0x1ac0] sm:$0xff]
    %v2091 = vld [vmem:[%s2 + $0x1ac8] sm:$0xff]
    %v2092 = vld [vmem:[%s2 + $0x1ad0] sm:$0xff]
    %v2093 = vld [vmem:[%s2 + $0x1ad8] sm:$0xff]
    %v2094 = vld [vmem:[%s2 + $0x1ae0] sm:$0xff]
    %v2095 = vld [vmem:[%s2 + $0x1ae8] sm:$0xff]
    %v2096 = vld [vmem:[%s2 + $0x1af0] sm:$0xff]
    %v2097 = vld [vmem:[%s2 + $0x1af8] sm:$0xff]
    %v2098 = vld [vmem:[%s2 + $0x1b00] sm:$0xff]
    %v2099 = vld [vmem:[%s2 + $0x1b08] sm:$0xff]
    %v2100 = vld [vmem:[%s2 + $0x1b10] sm:$0xff]
    %v2101 = vld [vmem:[%s2 + $0x1b18] sm:$0xff]
    %v2102 = vld [vmem:[%s2 + $0x1b20] sm:$0xff]
    %v2103 = vld [vmem:[%s2 + $0x1b28] sm:$0xff]
    %v2104 = vld [vmem:[%s2 + $0x1b30] sm:$0xff]
    %v2105 = vld [vmem:[%s2 + $0x1b38] sm:$0xff]
    %v2106 = vld [vmem:[%s2 + $0x1b40] sm:$0xff]
    %v2107 = vld [vmem:[%s2 + $0x1b48] sm:$0xff]
    %v2108 = vld [vmem:[%s2 + $0x1b50] sm:$0xff]
    %v2109 = vld [vmem:[%s2 + $0x1b58] sm:$0xff]
    %v2110 = vld [vmem:[%s2 + $0x1b60] sm:$0xff]
    %v2111 = vld [vmem:[%s2 + $0x1b68] sm:$0xff]
    %v2112 = vld [vmem:[%s2 + $0x1b70] sm:$0xff]
    %v2113 = vld [vmem:[%s2 + $0x1b78] sm:$0xff]
    %v2114 = vld [vmem:[%s2 + $0x1b80] sm:$0xff]
    %v2115 = vld [vmem:[%s2 + $0x1b88] sm:$0xff]
    %v2116 = vld [vmem:[%s2 + $0x1b90] sm:$0xff]
    %v2117 = vld [vmem:[%s2 + $0x1b98] sm:$0xff]
    %v2118 = vld [vmem:[%s2 + $0x1ba0] sm:$0xff]
    %v2119 = vld [vmem:[%s2 + $0x1ba8] sm:$0xff]
    %v2120 = vld [vmem:[%s2 + $0x1bb0] sm:$0xff]
    %v2121 = vld [vmem:[%s2 + $0x1bb8] sm:$0xff]
    %v2122 = vld [vmem:[%s2 + $0x1bc0] sm:$0xff]
    %v2123 = vld [vmem:[%s2 + $0x1bc8] sm:$0xff]
    %v2124 = vld [vmem:[%s2 + $0x1bd0] sm:$0xff]
    %v2125 = vld [vmem:[%s2 + $0x1bd8] sm:$0xff]
    %v2126 = vld [vmem:[%s2 + $0x1be0] sm:$0xff]
    %v2127 = vld [vmem:[%s2 + $0x1be8] sm:$0xff]
    %v2128 = vld [vmem:[%s2 + $0x1bf0] sm:$0xff]
    %v2129 = vld [vmem:[%s2 + $0x1bf8] sm:$0xff]
    %v2130 = vld [vmem:[%s2 + $0x1c00] sm:$0xff]
    %v2131 = vld [vmem:[%s2 + $0x1c08] sm:$0xff]
    %v2132 = vld [vmem:[%s2 + $0x1c10] sm:$0xff]
    %v2133 = vld [vmem:[%s2 + $0x1c18] sm:$0xff]
    %v2134 = vld [vmem:[%s2 + $0x1c20] sm:$0xff]
    %v2135 = vld [vmem:[%s2 + $0x1c28] sm:$0xff]
    %v2136 = vld [vmem:[%s2 + $0x1c30] sm:$0xff]
    %v2137 = vld [vmem:[%s2 + $0x1c38] sm:$0xff]
    %v2138 = vld [vmem:[%s2 + $0x1c40] sm:$0xff]
    %v2139 = vld [vmem:[%s2 + $0x1c48] sm:$0xff]
    %v2140 = vld [vmem:[%s2 + $0x1c50] sm:$0xff]
    %v2141 = vld [vmem:[%s2 + $0x1c58] sm:$0xff]
    %v2142 = vld [vmem:[%s2 + $0x1c60] sm:$0xff]
    %v2143 = vld [vmem:[%s2 + $0x1c68] sm:$0xff]
    %v2144 = vld [vmem:[%s2 + $0x1c70] sm:$0xff]
    %v2145 = vld [vmem:[%s2 + $0x1c78] sm:$0xff]
    %v2146 = vld [vmem:[%s2 + $0x1c80] sm:$0xff]
    %v2147 = vld [vmem:[%s2 + $0x1c88] sm:$0xff]
    %v2148 = vld [vmem:[%s2 + $0x1c90] sm:$0xff]
    %v2149 = vld [vmem:[%s2 + $0x1c98] sm:$0xff]
    %v2150 = vld [vmem:[%s2 + $0x1ca0] sm:$0xff]
    %v2151 = vld [vmem:[%s2 + $0x1ca8] sm:$0xff]
    %v2152 = vld [vmem:[%s2 + $0x1cb0] sm:$0xff]
    %v2153 = vld [vmem:[%s2 + $0x1cb8] sm:$0xff]
    %v2154 = vld [vmem:[%s2 + $0x1cc0] sm:$0xff]
    %v2155 = vld [vmem:[%s2 + $0x1cc8] sm:$0xff]
    %v2156 = vld [vmem:[%s2 + $0x1cd0] sm:$0xff]
    %v2157 = vld [vmem:[%s2 + $0x1cd8] sm:$0xff]
    %v2158 = vld [vmem:[%s2 + $0x1ce0] sm:$0xff]
    %v2159 = vld [vmem:[%s2 + $0x1ce8] sm:$0xff]
    %v2160 = vld [vmem:[%s2 + $0x1cf0] sm:$0xff]
    %v2161 = vld [vmem:[%s2 + $0x1cf8] sm:$0xff]
    %v2162 = vld [vmem:[%s2 + $0x1d00] sm:$0xff]
    %v2163 = vld [vmem:[%s2 + $0x1d08] sm:$0xff]
    %v2164 = vld [vmem:[%s2 + $0x1d10] sm:$0xff]
    %v2165 = vld [vmem:[%s2 + $0x1d18] sm:$0xff]
    %v2166 = vld [vmem:[%s2 + $0x1d20] sm:$0xff]
    %v2167 = vld [vmem:[%s2 + $0x1d28] sm:$0xff]
    %v2168 = vld [vmem:[%s2 + $0x1d30] sm:$0xff]
    %v2169 = vld [vmem:[%s2 + $0x1d38] sm:$0xff]
    %v2170 = vld [vmem:[%s2 + $0x1d40] sm:$0xff]
    %v2171 = vld [vmem:[%s2 + $0x1d48] sm:$0xff]
    %v2172 = vld [vmem:[%s2 + $0x1d50] sm:$0xff]
    %v2173 = vld [vmem:[%s2 + $0x1d58] sm:$0xff]
    %v2174 = vld [vmem:[%s2 + $0x1d60] sm:$0xff]
    %v2175 = vld [vmem:[%s2 + $0x1d68] sm:$0xff]
    %v2176 = vld [vmem:[%s2 + $0x1d70] sm:$0xff]
    %v2177 = vld [vmem:[%s2 + $0x1d78] sm:$0xff]
    %v2178 = vld [vmem:[%s2 + $0x1d80] sm:$0xff]
    %v2179 = vld [vmem:[%s2 + $0x1d88] sm:$0xff]
    %v2180 = vld [vmem:[%s2 + $0x1d90] sm:$0xff]
    %v2181 = vld [vmem:[%s2 + $0x1d98] sm:$0xff]
    %v2182 = vld [vmem:[%s2 + $0x1da0] sm:$0xff]
    %v2183 = vld [vmem:[%s2 + $0x1da8] sm:$0xff]
    %v2184 = vld [vmem:[%s2 + $0x1db0] sm:$0xff]
    %v2185 = vld [vmem:[%s2 + $0x1db8] sm:$0xff]
    %v2186 = vld [vmem:[%s2 + $0x1dc0] sm:$0xff]
    %v2187 = vld [vmem:[%s2 + $0x1dc8] sm:$0xff]
    %v2188 = vld [vmem:[%s2 + $0x1dd0] sm:$0xff]
    %v2189 = vld [vmem:[%s2 + $0x1dd8] sm:$0xff]
    %v2190 = vld [vmem:[%s2 + $0x1de0] sm:$0xff]
    %v2191 = vld [vmem:[%s2 + $0x1de8] sm:$0xff]
    %v2192 = vld [vmem:[%s2 + $0x1df0] sm:$0xff]
    %v2193 = vld [vmem:[%s2 + $0x1df8] sm:$0xff]
    %v2194 = vld [vmem:[%s2 + $0x1e00] sm:$0xf]
    %v2195 = vld [vmem:[%s2 + $0x1e08] sm:$0xf]
    %v2196 = vld [vmem:[%s2 + $0x1e10] sm:$0xf]
    %v2197 = vld [vmem:[%s2 + $0x1e18] sm:$0xf]
    %v2198 = vld [vmem:[%s2 + $0x1e20] sm:$0xf]
    %v2199 = vld [vmem:[%s2 + $0x1e28] sm:$0xf]
    %vm2200 = vcmask 15360
    %v2202 = vsel %vm2200, %v1190, 0
    %v2205 = vsel %vm2200, %v1196, 0
    %v2208 = vsel %vm2200, %v1202, 0
    %v2211 = vsel %vm2200, %v1208, 0
    %v2214 = vsel %vm2200, %v1214, 0
    %v2217 = vsel %vm2200, %v1220, 0
    %v2220 = vsel %vm2200, %v1226, 0
    %v2223 = vsel %vm2200, %v1232, 0
    %v2226 = vsel %vm2200, %v1239, 0
    %v2229 = vsel %vm2200, %v1245, 0
    %v2232 = vsel %vm2200, %v1251, 0
    %v2235 = vsel %vm2200, %v1257, 0
    %v2238 = vsel %vm2200, %v1263, 0
    %v2241 = vsel %vm2200, %v1269, 0
    %v2244 = vsel %vm2200, %v1275, 0
    %v2247 = vsel %vm2200, %v1281, 0
    %v2250 = vsel %vm2200, %v1287, 0
    %v2253 = vsel %vm2200, %v1293, 0
    %v2256 = vsel %vm2200, %v1299, 0
    %v2259 = vsel %vm2200, %v1305, 0
    %v2262 = vsel %vm2200, %v1311, 0
    %v2265 = vsel %vm2200, %v1317, 0
    %v2268 = vsel %vm2200, %v1323, 0
    %v2271 = vsel %vm2200, %v1329, 0
    %v2274 = vsel %vm2200, %v1335, 0
    %v2277 = vsel %vm2200, %v1341, 0
    %v2280 = vsel %vm2200, %v1347, 0
    %v2283 = vsel %vm2200, %v1353, 0
    %v2286 = vsel %vm2200, %v1359, 0
    %v2289 = vsel %vm2200, %v1365, 0
    %v2292 = vsel %vm2200, %v1371, 0
    %v2295 = vsel %vm2200, %v1377, 0
    %v2298 = vsel %vm2200, %v1383, 0
    %v2301 = vsel %vm2200, %v1389, 0
    %v2304 = vsel %vm2200, %v1395, 0
    %v2307 = vsel %vm2200, %v1401, 0
    %v2310 = vsel %vm2200, %v1407, 0
    %v2313 = vsel %vm2200, %v1413, 0
    %v2316 = vsel %vm2200, %v1419, 0
    %v2319 = vsel %vm2200, %v1425, 0
    %v2322 = vsel %vm2200, %v1431, 0
    %v2325 = vsel %vm2200, %v1437, 0
    %v2328 = vsel %vm2200, %v1443, 0
    %v2331 = vsel %vm2200, %v1449, 0
    %v2334 = vsel %vm2200, %v1455, 0
    %v2337 = vsel %vm2200, %v1461, 0
    %v2340 = vsel %vm2200, %v1467, 0
    %v2343 = vsel %vm2200, %v1473, 0
    %v2346 = vsel %vm2200, %v1479, 0
    %v2349 = vsel %vm2200, %v1485, 0
    %v2352 = vsel %vm2200, %v1491, 0
    %v2355 = vsel %vm2200, %v1497, 0
    %v2358 = vsel %vm2200, %v1503, 0
    %v2361 = vsel %vm2200, %v1509, 0
    %v2364 = vsel %vm2200, %v1515, 0
    %v2367 = vsel %vm2200, %v1521, 0
    %v2370 = vsel %vm2200, %v1527, 0
    %v2373 = vsel %vm2200, %v1533, 0
    %v2376 = vsel %vm2200, %v1539, 0
    %v2379 = vsel %vm2200, %v1545, 0
    %v2382 = vsel %vm2200, %v1551, 0
    %v2385 = vsel %vm2200, %v1557, 0
    %v2388 = vsel %vm2200, %v1563, 0
    %v2391 = vsel %vm2200, %v1569, 0
    %v2394 = vsel %vm2200, %v1575, 0
    %v2397 = vsel %vm2200, %v1581, 0
    %v2400 = vsel %vm2200, %v1587, 0
    %v2403 = vsel %vm2200, %v1593, 0
    %v2406 = vsel %vm2200, %v1599, 0
    %v2409 = vsel %vm2200, %v1605, 0
    %v2412 = vsel %vm2200, %v1611, 0
    %v2415 = vsel %vm2200, %v1617, 0
    %v2418 = vsel %vm2200, %v1623, 0
    %v2421 = vsel %vm2200, %v1629, 0
    %v2424 = vsel %vm2200, %v1635, 0
    %v2427 = vsel %vm2200, %v1641, 0
    %v2430 = vsel %vm2200, %v1647, 0
    %v2433 = vsel %vm2200, %v1653, 0
    %v2436 = vsel %vm2200, %v1659, 0
    %v2439 = vsel %vm2200, %v1665, 0
    %v2442 = vsel %vm2200, %v1671, 0
    %v2445 = vsel %vm2200, %v1677, 0
    %v2448 = vsel %vm2200, %v1683, 0
    %v2451 = vsel %vm2200, %v1689, 0
    %v2454 = vsel %vm2200, %v1695, 0
    %v2457 = vsel %vm2200, %v1701, 0
    %v2460 = vsel %vm2200, %v1707, 0
    %v2463 = vsel %vm2200, %v1713, 0
    %v2466 = vsel %vm2200, %v1719, 0
    %v2469 = vsel %vm2200, %v1725, 0
    %v2472 = vsel %vm2200, %v1731, 0
    %v2475 = vsel %vm2200, %v1737, 0
    %v2478 = vsel %vm2200, %v1743, 0
    %v2481 = vsel %vm2200, %v1749, 0
    %v2484 = vsel %vm2200, %v1755, 0
    %v2487 = vsel %vm2200, %v1761, 0
    %v2490 = vsel %vm2200, %v1767, 0
    %v2493 = vsel %vm2200, %v1773, 0
    %v2496 = vsel %vm2200, %v1779, 0
    %v2499 = vsel %vm2200, %v1785, 0
    %v2502 = vsel %vm2200, %v1791, 0
    %v2505 = vsel %vm2200, %v1797, 0
    %v2508 = vsel %vm2200, %v1803, 0
    %v2511 = vsel %vm2200, %v1809, 0
    %v2514 = vsel %vm2200, %v1815, 0
    %v2517 = vsel %vm2200, %v1821, 0
    %v2520 = vsel %vm2200, %v1827, 0
    %v2523 = vsel %vm2200, %v1833, 0
    %v2526 = vsel %vm2200, %v1839, 0
    %v2529 = vsel %vm2200, %v1845, 0
    %v2532 = vsel %vm2200, %v1851, 0
    %v2535 = vsel %vm2200, %v1857, 0
    %v2538 = vsel %vm2200, %v1863, 0
    %v2541 = vsel %vm2200, %v1869, 0
    %v2544 = vsel %vm2200, %v1875, 0
    %v2547 = vsel %vm2200, %v1881, 0
    %v2550 = vsel %vm2200, %v1887, 0
    %v2553 = vsel %vm2200, %v1893, 0
    %v2556 = vsel %vm2200, %v1899, 0
    %v2559 = vsel %vm2200, %v1905, 0
    %v2562 = vsel %vm2200, %v1911, 0
    %v2565 = vsel %vm2200, %v1917, 0
    %v2568 = vsel %vm2200, %v1923, 0
    %v2571 = vsel %vm2200, %v1929, 0
    %v2574 = vsel %vm2200, %v1935, 0
    %v2577 = vsel %vm2200, %v1941, 0
    %v2580 = vsel %vm2200, %v1947, 0
    %v2583 = vsel %vm2200, %v1953, 0
    %v2586 = vsel %vm2200, %v1959, 0
    %v2589 = vsel %vm2200, %v1965, 0
    %v2592 = vsel %vm2200, %v1971, 0
    %v2595 = vsel %vm2200, %v1977, 0
    %v2598 = vsel %vm2200, %v1983, 0
    %v2601 = vsel %vm2200, %v1989, 0
    %v2604 = vsel %vm2200, %v1995, 0
    %v2607 = vsel %vm2200, %v2001, 0
    %v2610 = vsel %vm2200, %v2007, 0
    %v2613 = vsel %vm2200, %v2013, 0
    %v2616 = vsel %vm2200, %v2019, 0
    %v2619 = vsel %vm2200, %v2025, 0
    %v2622 = vsel %vm2200, %v2031, 0
    %v2625 = vsel %vm2200, %v2037, 0
    %v2628 = vsel %vm2200, %v2043, 0
    %v2631 = vsel %vm2200, %v2049, 0
    %v2634 = vsel %vm2200, %v2055, 0
    %v2637 = vsel %vm2200, %v2061, 0
    %v2640 = vsel %vm2200, %v2067, 0
    %v2643 = vsel %vm2200, %v2073, 0
    %v2646 = vsel %vm2200, %v2079, 0
    %v2649 = vsel %vm2200, %v2085, 0
    %v2652 = vsel %vm2200, %v2091, 0
    %v2655 = vsel %vm2200, %v2097, 0
    %v2658 = vsel %vm2200, %v2103, 0
    %v2661 = vsel %vm2200, %v2109, 0
    %v2664 = vsel %vm2200, %v2115, 0
    %v2667 = vsel %vm2200, %v2121, 0
    %v2670 = vsel %vm2200, %v2127, 0
    %v2673 = vsel %vm2200, %v2133, 0
    %v2676 = vsel %vm2200, %v2139, 0
    %v2679 = vsel %vm2200, %v2145, 0
    %v2682 = vsel %vm2200, %v2151, 0
    %v2685 = vsel %vm2200, %v2157, 0
    %v2688 = vsel %vm2200, %v2163, 0
    %v2691 = vsel %vm2200, %v2169, 0
    %v2694 = vsel %vm2200, %v2175, 0
    %v2697 = vsel %vm2200, %v2181, 0
    %v2700 = vsel %vm2200, %v2187, 0
    %v2703 = vsel %vm2200, %v2193, 0
    %v2706 = vsel %vm2200, %v2199, 0
    %2708 = vmatprep.subr.mxu0 %v1325
    %2709 = vmatpush1.xpose.msra.mxu0 %v1324
    %2710 = vmatprep.subr.mxu0 %v1319
    %2711 = vmatpush1.xpose.msra.mxu0 %v1318
    %2712 = vmatprep.subr.mxu0 %v1313
    %2713 = vmatpush1.xpose.msra.mxu0 %v1312
    %2714 = vmatprep.subr.mxu0 %v1307
    %2715 = vmatpush1.xpose.msra.mxu0 %v1306
    %2716 = vmatprep.subr.mxu0 %v1301
    %2717 = vmatpush1.xpose.msra.mxu0 %v1300
    %2718 = vmatprep.subr.mxu0 %v1295
    %2719 = vmatpush1.xpose.msra.mxu0 %v1294
    %2720 = vmatprep.subr.mxu0 %v1289
    %2721 = vmatpush1.xpose.msra.mxu0 %v1288
    %2722 = vmatprep.subr.mxu0 %v1283
    %2723 = vmatpush1.xpose.msra.mxu0 %v1282
    %2724 = vmatprep.subr.mxu0 %v1277
    %2725 = vmatpush1.xpose.msra.mxu0 %v1276
    %2726 = vmatprep.subr.mxu0 %v1271
    %2727 = vmatpush1.xpose.msra.mxu0 %v1270
    %2728 = vmatprep.subr.mxu0 %v1265
    %2729 = vmatpush1.xpose.msra.mxu0 %v1264
    %2730 = vmatprep.subr.mxu0 %v1259
    %2731 = vmatpush1.xpose.msra.mxu0 %v1258
    %2732 = vmatprep.subr.mxu0 %v1253
    %2733 = vmatpush1.xpose.msra.mxu0 %v1252
    %2734 = vmatprep.subr.mxu0 %v1247
    %2735 = vmatpush1.xpose.msra.mxu0 %v1246
    %2736 = vmatprep.subr.mxu0 %v1241
    %2737 = vmatpush1.xpose.msra.mxu0 %v1240
    %2738 = vmatprep.subr.mxu0 %v1235
    %2739 = vmatpush1.xpose.msra.mxu0 %v1234
    %2740 = vmatprep.subr.mxu0 %v1421
    %2741 = vmatpush2.xpose.msra.mxu0 %v1420
    %2742 = vmatprep.subr.mxu0 %v1415
    %2743 = vmatpush2.xpose.msra.mxu0 %v1414
    %2744 = vmatprep.subr.mxu0 %v1409
    %2745 = vmatpush2.xpose.msra.mxu0 %v1408
    %2746 = vmatprep.subr.mxu0 %v1403
    %2747 = vmatpush2.xpose.msra.mxu0 %v1402
    %2748 = vmatprep.subr.mxu0 %v1397
    %2749 = vmatpush2.xpose.msra.mxu0 %v1396
    %2750 = vmatprep.subr.mxu0 %v1391
    %2751 = vmatpush2.xpose.msra.mxu0 %v1390
    %2752 = vmatprep.subr.mxu0 %v1385
    %2753 = vmatpush2.xpose.msra.mxu0 %v1384
    %2754 = vmatprep.subr.mxu0 %v1379
    %2755 = vmatpush2.xpose.msra.mxu0 %v1378
    %2756 = vmatprep.subr.mxu0 %v1373
    %2757 = vmatpush2.xpose.msra.mxu0 %v1372
    %2758 = vmatprep.subr.mxu0 %v1367
    %2759 = vmatpush2.xpose.msra.mxu0 %v1366
    %2760 = vmatprep.subr.mxu0 %v1361
    %2761 = vmatpush2.xpose.msra.mxu0 %v1360
    %2762 = vmatprep.subr.mxu0 %v1355
    %2763 = vmatpush2.xpose.msra.mxu0 %v1354
    %2764 = vmatprep.subr.mxu0 %v1349
    %2765 = vmatpush2.xpose.msra.mxu0 %v1348
    %2766 = vmatprep.subr.mxu0 %v1343
    %2767 = vmatpush2.xpose.msra.mxu0 %v1342
    %2768 = vmatprep.subr.mxu0 %v1337
    %2769 = vmatpush2.xpose.msra.mxu0 %v1336
    %2770 = vmatprep.subr.mxu0 %v1331
    %2771 = vmatpush2.xpose.msra.mxu0 %v1330
    %2772 = vmatprep.mubr.f32.mxu0 %v738
    %2773 = vmatmul.mubr.f32.gmra.mxu0 %v736
    %v2774 = vpop.f32.mrf.mxu0
    %v2775 = vadd.f32 0.0, %v2774
    %v2776 = vpop.f32.mrf.mxu0
    %v2777 = vadd.f32 0.0, %v2776
    %2778 = vmatprep.mubr.f32.mxu0 %v744
    %2779 = vmatmul.mubr.f32.gmra.mxu0 %v742
    %v2780 = vpop.f32.mrf.mxu0
    %v2781 = vadd.f32 0.0, %v2780
    %v2782 = vpop.f32.mrf.mxu0
    %v2783 = vadd.f32 0.0, %v2782
    %2784 = vmatprep.mubr.f32.mxu0 %v750
    %2785 = vmatmul.mubr.f32.gmra.mxu0 %v748
    %v2786 = vpop.f32.mrf.mxu0
    %v2787 = vadd.f32 0.0, %v2786
    %v2788 = vpop.f32.mrf.mxu0
    %v2789 = vadd.f32 0.0, %v2788
    %2790 = vmatprep.mubr.f32.mxu0 %v756
    %2791 = vmatmul.mubr.f32.gmra.mxu0 %v754
    %v2792 = vpop.f32.mrf.mxu0
    %v2793 = vadd.f32 0.0, %v2792
    %v2794 = vpop.f32.mrf.mxu0
    %v2795 = vadd.f32 0.0, %v2794
    %2796 = vmatprep.mubr.f32.mxu0 %v762
    %2797 = vmatmul.mubr.f32.gmra.mxu0 %v760
    %v2798 = vpop.f32.mrf.mxu0
    %v2799 = vadd.f32 0.0, %v2798
    %v2800 = vpop.f32.mrf.mxu0
    %v2801 = vadd.f32 0.0, %v2800
    %2802 = vmatprep.mubr.f32.mxu0 %v768
    %2803 = vmatmul.mubr.f32.gmra.mxu0 %v766
    %v2804 = vpop.f32.mrf.mxu0
    %v2805 = vadd.f32 0.0, %v2804
    %v2806 = vpop.f32.mrf.mxu0
    %v2807 = vadd.f32 0.0, %v2806
    %2808 = vmatprep.mubr.f32.mxu0 %v774
    %2809 = vmatmul.mubr.f32.gmra.mxu0 %v772
    %v2810 = vpop.f32.mrf.mxu0
    %v2811 = vadd.f32 0.0, %v2810
    %v2812 = vpop.f32.mrf.mxu0
    %v2813 = vadd.f32 0.0, %v2812
    %2814 = vmatprep.mubr.f32.mxu0 %v780
    %2815 = vmatmul.mubr.f32.gmra.mxu0 %v778
    %v2816 = vpop.f32.mrf.mxu0
    %v2817 = vadd.f32 0.0, %v2816
    %v2818 = vpop.f32.mrf.mxu0
    %v2819 = vadd.f32 0.0, %v2818
    %2820 = vdwg.mxu0
    %2821 = vmatprep.subr.mxu0 %v1327
    %2822 = vmatpush1.xpose.msra.mxu0 %v1326
    %2823 = vmatprep.subr.mxu0 %v1321
    %2824 = vmatpush1.xpose.msra.mxu0 %v1320
    %2825 = vmatprep.subr.mxu0 %v1315
    %2826 = vmatpush1.xpose.msra.mxu0 %v1314
    %2827 = vmatprep.subr.mxu0 %v1309
    %2828 = vmatpush1.xpose.msra.mxu0 %v1308
    %2829 = vmatprep.subr.mxu0 %v1303
    %2830 = vmatpush1.xpose.msra.mxu0 %v1302
    %2831 = vmatprep.subr.mxu0 %v1297
    %2832 = vmatpush1.xpose.msra.mxu0 %v1296
    %2833 = vmatprep.subr.mxu0 %v1291
    %2834 = vmatpush1.xpose.msra.mxu0 %v1290
    %2835 = vmatprep.subr.mxu0 %v1285
    %2836 = vmatpush1.xpose.msra.mxu0 %v1284
    %2837 = vmatprep.subr.mxu0 %v1279
    %2838 = vmatpush1.xpose.msra.mxu0 %v1278
    %2839 = vmatprep.subr.mxu0 %v1273
    %2840 = vmatpush1.xpose.msra.mxu0 %v1272
    %2841 = vmatprep.subr.mxu0 %v1267
    %2842 = vmatpush1.xpose.msra.mxu0 %v1266
    %2843 = vmatprep.subr.mxu0 %v1261
    %2844 = vmatpush1.xpose.msra.mxu0 %v1260
    %2845 = vmatprep.subr.mxu0 %v1255
    %2846 = vmatpush1.xpose.msra.mxu0 %v1254
    %2847 = vmatprep.subr.mxu0 %v1249
    %2848 = vmatpush1.xpose.msra.mxu0 %v1248
    %2849 = vmatprep.subr.mxu0 %v1243
    %2850 = vmatpush1.xpose.msra.mxu0 %v1242
    %2851 = vmatprep.subr.mxu0 %v1237
    %2852 = vmatpush1.xpose.msra.mxu0 %v1236
    %2853 = vmatprep.subr.mxu0 %v1423
    %2854 = vmatpush2.xpose.msra.mxu0 %v1422
    %2855 = vmatprep.subr.mxu0 %v1417
    %2856 = vmatpush2.xpose.msra.mxu0 %v1416
    %2857 = vmatprep.subr.mxu0 %v1411
    %2858 = vmatpush2.xpose.msra.mxu0 %v1410
    %2859 = vmatprep.subr.mxu0 %v1405
    %2860 = vmatpush2.xpose.msra.mxu0 %v1404
    %2861 = vmatprep.subr.mxu0 %v1399
    %2862 = vmatpush2.xpose.msra.mxu0 %v1398
    %2863 = vmatprep.subr.mxu0 %v1393
    %2864 = vmatpush2.xpose.msra.mxu0 %v1392
    %2865 = vmatprep.subr.mxu0 %v1387
    %2866 = vmatpush2.xpose.msra.mxu0 %v1386
    %2867 = vmatprep.subr.mxu0 %v1381
    %2868 = vmatpush2.xpose.msra.mxu0 %v1380
    %2869 = vmatprep.subr.mxu0 %v1375
    %2870 = vmatpush2.xpose.msra.mxu0 %v1374
    %2871 = vmatprep.subr.mxu0 %v1369
    %2872 = vmatpush2.xpose.msra.mxu0 %v1368
    %2873 = vmatprep.subr.mxu0 %v1363
    %2874 = vmatpush2.xpose.msra.mxu0 %v1362
    %2875 = vmatprep.subr.mxu0 %v1357
    %2876 = vmatpush2.xpose.msra.mxu0 %v1356
    %2877 = vmatprep.subr.mxu0 %v1351
    %2878 = vmatpush2.xpose.msra.mxu0 %v1350
    %2879 = vmatprep.subr.mxu0 %v1345
    %2880 = vmatpush2.xpose.msra.mxu0 %v1344
    %2881 = vmatprep.subr.mxu0 %v1339
    %2882 = vmatpush2.xpose.msra.mxu0 %v1338
    %2883 = vmatprep.subr.mxu0 %v1333
    %2884 = vmatpush2.xpose.msra.mxu0 %v1332
    %2885 = vmatprep.mubr.f32.mxu0 %v964
    %2886 = vmatmul.mubr.f32.gmra.mxu0 %v962
    %v2887 = vpop.f32.mrf.mxu0
    %v2888 = vadd.f32 %v2775, %v2887
    %v2889 = vpop.f32.mrf.mxu0
    %v2890 = vadd.f32 %v2777, %v2889
    %2891 = vmatprep.mubr.f32.mxu0 %v970
    %2892 = vmatmul.mubr.f32.gmra.mxu0 %v968
    %v2893 = vpop.f32.mrf.mxu0
    %v2894 = vadd.f32 %v2781, %v2893
    %v2895 = vpop.f32.mrf.mxu0
    %v2896 = vadd.f32 %v2783, %v2895
    %2897 = vmatprep.mubr.f32.mxu0 %v976
    %2898 = vmatmul.mubr.f32.gmra.mxu0 %v974
    %v2899 = vpop.f32.mrf.mxu0
    %v2900 = vadd.f32 %v2787, %v2899
    %v2901 = vpop.f32.mrf.mxu0
    %v2902 = vadd.f32 %v2789, %v2901
    %2903 = vmatprep.mubr.f32.mxu0 %v982
    %2904 = vmatmul.mubr.f32.gmra.mxu0 %v980
    %v2905 = vpop.f32.mrf.mxu0
    %v2906 = vadd.f32 %v2793, %v2905
    %v2907 = vpop.f32.mrf.mxu0
    %v2908 = vadd.f32 %v2795, %v2907
    %2909 = vmatprep.mubr.f32.mxu0 %v988
    %2910 = vmatmul.mubr.f32.gmra.mxu0 %v986
    %v2911 = vpop.f32.mrf.mxu0
    %v2912 = vadd.f32 %v2799, %v2911
    %v2913 = vpop.f32.mrf.mxu0
    %v2914 = vadd.f32 %v2801, %v2913
    %2915 = vmatprep.mubr.f32.mxu0 %v994
    %2916 = vmatmul.mubr.f32.gmra.mxu0 %v992
    %v2917 = vpop.f32.mrf.mxu0
    %v2918 = vadd.f32 %v2805, %v2917
    %v2919 = vpop.f32.mrf.mxu0
    %v2920 = vadd.f32 %v2807, %v2919
    %2921 = vmatprep.mubr.f32.mxu0 %v1000
    %2922 = vmatmul.mubr.f32.gmra.mxu0 %v998
    %v2923 = vpop.f32.mrf.mxu0
    %v2924 = vadd.f32 %v2811, %v2923
    %v2925 = vpop.f32.mrf.mxu0
    %v2926 = vadd.f32 %v2813, %v2925
    %2927 = vmatprep.mubr.f32.mxu0 %v1006
    %2928 = vmatmul.mubr.f32.gmra.mxu0 %v1004
    %v2929 = vpop.f32.mrf.mxu0
    %v2930 = vadd.f32 %v2817, %v2929
    %v2931 = vpop.f32.mrf.mxu0
    %v2932 = vadd.f32 %v2819, %v2931
    %2933 = vdwg.mxu0
    %2934 = vmatprep.subr.mxu0 %v2271
    %2935 = vmatpush1.xpose.msra.mxu0 %v1328
    %2936 = vmatprep.subr.mxu0 %v2268
    %2937 = vmatpush1.xpose.msra.mxu0 %v1322
    %2938 = vmatprep.subr.mxu0 %v2265
    %2939 = vmatpush1.xpose.msra.mxu0 %v1316
    %2940 = vmatprep.subr.mxu0 %v2262
    %2941 = vmatpush1.xpose.msra.mxu0 %v1310
    %2942 = vmatprep.subr.mxu0 %v2259
    %2943 = vmatpush1.xpose.msra.mxu0 %v1304
    %2944 = vmatprep.subr.mxu0 %v2256
    %2945 = vmatpush1.xpose.msra.mxu0 %v1298
    %2946 = vmatprep.subr.mxu0 %v2253
    %2947 = vmatpush1.xpose.msra.mxu0 %v1292
    %2948 = vmatprep.subr.mxu0 %v2250
    %2949 = vmatpush1.xpose.msra.mxu0 %v1286
    %2950 = vmatprep.subr.mxu0 %v2247
    %2951 = vmatpush1.xpose.msra.mxu0 %v1280
    %2952 = vmatprep.subr.mxu0 %v2244
    %2953 = vmatpush1.xpose.msra.mxu0 %v1274
    %2954 = vmatprep.subr.mxu0 %v2241
    %2955 = vmatpush1.xpose.msra.mxu0 %v1268
    %2956 = vmatprep.subr.mxu0 %v2238
    %2957 = vmatpush1.xpose.msra.mxu0 %v1262
    %2958 = vmatprep.subr.mxu0 %v2235
    %2959 = vmatpush1.xpose.msra.mxu0 %v1256
    %2960 = vmatprep.subr.mxu0 %v2232
    %2961 = vmatpush1.xpose.msra.mxu0 %v1250
    %2962 = vmatprep.subr.mxu0 %v2229
    %2963 = vmatpush1.xpose.msra.mxu0 %v1244
    %2964 = vmatprep.subr.mxu0 %v2226
    %2965 = vmatpush1.xpose.msra.mxu0 %v1238
    %2966 = vmatprep.subr.mxu0 %v2319
    %2967 = vmatpush2.xpose.msra.mxu0 %v1424
    %2968 = vmatprep.subr.mxu0 %v2316
    %2969 = vmatpush2.xpose.msra.mxu0 %v1418
    %2970 = vmatprep.subr.mxu0 %v2313
    %2971 = vmatpush2.xpose.msra.mxu0 %v1412
    %2972 = vmatprep.subr.mxu0 %v2310
    %2973 = vmatpush2.xpose.msra.mxu0 %v1406
    %2974 = vmatprep.subr.mxu0 %v2307
    %2975 = vmatpush2.xpose.msra.mxu0 %v1400
    %2976 = vmatprep.subr.mxu0 %v2304
    %2977 = vmatpush2.xpose.msra.mxu0 %v1394
    %2978 = vmatprep.subr.mxu0 %v2301
    %2979 = vmatpush2.xpose.msra.mxu0 %v1388
    %2980 = vmatprep.subr.mxu0 %v2298
    %2981 = vmatpush2.xpose.msra.mxu0 %v1382
    %2982 = vmatprep.subr.mxu0 %v2295
    %2983 = vmatpush2.xpose.msra.mxu0 %v1376
    %2984 = vmatprep.subr.mxu0 %v2292
    %2985 = vmatpush2.xpose.msra.mxu0 %v1370
    %2986 = vmatprep.subr.mxu0 %v2289
    %2987 = vmatpush2.xpose.msra.mxu0 %v1364
    %2988 = vmatprep.subr.mxu0 %v2286
    %2989 = vmatpush2.xpose.msra.mxu0 %v1358
    %2990 = vmatprep.subr.mxu0 %v2283
    %2991 = vmatpush2.xpose.msra.mxu0 %v1352
    %2992 = vmatprep.subr.mxu0 %v2280
    %2993 = vmatpush2.xpose.msra.mxu0 %v1346
    %2994 = vmatprep.subr.mxu0 %v2277
    %2995 = vmatpush2.xpose.msra.mxu0 %v1340
    %2996 = vmatprep.subr.mxu0 %v2274
    %2997 = vmatpush2.xpose.msra.mxu0 %v1334
    %2998 = vmatprep.mubr.f32.mxu0 %v2202
    %2999 = vmatmul.mubr.f32.gmra.mxu0 %v1188
    %v3000 = vpop.f32.mrf.mxu0
    %v3001 = vadd.f32 %v2888, %v3000
    %v3002 = vpop.f32.mrf.mxu0
    %v3003 = vadd.f32 %v2890, %v3002
    %3004 = vmatprep.mubr.f32.mxu0 %v2205
    %3005 = vmatmul.mubr.f32.gmra.mxu0 %v1194
    %v3006 = vpop.f32.mrf.mxu0
    %v3007 = vadd.f32 %v2894, %v3006
    %v3008 = vpop.f32.mrf.mxu0
    %v3009 = vadd.f32 %v2896, %v3008
    %3010 = vmatprep.mubr.f32.mxu0 %v2208
    %3011 = vmatmul.mubr.f32.gmra.mxu0 %v1200
    %v3012 = vpop.f32.mrf.mxu0
    %v3013 = vadd.f32 %v2900, %v3012
    %v3014 = vpop.f32.mrf.mxu0
    %v3015 = vadd.f32 %v2902, %v3014
    %3016 = vmatprep.mubr.f32.mxu0 %v2211
    %3017 = vmatmul.mubr.f32.gmra.mxu0 %v1206
    %v3018 = vpop.f32.mrf.mxu0
    %v3019 = vadd.f32 %v2906, %v3018
    %v3020 = vpop.f32.mrf.mxu0
    %v3021 = vadd.f32 %v2908, %v3020
    %3022 = vmatprep.mubr.f32.mxu0 %v2214
    %3023 = vmatmul.mubr.f32.gmra.mxu0 %v1212
    %v3024 = vpop.f32.mrf.mxu0
    %v3025 = vadd.f32 %v2912, %v3024
    %v3026 = vpop.f32.mrf.mxu0
    %v3027 = vadd.f32 %v2914, %v3026
    %3028 = vmatprep.mubr.f32.mxu0 %v2217
    %3029 = vmatmul.mubr.f32.gmra.mxu0 %v1218
    %v3030 = vpop.f32.mrf.mxu0
    %v3031 = vadd.f32 %v2918, %v3030
    %v3032 = vpop.f32.mrf.mxu0
    %v3033 = vadd.f32 %v2920, %v3032
    %3034 = vmatprep.mubr.f32.mxu0 %v2220
    %3035 = vmatmul.mubr.f32.gmra.mxu0 %v1224
    %v3036 = vpop.f32.mrf.mxu0
    %v3037 = vadd.f32 %v2924, %v3036
    %v3038 = vpop.f32.mrf.mxu0
    %v3039 = vadd.f32 %v2926, %v3038
    %3040 = vmatprep.mubr.f32.mxu0 %v2223
    %3041 = vmatmul.mubr.f32.gmra.mxu0 %v1230
    %v3042 = vpop.f32.mrf.mxu0
    %v3043 = vadd.f32 %v2930, %v3042
    %v3044 = vpop.f32.mrf.mxu0
    %v3045 = vadd.f32 %v2932, %v3044
    %3046 = vdwg.mxu0
    %3047 = vmatprep.subr.mxu0 %v1517
    %3048 = vmatpush1.xpose.msra.mxu0 %v1516
    %3049 = vmatprep.subr.mxu0 %v1511
    %3050 = vmatpush1.xpose.msra.mxu0 %v1510
    %3051 = vmatprep.subr.mxu0 %v1505
    %3052 = vmatpush1.xpose.msra.mxu0 %v1504
    %3053 = vmatprep.subr.mxu0 %v1499
    %3054 = vmatpush1.xpose.msra.mxu0 %v1498
    %3055 = vmatprep.subr.mxu0 %v1493
    %3056 = vmatpush1.xpose.msra.mxu0 %v1492
    %3057 = vmatprep.subr.mxu0 %v1487
    %3058 = vmatpush1.xpose.msra.mxu0 %v1486
    %3059 = vmatprep.subr.mxu0 %v1481
    %3060 = vmatpush1.xpose.msra.mxu0 %v1480
    %3061 = vmatprep.subr.mxu0 %v1475
    %3062 = vmatpush1.xpose.msra.mxu0 %v1474
    %3063 = vmatprep.subr.mxu0 %v1469
    %3064 = vmatpush1.xpose.msra.mxu0 %v1468
    %3065 = vmatprep.subr.mxu0 %v1463
    %3066 = vmatpush1.xpose.msra.mxu0 %v1462
    %3067 = vmatprep.subr.mxu0 %v1457
    %3068 = vmatpush1.xpose.msra.mxu0 %v1456
    %3069 = vmatprep.subr.mxu0 %v1451
    %3070 = vmatpush1.xpose.msra.mxu0 %v1450
    %3071 = vmatprep.subr.mxu0 %v1445
    %3072 = vmatpush1.xpose.msra.mxu0 %v1444
    %3073 = vmatprep.subr.mxu0 %v1439
    %3074 = vmatpush1.xpose.msra.mxu0 %v1438
    %3075 = vmatprep.subr.mxu0 %v1433
    %3076 = vmatpush1.xpose.msra.mxu0 %v1432
    %3077 = vmatprep.subr.mxu0 %v1427
    %3078 = vmatpush1.xpose.msra.mxu0 %v1426
    %3079 = vmatprep.subr.mxu0 %v1613
    %3080 = vmatpush2.xpose.msra.mxu0 %v1612
    %3081 = vmatprep.subr.mxu0 %v1607
    %3082 = vmatpush2.xpose.msra.mxu0 %v1606
    %3083 = vmatprep.subr.mxu0 %v1601
    %3084 = vmatpush2.xpose.msra.mxu0 %v1600
    %3085 = vmatprep.subr.mxu0 %v1595
    %3086 = vmatpush2.xpose.msra.mxu0 %v1594
    %3087 = vmatprep.subr.mxu0 %v1589
    %3088 = vmatpush2.xpose.msra.mxu0 %v1588
    %3089 = vmatprep.subr.mxu0 %v1583
    %3090 = vmatpush2.xpose.msra.mxu0 %v1582
    %3091 = vmatprep.subr.mxu0 %v1577
    %3092 = vmatpush2.xpose.msra.mxu0 %v1576
    %3093 = vmatprep.subr.mxu0 %v1571
    %3094 = vmatpush2.xpose.msra.mxu0 %v1570
    %3095 = vmatprep.subr.mxu0 %v1565
    %3096 = vmatpush2.xpose.msra.mxu0 %v1564
    %3097 = vmatprep.subr.mxu0 %v1559
    %3098 = vmatpush2.xpose.msra.mxu0 %v1558
    %3099 = vmatprep.subr.mxu0 %v1553
    %3100 = vmatpush2.xpose.msra.mxu0 %v1552
    %3101 = vmatprep.subr.mxu0 %v1547
    %3102 = vmatpush2.xpose.msra.mxu0 %v1546
    %3103 = vmatprep.subr.mxu0 %v1541
    %3104 = vmatpush2.xpose.msra.mxu0 %v1540
    %3105 = vmatprep.subr.mxu0 %v1535
    %3106 = vmatpush2.xpose.msra.mxu0 %v1534
    %3107 = vmatprep.subr.mxu0 %v1529
    %3108 = vmatpush2.xpose.msra.mxu0 %v1528
    %3109 = vmatprep.subr.mxu0 %v1523
    %3110 = vmatpush2.xpose.msra.mxu0 %v1522
    %3111 = vmatprep.mubr.f32.mxu0 %v738
    %3112 = vmatmul.mubr.f32.gmra.mxu0 %v736
    %v3113 = vpop.f32.mrf.mxu0
    %v3114 = vadd.f32 0.0, %v3113
    %v3115 = vpop.f32.mrf.mxu0
    %v3116 = vadd.f32 0.0, %v3115
    %3117 = vmatprep.mubr.f32.mxu0 %v744
    %3118 = vmatmul.mubr.f32.gmra.mxu0 %v742
    %v3119 = vpop.f32.mrf.mxu0
    %v3120 = vadd.f32 0.0, %v3119
    %v3121 = vpop.f32.mrf.mxu0
    %v3122 = vadd.f32 0.0, %v3121
    %3123 = vmatprep.mubr.f32.mxu0 %v750
    %3124 = vmatmul.mubr.f32.gmra.mxu0 %v748
    %v3125 = vpop.f32.mrf.mxu0
    %v3126 = vadd.f32 0.0, %v3125
    %v3127 = vpop.f32.mrf.mxu0
    %v3128 = vadd.f32 0.0, %v3127
    %3129 = vmatprep.mubr.f32.mxu0 %v756
    %3130 = vmatmul.mubr.f32.gmra.mxu0 %v754
    %v3131 = vpop.f32.mrf.mxu0
    %v3132 = vadd.f32 0.0, %v3131
    %v3133 = vpop.f32.mrf.mxu0
    %v3134 = vadd.f32 0.0, %v3133
    %3135 = vmatprep.mubr.f32.mxu0 %v762
    %3136 = vmatmul.mubr.f32.gmra.mxu0 %v760
    %v3137 = vpop.f32.mrf.mxu0
    %v3138 = vadd.f32 0.0, %v3137
    %v3139 = vpop.f32.mrf.mxu0
    %v3140 = vadd.f32 0.0, %v3139
    %3141 = vmatprep.mubr.f32.mxu0 %v768
    %3142 = vmatmul.mubr.f32.gmra.mxu0 %v766
    %v3143 = vpop.f32.mrf.mxu0
    %v3144 = vadd.f32 0.0, %v3143
    %v3145 = vpop.f32.mrf.mxu0
    %v3146 = vadd.f32 0.0, %v3145
    %3147 = vmatprep.mubr.f32.mxu0 %v774
    %3148 = vmatmul.mubr.f32.gmra.mxu0 %v772
    %v3149 = vpop.f32.mrf.mxu0
    %v3150 = vadd.f32 0.0, %v3149
    %v3151 = vpop.f32.mrf.mxu0
    %v3152 = vadd.f32 0.0, %v3151
    %3153 = vmatprep.mubr.f32.mxu0 %v780
    %3154 = vmatmul.mubr.f32.gmra.mxu0 %v778
    %v3155 = vpop.f32.mrf.mxu0
    %v3156 = vadd.f32 0.0, %v3155
    %v3157 = vpop.f32.mrf.mxu0
    %v3158 = vadd.f32 0.0, %v3157
    %3159 = vdwg.mxu0
    %3160 = vmatprep.subr.mxu0 %v1519
    %3161 = vmatpush1.xpose.msra.mxu0 %v1518
    %3162 = vmatprep.subr.mxu0 %v1513
    %3163 = vmatpush1.xpose.msra.mxu0 %v1512
    %3164 = vmatprep.subr.mxu0 %v1507
    %3165 = vmatpush1.xpose.msra.mxu0 %v1506
    %3166 = vmatprep.subr.mxu0 %v1501
    %3167 = vmatpush1.xpose.msra.mxu0 %v1500
    %3168 = vmatprep.subr.mxu0 %v1495
    %3169 = vmatpush1.xpose.msra.mxu0 %v1494
    %3170 = vmatprep.subr.mxu0 %v1489
    %3171 = vmatpush1.xpose.msra.mxu0 %v1488
    %3172 = vmatprep.subr.mxu0 %v1483
    %3173 = vmatpush1.xpose.msra.mxu0 %v1482
    %3174 = vmatprep.subr.mxu0 %v1477
    %3175 = vmatpush1.xpose.msra.mxu0 %v1476
    %3176 = vmatprep.subr.mxu0 %v1471
    %3177 = vmatpush1.xpose.msra.mxu0 %v1470
    %3178 = vmatprep.subr.mxu0 %v1465
    %3179 = vmatpush1.xpose.msra.mxu0 %v1464
    %3180 = vmatprep.subr.mxu0 %v1459
    %3181 = vmatpush1.xpose.msra.mxu0 %v1458
    %3182 = vmatprep.subr.mxu0 %v1453
    %3183 = vmatpush1.xpose.msra.mxu0 %v1452
    %3184 = vmatprep.subr.mxu0 %v1447
    %3185 = vmatpush1.xpose.msra.mxu0 %v1446
    %3186 = vmatprep.subr.mxu0 %v1441
    %3187 = vmatpush1.xpose.msra.mxu0 %v1440
    %3188 = vmatprep.subr.mxu0 %v1435
    %3189 = vmatpush1.xpose.msra.mxu0 %v1434
    %3190 = vmatprep.subr.mxu0 %v1429
    %3191 = vmatpush1.xpose.msra.mxu0 %v1428
    %3192 = vmatprep.subr.mxu0 %v1615
    %3193 = vmatpush2.xpose.msra.mxu0 %v1614
    %3194 = vmatprep.subr.mxu0 %v1609
    %3195 = vmatpush2.xpose.msra.mxu0 %v1608
    %3196 = vmatprep.subr.mxu0 %v1603
    %3197 = vmatpush2.xpose.msra.mxu0 %v1602
    %3198 = vmatprep.subr.mxu0 %v1597
    %3199 = vmatpush2.xpose.msra.mxu0 %v1596
    %3200 = vmatprep.subr.mxu0 %v1591
    %3201 = vmatpush2.xpose.msra.mxu0 %v1590
    %3202 = vmatprep.subr.mxu0 %v1585
    %3203 = vmatpush2.xpose.msra.mxu0 %v1584
    %3204 = vmatprep.subr.mxu0 %v1579
    %3205 = vmatpush2.xpose.msra.mxu0 %v1578
    %3206 = vmatprep.subr.mxu0 %v1573
    %3207 = vmatpush2.xpose.msra.mxu0 %v1572
    %3208 = vmatprep.subr.mxu0 %v1567
    %3209 = vmatpush2.xpose.msra.mxu0 %v1566
    %3210 = vmatprep.subr.mxu0 %v1561
    %3211 = vmatpush2.xpose.msra.mxu0 %v1560
    %3212 = vmatprep.subr.mxu0 %v1555
    %3213 = vmatpush2.xpose.msra.mxu0 %v1554
    %3214 = vmatprep.subr.mxu0 %v1549
    %3215 = vmatpush2.xpose.msra.mxu0 %v1548
    %3216 = vmatprep.subr.mxu0 %v1543
    %3217 = vmatpush2.xpose.msra.mxu0 %v1542
    %3218 = vmatprep.subr.mxu0 %v1537
    %3219 = vmatpush2.xpose.msra.mxu0 %v1536
    %3220 = vmatprep.subr.mxu0 %v1531
    %3221 = vmatpush2.xpose.msra.mxu0 %v1530
    %3222 = vmatprep.subr.mxu0 %v1525
    %3223 = vmatpush2.xpose.msra.mxu0 %v1524
    %3224 = vmatprep.mubr.f32.mxu0 %v964
    %3225 = vmatmul.mubr.f32.gmra.mxu0 %v962
    %v3226 = vpop.f32.mrf.mxu0
    %v3227 = vadd.f32 %v3114, %v3226
    %v3228 = vpop.f32.mrf.mxu0
    %v3229 = vadd.f32 %v3116, %v3228
    %3230 = vmatprep.mubr.f32.mxu0 %v970
    %3231 = vmatmul.mubr.f32.gmra.mxu0 %v968
    %v3232 = vpop.f32.mrf.mxu0
    %v3233 = vadd.f32 %v3120, %v3232
    %v3234 = vpop.f32.mrf.mxu0
    %v3235 = vadd.f32 %v3122, %v3234
    %3236 = vmatprep.mubr.f32.mxu0 %v976
    %3237 = vmatmul.mubr.f32.gmra.mxu0 %v974
    %v3238 = vpop.f32.mrf.mxu0
    %v3239 = vadd.f32 %v3126, %v3238
    %v3240 = vpop.f32.mrf.mxu0
    %v3241 = vadd.f32 %v3128, %v3240
    %3242 = vmatprep.mubr.f32.mxu0 %v982
    %3243 = vmatmul.mubr.f32.gmra.mxu0 %v980
    %v3244 = vpop.f32.mrf.mxu0
    %v3245 = vadd.f32 %v3132, %v3244
    %v3246 = vpop.f32.mrf.mxu0
    %v3247 = vadd.f32 %v3134, %v3246
    %3248 = vmatprep.mubr.f32.mxu0 %v988
    %3249 = vmatmul.mubr.f32.gmra.mxu0 %v986
    %v3250 = vpop.f32.mrf.mxu0
    %v3251 = vadd.f32 %v3138, %v3250
    %v3252 = vpop.f32.mrf.mxu0
    %v3253 = vadd.f32 %v3140, %v3252
    %3254 = vmatprep.mubr.f32.mxu0 %v994
    %3255 = vmatmul.mubr.f32.gmra.mxu0 %v992
    %v3256 = vpop.f32.mrf.mxu0
    %v3257 = vadd.f32 %v3144, %v3256
    %v3258 = vpop.f32.mrf.mxu0
    %v3259 = vadd.f32 %v3146, %v3258
    %3260 = vmatprep.mubr.f32.mxu0 %v1000
    %3261 = vmatmul.mubr.f32.gmra.mxu0 %v998
    %v3262 = vpop.f32.mrf.mxu0
    %v3263 = vadd.f32 %v3150, %v3262
    %v3264 = vpop.f32.mrf.mxu0
    %v3265 = vadd.f32 %v3152, %v3264
    %3266 = vmatprep.mubr.f32.mxu0 %v1006
    %3267 = vmatmul.mubr.f32.gmra.mxu0 %v1004
    %v3268 = vpop.f32.mrf.mxu0
    %v3269 = vadd.f32 %v3156, %v3268
    %v3270 = vpop.f32.mrf.mxu0
    %v3271 = vadd.f32 %v3158, %v3270
    %3272 = vdwg.mxu0
    %3273 = vmatprep.subr.mxu0 %v2367
    %3274 = vmatpush1.xpose.msra.mxu0 %v1520
    %3275 = vmatprep.subr.mxu0 %v2364
    %3276 = vmatpush1.xpose.msra.mxu0 %v1514
    %3277 = vmatprep.subr.mxu0 %v2361
    %3278 = vmatpush1.xpose.msra.mxu0 %v1508
    %3279 = vmatprep.subr.mxu0 %v2358
    %3280 = vmatpush1.xpose.msra.mxu0 %v1502
    %3281 = vmatprep.subr.mxu0 %v2355
    %3282 = vmatpush1.xpose.msra.mxu0 %v1496
    %3283 = vmatprep.subr.mxu0 %v2352
    %3284 = vmatpush1.xpose.msra.mxu0 %v1490
    %3285 = vmatprep.subr.mxu0 %v2349
    %3286 = vmatpush1.xpose.msra.mxu0 %v1484
    %3287 = vmatprep.subr.mxu0 %v2346
    %3288 = vmatpush1.xpose.msra.mxu0 %v1478
    %3289 = vmatprep.subr.mxu0 %v2343
    %3290 = vmatpush1.xpose.msra.mxu0 %v1472
    %3291 = vmatprep.subr.mxu0 %v2340
    %3292 = vmatpush1.xpose.msra.mxu0 %v1466
    %3293 = vmatprep.subr.mxu0 %v2337
    %3294 = vmatpush1.xpose.msra.mxu0 %v1460
    %3295 = vmatprep.subr.mxu0 %v2334
    %3296 = vmatpush1.xpose.msra.mxu0 %v1454
    %3297 = vmatprep.subr.mxu0 %v2331
    %3298 = vmatpush1.xpose.msra.mxu0 %v1448
    %3299 = vmatprep.subr.mxu0 %v2328
    %3300 = vmatpush1.xpose.msra.mxu0 %v1442
    %3301 = vmatprep.subr.mxu0 %v2325
    %3302 = vmatpush1.xpose.msra.mxu0 %v1436
    %3303 = vmatprep.subr.mxu0 %v2322
    %3304 = vmatpush1.xpose.msra.mxu0 %v1430
    %3305 = vmatprep.subr.mxu0 %v2415
    %3306 = vmatpush2.xpose.msra.mxu0 %v1616
    %3307 = vmatprep.subr.mxu0 %v2412
    %3308 = vmatpush2.xpose.msra.mxu0 %v1610
    %3309 = vmatprep.subr.mxu0 %v2409
    %3310 = vmatpush2.xpose.msra.mxu0 %v1604
    %3311 = vmatprep.subr.mxu0 %v2406
    %3312 = vmatpush2.xpose.msra.mxu0 %v1598
    %3313 = vmatprep.subr.mxu0 %v2403
    %3314 = vmatpush2.xpose.msra.mxu0 %v1592
    %3315 = vmatprep.subr.mxu0 %v2400
    %3316 = vmatpush2.xpose.msra.mxu0 %v1586
    %3317 = vmatprep.subr.mxu0 %v2397
    %3318 = vmatpush2.xpose.msra.mxu0 %v1580
    %3319 = vmatprep.subr.mxu0 %v2394
    %3320 = vmatpush2.xpose.msra.mxu0 %v1574
    %3321 = vmatprep.subr.mxu0 %v2391
    %3322 = vmatpush2.xpose.msra.mxu0 %v1568
    %3323 = vmatprep.subr.mxu0 %v2388
    %3324 = vmatpush2.xpose.msra.mxu0 %v1562
    %3325 = vmatprep.subr.mxu0 %v2385
    %3326 = vmatpush2.xpose.msra.mxu0 %v1556
    %3327 = vmatprep.subr.mxu0 %v2382
    %3328 = vmatpush2.xpose.msra.mxu0 %v1550
    %3329 = vmatprep.subr.mxu0 %v2379
    %3330 = vmatpush2.xpose.msra.mxu0 %v1544
    %3331 = vmatprep.subr.mxu0 %v2376
    %3332 = vmatpush2.xpose.msra.mxu0 %v1538
    %3333 = vmatprep.subr.mxu0 %v2373
    %3334 = vmatpush2.xpose.msra.mxu0 %v1532
    %3335 = vmatprep.subr.mxu0 %v2370
    %3336 = vmatpush2.xpose.msra.mxu0 %v1526
    %3337 = vmatprep.mubr.f32.mxu0 %v2202
    %3338 = vmatmul.mubr.f32.gmra.mxu0 %v1188
    %v3339 = vpop.f32.mrf.mxu0
    %v3340 = vadd.f32 %v3227, %v3339
    %v3341 = vpop.f32.mrf.mxu0
    %v3342 = vadd.f32 %v3229, %v3341
    %3343 = vmatprep.mubr.f32.mxu0 %v2205
    %3344 = vmatmul.mubr.f32.gmra.mxu0 %v1194
    %v3345 = vpop.f32.mrf.mxu0
    %v3346 = vadd.f32 %v3233, %v3345
    %v3347 = vpop.f32.mrf.mxu0
    %v3348 = vadd.f32 %v3235, %v3347
    %3349 = vmatprep.mubr.f32.mxu0 %v2208
    %3350 = vmatmul.mubr.f32.gmra.mxu0 %v1200
    %v3351 = vpop.f32.mrf.mxu0
    %v3352 = vadd.f32 %v3239, %v3351
    %v3353 = vpop.f32.mrf.mxu0
    %v3354 = vadd.f32 %v3241, %v3353
    %3355 = vmatprep.mubr.f32.mxu0 %v2211
    %3356 = vmatmul.mubr.f32.gmra.mxu0 %v1206
    %v3357 = vpop.f32.mrf.mxu0
    %v3358 = vadd.f32 %v3245, %v3357
    %v3359 = vpop.f32.mrf.mxu0
    %v3360 = vadd.f32 %v3247, %v3359
    %3361 = vmatprep.mubr.f32.mxu0 %v2214
    %3362 = vmatmul.mubr.f32.gmra.mxu0 %v1212
    %v3363 = vpop.f32.mrf.mxu0
    %v3364 = vadd.f32 %v3251, %v3363
    %v3365 = vpop.f32.mrf.mxu0
    %v3366 = vadd.f32 %v3253, %v3365
    %3367 = vmatprep.mubr.f32.mxu0 %v2217
    %3368 = vmatmul.mubr.f32.gmra.mxu0 %v1218
    %v3369 = vpop.f32.mrf.mxu0
    %v3370 = vadd.f32 %v3257, %v3369
    %v3371 = vpop.f32.mrf.mxu0
    %v3372 = vadd.f32 %v3259, %v3371
    %3373 = vmatprep.mubr.f32.mxu0 %v2220
    %3374 = vmatmul.mubr.f32.gmra.mxu0 %v1224
    %v3375 = vpop.f32.mrf.mxu0
    %v3376 = vadd.f32 %v3263, %v3375
    %v3377 = vpop.f32.mrf.mxu0
    %v3378 = vadd.f32 %v3265, %v3377
    %3379 = vmatprep.mubr.f32.mxu0 %v2223
    %3380 = vmatmul.mubr.f32.gmra.mxu0 %v1230
    %v3381 = vpop.f32.mrf.mxu0
    %v3382 = vadd.f32 %v3269, %v3381
    %v3383 = vpop.f32.mrf.mxu0
    %v3384 = vadd.f32 %v3271, %v3383
    %3385 = vdwg.mxu0
    %3386 = vmatprep.subr.mxu0 %v1709
    %3387 = vmatpush1.xpose.msra.mxu0 %v1708
    %3388 = vmatprep.subr.mxu0 %v1703
    %3389 = vmatpush1.xpose.msra.mxu0 %v1702
    %3390 = vmatprep.subr.mxu0 %v1697
    %3391 = vmatpush1.xpose.msra.mxu0 %v1696
    %3392 = vmatprep.subr.mxu0 %v1691
    %3393 = vmatpush1.xpose.msra.mxu0 %v1690
    %3394 = vmatprep.subr.mxu0 %v1685
    %3395 = vmatpush1.xpose.msra.mxu0 %v1684
    %3396 = vmatprep.subr.mxu0 %v1679
    %3397 = vmatpush1.xpose.msra.mxu0 %v1678
    %3398 = vmatprep.subr.mxu0 %v1673
    %3399 = vmatpush1.xpose.msra.mxu0 %v1672
    %3400 = vmatprep.subr.mxu0 %v1667
    %3401 = vmatpush1.xpose.msra.mxu0 %v1666
    %3402 = vmatprep.subr.mxu0 %v1661
    %3403 = vmatpush1.xpose.msra.mxu0 %v1660
    %3404 = vmatprep.subr.mxu0 %v1655
    %3405 = vmatpush1.xpose.msra.mxu0 %v1654
    %3406 = vmatprep.subr.mxu0 %v1649
    %3407 = vmatpush1.xpose.msra.mxu0 %v1648
    %3408 = vmatprep.subr.mxu0 %v1643
    %3409 = vmatpush1.xpose.msra.mxu0 %v1642
    %3410 = vmatprep.subr.mxu0 %v1637
    %3411 = vmatpush1.xpose.msra.mxu0 %v1636
    %3412 = vmatprep.subr.mxu0 %v1631
    %3413 = vmatpush1.xpose.msra.mxu0 %v1630
    %3414 = vmatprep.subr.mxu0 %v1625
    %3415 = vmatpush1.xpose.msra.mxu0 %v1624
    %3416 = vmatprep.subr.mxu0 %v1619
    %3417 = vmatpush1.xpose.msra.mxu0 %v1618
    %3418 = vmatprep.subr.mxu0 %v1805
    %3419 = vmatpush2.xpose.msra.mxu0 %v1804
    %3420 = vmatprep.subr.mxu0 %v1799
    %3421 = vmatpush2.xpose.msra.mxu0 %v1798
    %3422 = vmatprep.subr.mxu0 %v1793
    %3423 = vmatpush2.xpose.msra.mxu0 %v1792
    %3424 = vmatprep.subr.mxu0 %v1787
    %3425 = vmatpush2.xpose.msra.mxu0 %v1786
    %3426 = vmatprep.subr.mxu0 %v1781
    %3427 = vmatpush2.xpose.msra.mxu0 %v1780
    %3428 = vmatprep.subr.mxu0 %v1775
    %3429 = vmatpush2.xpose.msra.mxu0 %v1774
    %3430 = vmatprep.subr.mxu0 %v1769
    %3431 = vmatpush2.xpose.msra.mxu0 %v1768
    %3432 = vmatprep.subr.mxu0 %v1763
    %3433 = vmatpush2.xpose.msra.mxu0 %v1762
    %3434 = vmatprep.subr.mxu0 %v1757
    %3435 = vmatpush2.xpose.msra.mxu0 %v1756
    %3436 = vmatprep.subr.mxu0 %v1751
    %3437 = vmatpush2.xpose.msra.mxu0 %v1750
    %3438 = vmatprep.subr.mxu0 %v1745
    %3439 = vmatpush2.xpose.msra.mxu0 %v1744
    %3440 = vmatprep.subr.mxu0 %v1739
    %3441 = vmatpush2.xpose.msra.mxu0 %v1738
    %3442 = vmatprep.subr.mxu0 %v1733
    %3443 = vmatpush2.xpose.msra.mxu0 %v1732
    %3444 = vmatprep.subr.mxu0 %v1727
    %3445 = vmatpush2.xpose.msra.mxu0 %v1726
    %3446 = vmatprep.subr.mxu0 %v1721
    %3447 = vmatpush2.xpose.msra.mxu0 %v1720
    %3448 = vmatprep.subr.mxu0 %v1715
    %3449 = vmatpush2.xpose.msra.mxu0 %v1714
    %3450 = vmatprep.mubr.f32.mxu0 %v738
    %3451 = vmatmul.mubr.f32.gmra.mxu0 %v736
    %v3452 = vpop.f32.mrf.mxu0
    %v3453 = vadd.f32 0.0, %v3452
    %v3454 = vpop.f32.mrf.mxu0
    %v3455 = vadd.f32 0.0, %v3454
    %3456 = vmatprep.mubr.f32.mxu0 %v744
    %3457 = vmatmul.mubr.f32.gmra.mxu0 %v742
    %v3458 = vpop.f32.mrf.mxu0
    %v3459 = vadd.f32 0.0, %v3458
    %v3460 = vpop.f32.mrf.mxu0
    %v3461 = vadd.f32 0.0, %v3460
    %3462 = vmatprep.mubr.f32.mxu0 %v750
    %3463 = vmatmul.mubr.f32.gmra.mxu0 %v748
    %v3464 = vpop.f32.mrf.mxu0
    %v3465 = vadd.f32 0.0, %v3464
    %v3466 = vpop.f32.mrf.mxu0
    %v3467 = vadd.f32 0.0, %v3466
    %3468 = vmatprep.mubr.f32.mxu0 %v756
    %3469 = vmatmul.mubr.f32.gmra.mxu0 %v754
    %v3470 = vpop.f32.mrf.mxu0
    %v3471 = vadd.f32 0.0, %v3470
    %v3472 = vpop.f32.mrf.mxu0
    %v3473 = vadd.f32 0.0, %v3472
    %3474 = vmatprep.mubr.f32.mxu0 %v762
    %3475 = vmatmul.mubr.f32.gmra.mxu0 %v760
    %v3476 = vpop.f32.mrf.mxu0
    %v3477 = vadd.f32 0.0, %v3476
    %v3478 = vpop.f32.mrf.mxu0
    %v3479 = vadd.f32 0.0, %v3478
    %3480 = vmatprep.mubr.f32.mxu0 %v768
    %3481 = vmatmul.mubr.f32.gmra.mxu0 %v766
    %v3482 = vpop.f32.mrf.mxu0
    %v3483 = vadd.f32 0.0, %v3482
    %v3484 = vpop.f32.mrf.mxu0
    %v3485 = vadd.f32 0.0, %v3484
    %3486 = vmatprep.mubr.f32.mxu0 %v774
    %3487 = vmatmul.mubr.f32.gmra.mxu0 %v772
    %v3488 = vpop.f32.mrf.mxu0
    %v3489 = vadd.f32 0.0, %v3488
    %v3490 = vpop.f32.mrf.mxu0
    %v3491 = vadd.f32 0.0, %v3490
    %3492 = vmatprep.mubr.f32.mxu0 %v780
    %3493 = vmatmul.mubr.f32.gmra.mxu0 %v778
    %v3494 = vpop.f32.mrf.mxu0
    %v3495 = vadd.f32 0.0, %v3494
    %v3496 = vpop.f32.mrf.mxu0
    %v3497 = vadd.f32 0.0, %v3496
    %3498 = vdwg.mxu0
    %3499 = vmatprep.subr.mxu0 %v1711
    %3500 = vmatpush1.xpose.msra.mxu0 %v1710
    %3501 = vmatprep.subr.mxu0 %v1705
    %3502 = vmatpush1.xpose.msra.mxu0 %v1704
    %3503 = vmatprep.subr.mxu0 %v1699
    %3504 = vmatpush1.xpose.msra.mxu0 %v1698
    %3505 = vmatprep.subr.mxu0 %v1693
    %3506 = vmatpush1.xpose.msra.mxu0 %v1692
    %3507 = vmatprep.subr.mxu0 %v1687
    %3508 = vmatpush1.xpose.msra.mxu0 %v1686
    %3509 = vmatprep.subr.mxu0 %v1681
    %3510 = vmatpush1.xpose.msra.mxu0 %v1680
    %3511 = vmatprep.subr.mxu0 %v1675
    %3512 = vmatpush1.xpose.msra.mxu0 %v1674
    %3513 = vmatprep.subr.mxu0 %v1669
    %3514 = vmatpush1.xpose.msra.mxu0 %v1668
    %3515 = vmatprep.subr.mxu0 %v1663
    %3516 = vmatpush1.xpose.msra.mxu0 %v1662
    %3517 = vmatprep.subr.mxu0 %v1657
    %3518 = vmatpush1.xpose.msra.mxu0 %v1656
    %3519 = vmatprep.subr.mxu0 %v1651
    %3520 = vmatpush1.xpose.msra.mxu0 %v1650
    %3521 = vmatprep.subr.mxu0 %v1645
    %3522 = vmatpush1.xpose.msra.mxu0 %v1644
    %3523 = vmatprep.subr.mxu0 %v1639
    %3524 = vmatpush1.xpose.msra.mxu0 %v1638
    %3525 = vmatprep.subr.mxu0 %v1633
    %3526 = vmatpush1.xpose.msra.mxu0 %v1632
    %3527 = vmatprep.subr.mxu0 %v1627
    %3528 = vmatpush1.xpose.msra.mxu0 %v1626
    %3529 = vmatprep.subr.mxu0 %v1621
    %3530 = vmatpush1.xpose.msra.mxu0 %v1620
    %3531 = vmatprep.subr.mxu0 %v1807
    %3532 = vmatpush2.xpose.msra.mxu0 %v1806
    %3533 = vmatprep.subr.mxu0 %v1801
    %3534 = vmatpush2.xpose.msra.mxu0 %v1800
    %3535 = vmatprep.subr.mxu0 %v1795
    %3536 = vmatpush2.xpose.msra.mxu0 %v1794
    %3537 = vmatprep.subr.mxu0 %v1789
    %3538 = vmatpush2.xpose.msra.mxu0 %v1788
    %3539 = vmatprep.subr.mxu0 %v1783
    %3540 = vmatpush2.xpose.msra.mxu0 %v1782
    %3541 = vmatprep.subr.mxu0 %v1777
    %3542 = vmatpush2.xpose.msra.mxu0 %v1776
    %3543 = vmatprep.subr.mxu0 %v1771
    %3544 = vmatpush2.xpose.msra.mxu0 %v1770
    %3545 = vmatprep.subr.mxu0 %v1765
    %3546 = vmatpush2.xpose.msra.mxu0 %v1764
    %3547 = vmatprep.subr.mxu0 %v1759
    %3548 = vmatpush2.xpose.msra.mxu0 %v1758
    %3549 = vmatprep.subr.mxu0 %v1753
    %3550 = vmatpush2.xpose.msra.mxu0 %v1752
    %3551 = vmatprep.subr.mxu0 %v1747
    %3552 = vmatpush2.xpose.msra.mxu0 %v1746
    %3553 = vmatprep.subr.mxu0 %v1741
    %3554 = vmatpush2.xpose.msra.mxu0 %v1740
    %3555 = vmatprep.subr.mxu0 %v1735
    %3556 = vmatpush2.xpose.msra.mxu0 %v1734
    %3557 = vmatprep.subr.mxu0 %v1729
    %3558 = vmatpush2.xpose.msra.mxu0 %v1728
    %3559 = vmatprep.subr.mxu0 %v1723
    %3560 = vmatpush2.xpose.msra.mxu0 %v1722
    %3561 = vmatprep.subr.mxu0 %v1717
    %3562 = vmatpush2.xpose.msra.mxu0 %v1716
    %3563 = vmatprep.mubr.f32.mxu0 %v964
    %3564 = vmatmul.mubr.f32.gmra.mxu0 %v962
    %v3565 = vpop.f32.mrf.mxu0
    %v3566 = vadd.f32 %v3453, %v3565
    %v3567 = vpop.f32.mrf.mxu0
    %v3568 = vadd.f32 %v3455, %v3567
    %3569 = vmatprep.mubr.f32.mxu0 %v970
    %3570 = vmatmul.mubr.f32.gmra.mxu0 %v968
    %v3571 = vpop.f32.mrf.mxu0
    %v3572 = vadd.f32 %v3459, %v3571
    %v3573 = vpop.f32.mrf.mxu0
    %v3574 = vadd.f32 %v3461, %v3573
    %3575 = vmatprep.mubr.f32.mxu0 %v976
    %3576 = vmatmul.mubr.f32.gmra.mxu0 %v974
    %v3577 = vpop.f32.mrf.mxu0
    %v3578 = vadd.f32 %v3465, %v3577
    %v3579 = vpop.f32.mrf.mxu0
    %v3580 = vadd.f32 %v3467, %v3579
    %3581 = vmatprep.mubr.f32.mxu0 %v982
    %3582 = vmatmul.mubr.f32.gmra.mxu0 %v980
    %v3583 = vpop.f32.mrf.mxu0
    %v3584 = vadd.f32 %v3471, %v3583
    %v3585 = vpop.f32.mrf.mxu0
    %v3586 = vadd.f32 %v3473, %v3585
    %3587 = vmatprep.mubr.f32.mxu0 %v988
    %3588 = vmatmul.mubr.f32.gmra.mxu0 %v986
    %v3589 = vpop.f32.mrf.mxu0
    %v3590 = vadd.f32 %v3477, %v3589
    %v3591 = vpop.f32.mrf.mxu0
    %v3592 = vadd.f32 %v3479, %v3591
    %3593 = vmatprep.mubr.f32.mxu0 %v994
    %3594 = vmatmul.mubr.f32.gmra.mxu0 %v992
    %v3595 = vpop.f32.mrf.mxu0
    %v3596 = vadd.f32 %v3483, %v3595
    %v3597 = vpop.f32.mrf.mxu0
    %v3598 = vadd.f32 %v3485, %v3597
    %3599 = vmatprep.mubr.f32.mxu0 %v1000
    %3600 = vmatmul.mubr.f32.gmra.mxu0 %v998
    %v3601 = vpop.f32.mrf.mxu0
    %v3602 = vadd.f32 %v3489, %v3601
    %v3603 = vpop.f32.mrf.mxu0
    %v3604 = vadd.f32 %v3491, %v3603
    %3605 = vmatprep.mubr.f32.mxu0 %v1006
    %3606 = vmatmul.mubr.f32.gmra.mxu0 %v1004
    %v3607 = vpop.f32.mrf.mxu0
    %v3608 = vadd.f32 %v3495, %v3607
    %v3609 = vpop.f32.mrf.mxu0
    %v3610 = vadd.f32 %v3497, %v3609
    %3611 = vdwg.mxu0
    %3612 = vmatprep.subr.mxu0 %v2463
    %3613 = vmatpush1.xpose.msra.mxu0 %v1712
    %3614 = vmatprep.subr.mxu0 %v2460
    %3615 = vmatpush1.xpose.msra.mxu0 %v1706
    %3616 = vmatprep.subr.mxu0 %v2457
    %3617 = vmatpush1.xpose.msra.mxu0 %v1700
    %3618 = vmatprep.subr.mxu0 %v2454
    %3619 = vmatpush1.xpose.msra.mxu0 %v1694
    %3620 = vmatprep.subr.mxu0 %v2451
    %3621 = vmatpush1.xpose.msra.mxu0 %v1688
    %3622 = vmatprep.subr.mxu0 %v2448
    %3623 = vmatpush1.xpose.msra.mxu0 %v1682
    %3624 = vmatprep.subr.mxu0 %v2445
    %3625 = vmatpush1.xpose.msra.mxu0 %v1676
    %3626 = vmatprep.subr.mxu0 %v2442
    %3627 = vmatpush1.xpose.msra.mxu0 %v1670
    %3628 = vmatprep.subr.mxu0 %v2439
    %3629 = vmatpush1.xpose.msra.mxu0 %v1664
    %3630 = vmatprep.subr.mxu0 %v2436
    %3631 = vmatpush1.xpose.msra.mxu0 %v1658
    %3632 = vmatprep.subr.mxu0 %v2433
    %3633 = vmatpush1.xpose.msra.mxu0 %v1652
    %3634 = vmatprep.subr.mxu0 %v2430
    %3635 = vmatpush1.xpose.msra.mxu0 %v1646
    %3636 = vmatprep.subr.mxu0 %v2427
    %3637 = vmatpush1.xpose.msra.mxu0 %v1640
    %3638 = vmatprep.subr.mxu0 %v2424
    %3639 = vmatpush1.xpose.msra.mxu0 %v1634
    %3640 = vmatprep.subr.mxu0 %v2421
    %3641 = vmatpush1.xpose.msra.mxu0 %v1628
    %3642 = vmatprep.subr.mxu0 %v2418
    %3643 = vmatpush1.xpose.msra.mxu0 %v1622
    %3644 = vmatprep.subr.mxu0 %v2511
    %3645 = vmatpush2.xpose.msra.mxu0 %v1808
    %3646 = vmatprep.subr.mxu0 %v2508
    %3647 = vmatpush2.xpose.msra.mxu0 %v1802
    %3648 = vmatprep.subr.mxu0 %v2505
    %3649 = vmatpush2.xpose.msra.mxu0 %v1796
    %3650 = vmatprep.subr.mxu0 %v2502
    %3651 = vmatpush2.xpose.msra.mxu0 %v1790
    %3652 = vmatprep.subr.mxu0 %v2499
    %3653 = vmatpush2.xpose.msra.mxu0 %v1784
    %3654 = vmatprep.subr.mxu0 %v2496
    %3655 = vmatpush2.xpose.msra.mxu0 %v1778
    %3656 = vmatprep.subr.mxu0 %v2493
    %3657 = vmatpush2.xpose.msra.mxu0 %v1772
    %3658 = vmatprep.subr.mxu0 %v2490
    %3659 = vmatpush2.xpose.msra.mxu0 %v1766
    %3660 = vmatprep.subr.mxu0 %v2487
    %3661 = vmatpush2.xpose.msra.mxu0 %v1760
    %3662 = vmatprep.subr.mxu0 %v2484
    %3663 = vmatpush2.xpose.msra.mxu0 %v1754
    %3664 = vmatprep.subr.mxu0 %v2481
    %3665 = vmatpush2.xpose.msra.mxu0 %v1748
    %3666 = vmatprep.subr.mxu0 %v2478
    %3667 = vmatpush2.xpose.msra.mxu0 %v1742
    %3668 = vmatprep.subr.mxu0 %v2475
    %3669 = vmatpush2.xpose.msra.mxu0 %v1736
    %3670 = vmatprep.subr.mxu0 %v2472
    %3671 = vmatpush2.xpose.msra.mxu0 %v1730
    %3672 = vmatprep.subr.mxu0 %v2469
    %3673 = vmatpush2.xpose.msra.mxu0 %v1724
    %3674 = vmatprep.subr.mxu0 %v2466
    %3675 = vmatpush2.xpose.msra.mxu0 %v1718
    %3676 = vmatprep.mubr.f32.mxu0 %v2202
    %3677 = vmatmul.mubr.f32.gmra.mxu0 %v1188
    %v3678 = vpop.f32.mrf.mxu0
    %v3679 = vadd.f32 %v3566, %v3678
    %v3680 = vpop.f32.mrf.mxu0
    %v3681 = vadd.f32 %v3568, %v3680
    %3682 = vmatprep.mubr.f32.mxu0 %v2205
    %3683 = vmatmul.mubr.f32.gmra.mxu0 %v1194
    %v3684 = vpop.f32.mrf.mxu0
    %v3685 = vadd.f32 %v3572, %v3684
    %v3686 = vpop.f32.mrf.mxu0
    %v3687 = vadd.f32 %v3574, %v3686
    %3688 = vmatprep.mubr.f32.mxu0 %v2208
    %3689 = vmatmul.mubr.f32.gmra.mxu0 %v1200
    %v3690 = vpop.f32.mrf.mxu0
    %v3691 = vadd.f32 %v3578, %v3690
    %v3692 = vpop.f32.mrf.mxu0
    %v3693 = vadd.f32 %v3580, %v3692
    %3694 = vmatprep.mubr.f32.mxu0 %v2211
    %3695 = vmatmul.mubr.f32.gmra.mxu0 %v1206
    %v3696 = vpop.f32.mrf.mxu0
    %v3697 = vadd.f32 %v3584, %v3696
    %v3698 = vpop.f32.mrf.mxu0
    %v3699 = vadd.f32 %v3586, %v3698
    %3700 = vmatprep.mubr.f32.mxu0 %v2214
    %3701 = vmatmul.mubr.f32.gmra.mxu0 %v1212
    %v3702 = vpop.f32.mrf.mxu0
    %v3703 = vadd.f32 %v3590, %v3702
    %v3704 = vpop.f32.mrf.mxu0
    %v3705 = vadd.f32 %v3592, %v3704
    %3706 = vmatprep.mubr.f32.mxu0 %v2217
    %3707 = vmatmul.mubr.f32.gmra.mxu0 %v1218
    %v3708 = vpop.f32.mrf.mxu0
    %v3709 = vadd.f32 %v3596, %v3708
    %v3710 = vpop.f32.mrf.mxu0
    %v3711 = vadd.f32 %v3598, %v3710
    %3712 = vmatprep.mubr.f32.mxu0 %v2220
    %3713 = vmatmul.mubr.f32.gmra.mxu0 %v1224
    %v3714 = vpop.f32.mrf.mxu0
    %v3715 = vadd.f32 %v3602, %v3714
    %v3716 = vpop.f32.mrf.mxu0
    %v3717 = vadd.f32 %v3604, %v3716
    %3718 = vmatprep.mubr.f32.mxu0 %v2223
    %3719 = vmatmul.mubr.f32.gmra.mxu0 %v1230
    %v3720 = vpop.f32.mrf.mxu0
    %v3721 = vadd.f32 %v3608, %v3720
    %v3722 = vpop.f32.mrf.mxu0
    %v3723 = vadd.f32 %v3610, %v3722
    %3724 = vdwg.mxu0
    %3725 = vmatprep.subr.mxu0 %v1901
    %3726 = vmatpush1.xpose.msra.mxu0 %v1900
    %3727 = vmatprep.subr.mxu0 %v1895
    %3728 = vmatpush1.xpose.msra.mxu0 %v1894
    %3729 = vmatprep.subr.mxu0 %v1889
    %3730 = vmatpush1.xpose.msra.mxu0 %v1888
    %3731 = vmatprep.subr.mxu0 %v1883
    %3732 = vmatpush1.xpose.msra.mxu0 %v1882
    %3733 = vmatprep.subr.mxu0 %v1877
    %3734 = vmatpush1.xpose.msra.mxu0 %v1876
    %3735 = vmatprep.subr.mxu0 %v1871
    %3736 = vmatpush1.xpose.msra.mxu0 %v1870
    %3737 = vmatprep.subr.mxu0 %v1865
    %3738 = vmatpush1.xpose.msra.mxu0 %v1864
    %3739 = vmatprep.subr.mxu0 %v1859
    %3740 = vmatpush1.xpose.msra.mxu0 %v1858
    %3741 = vmatprep.subr.mxu0 %v1853
    %3742 = vmatpush1.xpose.msra.mxu0 %v1852
    %3743 = vmatprep.subr.mxu0 %v1847
    %3744 = vmatpush1.xpose.msra.mxu0 %v1846
    %3745 = vmatprep.subr.mxu0 %v1841
    %3746 = vmatpush1.xpose.msra.mxu0 %v1840
    %3747 = vmatprep.subr.mxu0 %v1835
    %3748 = vmatpush1.xpose.msra.mxu0 %v1834
    %3749 = vmatprep.subr.mxu0 %v1829
    %3750 = vmatpush1.xpose.msra.mxu0 %v1828
    %3751 = vmatprep.subr.mxu0 %v1823
    %3752 = vmatpush1.xpose.msra.mxu0 %v1822
    %3753 = vmatprep.subr.mxu0 %v1817
    %3754 = vmatpush1.xpose.msra.mxu0 %v1816
    %3755 = vmatprep.subr.mxu0 %v1811
    %3756 = vmatpush1.xpose.msra.mxu0 %v1810
    %3757 = vmatprep.subr.mxu0 %v1997
    %3758 = vmatpush2.xpose.msra.mxu0 %v1996
    %3759 = vmatprep.subr.mxu0 %v1991
    %3760 = vmatpush2.xpose.msra.mxu0 %v1990
    %3761 = vmatprep.subr.mxu0 %v1985
    %3762 = vmatpush2.xpose.msra.mxu0 %v1984
    %3763 = vmatprep.subr.mxu0 %v1979
    %3764 = vmatpush2.xpose.msra.mxu0 %v1978
    %3765 = vmatprep.subr.mxu0 %v1973
    %3766 = vmatpush2.xpose.msra.mxu0 %v1972
    %3767 = vmatprep.subr.mxu0 %v1967
    %3768 = vmatpush2.xpose.msra.mxu0 %v1966
    %3769 = vmatprep.subr.mxu0 %v1961
    %3770 = vmatpush2.xpose.msra.mxu0 %v1960
    %3771 = vmatprep.subr.mxu0 %v1955
    %3772 = vmatpush2.xpose.msra.mxu0 %v1954
    %3773 = vmatprep.subr.mxu0 %v1949
    %3774 = vmatpush2.xpose.msra.mxu0 %v1948
    %3775 = vmatprep.subr.mxu0 %v1943
    %3776 = vmatpush2.xpose.msra.mxu0 %v1942
    %3777 = vmatprep.subr.mxu0 %v1937
    %3778 = vmatpush2.xpose.msra.mxu0 %v1936
    %3779 = vmatprep.subr.mxu0 %v1931
    %3780 = vmatpush2.xpose.msra.mxu0 %v1930
    %3781 = vmatprep.subr.mxu0 %v1925
    %3782 = vmatpush2.xpose.msra.mxu0 %v1924
    %3783 = vmatprep.subr.mxu0 %v1919
    %3784 = vmatpush2.xpose.msra.mxu0 %v1918
    %3785 = vmatprep.subr.mxu0 %v1913
    %3786 = vmatpush2.xpose.msra.mxu0 %v1912
    %3787 = vmatprep.subr.mxu0 %v1907
    %3788 = vmatpush2.xpose.msra.mxu0 %v1906
    %3789 = vmatprep.mubr.f32.mxu0 %v738
    %3790 = vmatmul.mubr.f32.gmra.mxu0 %v736
    %v3791 = vpop.f32.mrf.mxu0
    %v3792 = vadd.f32 0.0, %v3791
    %v3793 = vpop.f32.mrf.mxu0
    %v3794 = vadd.f32 0.0, %v3793
    %3795 = vmatprep.mubr.f32.mxu0 %v744
    %3796 = vmatmul.mubr.f32.gmra.mxu0 %v742
    %v3797 = vpop.f32.mrf.mxu0
    %v3798 = vadd.f32 0.0, %v3797
    %v3799 = vpop.f32.mrf.mxu0
    %v3800 = vadd.f32 0.0, %v3799
    %3801 = vmatprep.mubr.f32.mxu0 %v750
    %3802 = vmatmul.mubr.f32.gmra.mxu0 %v748
    %v3803 = vpop.f32.mrf.mxu0
    %v3804 = vadd.f32 0.0, %v3803
    %v3805 = vpop.f32.mrf.mxu0
    %v3806 = vadd.f32 0.0, %v3805
    %3807 = vmatprep.mubr.f32.mxu0 %v756
    %3808 = vmatmul.mubr.f32.gmra.mxu0 %v754
    %v3809 = vpop.f32.mrf.mxu0
    %v3810 = vadd.f32 0.0, %v3809
    %v3811 = vpop.f32.mrf.mxu0
    %v3812 = vadd.f32 0.0, %v3811
    %3813 = vmatprep.mubr.f32.mxu0 %v762
    %3814 = vmatmul.mubr.f32.gmra.mxu0 %v760
    %v3815 = vpop.f32.mrf.mxu0
    %v3816 = vadd.f32 0.0, %v3815
    %v3817 = vpop.f32.mrf.mxu0
    %v3818 = vadd.f32 0.0, %v3817
    %3819 = vmatprep.mubr.f32.mxu0 %v768
    %3820 = vmatmul.mubr.f32.gmra.mxu0 %v766
    %v3821 = vpop.f32.mrf.mxu0
    %v3822 = vadd.f32 0.0, %v3821
    %v3823 = vpop.f32.mrf.mxu0
    %v3824 = vadd.f32 0.0, %v3823
    %3825 = vmatprep.mubr.f32.mxu0 %v774
    %3826 = vmatmul.mubr.f32.gmra.mxu0 %v772
    %v3827 = vpop.f32.mrf.mxu0
    %v3828 = vadd.f32 0.0, %v3827
    %v3829 = vpop.f32.mrf.mxu0
    %v3830 = vadd.f32 0.0, %v3829
    %3831 = vmatprep.mubr.f32.mxu0 %v780
    %3832 = vmatmul.mubr.f32.gmra.mxu0 %v778
    %v3833 = vpop.f32.mrf.mxu0
    %v3834 = vadd.f32 0.0, %v3833
    %v3835 = vpop.f32.mrf.mxu0
    %v3836 = vadd.f32 0.0, %v3835
    %3837 = vdwg.mxu0
    %3838 = vmatprep.subr.mxu0 %v1903
    %3839 = vmatpush1.xpose.msra.mxu0 %v1902
    %3840 = vmatprep.subr.mxu0 %v1897
    %3841 = vmatpush1.xpose.msra.mxu0 %v1896
    %3842 = vmatprep.subr.mxu0 %v1891
    %3843 = vmatpush1.xpose.msra.mxu0 %v1890
    %3844 = vmatprep.subr.mxu0 %v1885
    %3845 = vmatpush1.xpose.msra.mxu0 %v1884
    %3846 = vmatprep.subr.mxu0 %v1879
    %3847 = vmatpush1.xpose.msra.mxu0 %v1878
    %3848 = vmatprep.subr.mxu0 %v1873
    %3849 = vmatpush1.xpose.msra.mxu0 %v1872
    %3850 = vmatprep.subr.mxu0 %v1867
    %3851 = vmatpush1.xpose.msra.mxu0 %v1866
    %3852 = vmatprep.subr.mxu0 %v1861
    %3853 = vmatpush1.xpose.msra.mxu0 %v1860
    %3854 = vmatprep.subr.mxu0 %v1855
    %3855 = vmatpush1.xpose.msra.mxu0 %v1854
    %3856 = vmatprep.subr.mxu0 %v1849
    %3857 = vmatpush1.xpose.msra.mxu0 %v1848
    %3858 = vmatprep.subr.mxu0 %v1843
    %3859 = vmatpush1.xpose.msra.mxu0 %v1842
    %3860 = vmatprep.subr.mxu0 %v1837
    %3861 = vmatpush1.xpose.msra.mxu0 %v1836
    %3862 = vmatprep.subr.mxu0 %v1831
    %3863 = vmatpush1.xpose.msra.mxu0 %v1830
    %3864 = vmatprep.subr.mxu0 %v1825
    %3865 = vmatpush1.xpose.msra.mxu0 %v1824
    %3866 = vmatprep.subr.mxu0 %v1819
    %3867 = vmatpush1.xpose.msra.mxu0 %v1818
    %3868 = vmatprep.subr.mxu0 %v1813
    %3869 = vmatpush1.xpose.msra.mxu0 %v1812
    %3870 = vmatprep.subr.mxu0 %v1999
    %3871 = vmatpush2.xpose.msra.mxu0 %v1998
    %3872 = vmatprep.subr.mxu0 %v1993
    %3873 = vmatpush2.xpose.msra.mxu0 %v1992
    %3874 = vmatprep.subr.mxu0 %v1987
    %3875 = vmatpush2.xpose.msra.mxu0 %v1986
    %3876 = vmatprep.subr.mxu0 %v1981
    %3877 = vmatpush2.xpose.msra.mxu0 %v1980
    %3878 = vmatprep.subr.mxu0 %v1975
    %3879 = vmatpush2.xpose.msra.mxu0 %v1974
    %3880 = vmatprep.subr.mxu0 %v1969
    %3881 = vmatpush2.xpose.msra.mxu0 %v1968
    %3882 = vmatprep.subr.mxu0 %v1963
    %3883 = vmatpush2.xpose.msra.mxu0 %v1962
    %3884 = vmatprep.subr.mxu0 %v1957
    %3885 = vmatpush2.xpose.msra.mxu0 %v1956
    %3886 = vmatprep.subr.mxu0 %v1951
    %3887 = vmatpush2.xpose.msra.mxu0 %v1950
    %3888 = vmatprep.subr.mxu0 %v1945
    %3889 = vmatpush2.xpose.msra.mxu0 %v1944
    %3890 = vmatprep.subr.mxu0 %v1939
    %3891 = vmatpush2.xpose.msra.mxu0 %v1938
    %3892 = vmatprep.subr.mxu0 %v1933
    %3893 = vmatpush2.xpose.msra.mxu0 %v1932
    %3894 = vmatprep.subr.mxu0 %v1927
    %3895 = vmatpush2.xpose.msra.mxu0 %v1926
    %3896 = vmatprep.subr.mxu0 %v1921
    %3897 = vmatpush2.xpose.msra.mxu0 %v1920
    %3898 = vmatprep.subr.mxu0 %v1915
    %3899 = vmatpush2.xpose.msra.mxu0 %v1914
    %3900 = vmatprep.subr.mxu0 %v1909
    %3901 = vmatpush2.xpose.msra.mxu0 %v1908
    %3902 = vmatprep.mubr.f32.mxu0 %v964
    %3903 = vmatmul.mubr.f32.gmra.mxu0 %v962
    %v3904 = vpop.f32.mrf.mxu0
    %v3905 = vadd.f32 %v3792, %v3904
    %v3906 = vpop.f32.mrf.mxu0
    %v3907 = vadd.f32 %v3794, %v3906
    %3908 = vmatprep.mubr.f32.mxu0 %v970
    %3909 = vmatmul.mubr.f32.gmra.mxu0 %v968
    %v3910 = vpop.f32.mrf.mxu0
    %v3911 = vadd.f32 %v3798, %v3910
    %v3912 = vpop.f32.mrf.mxu0
    %v3913 = vadd.f32 %v3800, %v3912
    %3914 = vmatprep.mubr.f32.mxu0 %v976
    %3915 = vmatmul.mubr.f32.gmra.mxu0 %v974
    %v3916 = vpop.f32.mrf.mxu0
    %v3917 = vadd.f32 %v3804, %v3916
    %v3918 = vpop.f32.mrf.mxu0
    %v3919 = vadd.f32 %v3806, %v3918
    %3920 = vmatprep.mubr.f32.mxu0 %v982
    %3921 = vmatmul.mubr.f32.gmra.mxu0 %v980
    %v3922 = vpop.f32.mrf.mxu0
    %v3923 = vadd.f32 %v3810, %v3922
    %v3924 = vpop.f32.mrf.mxu0
    %v3925 = vadd.f32 %v3812, %v3924
    %3926 = vmatprep.mubr.f32.mxu0 %v988
    %3927 = vmatmul.mubr.f32.gmra.mxu0 %v986
    %v3928 = vpop.f32.mrf.mxu0
    %v3929 = vadd.f32 %v3816, %v3928
    %v3930 = vpop.f32.mrf.mxu0
    %v3931 = vadd.f32 %v3818, %v3930
    %3932 = vmatprep.mubr.f32.mxu0 %v994
    %3933 = vmatmul.mubr.f32.gmra.mxu0 %v992
    %v3934 = vpop.f32.mrf.mxu0
    %v3935 = vadd.f32 %v3822, %v3934
    %v3936 = vpop.f32.mrf.mxu0
    %v3937 = vadd.f32 %v3824, %v3936
    %3938 = vmatprep.mubr.f32.mxu0 %v1000
    %3939 = vmatmul.mubr.f32.gmra.mxu0 %v998
    %v3940 = vpop.f32.mrf.mxu0
    %v3941 = vadd.f32 %v3828, %v3940
    %v3942 = vpop.f32.mrf.mxu0
    %v3943 = vadd.f32 %v3830, %v3942
    %3944 = vmatprep.mubr.f32.mxu0 %v1006
    %3945 = vmatmul.mubr.f32.gmra.mxu0 %v1004
    %v3946 = vpop.f32.mrf.mxu0
    %v3947 = vadd.f32 %v3834, %v3946
    %v3948 = vpop.f32.mrf.mxu0
    %v3949 = vadd.f32 %v3836, %v3948
    %3950 = vdwg.mxu0
    %3951 = vmatprep.subr.mxu0 %v2559
    %3952 = vmatpush1.xpose.msra.mxu0 %v1904
    %3953 = vmatprep.subr.mxu0 %v2556
    %3954 = vmatpush1.xpose.msra.mxu0 %v1898
    %3955 = vmatprep.subr.mxu0 %v2553
    %3956 = vmatpush1.xpose.msra.mxu0 %v1892
    %3957 = vmatprep.subr.mxu0 %v2550
    %3958 = vmatpush1.xpose.msra.mxu0 %v1886
    %3959 = vmatprep.subr.mxu0 %v2547
    %3960 = vmatpush1.xpose.msra.mxu0 %v1880
    %3961 = vmatprep.subr.mxu0 %v2544
    %3962 = vmatpush1.xpose.msra.mxu0 %v1874
    %3963 = vmatprep.subr.mxu0 %v2541
    %3964 = vmatpush1.xpose.msra.mxu0 %v1868
    %3965 = vmatprep.subr.mxu0 %v2538
    %3966 = vmatpush1.xpose.msra.mxu0 %v1862
    %3967 = vmatprep.subr.mxu0 %v2535
    %3968 = vmatpush1.xpose.msra.mxu0 %v1856
    %3969 = vmatprep.subr.mxu0 %v2532
    %3970 = vmatpush1.xpose.msra.mxu0 %v1850
    %3971 = vmatprep.subr.mxu0 %v2529
    %3972 = vmatpush1.xpose.msra.mxu0 %v1844
    %3973 = vmatprep.subr.mxu0 %v2526
    %3974 = vmatpush1.xpose.msra.mxu0 %v1838
    %3975 = vmatprep.subr.mxu0 %v2523
    %3976 = vmatpush1.xpose.msra.mxu0 %v1832
    %3977 = vmatprep.subr.mxu0 %v2520
    %3978 = vmatpush1.xpose.msra.mxu0 %v1826
    %3979 = vmatprep.subr.mxu0 %v2517
    %3980 = vmatpush1.xpose.msra.mxu0 %v1820
    %3981 = vmatprep.subr.mxu0 %v2514
    %3982 = vmatpush1.xpose.msra.mxu0 %v1814
    %3983 = vmatprep.subr.mxu0 %v2607
    %3984 = vmatpush2.xpose.msra.mxu0 %v2000
    %3985 = vmatprep.subr.mxu0 %v2604
    %3986 = vmatpush2.xpose.msra.mxu0 %v1994
    %3987 = vmatprep.subr.mxu0 %v2601
    %3988 = vmatpush2.xpose.msra.mxu0 %v1988
    %3989 = vmatprep.subr.mxu0 %v2598
    %3990 = vmatpush2.xpose.msra.mxu0 %v1982
    %3991 = vmatprep.subr.mxu0 %v2595
    %3992 = vmatpush2.xpose.msra.mxu0 %v1976
    %3993 = vmatprep.subr.mxu0 %v2592
    %3994 = vmatpush2.xpose.msra.mxu0 %v1970
    %3995 = vmatprep.subr.mxu0 %v2589
    %3996 = vmatpush2.xpose.msra.mxu0 %v1964
    %3997 = vmatprep.subr.mxu0 %v2586
    %3998 = vmatpush2.xpose.msra.mxu0 %v1958
    %3999 = vmatprep.subr.mxu0 %v2583
    %4000 = vmatpush2.xpose.msra.mxu0 %v1952
    %4001 = vmatprep.subr.mxu0 %v2580
    %4002 = vmatpush2.xpose.msra.mxu0 %v1946
    %4003 = vmatprep.subr.mxu0 %v2577
    %4004 = vmatpush2.xpose.msra.mxu0 %v1940
    %4005 = vmatprep.subr.mxu0 %v2574
    %4006 = vmatpush2.xpose.msra.mxu0 %v1934
    %4007 = vmatprep.subr.mxu0 %v2571
    %4008 = vmatpush2.xpose.msra.mxu0 %v1928
    %4009 = vmatprep.subr.mxu0 %v2568
    %4010 = vmatpush2.xpose.msra.mxu0 %v1922
    %4011 = vmatprep.subr.mxu0 %v2565
    %4012 = vmatpush2.xpose.msra.mxu0 %v1916
    %4013 = vmatprep.subr.mxu0 %v2562
    %4014 = vmatpush2.xpose.msra.mxu0 %v1910
    %4015 = vmatprep.mubr.f32.mxu0 %v2202
    %4016 = vmatmul.mubr.f32.gmra.mxu0 %v1188
    %v4017 = vpop.f32.mrf.mxu0
    %v4018 = vadd.f32 %v3905, %v4017
    %v4019 = vpop.f32.mrf.mxu0
    %v4020 = vadd.f32 %v3907, %v4019
    %4021 = vmatprep.mubr.f32.mxu0 %v2205
    %4022 = vmatmul.mubr.f32.gmra.mxu0 %v1194
    %v4023 = vpop.f32.mrf.mxu0
    %v4024 = vadd.f32 %v3911, %v4023
    %v4025 = vpop.f32.mrf.mxu0
    %v4026 = vadd.f32 %v3913, %v4025
    %4027 = vmatprep.mubr.f32.mxu0 %v2208
    %4028 = vmatmul.mubr.f32.gmra.mxu0 %v1200
    %v4029 = vpop.f32.mrf.mxu0
    %v4030 = vadd.f32 %v3917, %v4029
    %v4031 = vpop.f32.mrf.mxu0
    %v4032 = vadd.f32 %v3919, %v4031
    %4033 = vmatprep.mubr.f32.mxu0 %v2211
    %4034 = vmatmul.mubr.f32.gmra.mxu0 %v1206
    %v4035 = vpop.f32.mrf.mxu0
    %v4036 = vadd.f32 %v3923, %v4035
    %v4037 = vpop.f32.mrf.mxu0
    %v4038 = vadd.f32 %v3925, %v4037
    %4039 = vmatprep.mubr.f32.mxu0 %v2214
    %4040 = vmatmul.mubr.f32.gmra.mxu0 %v1212
    %v4041 = vpop.f32.mrf.mxu0
    %v4042 = vadd.f32 %v3929, %v4041
    %v4043 = vpop.f32.mrf.mxu0
    %v4044 = vadd.f32 %v3931, %v4043
    %4045 = vmatprep.mubr.f32.mxu0 %v2217
    %4046 = vmatmul.mubr.f32.gmra.mxu0 %v1218
    %v4047 = vpop.f32.mrf.mxu0
    %v4048 = vadd.f32 %v3935, %v4047
    %v4049 = vpop.f32.mrf.mxu0
    %v4050 = vadd.f32 %v3937, %v4049
    %4051 = vmatprep.mubr.f32.mxu0 %v2220
    %4052 = vmatmul.mubr.f32.gmra.mxu0 %v1224
    %v4053 = vpop.f32.mrf.mxu0
    %v4054 = vadd.f32 %v3941, %v4053
    %v4055 = vpop.f32.mrf.mxu0
    %v4056 = vadd.f32 %v3943, %v4055
    %4057 = vmatprep.mubr.f32.mxu0 %v2223
    %4058 = vmatmul.mubr.f32.gmra.mxu0 %v1230
    %v4059 = vpop.f32.mrf.mxu0
    %v4060 = vadd.f32 %v3947, %v4059
    %v4061 = vpop.f32.mrf.mxu0
    %v4062 = vadd.f32 %v3949, %v4061
    %4063 = vdwg.mxu0
    %4064 = vmatprep.subr.mxu0 %v2093
    %4065 = vmatpush1.xpose.msra.mxu0 %v2092
    %4066 = vmatprep.subr.mxu0 %v2087
    %4067 = vmatpush1.xpose.msra.mxu0 %v2086
    %4068 = vmatprep.subr.mxu0 %v2081
    %4069 = vmatpush1.xpose.msra.mxu0 %v2080
    %4070 = vmatprep.subr.mxu0 %v2075
    %4071 = vmatpush1.xpose.msra.mxu0 %v2074
    %4072 = vmatprep.subr.mxu0 %v2069
    %4073 = vmatpush1.xpose.msra.mxu0 %v2068
    %4074 = vmatprep.subr.mxu0 %v2063
    %4075 = vmatpush1.xpose.msra.mxu0 %v2062
    %4076 = vmatprep.subr.mxu0 %v2057
    %4077 = vmatpush1.xpose.msra.mxu0 %v2056
    %4078 = vmatprep.subr.mxu0 %v2051
    %4079 = vmatpush1.xpose.msra.mxu0 %v2050
    %4080 = vmatprep.subr.mxu0 %v2045
    %4081 = vmatpush1.xpose.msra.mxu0 %v2044
    %4082 = vmatprep.subr.mxu0 %v2039
    %4083 = vmatpush1.xpose.msra.mxu0 %v2038
    %4084 = vmatprep.subr.mxu0 %v2033
    %4085 = vmatpush1.xpose.msra.mxu0 %v2032
    %4086 = vmatprep.subr.mxu0 %v2027
    %4087 = vmatpush1.xpose.msra.mxu0 %v2026
    %4088 = vmatprep.subr.mxu0 %v2021
    %4089 = vmatpush1.xpose.msra.mxu0 %v2020
    %4090 = vmatprep.subr.mxu0 %v2015
    %4091 = vmatpush1.xpose.msra.mxu0 %v2014
    %4092 = vmatprep.subr.mxu0 %v2009
    %4093 = vmatpush1.xpose.msra.mxu0 %v2008
    %4094 = vmatprep.subr.mxu0 %v2003
    %4095 = vmatpush1.xpose.msra.mxu0 %v2002
    %4096 = vmatprep.subr.mxu0 %v2189
    %4097 = vmatpush2.xpose.msra.mxu0 %v2188
    %4098 = vmatprep.subr.mxu0 %v2183
    %4099 = vmatpush2.xpose.msra.mxu0 %v2182
    %4100 = vmatprep.subr.mxu0 %v2177
    %4101 = vmatpush2.xpose.msra.mxu0 %v2176
    %4102 = vmatprep.subr.mxu0 %v2171
    %4103 = vmatpush2.xpose.msra.mxu0 %v2170
    %4104 = vmatprep.subr.mxu0 %v2165
    %4105 = vmatpush2.xpose.msra.mxu0 %v2164
    %4106 = vmatprep.subr.mxu0 %v2159
    %4107 = vmatpush2.xpose.msra.mxu0 %v2158
    %4108 = vmatprep.subr.mxu0 %v2153
    %4109 = vmatpush2.xpose.msra.mxu0 %v2152
    %4110 = vmatprep.subr.mxu0 %v2147
    %4111 = vmatpush2.xpose.msra.mxu0 %v2146
    %4112 = vmatprep.subr.mxu0 %v2141
    %4113 = vmatpush2.xpose.msra.mxu0 %v2140
    %4114 = vmatprep.subr.mxu0 %v2135
    %4115 = vmatpush2.xpose.msra.mxu0 %v2134
    %4116 = vmatprep.subr.mxu0 %v2129
    %4117 = vmatpush2.xpose.msra.mxu0 %v2128
    %4118 = vmatprep.subr.mxu0 %v2123
    %4119 = vmatpush2.xpose.msra.mxu0 %v2122
    %4120 = vmatprep.subr.mxu0 %v2117
    %4121 = vmatpush2.xpose.msra.mxu0 %v2116
    %4122 = vmatprep.subr.mxu0 %v2111
    %4123 = vmatpush2.xpose.msra.mxu0 %v2110
    %4124 = vmatprep.subr.mxu0 %v2105
    %4125 = vmatpush2.xpose.msra.mxu0 %v2104
    %4126 = vmatprep.subr.mxu0 %v2099
    %4127 = vmatpush2.xpose.msra.mxu0 %v2098
    %4128 = vmatprep.mubr.f32.mxu0 %v738
    %4129 = vmatmul.mubr.f32.gmra.mxu0 %v736
    %v4130 = vpop.f32.mrf.mxu0
    %v4131 = vadd.f32 0.0, %v4130
    %v4132 = vpop.f32.mrf.mxu0
    %v4133 = vadd.f32 0.0, %v4132
    %4134 = vmatprep.mubr.f32.mxu0 %v744
    %4135 = vmatmul.mubr.f32.gmra.mxu0 %v742
    %v4136 = vpop.f32.mrf.mxu0
    %v4137 = vadd.f32 0.0, %v4136
    %v4138 = vpop.f32.mrf.mxu0
    %v4139 = vadd.f32 0.0, %v4138
    %4140 = vmatprep.mubr.f32.mxu0 %v750
    %4141 = vmatmul.mubr.f32.gmra.mxu0 %v748
    %v4142 = vpop.f32.mrf.mxu0
    %v4143 = vadd.f32 0.0, %v4142
    %v4144 = vpop.f32.mrf.mxu0
    %v4145 = vadd.f32 0.0, %v4144
    %4146 = vmatprep.mubr.f32.mxu0 %v756
    %4147 = vmatmul.mubr.f32.gmra.mxu0 %v754
    %v4148 = vpop.f32.mrf.mxu0
    %v4149 = vadd.f32 0.0, %v4148
    %v4150 = vpop.f32.mrf.mxu0
    %v4151 = vadd.f32 0.0, %v4150
    %4152 = vmatprep.mubr.f32.mxu0 %v762
    %4153 = vmatmul.mubr.f32.gmra.mxu0 %v760
    %v4154 = vpop.f32.mrf.mxu0
    %v4155 = vadd.f32 0.0, %v4154
    %v4156 = vpop.f32.mrf.mxu0
    %v4157 = vadd.f32 0.0, %v4156
    %4158 = vmatprep.mubr.f32.mxu0 %v768
    %4159 = vmatmul.mubr.f32.gmra.mxu0 %v766
    %v4160 = vpop.f32.mrf.mxu0
    %v4161 = vadd.f32 0.0, %v4160
    %v4162 = vpop.f32.mrf.mxu0
    %v4163 = vadd.f32 0.0, %v4162
    %4164 = vmatprep.mubr.f32.mxu0 %v774
    %4165 = vmatmul.mubr.f32.gmra.mxu0 %v772
    %v4166 = vpop.f32.mrf.mxu0
    %v4167 = vadd.f32 0.0, %v4166
    %v4168 = vpop.f32.mrf.mxu0
    %v4169 = vadd.f32 0.0, %v4168
    %4170 = vmatprep.mubr.f32.mxu0 %v780
    %4171 = vmatmul.mubr.f32.gmra.mxu0 %v778
    %v4172 = vpop.f32.mrf.mxu0
    %v4173 = vadd.f32 0.0, %v4172
    %v4174 = vpop.f32.mrf.mxu0
    %v4175 = vadd.f32 0.0, %v4174
    %4176 = vdwg.mxu0
    %4177 = vmatprep.subr.mxu0 %v2095
    %4178 = vmatpush1.xpose.msra.mxu0 %v2094
    %4179 = vmatprep.subr.mxu0 %v2089
    %4180 = vmatpush1.xpose.msra.mxu0 %v2088
    %4181 = vmatprep.subr.mxu0 %v2083
    %4182 = vmatpush1.xpose.msra.mxu0 %v2082
    %4183 = vmatprep.subr.mxu0 %v2077
    %4184 = vmatpush1.xpose.msra.mxu0 %v2076
    %4185 = vmatprep.subr.mxu0 %v2071
    %4186 = vmatpush1.xpose.msra.mxu0 %v2070
    %4187 = vmatprep.subr.mxu0 %v2065
    %4188 = vmatpush1.xpose.msra.mxu0 %v2064
    %4189 = vmatprep.subr.mxu0 %v2059
    %4190 = vmatpush1.xpose.msra.mxu0 %v2058
    %4191 = vmatprep.subr.mxu0 %v2053
    %4192 = vmatpush1.xpose.msra.mxu0 %v2052
    %4193 = vmatprep.subr.mxu0 %v2047
    %4194 = vmatpush1.xpose.msra.mxu0 %v2046
    %4195 = vmatprep.subr.mxu0 %v2041
    %4196 = vmatpush1.xpose.msra.mxu0 %v2040
    %4197 = vmatprep.subr.mxu0 %v2035
    %4198 = vmatpush1.xpose.msra.mxu0 %v2034
    %4199 = vmatprep.subr.mxu0 %v2029
    %4200 = vmatpush1.xpose.msra.mxu0 %v2028
    %4201 = vmatprep.subr.mxu0 %v2023
    %4202 = vmatpush1.xpose.msra.mxu0 %v2022
    %4203 = vmatprep.subr.mxu0 %v2017
    %4204 = vmatpush1.xpose.msra.mxu0 %v2016
    %4205 = vmatprep.subr.mxu0 %v2011
    %4206 = vmatpush1.xpose.msra.mxu0 %v2010
    %4207 = vmatprep.subr.mxu0 %v2005
    %4208 = vmatpush1.xpose.msra.mxu0 %v2004
    %4209 = vmatprep.subr.mxu0 %v2191
    %4210 = vmatpush2.xpose.msra.mxu0 %v2190
    %4211 = vmatprep.subr.mxu0 %v2185
    %4212 = vmatpush2.xpose.msra.mxu0 %v2184
    %4213 = vmatprep.subr.mxu0 %v2179
    %4214 = vmatpush2.xpose.msra.mxu0 %v2178
    %4215 = vmatprep.subr.mxu0 %v2173
    %4216 = vmatpush2.xpose.msra.mxu0 %v2172
    %4217 = vmatprep.subr.mxu0 %v2167
    %4218 = vmatpush2.xpose.msra.mxu0 %v2166
    %4219 = vmatprep.subr.mxu0 %v2161
    %4220 = vmatpush2.xpose.msra.mxu0 %v2160
    %4221 = vmatprep.subr.mxu0 %v2155
    %4222 = vmatpush2.xpose.msra.mxu0 %v2154
    %4223 = vmatprep.subr.mxu0 %v2149
    %4224 = vmatpush2.xpose.msra.mxu0 %v2148
    %4225 = vmatprep.subr.mxu0 %v2143
    %4226 = vmatpush2.xpose.msra.mxu0 %v2142
    %4227 = vmatprep.subr.mxu0 %v2137
    %4228 = vmatpush2.xpose.msra.mxu0 %v2136
    %4229 = vmatprep.subr.mxu0 %v2131
    %4230 = vmatpush2.xpose.msra.mxu0 %v2130
    %4231 = vmatprep.subr.mxu0 %v2125
    %4232 = vmatpush2.xpose.msra.mxu0 %v2124
    %4233 = vmatprep.subr.mxu0 %v2119
    %4234 = vmatpush2.xpose.msra.mxu0 %v2118
    %4235 = vmatprep.subr.mxu0 %v2113
    %4236 = vmatpush2.xpose.msra.mxu0 %v2112
    %4237 = vmatprep.subr.mxu0 %v2107
    %4238 = vmatpush2.xpose.msra.mxu0 %v2106
    %4239 = vmatprep.subr.mxu0 %v2101
    %4240 = vmatpush2.xpose.msra.mxu0 %v2100
    %4241 = vmatprep.mubr.f32.mxu0 %v964
    %4242 = vmatmul.mubr.f32.gmra.mxu0 %v962
    %v4243 = vpop.f32.mrf.mxu0
    %v4244 = vadd.f32 %v4131, %v4243
    %v4245 = vpop.f32.mrf.mxu0
    %v4246 = vadd.f32 %v4133, %v4245
    %4247 = vmatprep.mubr.f32.mxu0 %v970
    %4248 = vmatmul.mubr.f32.gmra.mxu0 %v968
    %v4249 = vpop.f32.mrf.mxu0
    %v4250 = vadd.f32 %v4137, %v4249
    %v4251 = vpop.f32.mrf.mxu0
    %v4252 = vadd.f32 %v4139, %v4251
    %4253 = vmatprep.mubr.f32.mxu0 %v976
    %4254 = vmatmul.mubr.f32.gmra.mxu0 %v974
    %v4255 = vpop.f32.mrf.mxu0
    %v4256 = vadd.f32 %v4143, %v4255
    %v4257 = vpop.f32.mrf.mxu0
    %v4258 = vadd.f32 %v4145, %v4257
    %4259 = vmatprep.mubr.f32.mxu0 %v982
    %4260 = vmatmul.mubr.f32.gmra.mxu0 %v980
    %v4261 = vpop.f32.mrf.mxu0
    %v4262 = vadd.f32 %v4149, %v4261
    %v4263 = vpop.f32.mrf.mxu0
    %v4264 = vadd.f32 %v4151, %v4263
    %4265 = vmatprep.mubr.f32.mxu0 %v988
    %4266 = vmatmul.mubr.f32.gmra.mxu0 %v986
    %v4267 = vpop.f32.mrf.mxu0
    %v4268 = vadd.f32 %v4155, %v4267
    %v4269 = vpop.f32.mrf.mxu0
    %v4270 = vadd.f32 %v4157, %v4269
    %4271 = vmatprep.mubr.f32.mxu0 %v994
    %4272 = vmatmul.mubr.f32.gmra.mxu0 %v992
    %v4273 = vpop.f32.mrf.mxu0
    %v4274 = vadd.f32 %v4161, %v4273
    %v4275 = vpop.f32.mrf.mxu0
    %v4276 = vadd.f32 %v4163, %v4275
    %4277 = vmatprep.mubr.f32.mxu0 %v1000
    %4278 = vmatmul.mubr.f32.gmra.mxu0 %v998
    %v4279 = vpop.f32.mrf.mxu0
    %v4280 = vadd.f32 %v4167, %v4279
    %v4281 = vpop.f32.mrf.mxu0
    %v4282 = vadd.f32 %v4169, %v4281
    %4283 = vmatprep.mubr.f32.mxu0 %v1006
    %4284 = vmatmul.mubr.f32.gmra.mxu0 %v1004
    %v4285 = vpop.f32.mrf.mxu0
    %v4286 = vadd.f32 %v4173, %v4285
    %v4287 = vpop.f32.mrf.mxu0
    %v4288 = vadd.f32 %v4175, %v4287
    %4289 = vdwg.mxu0
    %4290 = vmatprep.subr.mxu0 %v2655
    %4291 = vmatpush1.xpose.msra.mxu0 %v2096
    %4292 = vmatprep.subr.mxu0 %v2652
    %4293 = vmatpush1.xpose.msra.mxu0 %v2090
    %4294 = vmatprep.subr.mxu0 %v2649
    %4295 = vmatpush1.xpose.msra.mxu0 %v2084
    %4296 = vmatprep.subr.mxu0 %v2646
    %4297 = vmatpush1.xpose.msra.mxu0 %v2078
    %4298 = vmatprep.subr.mxu0 %v2643
    %4299 = vmatpush1.xpose.msra.mxu0 %v2072
    %4300 = vmatprep.subr.mxu0 %v2640
    %4301 = vmatpush1.xpose.msra.mxu0 %v2066
    %4302 = vmatprep.subr.mxu0 %v2637
    %4303 = vmatpush1.xpose.msra.mxu0 %v2060
    %4304 = vmatprep.subr.mxu0 %v2634
    %4305 = vmatpush1.xpose.msra.mxu0 %v2054
    %4306 = vmatprep.subr.mxu0 %v2631
    %4307 = vmatpush1.xpose.msra.mxu0 %v2048
    %4308 = vmatprep.subr.mxu0 %v2628
    %4309 = vmatpush1.xpose.msra.mxu0 %v2042
    %4310 = vmatprep.subr.mxu0 %v2625
    %4311 = vmatpush1.xpose.msra.mxu0 %v2036
    %4312 = vmatprep.subr.mxu0 %v2622
    %4313 = vmatpush1.xpose.msra.mxu0 %v2030
    %4314 = vmatprep.subr.mxu0 %v2619
    %4315 = vmatpush1.xpose.msra.mxu0 %v2024
    %4316 = vmatprep.subr.mxu0 %v2616
    %4317 = vmatpush1.xpose.msra.mxu0 %v2018
    %4318 = vmatprep.subr.mxu0 %v2613
    %4319 = vmatpush1.xpose.msra.mxu0 %v2012
    %4320 = vmatprep.subr.mxu0 %v2610
    %4321 = vmatpush1.xpose.msra.mxu0 %v2006
    %4322 = vmatprep.subr.mxu0 %v2703
    %4323 = vmatpush2.xpose.msra.mxu0 %v2192
    %4324 = vmatprep.subr.mxu0 %v2700
    %4325 = vmatpush2.xpose.msra.mxu0 %v2186
    %4326 = vmatprep.subr.mxu0 %v2697
    %4327 = vmatpush2.xpose.msra.mxu0 %v2180
    %4328 = vmatprep.subr.mxu0 %v2694
    %4329 = vmatpush2.xpose.msra.mxu0 %v2174
    %4330 = vmatprep.subr.mxu0 %v2691
    %4331 = vmatpush2.xpose.msra.mxu0 %v2168
    %4332 = vmatprep.subr.mxu0 %v2688
    %4333 = vmatpush2.xpose.msra.mxu0 %v2162
    %4334 = vmatprep.subr.mxu0 %v2685
    %4335 = vmatpush2.xpose.msra.mxu0 %v2156
    %4336 = vmatprep.subr.mxu0 %v2682
    %4337 = vmatpush2.xpose.msra.mxu0 %v2150
    %4338 = vmatprep.subr.mxu0 %v2679
    %4339 = vmatpush2.xpose.msra.mxu0 %v2144
    %4340 = vmatprep.subr.mxu0 %v2676
    %4341 = vmatpush2.xpose.msra.mxu0 %v2138
    %4342 = vmatprep.subr.mxu0 %v2673
    %4343 = vmatpush2.xpose.msra.mxu0 %v2132
    %4344 = vmatprep.subr.mxu0 %v2670
    %4345 = vmatpush2.xpose.msra.mxu0 %v2126
    %4346 = vmatprep.subr.mxu0 %v2667
    %4347 = vmatpush2.xpose.msra.mxu0 %v2120
    %4348 = vmatprep.subr.mxu0 %v2664
    %4349 = vmatpush2.xpose.msra.mxu0 %v2114
    %4350 = vmatprep.subr.mxu0 %v2661
    %4351 = vmatpush2.xpose.msra.mxu0 %v2108
    %4352 = vmatprep.subr.mxu0 %v2658
    %4353 = vmatpush2.xpose.msra.mxu0 %v2102
    %4354 = vmatprep.mubr.f32.mxu0 %v2202
    %4355 = vmatmul.mubr.f32.gmra.mxu0 %v1188
    %v4356 = vpop.f32.mrf.mxu0
    %v4357 = vadd.f32 %v4244, %v4356
    %v4358 = vpop.f32.mrf.mxu0
    %v4359 = vadd.f32 %v4246, %v4358
    %4360 = vmatprep.mubr.f32.mxu0 %v2205
    %4361 = vmatmul.mubr.f32.gmra.mxu0 %v1194
    %v4362 = vpop.f32.mrf.mxu0
    %v4363 = vadd.f32 %v4250, %v4362
    %v4364 = vpop.f32.mrf.mxu0
    %v4365 = vadd.f32 %v4252, %v4364
    %4366 = vmatprep.mubr.f32.mxu0 %v2208
    %4367 = vmatmul.mubr.f32.gmra.mxu0 %v1200
    %v4368 = vpop.f32.mrf.mxu0
    %v4369 = vadd.f32 %v4256, %v4368
    %v4370 = vpop.f32.mrf.mxu0
    %v4371 = vadd.f32 %v4258, %v4370
    %4372 = vmatprep.mubr.f32.mxu0 %v2211
    %4373 = vmatmul.mubr.f32.gmra.mxu0 %v1206
    %v4374 = vpop.f32.mrf.mxu0
    %v4375 = vadd.f32 %v4262, %v4374
    %v4376 = vpop.f32.mrf.mxu0
    %v4377 = vadd.f32 %v4264, %v4376
    %4378 = vmatprep.mubr.f32.mxu0 %v2214
    %4379 = vmatmul.mubr.f32.gmra.mxu0 %v1212
    %v4380 = vpop.f32.mrf.mxu0
    %v4381 = vadd.f32 %v4268, %v4380
    %v4382 = vpop.f32.mrf.mxu0
    %v4383 = vadd.f32 %v4270, %v4382
    %4384 = vmatprep.mubr.f32.mxu0 %v2217
    %4385 = vmatmul.mubr.f32.gmra.mxu0 %v1218
    %v4386 = vpop.f32.mrf.mxu0
    %v4387 = vadd.f32 %v4274, %v4386
    %v4388 = vpop.f32.mrf.mxu0
    %v4389 = vadd.f32 %v4276, %v4388
    %4390 = vmatprep.mubr.f32.mxu0 %v2220
    %4391 = vmatmul.mubr.f32.gmra.mxu0 %v1224
    %v4392 = vpop.f32.mrf.mxu0
    %v4393 = vadd.f32 %v4280, %v4392
    %v4394 = vpop.f32.mrf.mxu0
    %v4395 = vadd.f32 %v4282, %v4394
    %4396 = vmatprep.mubr.f32.mxu0 %v2223
    %4397 = vmatmul.mubr.f32.gmra.mxu0 %v1230
    %v4398 = vpop.f32.mrf.mxu0
    %v4399 = vadd.f32 %v4286, %v4398
    %v4400 = vpop.f32.mrf.mxu0
    %v4401 = vadd.f32 %v4288, %v4400
    %4402 = vdwg.mxu0
    %4403 = vmatprep.subr.mxu0 0.0
    %4404 = vmatpush1.xpose.msra.mxu0 0.0
    %4405 = vmatprep.subr.mxu0 0.0
    %4406 = vmatpush1.xpose.msra.mxu0 0.0
    %4407 = vmatprep.subr.mxu0 0.0
    %4408 = vmatpush1.xpose.msra.mxu0 0.0
    %4409 = vmatprep.subr.mxu0 0.0
    %4410 = vmatpush1.xpose.msra.mxu0 0.0
    %4411 = vmatprep.subr.mxu0 0.0
    %4412 = vmatpush1.xpose.msra.mxu0 0.0
    %4413 = vmatprep.subr.mxu0 0.0
    %4414 = vmatpush1.xpose.msra.mxu0 0.0
    %4415 = vmatprep.subr.mxu0 0.0
    %4416 = vmatpush1.xpose.msra.mxu0 0.0
    %4417 = vmatprep.subr.mxu0 0.0
    %4418 = vmatpush1.xpose.msra.mxu0 0.0
    %4419 = vmatprep.subr.mxu0 0.0
    %4420 = vmatpush1.xpose.msra.mxu0 0.0
    %4421 = vmatprep.subr.mxu0 0.0
    %4422 = vmatpush1.xpose.msra.mxu0 0.0
    %4423 = vmatprep.subr.mxu0 0.0
    %4424 = vmatpush1.xpose.msra.mxu0 0.0
    %4425 = vmatprep.subr.mxu0 0.0
    %4426 = vmatpush1.xpose.msra.mxu0 0.0
    %4427 = vmatprep.subr.mxu0 0.0
    %4428 = vmatpush1.xpose.msra.mxu0 0.0
    %4429 = vmatprep.subr.mxu0 0.0
    %4430 = vmatpush1.xpose.msra.mxu0 0.0
    %4431 = vmatprep.subr.mxu0 0.0
    %4432 = vmatpush1.xpose.msra.mxu0 0.0
    %4433 = vmatprep.subr.mxu0 %v2195
    %4434 = vmatpush1.xpose.msra.mxu0 %v2194
    %4435 = vmatprep.subr.mxu0 0.0
    %4436 = vmatpush2.xpose.msra.mxu0 0.0
    %4437 = vmatprep.subr.mxu0 0.0
    %4438 = vmatpush2.xpose.msra.mxu0 0.0
    %4439 = vmatprep.subr.mxu0 0.0
    %4440 = vmatpush2.xpose.msra.mxu0 0.0
    %4441 = vmatprep.subr.mxu0 0.0
    %4442 = vmatpush2.xpose.msra.mxu0 0.0
    %4443 = vmatprep.subr.mxu0 0.0
    %4444 = vmatpush2.xpose.msra.mxu0 0.0
    %4445 = vmatprep.subr.mxu0 0.0
    %4446 = vmatpush2.xpose.msra.mxu0 0.0
    %4447 = vmatprep.subr.mxu0 0.0
    %4448 = vmatpush2.xpose.msra.mxu0 0.0
    %4449 = vmatprep.subr.mxu0 0.0
    %4450 = vmatpush2.xpose.msra.mxu0 0.0
    %4451 = vmatprep.subr.mxu0 0.0
    %4452 = vmatpush2.xpose.msra.mxu0 0.0
    %4453 = vmatprep.subr.mxu0 0.0
    %4454 = vmatpush2.xpose.msra.mxu0 0.0
    %4455 = vmatprep.subr.mxu0 0.0
    %4456 = vmatpush2.xpose.msra.mxu0 0.0
    %4457 = vmatprep.subr.mxu0 0.0
    %4458 = vmatpush2.xpose.msra.mxu0 0.0
    %4459 = vmatprep.subr.mxu0 0.0
    %4460 = vmatpush2.xpose.msra.mxu0 0.0
    %4461 = vmatprep.subr.mxu0 0.0
    %4462 = vmatpush2.xpose.msra.mxu0 0.0
    %4463 = vmatprep.subr.mxu0 0.0
    %4464 = vmatpush2.xpose.msra.mxu0 0.0
    %4465 = vmatprep.subr.mxu0 0.0
    %4466 = vmatpush2.xpose.msra.mxu0 0.0
    %4467 = vmatprep.mubr.f32.mxu0 %v738
    %4468 = vmatmul.mubr.f32.gmra.mxu0 %v736
    %v4469 = vpop.f32.mrf.mxu0
    %v4470 = vadd.f32 0.0, %v4469
    %v4471 = vpop.f32.mrf.mxu0
    %4472 = vmatprep.mubr.f32.mxu0 %v744
    %4473 = vmatmul.mubr.f32.gmra.mxu0 %v742
    %v4474 = vpop.f32.mrf.mxu0
    %v4475 = vadd.f32 0.0, %v4474
    %v4476 = vpop.f32.mrf.mxu0
    %4477 = vmatprep.mubr.f32.mxu0 %v750
    %4478 = vmatmul.mubr.f32.gmra.mxu0 %v748
    %v4479 = vpop.f32.mrf.mxu0
    %v4480 = vadd.f32 0.0, %v4479
    %v4481 = vpop.f32.mrf.mxu0
    %4482 = vmatprep.mubr.f32.mxu0 %v756
    %4483 = vmatmul.mubr.f32.gmra.mxu0 %v754
    %v4484 = vpop.f32.mrf.mxu0
    %v4485 = vadd.f32 0.0, %v4484
    %v4486 = vpop.f32.mrf.mxu0
    %4487 = vmatprep.mubr.f32.mxu0 %v762
    %4488 = vmatmul.mubr.f32.gmra.mxu0 %v760
    %v4489 = vpop.f32.mrf.mxu0
    %v4490 = vadd.f32 0.0, %v4489
    %v4491 = vpop.f32.mrf.mxu0
    %4492 = vmatprep.mubr.f32.mxu0 %v768
    %4493 = vmatmul.mubr.f32.gmra.mxu0 %v766
    %v4494 = vpop.f32.mrf.mxu0
    %v4495 = vadd.f32 0.0, %v4494
    %v4496 = vpop.f32.mrf.mxu0
    %4497 = vmatprep.mubr.f32.mxu0 %v774
    %4498 = vmatmul.mubr.f32.gmra.mxu0 %v772
    %v4499 = vpop.f32.mrf.mxu0
    %v4500 = vadd.f32 0.0, %v4499
    %v4501 = vpop.f32.mrf.mxu0
    %4502 = vmatprep.mubr.f32.mxu0 %v780
    %4503 = vmatmul.mubr.f32.gmra.mxu0 %v778
    %v4504 = vpop.f32.mrf.mxu0
    %v4505 = vadd.f32 0.0, %v4504
    %v4506 = vpop.f32.mrf.mxu0
    %4507 = vdwg.mxu0
    %4508 = vmatprep.subr.mxu0 0.0
    %4509 = vmatpush1.xpose.msra.mxu0 0.0
    %4510 = vmatprep.subr.mxu0 0.0
    %4511 = vmatpush1.xpose.msra.mxu0 0.0
    %4512 = vmatprep.subr.mxu0 0.0
    %4513 = vmatpush1.xpose.msra.mxu0 0.0
    %4514 = vmatprep.subr.mxu0 0.0
    %4515 = vmatpush1.xpose.msra.mxu0 0.0
    %4516 = vmatprep.subr.mxu0 0.0
    %4517 = vmatpush1.xpose.msra.mxu0 0.0
    %4518 = vmatprep.subr.mxu0 0.0
    %4519 = vmatpush1.xpose.msra.mxu0 0.0
    %4520 = vmatprep.subr.mxu0 0.0
    %4521 = vmatpush1.xpose.msra.mxu0 0.0
    %4522 = vmatprep.subr.mxu0 0.0
    %4523 = vmatpush1.xpose.msra.mxu0 0.0
    %4524 = vmatprep.subr.mxu0 0.0
    %4525 = vmatpush1.xpose.msra.mxu0 0.0
    %4526 = vmatprep.subr.mxu0 0.0
    %4527 = vmatpush1.xpose.msra.mxu0 0.0
    %4528 = vmatprep.subr.mxu0 0.0
    %4529 = vmatpush1.xpose.msra.mxu0 0.0
    %4530 = vmatprep.subr.mxu0 0.0
    %4531 = vmatpush1.xpose.msra.mxu0 0.0
    %4532 = vmatprep.subr.mxu0 0.0
    %4533 = vmatpush1.xpose.msra.mxu0 0.0
    %4534 = vmatprep.subr.mxu0 0.0
    %4535 = vmatpush1.xpose.msra.mxu0 0.0
    %4536 = vmatprep.subr.mxu0 0.0
    %4537 = vmatpush1.xpose.msra.mxu0 0.0
    %4538 = vmatprep.subr.mxu0 %v2197
    %4539 = vmatpush1.xpose.msra.mxu0 %v2196
    %4540 = vmatprep.subr.mxu0 0.0
    %4541 = vmatpush2.xpose.msra.mxu0 0.0
    %4542 = vmatprep.subr.mxu0 0.0
    %4543 = vmatpush2.xpose.msra.mxu0 0.0
    %4544 = vmatprep.subr.mxu0 0.0
    %4545 = vmatpush2.xpose.msra.mxu0 0.0
    %4546 = vmatprep.subr.mxu0 0.0
    %4547 = vmatpush2.xpose.msra.mxu0 0.0
    %4548 = vmatprep.subr.mxu0 0.0
    %4549 = vmatpush2.xpose.msra.mxu0 0.0
    %4550 = vmatprep.subr.mxu0 0.0
    %4551 = vmatpush2.xpose.msra.mxu0 0.0
    %4552 = vmatprep.subr.mxu0 0.0
    %4553 = vmatpush2.xpose.msra.mxu0 0.0
    %4554 = vmatprep.subr.mxu0 0.0
    %4555 = vmatpush2.xpose.msra.mxu0 0.0
    %4556 = vmatprep.subr.mxu0 0.0
    %4557 = vmatpush2.xpose.msra.mxu0 0.0
    %4558 = vmatprep.subr.mxu0 0.0
    %4559 = vmatpush2.xpose.msra.mxu0 0.0
    %4560 = vmatprep.subr.mxu0 0.0
    %4561 = vmatpush2.xpose.msra.mxu0 0.0
    %4562 = vmatprep.subr.mxu0 0.0
    %4563 = vmatpush2.xpose.msra.mxu0 0.0
    %4564 = vmatprep.subr.mxu0 0.0
    %4565 = vmatpush2.xpose.msra.mxu0 0.0
    %4566 = vmatprep.subr.mxu0 0.0
    %4567 = vmatpush2.xpose.msra.mxu0 0.0
    %4568 = vmatprep.subr.mxu0 0.0
    %4569 = vmatpush2.xpose.msra.mxu0 0.0
    %4570 = vmatprep.subr.mxu0 0.0
    %4571 = vmatpush2.xpose.msra.mxu0 0.0
    %4572 = vmatprep.mubr.f32.mxu0 %v964
    %4573 = vmatmul.mubr.f32.gmra.mxu0 %v962
    %v4574 = vpop.f32.mrf.mxu0
    %v4575 = vadd.f32 %v4470, %v4574
    %v4576 = vpop.f32.mrf.mxu0
    %4577 = vmatprep.mubr.f32.mxu0 %v970
    %4578 = vmatmul.mubr.f32.gmra.mxu0 %v968
    %v4579 = vpop.f32.mrf.mxu0
    %v4580 = vadd.f32 %v4475, %v4579
    %v4581 = vpop.f32.mrf.mxu0
    %4582 = vmatprep.mubr.f32.mxu0 %v976
    %4583 = vmatmul.mubr.f32.gmra.mxu0 %v974
    %v4584 = vpop.f32.mrf.mxu0
    %v4585 = vadd.f32 %v4480, %v4584
    %v4586 = vpop.f32.mrf.mxu0
    %4587 = vmatprep.mubr.f32.mxu0 %v982
    %4588 = vmatmul.mubr.f32.gmra.mxu0 %v980
    %v4589 = vpop.f32.mrf.mxu0
    %v4590 = vadd.f32 %v4485, %v4589
    %v4591 = vpop.f32.mrf.mxu0
    %4592 = vmatprep.mubr.f32.mxu0 %v988
    %4593 = vmatmul.mubr.f32.gmra.mxu0 %v986
    %v4594 = vpop.f32.mrf.mxu0
    %v4595 = vadd.f32 %v4490, %v4594
    %v4596 = vpop.f32.mrf.mxu0
    %4597 = vmatprep.mubr.f32.mxu0 %v994
    %4598 = vmatmul.mubr.f32.gmra.mxu0 %v992
    %v4599 = vpop.f32.mrf.mxu0
    %v4600 = vadd.f32 %v4495, %v4599
    %v4601 = vpop.f32.mrf.mxu0
    %4602 = vmatprep.mubr.f32.mxu0 %v1000
    %4603 = vmatmul.mubr.f32.gmra.mxu0 %v998
    %v4604 = vpop.f32.mrf.mxu0
    %v4605 = vadd.f32 %v4500, %v4604
    %v4606 = vpop.f32.mrf.mxu0
    %4607 = vmatprep.mubr.f32.mxu0 %v1006
    %4608 = vmatmul.mubr.f32.gmra.mxu0 %v1004
    %v4609 = vpop.f32.mrf.mxu0
    %v4610 = vadd.f32 %v4505, %v4609
    %v4611 = vpop.f32.mrf.mxu0
    %4612 = vdwg.mxu0
    %4613 = vmatprep.subr.mxu0 0.0
    %4614 = vmatpush1.xpose.msra.mxu0 0.0
    %4615 = vmatprep.subr.mxu0 0.0
    %4616 = vmatpush1.xpose.msra.mxu0 0.0
    %4617 = vmatprep.subr.mxu0 0.0
    %4618 = vmatpush1.xpose.msra.mxu0 0.0
    %4619 = vmatprep.subr.mxu0 0.0
    %4620 = vmatpush1.xpose.msra.mxu0 0.0
    %4621 = vmatprep.subr.mxu0 0.0
    %4622 = vmatpush1.xpose.msra.mxu0 0.0
    %4623 = vmatprep.subr.mxu0 0.0
    %4624 = vmatpush1.xpose.msra.mxu0 0.0
    %4625 = vmatprep.subr.mxu0 0.0
    %4626 = vmatpush1.xpose.msra.mxu0 0.0
    %4627 = vmatprep.subr.mxu0 0.0
    %4628 = vmatpush1.xpose.msra.mxu0 0.0
    %4629 = vmatprep.subr.mxu0 0.0
    %4630 = vmatpush1.xpose.msra.mxu0 0.0
    %4631 = vmatprep.subr.mxu0 0.0
    %4632 = vmatpush1.xpose.msra.mxu0 0.0
    %4633 = vmatprep.subr.mxu0 0.0
    %4634 = vmatpush1.xpose.msra.mxu0 0.0
    %4635 = vmatprep.subr.mxu0 0.0
    %4636 = vmatpush1.xpose.msra.mxu0 0.0
    %4637 = vmatprep.subr.mxu0 0.0
    %4638 = vmatpush1.xpose.msra.mxu0 0.0
    %4639 = vmatprep.subr.mxu0 0.0
    %4640 = vmatpush1.xpose.msra.mxu0 0.0
    %4641 = vmatprep.subr.mxu0 0.0
    %4642 = vmatpush1.xpose.msra.mxu0 0.0
    %4643 = vmatprep.subr.mxu0 %v2706
    %4644 = vmatpush1.xpose.msra.mxu0 %v2198
    %4645 = vmatprep.subr.mxu0 0.0
    %4646 = vmatpush2.xpose.msra.mxu0 0.0
    %4647 = vmatprep.subr.mxu0 0.0
    %4648 = vmatpush2.xpose.msra.mxu0 0.0
    %4649 = vmatprep.subr.mxu0 0.0
    %4650 = vmatpush2.xpose.msra.mxu0 0.0
    %4651 = vmatprep.subr.mxu0 0.0
    %4652 = vmatpush2.xpose.msra.mxu0 0.0
    %4653 = vmatprep.subr.mxu0 0.0
    %4654 = vmatpush2.xpose.msra.mxu0 0.0
    %4655 = vmatprep.subr.mxu0 0.0
    %4656 = vmatpush2.xpose.msra.mxu0 0.0
    %4657 = vmatprep.subr.mxu0 0.0
    %4658 = vmatpush2.xpose.msra.mxu0 0.0
    %4659 = vmatprep.subr.mxu0 0.0
    %4660 = vmatpush2.xpose.msra.mxu0 0.0
    %4661 = vmatprep.subr.mxu0 0.0
    %4662 = vmatpush2.xpose.msra.mxu0 0.0
    %4663 = vmatprep.subr.mxu0 0.0
    %4664 = vmatpush2.xpose.msra.mxu0 0.0
    %4665 = vmatprep.subr.mxu0 0.0
    %4666 = vmatpush2.xpose.msra.mxu0 0.0
    %4667 = vmatprep.subr.mxu0 0.0
    %4668 = vmatpush2.xpose.msra.mxu0 0.0
    %4669 = vmatprep.subr.mxu0 0.0
    %4670 = vmatpush2.xpose.msra.mxu0 0.0
    %4671 = vmatprep.subr.mxu0 0.0
    %4672 = vmatpush2.xpose.msra.mxu0 0.0
    %4673 = vmatprep.subr.mxu0 0.0
    %4674 = vmatpush2.xpose.msra.mxu0 0.0
    %4675 = vmatprep.subr.mxu0 0.0
    %4676 = vmatpush2.xpose.msra.mxu0 0.0
    %4677 = vmatprep.mubr.f32.mxu0 %v2202
    %4678 = vmatmul.mubr.f32.gmra.mxu0 %v1188
    %v4679 = vpop.f32.mrf.mxu0
    %v4680 = vadd.f32 %v4575, %v4679
    %v4681 = vpop.f32.mrf.mxu0
    %4682 = vmatprep.mubr.f32.mxu0 %v2205
    %4683 = vmatmul.mubr.f32.gmra.mxu0 %v1194
    %v4684 = vpop.f32.mrf.mxu0
    %v4685 = vadd.f32 %v4580, %v4684
    %v4686 = vpop.f32.mrf.mxu0
    %4687 = vmatprep.mubr.f32.mxu0 %v2208
    %4688 = vmatmul.mubr.f32.gmra.mxu0 %v1200
    %v4689 = vpop.f32.mrf.mxu0
    %v4690 = vadd.f32 %v4585, %v4689
    %v4691 = vpop.f32.mrf.mxu0
    %4692 = vmatprep.mubr.f32.mxu0 %v2211
    %4693 = vmatmul.mubr.f32.gmra.mxu0 %v1206
    %v4694 = vpop.f32.mrf.mxu0
    %v4695 = vadd.f32 %v4590, %v4694
    %v4696 = vpop.f32.mrf.mxu0
    %4697 = vmatprep.mubr.f32.mxu0 %v2214
    %4698 = vmatmul.mubr.f32.gmra.mxu0 %v1212
    %v4699 = vpop.f32.mrf.mxu0
    %v4700 = vadd.f32 %v4595, %v4699
    %v4701 = vpop.f32.mrf.mxu0
    %4702 = vmatprep.mubr.f32.mxu0 %v2217
    %4703 = vmatmul.mubr.f32.gmra.mxu0 %v1218
    %v4704 = vpop.f32.mrf.mxu0
    %v4705 = vadd.f32 %v4600, %v4704
    %v4706 = vpop.f32.mrf.mxu0
    %4707 = vmatprep.mubr.f32.mxu0 %v2220
    %4708 = vmatmul.mubr.f32.gmra.mxu0 %v1224
    %v4709 = vpop.f32.mrf.mxu0
    %v4710 = vadd.f32 %v4605, %v4709
    %v4711 = vpop.f32.mrf.mxu0
    %4712 = vmatprep.mubr.f32.mxu0 %v2223
    %4713 = vmatmul.mubr.f32.gmra.mxu0 %v1230
    %v4714 = vpop.f32.mrf.mxu0
    %v4715 = vadd.f32 %v4610, %v4714
    %v4716 = vpop.f32.mrf.mxu0
    %4717 = vdwg.mxu0
    %v4718 = vxor.u32 %v3001, 2147483648
    %v4719 = vxor.u32 %v3003, 2147483648
    %v4720 = vxor.u32 %v3340, 2147483648
    %v4721 = vxor.u32 %v3342, 2147483648
    %v4722 = vxor.u32 %v3679, 2147483648
    %v4723 = vxor.u32 %v3681, 2147483648
    %v4724 = vxor.u32 %v4018, 2147483648
    %v4725 = vxor.u32 %v4020, 2147483648
    %v4726 = vxor.u32 %v4357, 2147483648
    %v4727 = vxor.u32 %v4359, 2147483648
    %v4728 = vxor.u32 %v4680, 2147483648
    %v4729 = vxor.u32 %v3007, 2147483648
    %v4730 = vxor.u32 %v3009, 2147483648
    %v4731 = vxor.u32 %v3346, 2147483648
    %v4732 = vxor.u32 %v3348, 2147483648
    %v4733 = vxor.u32 %v3685, 2147483648
    %v4734 = vxor.u32 %v3687, 2147483648
    %v4735 = vxor.u32 %v4024, 2147483648
    %v4736 = vxor.u32 %v4026, 2147483648
    %v4737 = vxor.u32 %v4363, 2147483648
    %v4738 = vxor.u32 %v4365, 2147483648
    %v4739 = vxor.u32 %v4685, 2147483648
    %v4740 = vxor.u32 %v3013, 2147483648
    %v4741 = vxor.u32 %v3015, 2147483648
    %v4742 = vxor.u32 %v3352, 2147483648
    %v4743 = vxor.u32 %v3354, 2147483648
    %v4744 = vxor.u32 %v3691, 2147483648
    %v4745 = vxor.u32 %v3693, 2147483648
    %v4746 = vxor.u32 %v4030, 2147483648
    %v4747 = vxor.u32 %v4032, 2147483648
    %v4748 = vxor.u32 %v4369, 2147483648
    %v4749 = vxor.u32 %v4371, 2147483648
    %v4750 = vxor.u32 %v4690, 2147483648
    %v4751 = vxor.u32 %v3019, 2147483648
    %v4752 = vxor.u32 %v3021, 2147483648
    %v4753 = vxor.u32 %v3358, 2147483648
    %v4754 = vxor.u32 %v3360, 2147483648
    %v4755 = vxor.u32 %v3697, 2147483648
    %v4756 = vxor.u32 %v3699, 2147483648
    %v4757 = vxor.u32 %v4036, 2147483648
    %v4758 = vxor.u32 %v4038, 2147483648
    %v4759 = vxor.u32 %v4375, 2147483648
    %v4760 = vxor.u32 %v4377, 2147483648
    %v4761 = vxor.u32 %v4695, 2147483648
    %v4762 = vxor.u32 %v3025, 2147483648
    %v4763 = vxor.u32 %v3027, 2147483648
    %v4764 = vxor.u32 %v3364, 2147483648
    %v4765 = vxor.u32 %v3366, 2147483648
    %v4766 = vxor.u32 %v3703, 2147483648
    %v4767 = vxor.u32 %v3705, 2147483648
    %v4768 = vxor.u32 %v4042, 2147483648
    %v4769 = vxor.u32 %v4044, 2147483648
    %v4770 = vxor.u32 %v4381, 2147483648
    %v4771 = vxor.u32 %v4383, 2147483648
    %v4772 = vxor.u32 %v4700, 2147483648
    %v4773 = vxor.u32 %v3031, 2147483648
    %v4774 = vxor.u32 %v3033, 2147483648
    %v4775 = vxor.u32 %v3370, 2147483648
    %v4776 = vxor.u32 %v3372, 2147483648
    %v4777 = vxor.u32 %v3709, 2147483648
    %v4778 = vxor.u32 %v3711, 2147483648
    %v4779 = vxor.u32 %v4048, 2147483648
    %v4780 = vxor.u32 %v4050, 2147483648
    %v4781 = vxor.u32 %v4387, 2147483648
    %v4782 = vxor.u32 %v4389, 2147483648
    %v4783 = vxor.u32 %v4705, 2147483648
    %v4784 = vxor.u32 %v3037, 2147483648
    %v4785 = vxor.u32 %v3039, 2147483648
    %v4786 = vxor.u32 %v3376, 2147483648
    %v4787 = vxor.u32 %v3378, 2147483648
    %v4788 = vxor.u32 %v3715, 2147483648
    %v4789 = vxor.u32 %v3717, 2147483648
    %v4790 = vxor.u32 %v4054, 2147483648
    %v4791 = vxor.u32 %v4056, 2147483648
    %v4792 = vxor.u32 %v4393, 2147483648
    %v4793 = vxor.u32 %v4395, 2147483648
    %v4794 = vxor.u32 %v4710, 2147483648
    %v4795 = vxor.u32 %v3043, 2147483648
    %v4796 = vxor.u32 %v3045, 2147483648
    %v4797 = vxor.u32 %v3382, 2147483648
    %v4798 = vxor.u32 %v3384, 2147483648
    %v4799 = vxor.u32 %v3721, 2147483648
    %v4800 = vxor.u32 %v3723, 2147483648
    %v4801 = vxor.u32 %v4060, 2147483648
    %v4802 = vxor.u32 %v4062, 2147483648
    %v4803 = vxor.u32 %v4399, 2147483648
    %v4804 = vxor.u32 %v4401, 2147483648
    %v4805 = vxor.u32 %v4715, 2147483648
    %v4806 = vmul.f32 %v4718, 1.442695
    %v4807 = vpow.pop %v4806
    %v4808 = vmul.f32 %v4719, 1.442695
    %v4809 = vpow.pop %v4808
    %v4810 = vmul.f32 %v4720, 1.442695
    %v4811 = vpow.pop %v4810
    %v4812 = vmul.f32 %v4721, 1.442695
    %v4813 = vpow.pop %v4812
    %v4814 = vmul.f32 %v4722, 1.442695
    %v4815 = vpow.pop %v4814
    %v4816 = vmul.f32 %v4723, 1.442695
    %v4817 = vpow.pop %v4816
    %v4818 = vmul.f32 %v4724, 1.442695
    %v4819 = vpow.pop %v4818
    %v4820 = vmul.f32 %v4725, 1.442695
    %v4821 = vpow.pop %v4820
    %v4822 = vmul.f32 %v4726, 1.442695
    %v4823 = vpow.pop %v4822
    %v4824 = vmul.f32 %v4727, 1.442695
    %v4825 = vpow.pop %v4824
    %v4826 = vmul.f32 %v4728, 1.442695
    %v4827 = vpow.pop %v4826
    %v4828 = vmul.f32 %v4729, 1.442695
    %v4829 = vpow.pop %v4828
    %v4830 = vmul.f32 %v4730, 1.442695
    %v4831 = vpow.pop %v4830
    %v4832 = vmul.f32 %v4731, 1.442695
    %v4833 = vpow.pop %v4832
    %v4834 = vmul.f32 %v4732, 1.442695
    %v4835 = vpow.pop %v4834
    %v4836 = vmul.f32 %v4733, 1.442695
    %v4837 = vpow.pop %v4836
    %v4838 = vmul.f32 %v4734, 1.442695
    %v4839 = vpow.pop %v4838
    %v4840 = vmul.f32 %v4735, 1.442695
    %v4841 = vpow.pop %v4840
    %v4842 = vmul.f32 %v4736, 1.442695
    %v4843 = vpow.pop %v4842
    %v4844 = vmul.f32 %v4737, 1.442695
    %v4845 = vpow.pop %v4844
    %v4846 = vmul.f32 %v4738, 1.442695
    %v4847 = vpow.pop %v4846
    %v4848 = vmul.f32 %v4739, 1.442695
    %v4849 = vpow.pop %v4848
    %v4850 = vmul.f32 %v4740, 1.442695
    %v4851 = vpow.pop %v4850
    %v4852 = vmul.f32 %v4741, 1.442695
    %v4853 = vpow.pop %v4852
    %v4854 = vmul.f32 %v4742, 1.442695
    %v4855 = vpow.pop %v4854
    %v4856 = vmul.f32 %v4743, 1.442695
    %v4857 = vpow.pop %v4856
    %v4858 = vmul.f32 %v4744, 1.442695
    %v4859 = vpow.pop %v4858
    %v4860 = vmul.f32 %v4745, 1.442695
    %v4861 = vpow.pop %v4860
    %v4862 = vmul.f32 %v4746, 1.442695
    %v4863 = vpow.pop %v4862
    %v4864 = vmul.f32 %v4747, 1.442695
    %v4865 = vpow.pop %v4864
    %v4866 = vmul.f32 %v4748, 1.442695
    %v4867 = vpow.pop %v4866
    %v4868 = vmul.f32 %v4749, 1.442695
    %v4869 = vpow.pop %v4868
    %v4870 = vmul.f32 %v4750, 1.442695
    %v4871 = vpow.pop %v4870
    %v4872 = vmul.f32 %v4751, 1.442695
    %v4873 = vpow.pop %v4872
    %v4874 = vmul.f32 %v4752, 1.442695
    %v4875 = vpow.pop %v4874
    %v4876 = vmul.f32 %v4753, 1.442695
    %v4877 = vpow.pop %v4876
    %v4878 = vmul.f32 %v4754, 1.442695
    %v4879 = vpow.pop %v4878
    %v4880 = vmul.f32 %v4755, 1.442695
    %v4881 = vpow.pop %v4880
    %v4882 = vmul.f32 %v4756, 1.442695
    %v4883 = vpow.pop %v4882
    %v4884 = vmul.f32 %v4757, 1.442695
    %v4885 = vpow.pop %v4884
    %v4886 = vmul.f32 %v4758, 1.442695
    %v4887 = vpow.pop %v4886
    %v4888 = vmul.f32 %v4759, 1.442695
    %v4889 = vpow.pop %v4888
    %v4890 = vmul.f32 %v4760, 1.442695
    %v4891 = vpow.pop %v4890
    %v4892 = vmul.f32 %v4761, 1.442695
    %v4893 = vpow.pop %v4892
    %v4894 = vmul.f32 %v4762, 1.442695
    %v4895 = vpow.pop %v4894
    %v4896 = vmul.f32 %v4763, 1.442695
    %v4897 = vpow.pop %v4896
    %v4898 = vmul.f32 %v4764, 1.442695
    %v4899 = vpow.pop %v4898
    %v4900 = vmul.f32 %v4765, 1.442695
    %v4901 = vpow.pop %v4900
    %v4902 = vmul.f32 %v4766, 1.442695
    %v4903 = vpow.pop %v4902
    %v4904 = vmul.f32 %v4767, 1.442695
    %v4905 = vpow.pop %v4904
    %v4906 = vmul.f32 %v4768, 1.442695
    %v4907 = vpow.pop %v4906
    %v4908 = vmul.f32 %v4769, 1.442695
    %v4909 = vpow.pop %v4908
    %v4910 = vmul.f32 %v4770, 1.442695
    %v4911 = vpow.pop %v4910
    %v4912 = vmul.f32 %v4771, 1.442695
    %v4913 = vpow.pop %v4912
    %v4914 = vmul.f32 %v4772, 1.442695
    %v4915 = vpow.pop %v4914
    %v4916 = vmul.f32 %v4773, 1.442695
    %v4917 = vpow.pop %v4916
    %v4918 = vmul.f32 %v4774, 1.442695
    %v4919 = vpow.pop %v4918
    %v4920 = vmul.f32 %v4775, 1.442695
    %v4921 = vpow.pop %v4920
    %v4922 = vmul.f32 %v4776, 1.442695
    %v4923 = vpow.pop %v4922
    %v4924 = vmul.f32 %v4777, 1.442695
    %v4925 = vpow.pop %v4924
    %v4926 = vmul.f32 %v4778, 1.442695
    %v4927 = vpow.pop %v4926
    %v4928 = vmul.f32 %v4779, 1.442695
    %v4929 = vpow.pop %v4928
    %v4930 = vmul.f32 %v4780, 1.442695
    %v4931 = vpow.pop %v4930
    %v4932 = vmul.f32 %v4781, 1.442695
    %v4933 = vpow.pop %v4932
    %v4934 = vmul.f32 %v4782, 1.442695
    %v4935 = vpow.pop %v4934
    %v4936 = vmul.f32 %v4783, 1.442695
    %v4937 = vpow.pop %v4936
    %v4938 = vmul.f32 %v4784, 1.442695
    %v4939 = vpow.pop %v4938
    %v4940 = vmul.f32 %v4785, 1.442695
    %v4941 = vpow.pop %v4940
    %v4942 = vmul.f32 %v4786, 1.442695
    %v4943 = vpow.pop %v4942
    %v4944 = vmul.f32 %v4787, 1.442695
    %v4945 = vpow.pop %v4944
    %v4946 = vmul.f32 %v4788, 1.442695
    %v4947 = vpow.pop %v4946
    %v4948 = vmul.f32 %v4789, 1.442695
    %v4949 = vpow.pop %v4948
    %v4950 = vmul.f32 %v4790, 1.442695
    %v4951 = vpow.pop %v4950
    %v4952 = vmul.f32 %v4791, 1.442695
    %v4953 = vpow.pop %v4952
    %v4954 = vmul.f32 %v4792, 1.442695
    %v4955 = vpow.pop %v4954
    %v4956 = vmul.f32 %v4793, 1.442695
    %v4957 = vpow.pop %v4956
    %v4958 = vmul.f32 %v4794, 1.442695
    %v4959 = vpow.pop %v4958
    %v4960 = vmul.f32 %v4795, 1.442695
    %v4961 = vpow.pop %v4960
    %v4962 = vmul.f32 %v4796, 1.442695
    %v4963 = vpow.pop %v4962
    %v4964 = vmul.f32 %v4797, 1.442695
    %v4965 = vpow.pop %v4964
    %v4966 = vmul.f32 %v4798, 1.442695
    %v4967 = vpow.pop %v4966
    %v4968 = vmul.f32 %v4799, 1.442695
    %v4969 = vpow.pop %v4968
    %v4970 = vmul.f32 %v4800, 1.442695
    %v4971 = vpow.pop %v4970
    %v4972 = vmul.f32 %v4801, 1.442695
    %v4973 = vpow.pop %v4972
    %v4974 = vmul.f32 %v4802, 1.442695
    %v4975 = vpow.pop %v4974
    %v4976 = vmul.f32 %v4803, 1.442695
    %v4977 = vpow.pop %v4976
    %v4978 = vmul.f32 %v4804, 1.442695
    %v4979 = vpow.pop %v4978
    %v4980 = vmul.f32 %v4805, 1.442695
    %v4981 = vpow.pop %v4980
    %v4982 = vadd.f32 %v4807, 1.0
    %v4983 = vadd.f32 %v4809, 1.0
    %v4984 = vadd.f32 %v4811, 1.0
    %v4985 = vadd.f32 %v4813, 1.0
    %v4986 = vadd.f32 %v4815, 1.0
    %v4987 = vadd.f32 %v4817, 1.0
    %v4988 = vadd.f32 %v4819, 1.0
    %v4989 = vadd.f32 %v4821, 1.0
    %v4990 = vadd.f32 %v4823, 1.0
    %v4991 = vadd.f32 %v4825, 1.0
    %v4992 = vadd.f32 %v4827, 1.0
    %v4993 = vadd.f32 %v4829, 1.0
    %v4994 = vadd.f32 %v4831, 1.0
    %v4995 = vadd.f32 %v4833, 1.0
    %v4996 = vadd.f32 %v4835, 1.0
    %v4997 = vadd.f32 %v4837, 1.0
    %v4998 = vadd.f32 %v4839, 1.0
    %v4999 = vadd.f32 %v4841, 1.0
    %v5000 = vadd.f32 %v4843, 1.0
    %v5001 = vadd.f32 %v4845, 1.0
    %v5002 = vadd.f32 %v4847, 1.0
    %v5003 = vadd.f32 %v4849, 1.0
    %v5004 = vadd.f32 %v4851, 1.0
    %v5005 = vadd.f32 %v4853, 1.0
    %v5006 = vadd.f32 %v4855, 1.0
    %v5007 = vadd.f32 %v4857, 1.0
    %v5008 = vadd.f32 %v4859, 1.0
    %v5009 = vadd.f32 %v4861, 1.0
    %v5010 = vadd.f32 %v4863, 1.0
    %v5011 = vadd.f32 %v4865, 1.0
    %v5012 = vadd.f32 %v4867, 1.0
    %v5013 = vadd.f32 %v4869, 1.0
    %v5014 = vadd.f32 %v4871, 1.0
    %v5015 = vadd.f32 %v4873, 1.0
    %v5016 = vadd.f32 %v4875, 1.0
    %v5017 = vadd.f32 %v4877, 1.0
    %v5018 = vadd.f32 %v4879, 1.0
    %v5019 = vadd.f32 %v4881, 1.0
    %v5020 = vadd.f32 %v4883, 1.0
    %v5021 = vadd.f32 %v4885, 1.0
    %v5022 = vadd.f32 %v4887, 1.0
    %v5023 = vadd.f32 %v4889, 1.0
    %v5024 = vadd.f32 %v4891, 1.0
    %v5025 = vadd.f32 %v4893, 1.0
    %v5026 = vadd.f32 %v4895, 1.0
    %v5027 = vadd.f32 %v4897, 1.0
    %v5028 = vadd.f32 %v4899, 1.0
    %v5029 = vadd.f32 %v4901, 1.0
    %v5030 = vadd.f32 %v4903, 1.0
    %v5031 = vadd.f32 %v4905, 1.0
    %v5032 = vadd.f32 %v4907, 1.0
    %v5033 = vadd.f32 %v4909, 1.0
    %v5034 = vadd.f32 %v4911, 1.0
    %v5035 = vadd.f32 %v4913, 1.0
    %v5036 = vadd.f32 %v4915, 1.0
    %v5037 = vadd.f32 %v4917, 1.0
    %v5038 = vadd.f32 %v4919, 1.0
    %v5039 = vadd.f32 %v4921, 1.0
    %v5040 = vadd.f32 %v4923, 1.0
    %v5041 = vadd.f32 %v4925, 1.0
    %v5042 = vadd.f32 %v4927, 1.0
    %v5043 = vadd.f32 %v4929, 1.0
    %v5044 = vadd.f32 %v4931, 1.0
    %v5045 = vadd.f32 %v4933, 1.0
    %v5046 = vadd.f32 %v4935, 1.0
    %v5047 = vadd.f32 %v4937, 1.0
    %v5048 = vadd.f32 %v4939, 1.0
    %v5049 = vadd.f32 %v4941, 1.0
    %v5050 = vadd.f32 %v4943, 1.0
    %v5051 = vadd.f32 %v4945, 1.0
    %v5052 = vadd.f32 %v4947, 1.0
    %v5053 = vadd.f32 %v4949, 1.0
    %v5054 = vadd.f32 %v4951, 1.0
    %v5055 = vadd.f32 %v4953, 1.0
    %v5056 = vadd.f32 %v4955, 1.0
    %v5057 = vadd.f32 %v4957, 1.0
    %v5058 = vadd.f32 %v4959, 1.0
    %v5059 = vadd.f32 %v4961, 1.0
    %v5060 = vadd.f32 %v4963, 1.0
    %v5061 = vadd.f32 %v4965, 1.0
    %v5062 = vadd.f32 %v4967, 1.0
    %v5063 = vadd.f32 %v4969, 1.0
    %v5064 = vadd.f32 %v4971, 1.0
    %v5065 = vadd.f32 %v4973, 1.0
    %v5066 = vadd.f32 %v4975, 1.0
    %v5067 = vadd.f32 %v4977, 1.0
    %v5068 = vadd.f32 %v4979, 1.0
    %v5069 = vadd.f32 %v4981, 1.0
    %v5070 = vrcp.pop %v4982
    %v5071 = vmul.f32 1.0, %v5070
    %v5072 = vrcp.pop %v4983
    %v5073 = vmul.f32 1.0, %v5072
    %v5074 = vrcp.pop %v4984
    %v5075 = vmul.f32 1.0, %v5074
    %v5076 = vrcp.pop %v4985
    %v5077 = vmul.f32 1.0, %v5076
    %v5078 = vrcp.pop %v4986
    %v5079 = vmul.f32 1.0, %v5078
    %v5080 = vrcp.pop %v4987
    %v5081 = vmul.f32 1.0, %v5080
    %v5082 = vrcp.pop %v4988
    %v5083 = vmul.f32 1.0, %v5082
    %v5084 = vrcp.pop %v4989
    %v5085 = vmul.f32 1.0, %v5084
    %v5086 = vrcp.pop %v4990
    %v5087 = vmul.f32 1.0, %v5086
    %v5088 = vrcp.pop %v4991
    %v5089 = vmul.f32 1.0, %v5088
    %v5090 = vrcp.pop %v4992
    %v5091 = vmul.f32 1.0, %v5090
    %v5092 = vrcp.pop %v4993
    %v5093 = vmul.f32 1.0, %v5092
    %v5094 = vrcp.pop %v4994
    %v5095 = vmul.f32 1.0, %v5094
    %v5096 = vrcp.pop %v4995
    %v5097 = vmul.f32 1.0, %v5096
    %v5098 = vrcp.pop %v4996
    %v5099 = vmul.f32 1.0, %v5098
    %v5100 = vrcp.pop %v4997
    %v5101 = vmul.f32 1.0, %v5100
    %v5102 = vrcp.pop %v4998
    %v5103 = vmul.f32 1.0, %v5102
    %v5104 = vrcp.pop %v4999
    %v5105 = vmul.f32 1.0, %v5104
    %v5106 = vrcp.pop %v5000
    %v5107 = vmul.f32 1.0, %v5106
    %v5108 = vrcp.pop %v5001
    %v5109 = vmul.f32 1.0, %v5108
    %v5110 = vrcp.pop %v5002
    %v5111 = vmul.f32 1.0, %v5110
    %v5112 = vrcp.pop %v5003
    %v5113 = vmul.f32 1.0, %v5112
    %v5114 = vrcp.pop %v5004
    %v5115 = vmul.f32 1.0, %v5114
    %v5116 = vrcp.pop %v5005
    %v5117 = vmul.f32 1.0, %v5116
    %v5118 = vrcp.pop %v5006
    %v5119 = vmul.f32 1.0, %v5118
    %v5120 = vrcp.pop %v5007
    %v5121 = vmul.f32 1.0, %v5120
    %v5122 = vrcp.pop %v5008
    %v5123 = vmul.f32 1.0, %v5122
    %v5124 = vrcp.pop %v5009
    %v5125 = vmul.f32 1.0, %v5124
    %v5126 = vrcp.pop %v5010
    %v5127 = vmul.f32 1.0, %v5126
    %v5128 = vrcp.pop %v5011
    %v5129 = vmul.f32 1.0, %v5128
    %v5130 = vrcp.pop %v5012
    %v5131 = vmul.f32 1.0, %v5130
    %v5132 = vrcp.pop %v5013
    %v5133 = vmul.f32 1.0, %v5132
    %v5134 = vrcp.pop %v5014
    %v5135 = vmul.f32 1.0, %v5134
    %v5136 = vrcp.pop %v5015
    %v5137 = vmul.f32 1.0, %v5136
    %v5138 = vrcp.pop %v5016
    %v5139 = vmul.f32 1.0, %v5138
    %v5140 = vrcp.pop %v5017
    %v5141 = vmul.f32 1.0, %v5140
    %v5142 = vrcp.pop %v5018
    %v5143 = vmul.f32 1.0, %v5142
    %v5144 = vrcp.pop %v5019
    %v5145 = vmul.f32 1.0, %v5144
    %v5146 = vrcp.pop %v5020
    %v5147 = vmul.f32 1.0, %v5146
    %v5148 = vrcp.pop %v5021
    %v5149 = vmul.f32 1.0, %v5148
    %v5150 = vrcp.pop %v5022
    %v5151 = vmul.f32 1.0, %v5150
    %v5152 = vrcp.pop %v5023
    %v5153 = vmul.f32 1.0, %v5152
    %v5154 = vrcp.pop %v5024
    %v5155 = vmul.f32 1.0, %v5154
    %v5156 = vrcp.pop %v5025
    %v5157 = vmul.f32 1.0, %v5156
    %v5158 = vrcp.pop %v5026
    %v5159 = vmul.f32 1.0, %v5158
    %v5160 = vrcp.pop %v5027
    %v5161 = vmul.f32 1.0, %v5160
    %v5162 = vrcp.pop %v5028
    %v5163 = vmul.f32 1.0, %v5162
    %v5164 = vrcp.pop %v5029
    %v5165 = vmul.f32 1.0, %v5164
    %v5166 = vrcp.pop %v5030
    %v5167 = vmul.f32 1.0, %v5166
    %v5168 = vrcp.pop %v5031
    %v5169 = vmul.f32 1.0, %v5168
    %v5170 = vrcp.pop %v5032
    %v5171 = vmul.f32 1.0, %v5170
    %v5172 = vrcp.pop %v5033
    %v5173 = vmul.f32 1.0, %v5172
    %v5174 = vrcp.pop %v5034
    %v5175 = vmul.f32 1.0, %v5174
    %v5176 = vrcp.pop %v5035
    %v5177 = vmul.f32 1.0, %v5176
    %v5178 = vrcp.pop %v5036
    %v5179 = vmul.f32 1.0, %v5178
    %v5180 = vrcp.pop %v5037
    %v5181 = vmul.f32 1.0, %v5180
    %v5182 = vrcp.pop %v5038
    %v5183 = vmul.f32 1.0, %v5182
    %v5184 = vrcp.pop %v5039
    %v5185 = vmul.f32 1.0, %v5184
    %v5186 = vrcp.pop %v5040
    %v5187 = vmul.f32 1.0, %v5186
    %v5188 = vrcp.pop %v5041
    %v5189 = vmul.f32 1.0, %v5188
    %v5190 = vrcp.pop %v5042
    %v5191 = vmul.f32 1.0, %v5190
    %v5192 = vrcp.pop %v5043
    %v5193 = vmul.f32 1.0, %v5192
    %v5194 = vrcp.pop %v5044
    %v5195 = vmul.f32 1.0, %v5194
    %v5196 = vrcp.pop %v5045
    %v5197 = vmul.f32 1.0, %v5196
    %v5198 = vrcp.pop %v5046
    %v5199 = vmul.f32 1.0, %v5198
    %v5200 = vrcp.pop %v5047
    %v5201 = vmul.f32 1.0, %v5200
    %v5202 = vrcp.pop %v5048
    %v5203 = vmul.f32 1.0, %v5202
    %v5204 = vrcp.pop %v5049
    %v5205 = vmul.f32 1.0, %v5204
    %v5206 = vrcp.pop %v5050
    %v5207 = vmul.f32 1.0, %v5206
    %v5208 = vrcp.pop %v5051
    %v5209 = vmul.f32 1.0, %v5208
    %v5210 = vrcp.pop %v5052
    %v5211 = vmul.f32 1.0, %v5210
    %v5212 = vrcp.pop %v5053
    %v5213 = vmul.f32 1.0, %v5212
    %v5214 = vrcp.pop %v5054
    %v5215 = vmul.f32 1.0, %v5214
    %v5216 = vrcp.pop %v5055
    %v5217 = vmul.f32 1.0, %v5216
    %v5218 = vrcp.pop %v5056
    %v5219 = vmul.f32 1.0, %v5218
    %v5220 = vrcp.pop %v5057
    %v5221 = vmul.f32 1.0, %v5220
    %v5222 = vrcp.pop %v5058
    %v5223 = vmul.f32 1.0, %v5222
    %v5224 = vrcp.pop %v5059
    %v5225 = vmul.f32 1.0, %v5224
    %v5226 = vrcp.pop %v5060
    %v5227 = vmul.f32 1.0, %v5226
    %v5228 = vrcp.pop %v5061
    %v5229 = vmul.f32 1.0, %v5228
    %v5230 = vrcp.pop %v5062
    %v5231 = vmul.f32 1.0, %v5230
    %v5232 = vrcp.pop %v5063
    %v5233 = vmul.f32 1.0, %v5232
    %v5234 = vrcp.pop %v5064
    %v5235 = vmul.f32 1.0, %v5234
    %v5236 = vrcp.pop %v5065
    %v5237 = vmul.f32 1.0, %v5236
    %v5238 = vrcp.pop %v5066
    %v5239 = vmul.f32 1.0, %v5238
    %v5240 = vrcp.pop %v5067
    %v5241 = vmul.f32 1.0, %v5240
    %v5242 = vrcp.pop %v5068
    %v5243 = vmul.f32 1.0, %v5242
    %v5244 = vrcp.pop %v5069
    %v5245 = vmul.f32 1.0, %v5244
    %v5246 = vmul.f32 %v3001, %v5071
    %v5247 = vmul.f32 %v3003, %v5073
    %v5248 = vmul.f32 %v3340, %v5075
    %v5249 = vmul.f32 %v3342, %v5077
    %v5250 = vmul.f32 %v3679, %v5079
    %v5251 = vmul.f32 %v3681, %v5081
    %v5252 = vmul.f32 %v4018, %v5083
    %v5253 = vmul.f32 %v4020, %v5085
    %v5254 = vmul.f32 %v4357, %v5087
    %v5255 = vmul.f32 %v4359, %v5089
    %v5256 = vmul.f32 %v4680, %v5091
    %v5257 = vmul.f32 %v3007, %v5093
    %v5258 = vmul.f32 %v3009, %v5095
    %v5259 = vmul.f32 %v3346, %v5097
    %v5260 = vmul.f32 %v3348, %v5099
    %v5261 = vmul.f32 %v3685, %v5101
    %v5262 = vmul.f32 %v3687, %v5103
    %v5263 = vmul.f32 %v4024, %v5105
    %v5264 = vmul.f32 %v4026, %v5107
    %v5265 = vmul.f32 %v4363, %v5109
    %v5266 = vmul.f32 %v4365, %v5111
    %v5267 = vmul.f32 %v4685, %v5113
    %v5268 = vmul.f32 %v3013, %v5115
    %v5269 = vmul.f32 %v3015, %v5117
    %v5270 = vmul.f32 %v3352, %v5119
    %v5271 = vmul.f32 %v3354, %v5121
    %v5272 = vmul.f32 %v3691, %v5123
    %v5273 = vmul.f32 %v3693, %v5125
    %v5274 = vmul.f32 %v4030, %v5127
    %v5275 = vmul.f32 %v4032, %v5129
    %v5276 = vmul.f32 %v4369, %v5131
    %v5277 = vmul.f32 %v4371, %v5133
    %v5278 = vmul.f32 %v4690, %v5135
    %v5279 = vmul.f32 %v3019, %v5137
    %v5280 = vmul.f32 %v3021, %v5139
    %v5281 = vmul.f32 %v3358, %v5141
    %v5282 = vmul.f32 %v3360, %v5143
    %v5283 = vmul.f32 %v3697, %v5145
    %v5284 = vmul.f32 %v3699, %v5147
    %v5285 = vmul.f32 %v4036, %v5149
    %v5286 = vmul.f32 %v4038, %v5151
    %v5287 = vmul.f32 %v4375, %v5153
    %v5288 = vmul.f32 %v4377, %v5155
    %v5289 = vmul.f32 %v4695, %v5157
    %v5290 = vmul.f32 %v3025, %v5159
    %v5291 = vmul.f32 %v3027, %v5161
    %v5292 = vmul.f32 %v3364, %v5163
    %v5293 = vmul.f32 %v3366, %v5165
    %v5294 = vmul.f32 %v3703, %v5167
    %v5295 = vmul.f32 %v3705, %v5169
    %v5296 = vmul.f32 %v4042, %v5171
    %v5297 = vmul.f32 %v4044, %v5173
    %v5298 = vmul.f32 %v4381, %v5175
    %v5299 = vmul.f32 %v4383, %v5177
    %v5300 = vmul.f32 %v4700, %v5179
    %v5301 = vmul.f32 %v3031, %v5181
    %v5302 = vmul.f32 %v3033, %v5183
    %v5303 = vmul.f32 %v3370, %v5185
    %v5304 = vmul.f32 %v3372, %v5187
    %v5305 = vmul.f32 %v3709, %v5189
    %v5306 = vmul.f32 %v3711, %v5191
    %v5307 = vmul.f32 %v4048, %v5193
    %v5308 = vmul.f32 %v4050, %v5195
    %v5309 = vmul.f32 %v4387, %v5197
    %v5310 = vmul.f32 %v4389, %v5199
    %v5311 = vmul.f32 %v4705, %v5201
    %v5312 = vmul.f32 %v3037, %v5203
    %v5313 = vmul.f32 %v3039, %v5205
    %v5314 = vmul.f32 %v3376, %v5207
    %v5315 = vmul.f32 %v3378, %v5209
    %v5316 = vmul.f32 %v3715, %v5211
    %v5317 = vmul.f32 %v3717, %v5213
    %v5318 = vmul.f32 %v4054, %v5215
    %v5319 = vmul.f32 %v4056, %v5217
    %v5320 = vmul.f32 %v4393, %v5219
    %v5321 = vmul.f32 %v4395, %v5221
    %v5322 = vmul.f32 %v4710, %v5223
    %v5323 = vmul.f32 %v3043, %v5225
    %v5324 = vmul.f32 %v3045, %v5227
    %v5325 = vmul.f32 %v3382, %v5229
    %v5326 = vmul.f32 %v3384, %v5231
    %v5327 = vmul.f32 %v3721, %v5233
    %v5328 = vmul.f32 %v3723, %v5235
    %v5329 = vmul.f32 %v4060, %v5237
    %v5330 = vmul.f32 %v4062, %v5239
    %v5331 = vmul.f32 %v4399, %v5241
    %v5332 = vmul.f32 %v4401, %v5243
    %v5333 = vmul.f32 %v4715, %v5245
    %v5334 = vld [vmem:[%s3] sm:$0xff]
    %v5335 = vld [vmem:[%s3 + $0x8] sm:$0xff]
    %v5336 = vld [vmem:[%s3 + $0x10] sm:$0xff]
    %v5337 = vld [vmem:[%s3 + $0x18] sm:$0xff]
    %v5338 = vld [vmem:[%s3 + $0x20] sm:$0xff]
    %v5339 = vld [vmem:[%s3 + $0x28] sm:$0xff]
    %v5340 = vld [vmem:[%s3 + $0x30] sm:$0xff]
    %v5341 = vld [vmem:[%s3 + $0x38] sm:$0xff]
    %v5342 = vld [vmem:[%s3 + $0x40] sm:$0xff]
    %v5343 = vld [vmem:[%s3 + $0x48] sm:$0xff]
    %v5344 = vld [vmem:[%s3 + $0x50] sm:$0xff]
    %v5345 = vld [vmem:[%s3 + $0x58] sm:$0xff]
    %v5346 = vld [vmem:[%s3 + $0x60] sm:$0xff]
    %v5347 = vld [vmem:[%s3 + $0x68] sm:$0xff]
    %v5348 = vld [vmem:[%s3 + $0x70] sm:$0xff]
    %v5349 = vld [vmem:[%s3 + $0x78] sm:$0xff]
    %v5350 = vld [vmem:[%s3 + $0x80] sm:$0xff]
    %v5351 = vld [vmem:[%s3 + $0x88] sm:$0xff]
    %v5352 = vld [vmem:[%s3 + $0x90] sm:$0xff]
    %v5353 = vld [vmem:[%s3 + $0x98] sm:$0xff]
    %v5354 = vld [vmem:[%s3 + $0xa0] sm:$0xff]
    %v5355 = vld [vmem:[%s3 + $0xa8] sm:$0xff]
    %v5356 = vld [vmem:[%s3 + $0xb0] sm:$0xff]
    %v5357 = vld [vmem:[%s3 + $0xb8] sm:$0xff]
    %v5358 = vld [vmem:[%s3 + $0xc0] sm:$0xff]
    %v5359 = vld [vmem:[%s3 + $0xc8] sm:$0xff]
    %v5360 = vld [vmem:[%s3 + $0xd0] sm:$0xff]
    %v5361 = vld [vmem:[%s3 + $0xd8] sm:$0xff]
    %v5362 = vld [vmem:[%s3 + $0xe0] sm:$0xff]
    %v5363 = vld [vmem:[%s3 + $0xe8] sm:$0xff]
    %v5364 = vld [vmem:[%s3 + $0xf0] sm:$0xff]
    %v5365 = vld [vmem:[%s3 + $0xf8] sm:$0xff]
    %v5366 = vld [vmem:[%s3 + $0x100] sm:$0xff]
    %v5367 = vld [vmem:[%s3 + $0x108] sm:$0xff]
    %v5368 = vld [vmem:[%s3 + $0x110] sm:$0xff]
    %v5369 = vld [vmem:[%s3 + $0x118] sm:$0xff]
    %v5370 = vld [vmem:[%s3 + $0x120] sm:$0xff]
    %v5371 = vld [vmem:[%s3 + $0x128] sm:$0xff]
    %v5372 = vld [vmem:[%s3 + $0x130] sm:$0xff]
    %v5373 = vld [vmem:[%s3 + $0x138] sm:$0xff]
    %v5374 = vld [vmem:[%s3 + $0x140] sm:$0xff]
    %v5375 = vld [vmem:[%s3 + $0x148] sm:$0xff]
    %v5376 = vld [vmem:[%s3 + $0x150] sm:$0xff]
    %v5377 = vld [vmem:[%s3 + $0x158] sm:$0xff]
    %v5378 = vld [vmem:[%s3 + $0x160] sm:$0xff]
    %v5379 = vld [vmem:[%s3 + $0x168] sm:$0xff]
    %v5380 = vld [vmem:[%s3 + $0x170] sm:$0xff]
    %v5381 = vld [vmem:[%s3 + $0x178] sm:$0xff]
    %v5382 = vld [vmem:[%s3 + $0x180] sm:$0xff]
    %v5383 = vld [vmem:[%s3 + $0x188] sm:$0xff]
    %v5384 = vld [vmem:[%s3 + $0x190] sm:$0xff]
    %v5385 = vld [vmem:[%s3 + $0x198] sm:$0xff]
    %v5386 = vld [vmem:[%s3 + $0x1a0] sm:$0xff]
    %v5387 = vld [vmem:[%s3 + $0x1a8] sm:$0xff]
    %v5388 = vld [vmem:[%s3 + $0x1b0] sm:$0xff]
    %v5389 = vld [vmem:[%s3 + $0x1b8] sm:$0xff]
    %v5390 = vld [vmem:[%s3 + $0x1c0] sm:$0xff]
    %v5391 = vld [vmem:[%s3 + $0x1c8] sm:$0xff]
    %v5392 = vld [vmem:[%s3 + $0x1d0] sm:$0xff]
    %v5393 = vld [vmem:[%s3 + $0x1d8] sm:$0xff]
    %v5394 = vld [vmem:[%s3 + $0x1e0] sm:$0xff]
    %v5395 = vld [vmem:[%s3 + $0x1e8] sm:$0xff]
    %v5396 = vld [vmem:[%s3 + $0x1f0] sm:$0xff]
    %v5397 = vld [vmem:[%s3 + $0x1f8] sm:$0xff]
    %v5398 = vld [vmem:[%s3 + $0x200] sm:$0xff]
    %v5399 = vld [vmem:[%s3 + $0x208] sm:$0xff]
    %v5400 = vld [vmem:[%s3 + $0x210] sm:$0xff]
    %v5401 = vld [vmem:[%s3 + $0x218] sm:$0xff]
    %v5402 = vld [vmem:[%s3 + $0x220] sm:$0xff]
    %v5403 = vld [vmem:[%s3 + $0x228] sm:$0xff]
    %v5404 = vld [vmem:[%s3 + $0x230] sm:$0xff]
    %v5405 = vld [vmem:[%s3 + $0x238] sm:$0xff]
    %v5406 = vld [vmem:[%s3 + $0x240] sm:$0xff]
    %v5407 = vld [vmem:[%s3 + $0x248] sm:$0xff]
    %v5408 = vld [vmem:[%s3 + $0x250] sm:$0xff]
    %v5409 = vld [vmem:[%s3 + $0x258] sm:$0xff]
    %v5410 = vld [vmem:[%s3 + $0x260] sm:$0xff]
    %v5411 = vld [vmem:[%s3 + $0x268] sm:$0xff]
    %v5412 = vld [vmem:[%s3 + $0x270] sm:$0xff]
    %v5413 = vld [vmem:[%s3 + $0x278] sm:$0xff]
    %v5414 = vld [vmem:[%s3 + $0x280] sm:$0xff]
    %v5415 = vld [vmem:[%s3 + $0x288] sm:$0xff]
    %v5416 = vld [vmem:[%s3 + $0x290] sm:$0xff]
    %v5417 = vld [vmem:[%s3 + $0x298] sm:$0xff]
    %v5418 = vld [vmem:[%s3 + $0x2a0] sm:$0xff]
    %v5419 = vld [vmem:[%s3 + $0x2a8] sm:$0xff]
    %v5420 = vld [vmem:[%s3 + $0x2b0] sm:$0xff]
    %v5421 = vld [vmem:[%s3 + $0x2b8] sm:$0xff]
    %v5422 = vld [vmem:[%s3 + $0x2c0] sm:$0xff]
    %v5423 = vld [vmem:[%s3 + $0x2c8] sm:$0xff]
    %v5424 = vld [vmem:[%s3 + $0x2d0] sm:$0xff]
    %v5425 = vld [vmem:[%s3 + $0x2d8] sm:$0xff]
    %v5426 = vld [vmem:[%s3 + $0x2e0] sm:$0xff]
    %v5427 = vld [vmem:[%s3 + $0x2e8] sm:$0xff]
    %v5428 = vld [vmem:[%s3 + $0x2f0] sm:$0xff]
    %v5429 = vld [vmem:[%s3 + $0x2f8] sm:$0xff]
    %v5430 = vld [vmem:[%s3 + $0x300] sm:$0xff]
    %v5431 = vld [vmem:[%s3 + $0x308] sm:$0xff]
    %v5432 = vld [vmem:[%s3 + $0x310] sm:$0xff]
    %v5433 = vld [vmem:[%s3 + $0x318] sm:$0xff]
    %v5434 = vld [vmem:[%s3 + $0x320] sm:$0xff]
    %v5435 = vld [vmem:[%s3 + $0x328] sm:$0xff]
    %v5436 = vld [vmem:[%s3 + $0x330] sm:$0xff]
    %v5437 = vld [vmem:[%s3 + $0x338] sm:$0xff]
    %v5438 = vld [vmem:[%s3 + $0x340] sm:$0xff]
    %v5439 = vld [vmem:[%s3 + $0x348] sm:$0xff]
    %v5440 = vld [vmem:[%s3 + $0x350] sm:$0xff]
    %v5441 = vld [vmem:[%s3 + $0x358] sm:$0xff]
    %v5442 = vld [vmem:[%s3 + $0x360] sm:$0xff]
    %v5443 = vld [vmem:[%s3 + $0x368] sm:$0xff]
    %v5444 = vld [vmem:[%s3 + $0x370] sm:$0xff]
    %v5445 = vld [vmem:[%s3 + $0x378] sm:$0xff]
    %v5446 = vld [vmem:[%s3 + $0x380] sm:$0xff]
    %v5447 = vld [vmem:[%s3 + $0x388] sm:$0xff]
    %v5448 = vld [vmem:[%s3 + $0x390] sm:$0xff]
    %v5449 = vld [vmem:[%s3 + $0x398] sm:$0xff]
    %v5450 = vld [vmem:[%s3 + $0x3a0] sm:$0xff]
    %v5451 = vld [vmem:[%s3 + $0x3a8] sm:$0xff]
    %v5452 = vld [vmem:[%s3 + $0x3b0] sm:$0xff]
    %v5453 = vld [vmem:[%s3 + $0x3b8] sm:$0xff]
    %v5454 = vld [vmem:[%s3 + $0x3c0] sm:$0xff]
    %v5455 = vld [vmem:[%s3 + $0x3c8] sm:$0xff]
    %v5456 = vld [vmem:[%s3 + $0x3d0] sm:$0xff]
    %v5457 = vld [vmem:[%s3 + $0x3d8] sm:$0xff]
    %v5458 = vld [vmem:[%s3 + $0x3e0] sm:$0xff]
    %v5459 = vld [vmem:[%s3 + $0x3e8] sm:$0xff]
    %v5460 = vld [vmem:[%s3 + $0x3f0] sm:$0xff]
    %v5461 = vld [vmem:[%s3 + $0x3f8] sm:$0xff]
    %v5462 = vld [vmem:[%s3 + $0x400] sm:$0xff]
    %v5463 = vld [vmem:[%s3 + $0x408] sm:$0xff]
    %v5464 = vld [vmem:[%s3 + $0x410] sm:$0xff]
    %v5465 = vld [vmem:[%s3 + $0x418] sm:$0xff]
    %v5466 = vld [vmem:[%s3 + $0x420] sm:$0xff]
    %v5467 = vld [vmem:[%s3 + $0x428] sm:$0xff]
    %v5468 = vld [vmem:[%s3 + $0x430] sm:$0xff]
    %v5469 = vld [vmem:[%s3 + $0x438] sm:$0xff]
    %v5470 = vld [vmem:[%s3 + $0x440] sm:$0xff]
    %v5471 = vld [vmem:[%s3 + $0x448] sm:$0xff]
    %v5472 = vld [vmem:[%s3 + $0x450] sm:$0xff]
    %v5473 = vld [vmem:[%s3 + $0x458] sm:$0xff]
    %v5474 = vld [vmem:[%s3 + $0x460] sm:$0xff]
    %v5475 = vld [vmem:[%s3 + $0x468] sm:$0xff]
    %v5476 = vld [vmem:[%s3 + $0x470] sm:$0xff]
    %v5477 = vld [vmem:[%s3 + $0x478] sm:$0xff]
    %v5478 = vld [vmem:[%s3 + $0x480] sm:$0xff]
    %v5479 = vld [vmem:[%s3 + $0x488] sm:$0xff]
    %v5480 = vld [vmem:[%s3 + $0x490] sm:$0xff]
    %v5481 = vld [vmem:[%s3 + $0x498] sm:$0xff]
    %v5482 = vld [vmem:[%s3 + $0x4a0] sm:$0xff]
    %v5483 = vld [vmem:[%s3 + $0x4a8] sm:$0xff]
    %v5484 = vld [vmem:[%s3 + $0x4b0] sm:$0xff]
    %v5485 = vld [vmem:[%s3 + $0x4b8] sm:$0xff]
    %v5486 = vld [vmem:[%s3 + $0x4c0] sm:$0xff]
    %v5487 = vld [vmem:[%s3 + $0x4c8] sm:$0xff]
    %v5488 = vld [vmem:[%s3 + $0x4d0] sm:$0xff]
    %v5489 = vld [vmem:[%s3 + $0x4d8] sm:$0xff]
    %v5490 = vld [vmem:[%s3 + $0x4e0] sm:$0xff]
    %v5491 = vld [vmem:[%s3 + $0x4e8] sm:$0xff]
    %v5492 = vld [vmem:[%s3 + $0x4f0] sm:$0xff]
    %v5493 = vld [vmem:[%s3 + $0x4f8] sm:$0xff]
    %v5494 = vld [vmem:[%s3 + $0x500] sm:$0xff]
    %v5495 = vld [vmem:[%s3 + $0x508] sm:$0xff]
    %v5496 = vld [vmem:[%s3 + $0x510] sm:$0xff]
    %v5497 = vld [vmem:[%s3 + $0x518] sm:$0xff]
    %v5498 = vld [vmem:[%s3 + $0x520] sm:$0xff]
    %v5499 = vld [vmem:[%s3 + $0x528] sm:$0xff]
    %v5500 = vld [vmem:[%s3 + $0x530] sm:$0xff]
    %v5501 = vld [vmem:[%s3 + $0x538] sm:$0xff]
    %v5502 = vld [vmem:[%s3 + $0x540] sm:$0xff]
    %v5503 = vld [vmem:[%s3 + $0x548] sm:$0xff]
    %v5504 = vld [vmem:[%s3 + $0x550] sm:$0xff]
    %v5505 = vld [vmem:[%s3 + $0x558] sm:$0xff]
    %v5506 = vld [vmem:[%s3 + $0x560] sm:$0xff]
    %v5507 = vld [vmem:[%s3 + $0x568] sm:$0xff]
    %v5508 = vld [vmem:[%s3 + $0x570] sm:$0xff]
    %v5509 = vld [vmem:[%s3 + $0x578] sm:$0xff]
    %v5510 = vld [vmem:[%s3 + $0x580] sm:$0xff]
    %v5511 = vld [vmem:[%s3 + $0x588] sm:$0xff]
    %v5512 = vld [vmem:[%s3 + $0x590] sm:$0xff]
    %v5513 = vld [vmem:[%s3 + $0x598] sm:$0xff]
    %v5514 = vld [vmem:[%s3 + $0x5a0] sm:$0xff]
    %v5515 = vld [vmem:[%s3 + $0x5a8] sm:$0xff]
    %v5516 = vld [vmem:[%s3 + $0x5b0] sm:$0xff]
    %v5517 = vld [vmem:[%s3 + $0x5b8] sm:$0xff]
    %v5518 = vld [vmem:[%s3 + $0x5c0] sm:$0xff]
    %v5519 = vld [vmem:[%s3 + $0x5c8] sm:$0xff]
    %v5520 = vld [vmem:[%s3 + $0x5d0] sm:$0xff]
    %v5521 = vld [vmem:[%s3 + $0x5d8] sm:$0xff]
    %v5522 = vld [vmem:[%s3 + $0x5e0] sm:$0xff]
    %v5523 = vld [vmem:[%s3 + $0x5e8] sm:$0xff]
    %v5524 = vld [vmem:[%s3 + $0x5f0] sm:$0xff]
    %v5525 = vld [vmem:[%s3 + $0x5f8] sm:$0xff]
    %v5526 = vld [vmem:[%s3 + $0x600] sm:$0xff]
    %v5527 = vld [vmem:[%s3 + $0x608] sm:$0xff]
    %v5528 = vld [vmem:[%s3 + $0x610] sm:$0xff]
    %v5529 = vld [vmem:[%s3 + $0x618] sm:$0xff]
    %v5530 = vld [vmem:[%s3 + $0x620] sm:$0xff]
    %v5531 = vld [vmem:[%s3 + $0x628] sm:$0xff]
    %v5532 = vld [vmem:[%s3 + $0x630] sm:$0xff]
    %v5533 = vld [vmem:[%s3 + $0x638] sm:$0xff]
    %v5534 = vld [vmem:[%s3 + $0x640] sm:$0xff]
    %v5535 = vld [vmem:[%s3 + $0x648] sm:$0xff]
    %v5536 = vld [vmem:[%s3 + $0x650] sm:$0xff]
    %v5537 = vld [vmem:[%s3 + $0x658] sm:$0xff]
    %v5538 = vld [vmem:[%s3 + $0x660] sm:$0xff]
    %v5539 = vld [vmem:[%s3 + $0x668] sm:$0xff]
    %v5540 = vld [vmem:[%s3 + $0x670] sm:$0xff]
    %v5541 = vld [vmem:[%s3 + $0x678] sm:$0xff]
    %v5542 = vld [vmem:[%s3 + $0x680] sm:$0xff]
    %v5543 = vld [vmem:[%s3 + $0x688] sm:$0xff]
    %v5544 = vld [vmem:[%s3 + $0x690] sm:$0xff]
    %v5545 = vld [vmem:[%s3 + $0x698] sm:$0xff]
    %v5546 = vld [vmem:[%s3 + $0x6a0] sm:$0xff]
    %v5547 = vld [vmem:[%s3 + $0x6a8] sm:$0xff]
    %v5548 = vld [vmem:[%s3 + $0x6b0] sm:$0xff]
    %v5549 = vld [vmem:[%s3 + $0x6b8] sm:$0xff]
    %v5550 = vld [vmem:[%s3 + $0x6c0] sm:$0xff]
    %v5551 = vld [vmem:[%s3 + $0x6c8] sm:$0xff]
    %v5552 = vld [vmem:[%s3 + $0x6d0] sm:$0xff]
    %v5553 = vld [vmem:[%s3 + $0x6d8] sm:$0xff]
    %v5554 = vld [vmem:[%s3 + $0x6e0] sm:$0xff]
    %v5555 = vld [vmem:[%s3 + $0x6e8] sm:$0xff]
    %v5556 = vld [vmem:[%s3 + $0x6f0] sm:$0xff]
    %v5557 = vld [vmem:[%s3 + $0x6f8] sm:$0xff]
    %v5558 = vld [vmem:[%s3 + $0x700] sm:$0xff]
    %v5559 = vld [vmem:[%s3 + $0x708] sm:$0xff]
    %v5560 = vld [vmem:[%s3 + $0x710] sm:$0xff]
    %v5561 = vld [vmem:[%s3 + $0x718] sm:$0xff]
    %v5562 = vld [vmem:[%s3 + $0x720] sm:$0xff]
    %v5563 = vld [vmem:[%s3 + $0x728] sm:$0xff]
    %v5564 = vld [vmem:[%s3 + $0x730] sm:$0xff]
    %v5565 = vld [vmem:[%s3 + $0x738] sm:$0xff]
    %v5566 = vld [vmem:[%s3 + $0x740] sm:$0xff]
    %v5567 = vld [vmem:[%s3 + $0x748] sm:$0xff]
    %v5568 = vld [vmem:[%s3 + $0x750] sm:$0xff]
    %v5569 = vld [vmem:[%s3 + $0x758] sm:$0xff]
    %v5570 = vld [vmem:[%s3 + $0x760] sm:$0xff]
    %v5571 = vld [vmem:[%s3 + $0x768] sm:$0xff]
    %v5572 = vld [vmem:[%s3 + $0x770] sm:$0xff]
    %v5573 = vld [vmem:[%s3 + $0x778] sm:$0xff]
    %v5574 = vld [vmem:[%s3 + $0x780] sm:$0xff]
    %v5575 = vld [vmem:[%s3 + $0x788] sm:$0xff]
    %v5576 = vld [vmem:[%s3 + $0x790] sm:$0xff]
    %v5577 = vld [vmem:[%s3 + $0x798] sm:$0xff]
    %v5578 = vld [vmem:[%s3 + $0x7a0] sm:$0xff]
    %v5579 = vld [vmem:[%s3 + $0x7a8] sm:$0xff]
    %v5580 = vld [vmem:[%s3 + $0x7b0] sm:$0xff]
    %v5581 = vld [vmem:[%s3 + $0x7b8] sm:$0xff]
    %v5582 = vld [vmem:[%s3 + $0x7c0] sm:$0xff]
    %v5583 = vld [vmem:[%s3 + $0x7c8] sm:$0xff]
    %v5584 = vld [vmem:[%s3 + $0x7d0] sm:$0xff]
    %v5585 = vld [vmem:[%s3 + $0x7d8] sm:$0xff]
    %v5586 = vld [vmem:[%s3 + $0x7e0] sm:$0xff]
    %v5587 = vld [vmem:[%s3 + $0x7e8] sm:$0xff]
    %v5588 = vld [vmem:[%s3 + $0x7f0] sm:$0xff]
    %v5589 = vld [vmem:[%s3 + $0x7f8] sm:$0xff]
    %v5590 = vld [vmem:[%s3 + $0x800] sm:$0xff]
    %v5591 = vld [vmem:[%s3 + $0x808] sm:$0xff]
    %v5592 = vld [vmem:[%s3 + $0x810] sm:$0xff]
    %v5593 = vld [vmem:[%s3 + $0x818] sm:$0xff]
    %v5594 = vld [vmem:[%s3 + $0x820] sm:$0xff]
    %v5595 = vld [vmem:[%s3 + $0x828] sm:$0xff]
    %v5596 = vld [vmem:[%s3 + $0x830] sm:$0xff]
    %v5597 = vld [vmem:[%s3 + $0x838] sm:$0xff]
    %v5598 = vld [vmem:[%s3 + $0x840] sm:$0xff]
    %v5599 = vld [vmem:[%s3 + $0x848] sm:$0xff]
    %v5600 = vld [vmem:[%s3 + $0x850] sm:$0xff]
    %v5601 = vld [vmem:[%s3 + $0x858] sm:$0xff]
    %v5602 = vld [vmem:[%s3 + $0x860] sm:$0xff]
    %v5603 = vld [vmem:[%s3 + $0x868] sm:$0xff]
    %v5604 = vld [vmem:[%s3 + $0x870] sm:$0xff]
    %v5605 = vld [vmem:[%s3 + $0x878] sm:$0xff]
    %v5606 = vld [vmem:[%s3 + $0x880] sm:$0xff]
    %v5607 = vld [vmem:[%s3 + $0x888] sm:$0xff]
    %v5608 = vld [vmem:[%s3 + $0x890] sm:$0xff]
    %v5609 = vld [vmem:[%s3 + $0x898] sm:$0xff]
    %v5610 = vld [vmem:[%s3 + $0x8a0] sm:$0xff]
    %v5611 = vld [vmem:[%s3 + $0x8a8] sm:$0xff]
    %v5612 = vld [vmem:[%s3 + $0x8b0] sm:$0xff]
    %v5613 = vld [vmem:[%s3 + $0x8b8] sm:$0xff]
    %v5614 = vld [vmem:[%s3 + $0x8c0] sm:$0xff]
    %v5615 = vld [vmem:[%s3 + $0x8c8] sm:$0xff]
    %v5616 = vld [vmem:[%s3 + $0x8d0] sm:$0xff]
    %v5617 = vld [vmem:[%s3 + $0x8d8] sm:$0xff]
    %v5618 = vld [vmem:[%s3 + $0x8e0] sm:$0xff]
    %v5619 = vld [vmem:[%s3 + $0x8e8] sm:$0xff]
    %v5620 = vld [vmem:[%s3 + $0x8f0] sm:$0xff]
    %v5621 = vld [vmem:[%s3 + $0x8f8] sm:$0xff]
    %v5622 = vld [vmem:[%s3 + $0x900] sm:$0xff]
    %v5623 = vld [vmem:[%s3 + $0x908] sm:$0xff]
    %v5624 = vld [vmem:[%s3 + $0x910] sm:$0xff]
    %v5625 = vld [vmem:[%s3 + $0x918] sm:$0xff]
    %v5626 = vld [vmem:[%s3 + $0x920] sm:$0xff]
    %v5627 = vld [vmem:[%s3 + $0x928] sm:$0xff]
    %v5628 = vld [vmem:[%s3 + $0x930] sm:$0xff]
    %v5629 = vld [vmem:[%s3 + $0x938] sm:$0xff]
    %v5630 = vld [vmem:[%s3 + $0x940] sm:$0xff]
    %v5631 = vld [vmem:[%s3 + $0x948] sm:$0xff]
    %v5632 = vld [vmem:[%s3 + $0x950] sm:$0xff]
    %v5633 = vld [vmem:[%s3 + $0x958] sm:$0xff]
    %v5634 = vld [vmem:[%s3 + $0x960] sm:$0xff]
    %v5635 = vld [vmem:[%s3 + $0x968] sm:$0xff]
    %v5636 = vld [vmem:[%s3 + $0x970] sm:$0xff]
    %v5637 = vld [vmem:[%s3 + $0x978] sm:$0xff]
    %v5638 = vld [vmem:[%s3 + $0x980] sm:$0xff]
    %v5639 = vld [vmem:[%s3 + $0x988] sm:$0xff]
    %v5640 = vld [vmem:[%s3 + $0x990] sm:$0xff]
    %v5641 = vld [vmem:[%s3 + $0x998] sm:$0xff]
    %v5642 = vld [vmem:[%s3 + $0x9a0] sm:$0xff]
    %v5643 = vld [vmem:[%s3 + $0x9a8] sm:$0xff]
    %v5644 = vld [vmem:[%s3 + $0x9b0] sm:$0xff]
    %v5645 = vld [vmem:[%s3 + $0x9b8] sm:$0xff]
    %v5646 = vld [vmem:[%s3 + $0x9c0] sm:$0xff]
    %v5647 = vld [vmem:[%s3 + $0x9c8] sm:$0xff]
    %v5648 = vld [vmem:[%s3 + $0x9d0] sm:$0xff]
    %v5649 = vld [vmem:[%s3 + $0x9d8] sm:$0xff]
    %v5650 = vld [vmem:[%s3 + $0x9e0] sm:$0xff]
    %v5651 = vld [vmem:[%s3 + $0x9e8] sm:$0xff]
    %v5652 = vld [vmem:[%s3 + $0x9f0] sm:$0xff]
    %v5653 = vld [vmem:[%s3 + $0x9f8] sm:$0xff]
    %v5654 = vld [vmem:[%s3 + $0xa00] sm:$0xff]
    %v5655 = vld [vmem:[%s3 + $0xa08] sm:$0xff]
    %v5656 = vld [vmem:[%s3 + $0xa10] sm:$0xff]
    %v5657 = vld [vmem:[%s3 + $0xa18] sm:$0xff]
    %v5658 = vld [vmem:[%s3 + $0xa20] sm:$0xff]
    %v5659 = vld [vmem:[%s3 + $0xa28] sm:$0xff]
    %v5660 = vld [vmem:[%s3 + $0xa30] sm:$0xff]
    %v5661 = vld [vmem:[%s3 + $0xa38] sm:$0xff]
    %v5662 = vld [vmem:[%s3 + $0xa40] sm:$0xff]
    %v5663 = vld [vmem:[%s3 + $0xa48] sm:$0xff]
    %v5664 = vld [vmem:[%s3 + $0xa50] sm:$0xff]
    %v5665 = vld [vmem:[%s3 + $0xa58] sm:$0xff]
    %v5666 = vld [vmem:[%s3 + $0xa60] sm:$0xff]
    %v5667 = vld [vmem:[%s3 + $0xa68] sm:$0xff]
    %v5668 = vld [vmem:[%s3 + $0xa70] sm:$0xff]
    %v5669 = vld [vmem:[%s3 + $0xa78] sm:$0xff]
    %v5670 = vld [vmem:[%s3 + $0xa80] sm:$0xff]
    %v5671 = vld [vmem:[%s3 + $0xa88] sm:$0xff]
    %v5672 = vld [vmem:[%s3 + $0xa90] sm:$0xff]
    %v5673 = vld [vmem:[%s3 + $0xa98] sm:$0xff]
    %v5674 = vld [vmem:[%s3 + $0xaa0] sm:$0xff]
    %v5675 = vld [vmem:[%s3 + $0xaa8] sm:$0xff]
    %v5676 = vld [vmem:[%s3 + $0xab0] sm:$0xff]
    %v5677 = vld [vmem:[%s3 + $0xab8] sm:$0xff]
    %v5678 = vld [vmem:[%s3 + $0xac0] sm:$0xff]
    %v5679 = vld [vmem:[%s3 + $0xac8] sm:$0xff]
    %v5680 = vld [vmem:[%s3 + $0xad0] sm:$0xff]
    %v5681 = vld [vmem:[%s3 + $0xad8] sm:$0xff]
    %v5682 = vld [vmem:[%s3 + $0xae0] sm:$0xff]
    %v5683 = vld [vmem:[%s3 + $0xae8] sm:$0xff]
    %v5684 = vld [vmem:[%s3 + $0xaf0] sm:$0xff]
    %v5685 = vld [vmem:[%s3 + $0xaf8] sm:$0xff]
    %v5686 = vld [vmem:[%s3 + $0xb00] sm:$0xff]
    %v5687 = vld [vmem:[%s3 + $0xb08] sm:$0xff]
    %v5688 = vld [vmem:[%s3 + $0xb10] sm:$0xff]
    %v5689 = vld [vmem:[%s3 + $0xb18] sm:$0xff]
    %v5690 = vld [vmem:[%s3 + $0xb20] sm:$0xff]
    %v5691 = vld [vmem:[%s3 + $0xb28] sm:$0xff]
    %v5692 = vld [vmem:[%s3 + $0xb30] sm:$0xff]
    %v5693 = vld [vmem:[%s3 + $0xb38] sm:$0xff]
    %v5694 = vld [vmem:[%s3 + $0xb40] sm:$0xff]
    %v5695 = vld [vmem:[%s3 + $0xb48] sm:$0xff]
    %v5696 = vld [vmem:[%s3 + $0xb50] sm:$0xff]
    %v5697 = vld [vmem:[%s3 + $0xb58] sm:$0xff]
    %v5698 = vld [vmem:[%s3 + $0xb60] sm:$0xff]
    %v5699 = vld [vmem:[%s3 + $0xb68] sm:$0xff]
    %v5700 = vld [vmem:[%s3 + $0xb70] sm:$0xff]
    %v5701 = vld [vmem:[%s3 + $0xb78] sm:$0xff]
    %v5702 = vld [vmem:[%s3 + $0xb80] sm:$0xff]
    %v5703 = vld [vmem:[%s3 + $0xb88] sm:$0xff]
    %v5704 = vld [vmem:[%s3 + $0xb90] sm:$0xff]
    %v5705 = vld [vmem:[%s3 + $0xb98] sm:$0xff]
    %v5706 = vld [vmem:[%s3 + $0xba0] sm:$0xff]
    %v5707 = vld [vmem:[%s3 + $0xba8] sm:$0xff]
    %v5708 = vld [vmem:[%s3 + $0xbb0] sm:$0xff]
    %v5709 = vld [vmem:[%s3 + $0xbb8] sm:$0xff]
    %v5710 = vld [vmem:[%s3 + $0xbc0] sm:$0xff]
    %v5711 = vld [vmem:[%s3 + $0xbc8] sm:$0xff]
    %v5712 = vld [vmem:[%s3 + $0xbd0] sm:$0xff]
    %v5713 = vld [vmem:[%s3 + $0xbd8] sm:$0xff]
    %v5714 = vld [vmem:[%s3 + $0xbe0] sm:$0xff]
    %v5715 = vld [vmem:[%s3 + $0xbe8] sm:$0xff]
    %v5716 = vld [vmem:[%s3 + $0xbf0] sm:$0xff]
    %v5717 = vld [vmem:[%s3 + $0xbf8] sm:$0xff]
    %v5718 = vld [vmem:[%s3 + $0xc00] sm:$0xff]
    %v5719 = vld [vmem:[%s3 + $0xc08] sm:$0xff]
    %v5720 = vld [vmem:[%s3 + $0xc10] sm:$0xff]
    %v5721 = vld [vmem:[%s3 + $0xc18] sm:$0xff]
    %v5722 = vld [vmem:[%s3 + $0xc20] sm:$0xff]
    %v5723 = vld [vmem:[%s3 + $0xc28] sm:$0xff]
    %v5724 = vld [vmem:[%s3 + $0xc30] sm:$0xff]
    %v5725 = vld [vmem:[%s3 + $0xc38] sm:$0xff]
    %v5726 = vld [vmem:[%s3 + $0xc40] sm:$0xff]
    %v5727 = vld [vmem:[%s3 + $0xc48] sm:$0xff]
    %v5728 = vld [vmem:[%s3 + $0xc50] sm:$0xff]
    %v5729 = vld [vmem:[%s3 + $0xc58] sm:$0xff]
    %v5730 = vld [vmem:[%s3 + $0xc60] sm:$0xff]
    %v5731 = vld [vmem:[%s3 + $0xc68] sm:$0xff]
    %v5732 = vld [vmem:[%s3 + $0xc70] sm:$0xff]
    %v5733 = vld [vmem:[%s3 + $0xc78] sm:$0xff]
    %v5734 = vld [vmem:[%s3 + $0xc80] sm:$0xff]
    %v5735 = vld [vmem:[%s3 + $0xc88] sm:$0xff]
    %v5736 = vld [vmem:[%s3 + $0xc90] sm:$0xff]
    %v5737 = vld [vmem:[%s3 + $0xc98] sm:$0xff]
    %v5738 = vld [vmem:[%s3 + $0xca0] sm:$0xff]
    %v5739 = vld [vmem:[%s3 + $0xca8] sm:$0xff]
    %v5740 = vld [vmem:[%s3 + $0xcb0] sm:$0xff]
    %v5741 = vld [vmem:[%s3 + $0xcb8] sm:$0xff]
    %v5742 = vld [vmem:[%s3 + $0xcc0] sm:$0xff]
    %v5743 = vld [vmem:[%s3 + $0xcc8] sm:$0xff]
    %v5744 = vld [vmem:[%s3 + $0xcd0] sm:$0xff]
    %v5745 = vld [vmem:[%s3 + $0xcd8] sm:$0xff]
    %v5746 = vld [vmem:[%s3 + $0xce0] sm:$0xff]
    %v5747 = vld [vmem:[%s3 + $0xce8] sm:$0xff]
    %v5748 = vld [vmem:[%s3 + $0xcf0] sm:$0xff]
    %v5749 = vld [vmem:[%s3 + $0xcf8] sm:$0xff]
    %v5750 = vld [vmem:[%s3 + $0xd00] sm:$0xff]
    %v5751 = vld [vmem:[%s3 + $0xd08] sm:$0xff]
    %v5752 = vld [vmem:[%s3 + $0xd10] sm:$0xff]
    %v5753 = vld [vmem:[%s3 + $0xd18] sm:$0xff]
    %v5754 = vld [vmem:[%s3 + $0xd20] sm:$0xff]
    %v5755 = vld [vmem:[%s3 + $0xd28] sm:$0xff]
    %v5756 = vld [vmem:[%s3 + $0xd30] sm:$0xff]
    %v5757 = vld [vmem:[%s3 + $0xd38] sm:$0xff]
    %v5758 = vld [vmem:[%s3 + $0xd40] sm:$0xff]
    %v5759 = vld [vmem:[%s3 + $0xd48] sm:$0xff]
    %v5760 = vld [vmem:[%s3 + $0xd50] sm:$0xff]
    %v5761 = vld [vmem:[%s3 + $0xd58] sm:$0xff]
    %v5762 = vld [vmem:[%s3 + $0xd60] sm:$0xff]
    %v5763 = vld [vmem:[%s3 + $0xd68] sm:$0xff]
    %v5764 = vld [vmem:[%s3 + $0xd70] sm:$0xff]
    %v5765 = vld [vmem:[%s3 + $0xd78] sm:$0xff]
    %v5766 = vld [vmem:[%s3 + $0xd80] sm:$0xff]
    %v5767 = vld [vmem:[%s3 + $0xd88] sm:$0xff]
    %v5768 = vld [vmem:[%s3 + $0xd90] sm:$0xff]
    %v5769 = vld [vmem:[%s3 + $0xd98] sm:$0xff]
    %v5770 = vld [vmem:[%s3 + $0xda0] sm:$0xff]
    %v5771 = vld [vmem:[%s3 + $0xda8] sm:$0xff]
    %v5772 = vld [vmem:[%s3 + $0xdb0] sm:$0xff]
    %v5773 = vld [vmem:[%s3 + $0xdb8] sm:$0xff]
    %v5774 = vld [vmem:[%s3 + $0xdc0] sm:$0xff]
    %v5775 = vld [vmem:[%s3 + $0xdc8] sm:$0xff]
    %v5776 = vld [vmem:[%s3 + $0xdd0] sm:$0xff]
    %v5777 = vld [vmem:[%s3 + $0xdd8] sm:$0xff]
    %v5778 = vld [vmem:[%s3 + $0xde0] sm:$0xff]
    %v5779 = vld [vmem:[%s3 + $0xde8] sm:$0xff]
    %v5780 = vld [vmem:[%s3 + $0xdf0] sm:$0xff]
    %v5781 = vld [vmem:[%s3 + $0xdf8] sm:$0xff]
    %v5782 = vld [vmem:[%s3 + $0xe00] sm:$0xff]
    %v5783 = vld [vmem:[%s3 + $0xe08] sm:$0xff]
    %v5784 = vld [vmem:[%s3 + $0xe10] sm:$0xff]
    %v5785 = vld [vmem:[%s3 + $0xe18] sm:$0xff]
    %v5786 = vld [vmem:[%s3 + $0xe20] sm:$0xff]
    %v5787 = vld [vmem:[%s3 + $0xe28] sm:$0xff]
    %v5788 = vld [vmem:[%s3 + $0xe30] sm:$0xff]
    %v5789 = vld [vmem:[%s3 + $0xe38] sm:$0xff]
    %v5790 = vld [vmem:[%s3 + $0xe40] sm:$0xff]
    %v5791 = vld [vmem:[%s3 + $0xe48] sm:$0xff]
    %v5792 = vld [vmem:[%s3 + $0xe50] sm:$0xff]
    %v5793 = vld [vmem:[%s3 + $0xe58] sm:$0xff]
    %v5794 = vld [vmem:[%s3 + $0xe60] sm:$0xff]
    %v5795 = vld [vmem:[%s3 + $0xe68] sm:$0xff]
    %v5796 = vld [vmem:[%s3 + $0xe70] sm:$0xff]
    %v5797 = vld [vmem:[%s3 + $0xe78] sm:$0xff]
    %v5798 = vld [vmem:[%s3 + $0xe80] sm:$0xff]
    %v5799 = vld [vmem:[%s3 + $0xe88] sm:$0xff]
    %v5800 = vld [vmem:[%s3 + $0xe90] sm:$0xff]
    %v5801 = vld [vmem:[%s3 + $0xe98] sm:$0xff]
    %v5802 = vld [vmem:[%s3 + $0xea0] sm:$0xff]
    %v5803 = vld [vmem:[%s3 + $0xea8] sm:$0xff]
    %v5804 = vld [vmem:[%s3 + $0xeb0] sm:$0xff]
    %v5805 = vld [vmem:[%s3 + $0xeb8] sm:$0xff]
    %v5806 = vld [vmem:[%s3 + $0xec0] sm:$0xff]
    %v5807 = vld [vmem:[%s3 + $0xec8] sm:$0xff]
    %v5808 = vld [vmem:[%s3 + $0xed0] sm:$0xff]
    %v5809 = vld [vmem:[%s3 + $0xed8] sm:$0xff]
    %v5810 = vld [vmem:[%s3 + $0xee0] sm:$0xff]
    %v5811 = vld [vmem:[%s3 + $0xee8] sm:$0xff]
    %v5812 = vld [vmem:[%s3 + $0xef0] sm:$0xff]
    %v5813 = vld [vmem:[%s3 + $0xef8] sm:$0xff]
    %v5814 = vld [vmem:[%s3 + $0xf00] sm:$0xff]
    %v5815 = vld [vmem:[%s3 + $0xf08] sm:$0xff]
    %v5816 = vld [vmem:[%s3 + $0xf10] sm:$0xff]
    %v5817 = vld [vmem:[%s3 + $0xf18] sm:$0xff]
    %v5818 = vld [vmem:[%s3 + $0xf20] sm:$0xff]
    %v5819 = vld [vmem:[%s3 + $0xf28] sm:$0xff]
    %v5820 = vld [vmem:[%s3 + $0xf30] sm:$0xff]
    %v5821 = vld [vmem:[%s3 + $0xf38] sm:$0xff]
    %v5822 = vld [vmem:[%s3 + $0xf40] sm:$0xff]
    %v5823 = vld [vmem:[%s3 + $0xf48] sm:$0xff]
    %v5824 = vld [vmem:[%s3 + $0xf50] sm:$0xff]
    %v5825 = vld [vmem:[%s3 + $0xf58] sm:$0xff]
    %v5826 = vld [vmem:[%s3 + $0xf60] sm:$0xff]
    %v5827 = vld [vmem:[%s3 + $0xf68] sm:$0xff]
    %v5828 = vld [vmem:[%s3 + $0xf70] sm:$0xff]
    %v5829 = vld [vmem:[%s3 + $0xf78] sm:$0xff]
    %v5830 = vld [vmem:[%s3 + $0xf80] sm:$0xff]
    %v5831 = vld [vmem:[%s3 + $0xf88] sm:$0xff]
    %v5832 = vld [vmem:[%s3 + $0xf90] sm:$0xff]
    %v5833 = vld [vmem:[%s3 + $0xf98] sm:$0xff]
    %v5834 = vld [vmem:[%s3 + $0xfa0] sm:$0xff]
    %v5835 = vld [vmem:[%s3 + $0xfa8] sm:$0xff]
    %v5836 = vld [vmem:[%s3 + $0xfb0] sm:$0xff]
    %v5837 = vld [vmem:[%s3 + $0xfb8] sm:$0xff]
    %v5838 = vld [vmem:[%s3 + $0xfc0] sm:$0xff]
    %v5839 = vld [vmem:[%s3 + $0xfc8] sm:$0xff]
    %v5840 = vld [vmem:[%s3 + $0xfd0] sm:$0xff]
    %v5841 = vld [vmem:[%s3 + $0xfd8] sm:$0xff]
    %v5842 = vld [vmem:[%s3 + $0xfe0] sm:$0xff]
    %v5843 = vld [vmem:[%s3 + $0xfe8] sm:$0xff]
    %v5844 = vld [vmem:[%s3 + $0xff0] sm:$0xff]
    %v5845 = vld [vmem:[%s3 + $0xff8] sm:$0xff]
    %v5846 = vld [vmem:[%s3 + $0x1000] sm:$0xff]
    %v5847 = vld [vmem:[%s3 + $0x1008] sm:$0xff]
    %v5848 = vld [vmem:[%s3 + $0x1010] sm:$0xff]
    %v5849 = vld [vmem:[%s3 + $0x1018] sm:$0xff]
    %v5850 = vld [vmem:[%s3 + $0x1020] sm:$0xff]
    %v5851 = vld [vmem:[%s3 + $0x1028] sm:$0xff]
    %v5852 = vld [vmem:[%s3 + $0x1030] sm:$0xff]
    %v5853 = vld [vmem:[%s3 + $0x1038] sm:$0xff]
    %v5854 = vld [vmem:[%s3 + $0x1040] sm:$0xff]
    %v5855 = vld [vmem:[%s3 + $0x1048] sm:$0xff]
    %v5856 = vld [vmem:[%s3 + $0x1050] sm:$0xff]
    %v5857 = vld [vmem:[%s3 + $0x1058] sm:$0xff]
    %v5858 = vld [vmem:[%s3 + $0x1060] sm:$0xff]
    %v5859 = vld [vmem:[%s3 + $0x1068] sm:$0xff]
    %v5860 = vld [vmem:[%s3 + $0x1070] sm:$0xff]
    %v5861 = vld [vmem:[%s3 + $0x1078] sm:$0xff]
    %v5862 = vld [vmem:[%s3 + $0x1080] sm:$0xff]
    %v5863 = vld [vmem:[%s3 + $0x1088] sm:$0xff]
    %v5864 = vld [vmem:[%s3 + $0x1090] sm:$0xff]
    %v5865 = vld [vmem:[%s3 + $0x1098] sm:$0xff]
    %v5866 = vld [vmem:[%s3 + $0x10a0] sm:$0xff]
    %v5867 = vld [vmem:[%s3 + $0x10a8] sm:$0xff]
    %v5868 = vld [vmem:[%s3 + $0x10b0] sm:$0xff]
    %v5869 = vld [vmem:[%s3 + $0x10b8] sm:$0xff]
    %v5870 = vld [vmem:[%s3 + $0x10c0] sm:$0xff]
    %v5871 = vld [vmem:[%s3 + $0x10c8] sm:$0xff]
    %v5872 = vld [vmem:[%s3 + $0x10d0] sm:$0xff]
    %v5873 = vld [vmem:[%s3 + $0x10d8] sm:$0xff]
    %v5874 = vld [vmem:[%s3 + $0x10e0] sm:$0xff]
    %v5875 = vld [vmem:[%s3 + $0x10e8] sm:$0xff]
    %v5876 = vld [vmem:[%s3 + $0x10f0] sm:$0xff]
    %v5877 = vld [vmem:[%s3 + $0x10f8] sm:$0xff]
    %v5878 = vld [vmem:[%s3 + $0x1100] sm:$0xff]
    %v5879 = vld [vmem:[%s3 + $0x1108] sm:$0xff]
    %v5880 = vld [vmem:[%s3 + $0x1110] sm:$0xff]
    %v5881 = vld [vmem:[%s3 + $0x1118] sm:$0xff]
    %v5882 = vld [vmem:[%s3 + $0x1120] sm:$0xff]
    %v5883 = vld [vmem:[%s3 + $0x1128] sm:$0xff]
    %v5884 = vld [vmem:[%s3 + $0x1130] sm:$0xff]
    %v5885 = vld [vmem:[%s3 + $0x1138] sm:$0xff]
    %v5886 = vld [vmem:[%s3 + $0x1140] sm:$0xff]
    %v5887 = vld [vmem:[%s3 + $0x1148] sm:$0xff]
    %v5888 = vld [vmem:[%s3 + $0x1150] sm:$0xff]
    %v5889 = vld [vmem:[%s3 + $0x1158] sm:$0xff]
    %v5890 = vld [vmem:[%s3 + $0x1160] sm:$0xff]
    %v5891 = vld [vmem:[%s3 + $0x1168] sm:$0xff]
    %v5892 = vld [vmem:[%s3 + $0x1170] sm:$0xff]
    %v5893 = vld [vmem:[%s3 + $0x1178] sm:$0xff]
    %v5894 = vld [vmem:[%s3 + $0x1180] sm:$0xff]
    %v5895 = vld [vmem:[%s3 + $0x1188] sm:$0xff]
    %v5896 = vld [vmem:[%s3 + $0x1190] sm:$0xff]
    %v5897 = vld [vmem:[%s3 + $0x1198] sm:$0xff]
    %v5898 = vld [vmem:[%s3 + $0x11a0] sm:$0xff]
    %v5899 = vld [vmem:[%s3 + $0x11a8] sm:$0xff]
    %v5900 = vld [vmem:[%s3 + $0x11b0] sm:$0xff]
    %v5901 = vld [vmem:[%s3 + $0x11b8] sm:$0xff]
    %v5902 = vld [vmem:[%s3 + $0x11c0] sm:$0xff]
    %v5903 = vld [vmem:[%s3 + $0x11c8] sm:$0xff]
    %v5904 = vld [vmem:[%s3 + $0x11d0] sm:$0xff]
    %v5905 = vld [vmem:[%s3 + $0x11d8] sm:$0xff]
    %v5906 = vld [vmem:[%s3 + $0x11e0] sm:$0xff]
    %v5907 = vld [vmem:[%s3 + $0x11e8] sm:$0xff]
    %v5908 = vld [vmem:[%s3 + $0x11f0] sm:$0xff]
    %v5909 = vld [vmem:[%s3 + $0x11f8] sm:$0xff]
    %v5910 = vld [vmem:[%s3 + $0x1200] sm:$0xff]
    %v5911 = vld [vmem:[%s3 + $0x1208] sm:$0xff]
    %v5912 = vld [vmem:[%s3 + $0x1210] sm:$0xff]
    %v5913 = vld [vmem:[%s3 + $0x1218] sm:$0xff]
    %v5914 = vld [vmem:[%s3 + $0x1220] sm:$0xff]
    %v5915 = vld [vmem:[%s3 + $0x1228] sm:$0xff]
    %v5916 = vld [vmem:[%s3 + $0x1230] sm:$0xff]
    %v5917 = vld [vmem:[%s3 + $0x1238] sm:$0xff]
    %v5918 = vld [vmem:[%s3 + $0x1240] sm:$0xff]
    %v5919 = vld [vmem:[%s3 + $0x1248] sm:$0xff]
    %v5920 = vld [vmem:[%s3 + $0x1250] sm:$0xff]
    %v5921 = vld [vmem:[%s3 + $0x1258] sm:$0xff]
    %v5922 = vld [vmem:[%s3 + $0x1260] sm:$0xff]
    %v5923 = vld [vmem:[%s3 + $0x1268] sm:$0xff]
    %v5924 = vld [vmem:[%s3 + $0x1270] sm:$0xff]
    %v5925 = vld [vmem:[%s3 + $0x1278] sm:$0xff]
    %v5926 = vld [vmem:[%s3 + $0x1280] sm:$0xff]
    %v5927 = vld [vmem:[%s3 + $0x1288] sm:$0xff]
    %v5928 = vld [vmem:[%s3 + $0x1290] sm:$0xff]
    %v5929 = vld [vmem:[%s3 + $0x1298] sm:$0xff]
    %v5930 = vld [vmem:[%s3 + $0x12a0] sm:$0xff]
    %v5931 = vld [vmem:[%s3 + $0x12a8] sm:$0xff]
    %v5932 = vld [vmem:[%s3 + $0x12b0] sm:$0xff]
    %v5933 = vld [vmem:[%s3 + $0x12b8] sm:$0xff]
    %v5934 = vld [vmem:[%s3 + $0x12c0] sm:$0xff]
    %v5935 = vld [vmem:[%s3 + $0x12c8] sm:$0xff]
    %v5936 = vld [vmem:[%s3 + $0x12d0] sm:$0xff]
    %v5937 = vld [vmem:[%s3 + $0x12d8] sm:$0xff]
    %v5938 = vld [vmem:[%s3 + $0x12e0] sm:$0xff]
    %v5939 = vld [vmem:[%s3 + $0x12e8] sm:$0xff]
    %v5940 = vld [vmem:[%s3 + $0x12f0] sm:$0xff]
    %v5941 = vld [vmem:[%s3 + $0x12f8] sm:$0xff]
    %v5942 = vld [vmem:[%s3 + $0x1300] sm:$0xff]
    %v5943 = vld [vmem:[%s3 + $0x1308] sm:$0xff]
    %v5944 = vld [vmem:[%s3 + $0x1310] sm:$0xff]
    %v5945 = vld [vmem:[%s3 + $0x1318] sm:$0xff]
    %v5946 = vld [vmem:[%s3 + $0x1320] sm:$0xff]
    %v5947 = vld [vmem:[%s3 + $0x1328] sm:$0xff]
    %v5948 = vld [vmem:[%s3 + $0x1330] sm:$0xff]
    %v5949 = vld [vmem:[%s3 + $0x1338] sm:$0xff]
    %v5950 = vld [vmem:[%s3 + $0x1340] sm:$0xff]
    %v5951 = vld [vmem:[%s3 + $0x1348] sm:$0xff]
    %v5952 = vld [vmem:[%s3 + $0x1350] sm:$0xff]
    %v5953 = vld [vmem:[%s3 + $0x1358] sm:$0xff]
    %v5954 = vld [vmem:[%s3 + $0x1360] sm:$0xff]
    %v5955 = vld [vmem:[%s3 + $0x1368] sm:$0xff]
    %v5956 = vld [vmem:[%s3 + $0x1370] sm:$0xff]
    %v5957 = vld [vmem:[%s3 + $0x1378] sm:$0xff]
    %v5958 = vld [vmem:[%s3 + $0x1380] sm:$0xff]
    %v5959 = vld [vmem:[%s3 + $0x1388] sm:$0xff]
    %v5960 = vld [vmem:[%s3 + $0x1390] sm:$0xff]
    %v5961 = vld [vmem:[%s3 + $0x1398] sm:$0xff]
    %v5962 = vld [vmem:[%s3 + $0x13a0] sm:$0xff]
    %v5963 = vld [vmem:[%s3 + $0x13a8] sm:$0xff]
    %v5964 = vld [vmem:[%s3 + $0x13b0] sm:$0xff]
    %v5965 = vld [vmem:[%s3 + $0x13b8] sm:$0xff]
    %v5966 = vld [vmem:[%s3 + $0x13c0] sm:$0xff]
    %v5967 = vld [vmem:[%s3 + $0x13c8] sm:$0xff]
    %v5968 = vld [vmem:[%s3 + $0x13d0] sm:$0xff]
    %v5969 = vld [vmem:[%s3 + $0x13d8] sm:$0xff]
    %v5970 = vld [vmem:[%s3 + $0x13e0] sm:$0xff]
    %v5971 = vld [vmem:[%s3 + $0x13e8] sm:$0xff]
    %v5972 = vld [vmem:[%s3 + $0x13f0] sm:$0xff]
    %v5973 = vld [vmem:[%s3 + $0x13f8] sm:$0xff]
    %v5974 = vld [vmem:[%s3 + $0x1400] sm:$0xff]
    %v5975 = vld [vmem:[%s3 + $0x1408] sm:$0xff]
    %v5976 = vld [vmem:[%s3 + $0x1410] sm:$0xff]
    %v5977 = vld [vmem:[%s3 + $0x1418] sm:$0xff]
    %v5978 = vld [vmem:[%s3 + $0x1420] sm:$0xff]
    %v5979 = vld [vmem:[%s3 + $0x1428] sm:$0xff]
    %v5980 = vld [vmem:[%s3 + $0x1430] sm:$0xff]
    %v5981 = vld [vmem:[%s3 + $0x1438] sm:$0xff]
    %v5982 = vld [vmem:[%s3 + $0x1440] sm:$0xff]
    %v5983 = vld [vmem:[%s3 + $0x1448] sm:$0xff]
    %v5984 = vld [vmem:[%s3 + $0x1450] sm:$0xff]
    %v5985 = vld [vmem:[%s3 + $0x1458] sm:$0xff]
    %v5986 = vld [vmem:[%s3 + $0x1460] sm:$0xff]
    %v5987 = vld [vmem:[%s3 + $0x1468] sm:$0xff]
    %v5988 = vld [vmem:[%s3 + $0x1470] sm:$0xff]
    %v5989 = vld [vmem:[%s3 + $0x1478] sm:$0xff]
    %v5990 = vld [vmem:[%s3 + $0x1480] sm:$0xff]
    %v5991 = vld [vmem:[%s3 + $0x1488] sm:$0xff]
    %v5992 = vld [vmem:[%s3 + $0x1490] sm:$0xff]
    %v5993 = vld [vmem:[%s3 + $0x1498] sm:$0xff]
    %v5994 = vld [vmem:[%s3 + $0x14a0] sm:$0xff]
    %v5995 = vld [vmem:[%s3 + $0x14a8] sm:$0xff]
    %v5996 = vld [vmem:[%s3 + $0x14b0] sm:$0xff]
    %v5997 = vld [vmem:[%s3 + $0x14b8] sm:$0xff]
    %v5998 = vld [vmem:[%s3 + $0x14c0] sm:$0xff]
    %v5999 = vld [vmem:[%s3 + $0x14c8] sm:$0xff]
    %v6000 = vld [vmem:[%s3 + $0x14d0] sm:$0xff]
    %v6001 = vld [vmem:[%s3 + $0x14d8] sm:$0xff]
    %v6002 = vld [vmem:[%s3 + $0x14e0] sm:$0xff]
    %v6003 = vld [vmem:[%s3 + $0x14e8] sm:$0xff]
    %v6004 = vld [vmem:[%s3 + $0x14f0] sm:$0xff]
    %v6005 = vld [vmem:[%s3 + $0x14f8] sm:$0xff]
    %v6006 = vld [vmem:[%s3 + $0x1500] sm:$0xff]
    %v6007 = vld [vmem:[%s3 + $0x1508] sm:$0xff]
    %v6008 = vld [vmem:[%s3 + $0x1510] sm:$0xff]
    %v6009 = vld [vmem:[%s3 + $0x1518] sm:$0xff]
    %v6010 = vld [vmem:[%s3 + $0x1520] sm:$0xff]
    %v6011 = vld [vmem:[%s3 + $0x1528] sm:$0xff]
    %v6012 = vld [vmem:[%s3 + $0x1530] sm:$0xff]
    %v6013 = vld [vmem:[%s3 + $0x1538] sm:$0xff]
    %v6014 = vld [vmem:[%s3 + $0x1540] sm:$0xff]
    %v6015 = vld [vmem:[%s3 + $0x1548] sm:$0xff]
    %v6016 = vld [vmem:[%s3 + $0x1550] sm:$0xff]
    %v6017 = vld [vmem:[%s3 + $0x1558] sm:$0xff]
    %v6018 = vld [vmem:[%s3 + $0x1560] sm:$0xff]
    %v6019 = vld [vmem:[%s3 + $0x1568] sm:$0xff]
    %v6020 = vld [vmem:[%s3 + $0x1570] sm:$0xff]
    %v6021 = vld [vmem:[%s3 + $0x1578] sm:$0xff]
    %v6022 = vld [vmem:[%s3 + $0x1580] sm:$0xff]
    %v6023 = vld [vmem:[%s3 + $0x1588] sm:$0xff]
    %v6024 = vld [vmem:[%s3 + $0x1590] sm:$0xff]
    %v6025 = vld [vmem:[%s3 + $0x1598] sm:$0xff]
    %v6026 = vld [vmem:[%s3 + $0x15a0] sm:$0xff]
    %v6027 = vld [vmem:[%s3 + $0x15a8] sm:$0xff]
    %v6028 = vld [vmem:[%s3 + $0x15b0] sm:$0xff]
    %v6029 = vld [vmem:[%s3 + $0x15b8] sm:$0xff]
    %v6030 = vld [vmem:[%s3 + $0x15c0] sm:$0xff]
    %v6031 = vld [vmem:[%s3 + $0x15c8] sm:$0xff]
    %v6032 = vld [vmem:[%s3 + $0x15d0] sm:$0xff]
    %v6033 = vld [vmem:[%s3 + $0x15d8] sm:$0xff]
    %v6034 = vld [vmem:[%s3 + $0x15e0] sm:$0xff]
    %v6035 = vld [vmem:[%s3 + $0x15e8] sm:$0xff]
    %v6036 = vld [vmem:[%s3 + $0x15f0] sm:$0xff]
    %v6037 = vld [vmem:[%s3 + $0x15f8] sm:$0xff]
    %v6038 = vld [vmem:[%s3 + $0x1600] sm:$0xff]
    %v6039 = vld [vmem:[%s3 + $0x1608] sm:$0xff]
    %v6040 = vld [vmem:[%s3 + $0x1610] sm:$0xff]
    %v6041 = vld [vmem:[%s3 + $0x1618] sm:$0xff]
    %v6042 = vld [vmem:[%s3 + $0x1620] sm:$0xff]
    %v6043 = vld [vmem:[%s3 + $0x1628] sm:$0xff]
    %v6044 = vld [vmem:[%s3 + $0x1630] sm:$0xff]
    %v6045 = vld [vmem:[%s3 + $0x1638] sm:$0xff]
    %v6046 = vld [vmem:[%s3 + $0x1640] sm:$0xff]
    %v6047 = vld [vmem:[%s3 + $0x1648] sm:$0xff]
    %v6048 = vld [vmem:[%s3 + $0x1650] sm:$0xff]
    %v6049 = vld [vmem:[%s3 + $0x1658] sm:$0xff]
    %v6050 = vld [vmem:[%s3 + $0x1660] sm:$0xff]
    %v6051 = vld [vmem:[%s3 + $0x1668] sm:$0xff]
    %v6052 = vld [vmem:[%s3 + $0x1670] sm:$0xff]
    %v6053 = vld [vmem:[%s3 + $0x1678] sm:$0xff]
    %v6054 = vld [vmem:[%s3 + $0x1680] sm:$0xff]
    %v6055 = vld [vmem:[%s3 + $0x1688] sm:$0xff]
    %v6056 = vld [vmem:[%s3 + $0x1690] sm:$0xff]
    %v6057 = vld [vmem:[%s3 + $0x1698] sm:$0xff]
    %v6058 = vld [vmem:[%s3 + $0x16a0] sm:$0xff]
    %v6059 = vld [vmem:[%s3 + $0x16a8] sm:$0xff]
    %v6060 = vld [vmem:[%s3 + $0x16b0] sm:$0xff]
    %v6061 = vld [vmem:[%s3 + $0x16b8] sm:$0xff]
    %v6062 = vld [vmem:[%s3 + $0x16c0] sm:$0xff]
    %v6063 = vld [vmem:[%s3 + $0x16c8] sm:$0xff]
    %v6064 = vld [vmem:[%s3 + $0x16d0] sm:$0xff]
    %v6065 = vld [vmem:[%s3 + $0x16d8] sm:$0xff]
    %v6066 = vld [vmem:[%s3 + $0x16e0] sm:$0xff]
    %v6067 = vld [vmem:[%s3 + $0x16e8] sm:$0xff]
    %v6068 = vld [vmem:[%s3 + $0x16f0] sm:$0xff]
    %v6069 = vld [vmem:[%s3 + $0x16f8] sm:$0xff]
    %v6070 = vld [vmem:[%s3 + $0x1700] sm:$0xff]
    %v6071 = vld [vmem:[%s3 + $0x1708] sm:$0xff]
    %v6072 = vld [vmem:[%s3 + $0x1710] sm:$0xff]
    %v6073 = vld [vmem:[%s3 + $0x1718] sm:$0xff]
    %v6074 = vld [vmem:[%s3 + $0x1720] sm:$0xff]
    %v6075 = vld [vmem:[%s3 + $0x1728] sm:$0xff]
    %v6076 = vld [vmem:[%s3 + $0x1730] sm:$0xff]
    %v6077 = vld [vmem:[%s3 + $0x1738] sm:$0xff]
    %v6078 = vld [vmem:[%s3 + $0x1740] sm:$0xff]
    %v6079 = vld [vmem:[%s3 + $0x1748] sm:$0xff]
    %v6080 = vld [vmem:[%s3 + $0x1750] sm:$0xff]
    %v6081 = vld [vmem:[%s3 + $0x1758] sm:$0xff]
    %v6082 = vld [vmem:[%s3 + $0x1760] sm:$0xff]
    %v6083 = vld [vmem:[%s3 + $0x1768] sm:$0xff]
    %v6084 = vld [vmem:[%s3 + $0x1770] sm:$0xff]
    %v6085 = vld [vmem:[%s3 + $0x1778] sm:$0xff]
    %v6086 = vld [vmem:[%s3 + $0x1780] sm:$0xff]
    %v6087 = vld [vmem:[%s3 + $0x1788] sm:$0xff]
    %v6088 = vld [vmem:[%s3 + $0x1790] sm:$0xff]
    %v6089 = vld [vmem:[%s3 + $0x1798] sm:$0xff]
    %v6090 = vld [vmem:[%s3 + $0x17a0] sm:$0xff]
    %v6091 = vld [vmem:[%s3 + $0x17a8] sm:$0xff]
    %v6092 = vld [vmem:[%s3 + $0x17b0] sm:$0xff]
    %v6093 = vld [vmem:[%s3 + $0x17b8] sm:$0xff]
    %v6094 = vld [vmem:[%s3 + $0x17c0] sm:$0xff]
    %v6095 = vld [vmem:[%s3 + $0x17c8] sm:$0xff]
    %v6096 = vld [vmem:[%s3 + $0x17d0] sm:$0xff]
    %v6097 = vld [vmem:[%s3 + $0x17d8] sm:$0xff]
    %v6098 = vld [vmem:[%s3 + $0x17e0] sm:$0xff]
    %v6099 = vld [vmem:[%s3 + $0x17e8] sm:$0xff]
    %v6100 = vld [vmem:[%s3 + $0x17f0] sm:$0xff]
    %v6101 = vld [vmem:[%s3 + $0x17f8] sm:$0xff]
    %v6102 = vld [vmem:[%s3 + $0x1800] sm:$0xff]
    %v6103 = vld [vmem:[%s3 + $0x1808] sm:$0xff]
    %v6104 = vld [vmem:[%s3 + $0x1810] sm:$0xff]
    %v6105 = vld [vmem:[%s3 + $0x1818] sm:$0xff]
    %v6106 = vld [vmem:[%s3 + $0x1820] sm:$0xff]
    %v6107 = vld [vmem:[%s3 + $0x1828] sm:$0xff]
    %v6108 = vld [vmem:[%s3 + $0x1830] sm:$0xff]
    %v6109 = vld [vmem:[%s3 + $0x1838] sm:$0xff]
    %v6110 = vld [vmem:[%s3 + $0x1840] sm:$0xff]
    %v6111 = vld [vmem:[%s3 + $0x1848] sm:$0xff]
    %v6112 = vld [vmem:[%s3 + $0x1850] sm:$0xff]
    %v6113 = vld [vmem:[%s3 + $0x1858] sm:$0xff]
    %v6114 = vld [vmem:[%s3 + $0x1860] sm:$0xff]
    %v6115 = vld [vmem:[%s3 + $0x1868] sm:$0xff]
    %v6116 = vld [vmem:[%s3 + $0x1870] sm:$0xff]
    %v6117 = vld [vmem:[%s3 + $0x1878] sm:$0xff]
    %v6118 = vld [vmem:[%s3 + $0x1880] sm:$0xff]
    %v6119 = vld [vmem:[%s3 + $0x1888] sm:$0xff]
    %v6120 = vld [vmem:[%s3 + $0x1890] sm:$0xff]
    %v6121 = vld [vmem:[%s3 + $0x1898] sm:$0xff]
    %v6122 = vld [vmem:[%s3 + $0x18a0] sm:$0xff]
    %v6123 = vld [vmem:[%s3 + $0x18a8] sm:$0xff]
    %v6124 = vld [vmem:[%s3 + $0x18b0] sm:$0xff]
    %v6125 = vld [vmem:[%s3 + $0x18b8] sm:$0xff]
    %v6126 = vld [vmem:[%s3 + $0x18c0] sm:$0xff]
    %v6127 = vld [vmem:[%s3 + $0x18c8] sm:$0xff]
    %v6128 = vld [vmem:[%s3 + $0x18d0] sm:$0xff]
    %v6129 = vld [vmem:[%s3 + $0x18d8] sm:$0xff]
    %v6130 = vld [vmem:[%s3 + $0x18e0] sm:$0xff]
    %v6131 = vld [vmem:[%s3 + $0x18e8] sm:$0xff]
    %v6132 = vld [vmem:[%s3 + $0x18f0] sm:$0xff]
    %v6133 = vld [vmem:[%s3 + $0x18f8] sm:$0xff]
    %v6134 = vld [vmem:[%s3 + $0x1900] sm:$0xff]
    %v6135 = vld [vmem:[%s3 + $0x1908] sm:$0xff]
    %v6136 = vld [vmem:[%s3 + $0x1910] sm:$0xff]
    %v6137 = vld [vmem:[%s3 + $0x1918] sm:$0xff]
    %v6138 = vld [vmem:[%s3 + $0x1920] sm:$0xff]
    %v6139 = vld [vmem:[%s3 + $0x1928] sm:$0xff]
    %v6140 = vld [vmem:[%s3 + $0x1930] sm:$0xff]
    %v6141 = vld [vmem:[%s3 + $0x1938] sm:$0xff]
    %v6142 = vld [vmem:[%s3 + $0x1940] sm:$0xff]
    %v6143 = vld [vmem:[%s3 + $0x1948] sm:$0xff]
    %v6144 = vld [vmem:[%s3 + $0x1950] sm:$0xff]
    %v6145 = vld [vmem:[%s3 + $0x1958] sm:$0xff]
    %v6146 = vld [vmem:[%s3 + $0x1960] sm:$0xff]
    %v6147 = vld [vmem:[%s3 + $0x1968] sm:$0xff]
    %v6148 = vld [vmem:[%s3 + $0x1970] sm:$0xff]
    %v6149 = vld [vmem:[%s3 + $0x1978] sm:$0xff]
    %v6150 = vld [vmem:[%s3 + $0x1980] sm:$0xff]
    %v6151 = vld [vmem:[%s3 + $0x1988] sm:$0xff]
    %v6152 = vld [vmem:[%s3 + $0x1990] sm:$0xff]
    %v6153 = vld [vmem:[%s3 + $0x1998] sm:$0xff]
    %v6154 = vld [vmem:[%s3 + $0x19a0] sm:$0xff]
    %v6155 = vld [vmem:[%s3 + $0x19a8] sm:$0xff]
    %v6156 = vld [vmem:[%s3 + $0x19b0] sm:$0xff]
    %v6157 = vld [vmem:[%s3 + $0x19b8] sm:$0xff]
    %v6158 = vld [vmem:[%s3 + $0x19c0] sm:$0xff]
    %v6159 = vld [vmem:[%s3 + $0x19c8] sm:$0xff]
    %v6160 = vld [vmem:[%s3 + $0x19d0] sm:$0xff]
    %v6161 = vld [vmem:[%s3 + $0x19d8] sm:$0xff]
    %v6162 = vld [vmem:[%s3 + $0x19e0] sm:$0xff]
    %v6163 = vld [vmem:[%s3 + $0x19e8] sm:$0xff]
    %v6164 = vld [vmem:[%s3 + $0x19f0] sm:$0xff]
    %v6165 = vld [vmem:[%s3 + $0x19f8] sm:$0xff]
    %v6166 = vld [vmem:[%s3 + $0x1a00] sm:$0xff]
    %v6167 = vld [vmem:[%s3 + $0x1a08] sm:$0xff]
    %v6168 = vld [vmem:[%s3 + $0x1a10] sm:$0xff]
    %v6169 = vld [vmem:[%s3 + $0x1a18] sm:$0xff]
    %v6170 = vld [vmem:[%s3 + $0x1a20] sm:$0xff]
    %v6171 = vld [vmem:[%s3 + $0x1a28] sm:$0xff]
    %v6172 = vld [vmem:[%s3 + $0x1a30] sm:$0xff]
    %v6173 = vld [vmem:[%s3 + $0x1a38] sm:$0xff]
    %v6174 = vld [vmem:[%s3 + $0x1a40] sm:$0xff]
    %v6175 = vld [vmem:[%s3 + $0x1a48] sm:$0xff]
    %v6176 = vld [vmem:[%s3 + $0x1a50] sm:$0xff]
    %v6177 = vld [vmem:[%s3 + $0x1a58] sm:$0xff]
    %v6178 = vld [vmem:[%s3 + $0x1a60] sm:$0xff]
    %v6179 = vld [vmem:[%s3 + $0x1a68] sm:$0xff]
    %v6180 = vld [vmem:[%s3 + $0x1a70] sm:$0xff]
    %v6181 = vld [vmem:[%s3 + $0x1a78] sm:$0xff]
    %v6182 = vld [vmem:[%s3 + $0x1a80] sm:$0xff]
    %v6183 = vld [vmem:[%s3 + $0x1a88] sm:$0xff]
    %v6184 = vld [vmem:[%s3 + $0x1a90] sm:$0xff]
    %v6185 = vld [vmem:[%s3 + $0x1a98] sm:$0xff]
    %v6186 = vld [vmem:[%s3 + $0x1aa0] sm:$0xff]
    %v6187 = vld [vmem:[%s3 + $0x1aa8] sm:$0xff]
    %v6188 = vld [vmem:[%s3 + $0x1ab0] sm:$0xff]
    %v6189 = vld [vmem:[%s3 + $0x1ab8] sm:$0xff]
    %v6190 = vld [vmem:[%s3 + $0x1ac0] sm:$0xff]
    %v6191 = vld [vmem:[%s3 + $0x1ac8] sm:$0xff]
    %v6192 = vld [vmem:[%s3 + $0x1ad0] sm:$0xff]
    %v6193 = vld [vmem:[%s3 + $0x1ad8] sm:$0xff]
    %v6194 = vld [vmem:[%s3 + $0x1ae0] sm:$0xff]
    %v6195 = vld [vmem:[%s3 + $0x1ae8] sm:$0xff]
    %v6196 = vld [vmem:[%s3 + $0x1af0] sm:$0xff]
    %v6197 = vld [vmem:[%s3 + $0x1af8] sm:$0xff]
    %v6198 = vld [vmem:[%s3 + $0x1b00] sm:$0xff]
    %v6199 = vld [vmem:[%s3 + $0x1b08] sm:$0xff]
    %v6200 = vld [vmem:[%s3 + $0x1b10] sm:$0xff]
    %v6201 = vld [vmem:[%s3 + $0x1b18] sm:$0xff]
    %v6202 = vld [vmem:[%s3 + $0x1b20] sm:$0xff]
    %v6203 = vld [vmem:[%s3 + $0x1b28] sm:$0xff]
    %v6204 = vld [vmem:[%s3 + $0x1b30] sm:$0xff]
    %v6205 = vld [vmem:[%s3 + $0x1b38] sm:$0xff]
    %v6206 = vld [vmem:[%s3 + $0x1b40] sm:$0xff]
    %v6207 = vld [vmem:[%s3 + $0x1b48] sm:$0xff]
    %v6208 = vld [vmem:[%s3 + $0x1b50] sm:$0xff]
    %v6209 = vld [vmem:[%s3 + $0x1b58] sm:$0xff]
    %v6210 = vld [vmem:[%s3 + $0x1b60] sm:$0xff]
    %v6211 = vld [vmem:[%s3 + $0x1b68] sm:$0xff]
    %v6212 = vld [vmem:[%s3 + $0x1b70] sm:$0xff]
    %v6213 = vld [vmem:[%s3 + $0x1b78] sm:$0xff]
    %v6214 = vld [vmem:[%s3 + $0x1b80] sm:$0x3]
    %v6215 = vld [vmem:[%s3 + $0x1b88] sm:$0x3]
    %v6216 = vld [vmem:[%s3 + $0x1b90] sm:$0x3]
    %v6217 = vld [vmem:[%s3 + $0x1b98] sm:$0x3]
    %v6218 = vld [vmem:[%s3 + $0x1ba0] sm:$0x3]
    %v6219 = vld [vmem:[%s3 + $0x1ba8] sm:$0x3]
    %v6220 = vld [vmem:[%s3 + $0x1bb0] sm:$0x3]
    %v6221 = vld [vmem:[%s3 + $0x1bb8] sm:$0x3]
    %v6222 = vld [vmem:[%s3 + $0x1bc0] sm:$0x3]
    %v6223 = vld [vmem:[%s3 + $0x1bc8] sm:$0x3]
    %v6224 = vld [vmem:[%s3 + $0x1bd0] sm:$0x3]
    %vm6225 = vcmask 31744
    %v6227 = vsel %vm6225, %v5256, 0
    %v6230 = vsel %vm6225, %v5267, 0
    %v6233 = vsel %vm6225, %v5278, 0
    %v6236 = vsel %vm6225, %v5289, 0
    %v6239 = vsel %vm6225, %v5300, 0
    %v6242 = vsel %vm6225, %v5311, 0
    %v6245 = vsel %vm6225, %v5322, 0
    %v6248 = vsel %vm6225, %v5333, 0
    %v6251 = vsel %vm6225, %v5344, 0
    %v6254 = vsel %vm6225, %v5355, 0
    %v6257 = vsel %vm6225, %v5366, 0
    %v6260 = vsel %vm6225, %v5377, 0
    %v6263 = vsel %vm6225, %v5388, 0
    %v6266 = vsel %vm6225, %v5399, 0
    %v6269 = vsel %vm6225, %v5410, 0
    %v6272 = vsel %vm6225, %v5421, 0
    %v6275 = vsel %vm6225, %v5432, 0
    %v6278 = vsel %vm6225, %v5443, 0
    %v6281 = vsel %vm6225, %v5454, 0
    %v6284 = vsel %vm6225, %v5465, 0
    %v6287 = vsel %vm6225, %v5476, 0
    %v6290 = vsel %vm6225, %v5487, 0
    %v6293 = vsel %vm6225, %v5498, 0
    %v6296 = vsel %vm6225, %v5509, 0
    %v6299 = vsel %vm6225, %v5520, 0
    %v6302 = vsel %vm6225, %v5531, 0
    %v6305 = vsel %vm6225, %v5542, 0
    %v6308 = vsel %vm6225, %v5553, 0
    %v6311 = vsel %vm6225, %v5564, 0
    %v6314 = vsel %vm6225, %v5575, 0
    %v6317 = vsel %vm6225, %v5586, 0
    %v6320 = vsel %vm6225, %v5597, 0
    %v6323 = vsel %vm6225, %v5608, 0
    %v6326 = vsel %vm6225, %v5619, 0
    %v6329 = vsel %vm6225, %v5630, 0
    %v6332 = vsel %vm6225, %v5641, 0
    %v6335 = vsel %vm6225, %v5652, 0
    %v6338 = vsel %vm6225, %v5663, 0
    %v6341 = vsel %vm6225, %v5674, 0
    %v6344 = vsel %vm6225, %v5685, 0
    %v6347 = vsel %vm6225, %v5696, 0
    %v6350 = vsel %vm6225, %v5707, 0
    %v6353 = vsel %vm6225, %v5718, 0
    %v6356 = vsel %vm6225, %v5729, 0
    %v6359 = vsel %vm6225, %v5740, 0
    %v6362 = vsel %vm6225, %v5751, 0
    %v6365 = vsel %vm6225, %v5762, 0
    %v6368 = vsel %vm6225, %v5773, 0
    %v6371 = vsel %vm6225, %v5784, 0
    %v6374 = vsel %vm6225, %v5795, 0
    %v6377 = vsel %vm6225, %v5806, 0
    %v6380 = vsel %vm6225, %v5817, 0
    %v6383 = vsel %vm6225, %v5828, 0
    %v6386 = vsel %vm6225, %v5839, 0
    %v6389 = vsel %vm6225, %v5850, 0
    %v6392 = vsel %vm6225, %v5861, 0
    %v6395 = vsel %vm6225, %v5872, 0
    %v6398 = vsel %vm6225, %v5883, 0
    %v6401 = vsel %vm6225, %v5894, 0
    %v6404 = vsel %vm6225, %v5905, 0
    %v6407 = vsel %vm6225, %v5916, 0
    %v6410 = vsel %vm6225, %v5927, 0
    %v6413 = vsel %vm6225, %v5938, 0
    %v6416 = vsel %vm6225, %v5949, 0
    %v6419 = vsel %vm6225, %v5960, 0
    %v6422 = vsel %vm6225, %v5971, 0
    %v6425 = vsel %vm6225, %v5982, 0
    %v6428 = vsel %vm6225, %v5993, 0
    %v6431 = vsel %vm6225, %v6004, 0
    %v6434 = vsel %vm6225, %v6015, 0
    %v6437 = vsel %vm6225, %v6026, 0
    %v6440 = vsel %vm6225, %v6037, 0
    %v6443 = vsel %vm6225, %v6048, 0
    %v6446 = vsel %vm6225, %v6059, 0
    %v6449 = vsel %vm6225, %v6070, 0
    %v6452 = vsel %vm6225, %v6081, 0
    %v6455 = vsel %vm6225, %v6092, 0
    %v6458 = vsel %vm6225, %v6103, 0
    %v6461 = vsel %vm6225, %v6114, 0
    %v6464 = vsel %vm6225, %v6125, 0
    %v6467 = vsel %vm6225, %v6136, 0
    %v6470 = vsel %vm6225, %v6147, 0
    %v6473 = vsel %vm6225, %v6158, 0
    %v6476 = vsel %vm6225, %v6169, 0
    %v6479 = vsel %vm6225, %v6180, 0
    %v6482 = vsel %vm6225, %v6191, 0
    %v6485 = vsel %vm6225, %v6202, 0
    %v6488 = vsel %vm6225, %v6213, 0
    %v6491 = vsel %vm6225, %v6224, 0
    %6493 = vmatprep.subr.mxu0 %v5500
    %6494 = vmatpush1.xpose.msra.mxu0 %v5499
    %6495 = vmatprep.subr.mxu0 %v5489
    %6496 = vmatpush1.xpose.msra.mxu0 %v5488
    %6497 = vmatprep.subr.mxu0 %v5478
    %6498 = vmatpush1.xpose.msra.mxu0 %v5477
    %6499 = vmatprep.subr.mxu0 %v5467
    %6500 = vmatpush1.xpose.msra.mxu0 %v5466
    %6501 = vmatprep.subr.mxu0 %v5456
    %6502 = vmatpush1.xpose.msra.mxu0 %v5455
    %6503 = vmatprep.subr.mxu0 %v5445
    %6504 = vmatpush1.xpose.msra.mxu0 %v5444
    %6505 = vmatprep.subr.mxu0 %v5434
    %6506 = vmatpush1.xpose.msra.mxu0 %v5433
    %6507 = vmatprep.subr.mxu0 %v5423
    %6508 = vmatpush1.xpose.msra.mxu0 %v5422
    %6509 = vmatprep.subr.mxu0 %v5412
    %6510 = vmatpush1.xpose.msra.mxu0 %v5411
    %6511 = vmatprep.subr.mxu0 %v5401
    %6512 = vmatpush1.xpose.msra.mxu0 %v5400
    %6513 = vmatprep.subr.mxu0 %v5390
    %6514 = vmatpush1.xpose.msra.mxu0 %v5389
    %6515 = vmatprep.subr.mxu0 %v5379
    %6516 = vmatpush1.xpose.msra.mxu0 %v5378
    %6517 = vmatprep.subr.mxu0 %v5368
    %6518 = vmatpush1.xpose.msra.mxu0 %v5367
    %6519 = vmatprep.subr.mxu0 %v5357
    %6520 = vmatpush1.xpose.msra.mxu0 %v5356
    %6521 = vmatprep.subr.mxu0 %v5346
    %6522 = vmatpush1.xpose.msra.mxu0 %v5345
    %6523 = vmatprep.subr.mxu0 %v5335
    %6524 = vmatpush1.xpose.msra.mxu0 %v5334
    %6525 = vmatprep.subr.mxu0 %v5676
    %6526 = vmatpush2.xpose.msra.mxu0 %v5675
    %6527 = vmatprep.subr.mxu0 %v5665
    %6528 = vmatpush2.xpose.msra.mxu0 %v5664
    %6529 = vmatprep.subr.mxu0 %v5654
    %6530 = vmatpush2.xpose.msra.mxu0 %v5653
    %6531 = vmatprep.subr.mxu0 %v5643
    %6532 = vmatpush2.xpose.msra.mxu0 %v5642
    %6533 = vmatprep.subr.mxu0 %v5632
    %6534 = vmatpush2.xpose.msra.mxu0 %v5631
    %6535 = vmatprep.subr.mxu0 %v5621
    %6536 = vmatpush2.xpose.msra.mxu0 %v5620
    %6537 = vmatprep.subr.mxu0 %v5610
    %6538 = vmatpush2.xpose.msra.mxu0 %v5609
    %6539 = vmatprep.subr.mxu0 %v5599
    %6540 = vmatpush2.xpose.msra.mxu0 %v5598
    %6541 = vmatprep.subr.mxu0 %v5588
    %6542 = vmatpush2.xpose.msra.mxu0 %v5587
    %6543 = vmatprep.subr.mxu0 %v5577
    %6544 = vmatpush2.xpose.msra.mxu0 %v5576
    %6545 = vmatprep.subr.mxu0 %v5566
    %6546 = vmatpush2.xpose.msra.mxu0 %v5565
    %6547 = vmatprep.subr.mxu0 %v5555
    %6548 = vmatpush2.xpose.msra.mxu0 %v5554
    %6549 = vmatprep.subr.mxu0 %v5544
    %6550 = vmatpush2.xpose.msra.mxu0 %v5543
    %6551 = vmatprep.subr.mxu0 %v5533
    %6552 = vmatpush2.xpose.msra.mxu0 %v5532
    %6553 = vmatprep.subr.mxu0 %v5522
    %6554 = vmatpush2.xpose.msra.mxu0 %v5521
    %6555 = vmatprep.subr.mxu0 %v5511
    %6556 = vmatpush2.xpose.msra.mxu0 %v5510
    %6557 = vmatprep.mubr.f32.mxu0 %v5247
    %6558 = vmatmul.mubr.f32.gmra.mxu0 %v5246
    %v6559 = vpop.f32.mrf.mxu0
    %v6560 = vadd.f32 0.0, %v6559
    %v6561 = vpop.f32.mrf.mxu0
    %v6562 = vadd.f32 0.0, %v6561
    %6563 = vmatprep.mubr.f32.mxu0 %v5258
    %6564 = vmatmul.mubr.f32.gmra.mxu0 %v5257
    %v6565 = vpop.f32.mrf.mxu0
    %v6566 = vadd.f32 0.0, %v6565
    %v6567 = vpop.f32.mrf.mxu0
    %v6568 = vadd.f32 0.0, %v6567
    %6569 = vmatprep.mubr.f32.mxu0 %v5269
    %6570 = vmatmul.mubr.f32.gmra.mxu0 %v5268
    %v6571 = vpop.f32.mrf.mxu0
    %v6572 = vadd.f32 0.0, %v6571
    %v6573 = vpop.f32.mrf.mxu0
    %v6574 = vadd.f32 0.0, %v6573
    %6575 = vmatprep.mubr.f32.mxu0 %v5280
    %6576 = vmatmul.mubr.f32.gmra.mxu0 %v5279
    %v6577 = vpop.f32.mrf.mxu0
    %v6578 = vadd.f32 0.0, %v6577
    %v6579 = vpop.f32.mrf.mxu0
    %v6580 = vadd.f32 0.0, %v6579
    %6581 = vmatprep.mubr.f32.mxu0 %v5291
    %6582 = vmatmul.mubr.f32.gmra.mxu0 %v5290
    %v6583 = vpop.f32.mrf.mxu0
    %v6584 = vadd.f32 0.0, %v6583
    %v6585 = vpop.f32.mrf.mxu0
    %v6586 = vadd.f32 0.0, %v6585
    %6587 = vmatprep.mubr.f32.mxu0 %v5302
    %6588 = vmatmul.mubr.f32.gmra.mxu0 %v5301
    %v6589 = vpop.f32.mrf.mxu0
    %v6590 = vadd.f32 0.0, %v6589
    %v6591 = vpop.f32.mrf.mxu0
    %v6592 = vadd.f32 0.0, %v6591
    %6593 = vmatprep.mubr.f32.mxu0 %v5313
    %6594 = vmatmul.mubr.f32.gmra.mxu0 %v5312
    %v6595 = vpop.f32.mrf.mxu0
    %v6596 = vadd.f32 0.0, %v6595
    %v6597 = vpop.f32.mrf.mxu0
    %v6598 = vadd.f32 0.0, %v6597
    %6599 = vmatprep.mubr.f32.mxu0 %v5324
    %6600 = vmatmul.mubr.f32.gmra.mxu0 %v5323
    %v6601 = vpop.f32.mrf.mxu0
    %v6602 = vadd.f32 0.0, %v6601
    %v6603 = vpop.f32.mrf.mxu0
    %v6604 = vadd.f32 0.0, %v6603
    %6605 = vdwg.mxu0
    %6606 = vmatprep.subr.mxu0 %v5502
    %6607 = vmatpush1.xpose.msra.mxu0 %v5501
    %6608 = vmatprep.subr.mxu0 %v5491
    %6609 = vmatpush1.xpose.msra.mxu0 %v5490
    %6610 = vmatprep.subr.mxu0 %v5480
    %6611 = vmatpush1.xpose.msra.mxu0 %v5479
    %6612 = vmatprep.subr.mxu0 %v5469
    %6613 = vmatpush1.xpose.msra.mxu0 %v5468
    %6614 = vmatprep.subr.mxu0 %v5458
    %6615 = vmatpush1.xpose.msra.mxu0 %v5457
    %6616 = vmatprep.subr.mxu0 %v5447
    %6617 = vmatpush1.xpose.msra.mxu0 %v5446
    %6618 = vmatprep.subr.mxu0 %v5436
    %6619 = vmatpush1.xpose.msra.mxu0 %v5435
    %6620 = vmatprep.subr.mxu0 %v5425
    %6621 = vmatpush1.xpose.msra.mxu0 %v5424
    %6622 = vmatprep.subr.mxu0 %v5414
    %6623 = vmatpush1.xpose.msra.mxu0 %v5413
    %6624 = vmatprep.subr.mxu0 %v5403
    %6625 = vmatpush1.xpose.msra.mxu0 %v5402
    %6626 = vmatprep.subr.mxu0 %v5392
    %6627 = vmatpush1.xpose.msra.mxu0 %v5391
    %6628 = vmatprep.subr.mxu0 %v5381
    %6629 = vmatpush1.xpose.msra.mxu0 %v5380
    %6630 = vmatprep.subr.mxu0 %v5370
    %6631 = vmatpush1.xpose.msra.mxu0 %v5369
    %6632 = vmatprep.subr.mxu0 %v5359
    %6633 = vmatpush1.xpose.msra.mxu0 %v5358
    %6634 = vmatprep.subr.mxu0 %v5348
    %6635 = vmatpush1.xpose.msra.mxu0 %v5347
    %6636 = vmatprep.subr.mxu0 %v5337
    %6637 = vmatpush1.xpose.msra.mxu0 %v5336
    %6638 = vmatprep.subr.mxu0 %v5678
    %6639 = vmatpush2.xpose.msra.mxu0 %v5677
    %6640 = vmatprep.subr.mxu0 %v5667
    %6641 = vmatpush2.xpose.msra.mxu0 %v5666
    %6642 = vmatprep.subr.mxu0 %v5656
    %6643 = vmatpush2.xpose.msra.mxu0 %v5655
    %6644 = vmatprep.subr.mxu0 %v5645
    %6645 = vmatpush2.xpose.msra.mxu0 %v5644
    %6646 = vmatprep.subr.mxu0 %v5634
    %6647 = vmatpush2.xpose.msra.mxu0 %v5633
    %6648 = vmatprep.subr.mxu0 %v5623
    %6649 = vmatpush2.xpose.msra.mxu0 %v5622
    %6650 = vmatprep.subr.mxu0 %v5612
    %6651 = vmatpush2.xpose.msra.mxu0 %v5611
    %6652 = vmatprep.subr.mxu0 %v5601
    %6653 = vmatpush2.xpose.msra.mxu0 %v5600
    %6654 = vmatprep.subr.mxu0 %v5590
    %6655 = vmatpush2.xpose.msra.mxu0 %v5589
    %6656 = vmatprep.subr.mxu0 %v5579
    %6657 = vmatpush2.xpose.msra.mxu0 %v5578
    %6658 = vmatprep.subr.mxu0 %v5568
    %6659 = vmatpush2.xpose.msra.mxu0 %v5567
    %6660 = vmatprep.subr.mxu0 %v5557
    %6661 = vmatpush2.xpose.msra.mxu0 %v5556
    %6662 = vmatprep.subr.mxu0 %v5546
    %6663 = vmatpush2.xpose.msra.mxu0 %v5545
    %6664 = vmatprep.subr.mxu0 %v5535
    %6665 = vmatpush2.xpose.msra.mxu0 %v5534
    %6666 = vmatprep.subr.mxu0 %v5524
    %6667 = vmatpush2.xpose.msra.mxu0 %v5523
    %6668 = vmatprep.subr.mxu0 %v5513
    %6669 = vmatpush2.xpose.msra.mxu0 %v5512
    %6670 = vmatprep.mubr.f32.mxu0 %v5249
    %6671 = vmatmul.mubr.f32.gmra.mxu0 %v5248
    %v6672 = vpop.f32.mrf.mxu0
    %v6673 = vadd.f32 %v6560, %v6672
    %v6674 = vpop.f32.mrf.mxu0
    %v6675 = vadd.f32 %v6562, %v6674
    %6676 = vmatprep.mubr.f32.mxu0 %v5260
    %6677 = vmatmul.mubr.f32.gmra.mxu0 %v5259
    %v6678 = vpop.f32.mrf.mxu0
    %v6679 = vadd.f32 %v6566, %v6678
    %v6680 = vpop.f32.mrf.mxu0
    %v6681 = vadd.f32 %v6568, %v6680
    %6682 = vmatprep.mubr.f32.mxu0 %v5271
    %6683 = vmatmul.mubr.f32.gmra.mxu0 %v5270
    %v6684 = vpop.f32.mrf.mxu0
    %v6685 = vadd.f32 %v6572, %v6684
    %v6686 = vpop.f32.mrf.mxu0
    %v6687 = vadd.f32 %v6574, %v6686
    %6688 = vmatprep.mubr.f32.mxu0 %v5282
    %6689 = vmatmul.mubr.f32.gmra.mxu0 %v5281
    %v6690 = vpop.f32.mrf.mxu0
    %v6691 = vadd.f32 %v6578, %v6690
    %v6692 = vpop.f32.mrf.mxu0
    %v6693 = vadd.f32 %v6580, %v6692
    %6694 = vmatprep.mubr.f32.mxu0 %v5293
    %6695 = vmatmul.mubr.f32.gmra.mxu0 %v5292
    %v6696 = vpop.f32.mrf.mxu0
    %v6697 = vadd.f32 %v6584, %v6696
    %v6698 = vpop.f32.mrf.mxu0
    %v6699 = vadd.f32 %v6586, %v6698
    %6700 = vmatprep.mubr.f32.mxu0 %v5304
    %6701 = vmatmul.mubr.f32.gmra.mxu0 %v5303
    %v6702 = vpop.f32.mrf.mxu0
    %v6703 = vadd.f32 %v6590, %v6702
    %v6704 = vpop.f32.mrf.mxu0
    %v6705 = vadd.f32 %v6592, %v6704
    %6706 = vmatprep.mubr.f32.mxu0 %v5315
    %6707 = vmatmul.mubr.f32.gmra.mxu0 %v5314
    %v6708 = vpop.f32.mrf.mxu0
    %v6709 = vadd.f32 %v6596, %v6708
    %v6710 = vpop.f32.mrf.mxu0
    %v6711 = vadd.f32 %v6598, %v6710
    %6712 = vmatprep.mubr.f32.mxu0 %v5326
    %6713 = vmatmul.mubr.f32.gmra.mxu0 %v5325
    %v6714 = vpop.f32.mrf.mxu0
    %v6715 = vadd.f32 %v6602, %v6714
    %v6716 = vpop.f32.mrf.mxu0
    %v6717 = vadd.f32 %v6604, %v6716
    %6718 = vdwg.mxu0
    %6719 = vmatprep.subr.mxu0 %v5504
    %6720 = vmatpush1.xpose.msra.mxu0 %v5503
    %6721 = vmatprep.subr.mxu0 %v5493
    %6722 = vmatpush1.xpose.msra.mxu0 %v5492
    %6723 = vmatprep.subr.mxu0 %v5482
    %6724 = vmatpush1.xpose.msra.mxu0 %v5481
    %6725 = vmatprep.subr.mxu0 %v5471
    %6726 = vmatpush1.xpose.msra.mxu0 %v5470
    %6727 = vmatprep.subr.mxu0 %v5460
    %6728 = vmatpush1.xpose.msra.mxu0 %v5459
    %6729 = vmatprep.subr.mxu0 %v5449
    %6730 = vmatpush1.xpose.msra.mxu0 %v5448
    %6731 = vmatprep.subr.mxu0 %v5438
    %6732 = vmatpush1.xpose.msra.mxu0 %v5437
    %6733 = vmatprep.subr.mxu0 %v5427
    %6734 = vmatpush1.xpose.msra.mxu0 %v5426
    %6735 = vmatprep.subr.mxu0 %v5416
    %6736 = vmatpush1.xpose.msra.mxu0 %v5415
    %6737 = vmatprep.subr.mxu0 %v5405
    %6738 = vmatpush1.xpose.msra.mxu0 %v5404
    %6739 = vmatprep.subr.mxu0 %v5394
    %6740 = vmatpush1.xpose.msra.mxu0 %v5393
    %6741 = vmatprep.subr.mxu0 %v5383
    %6742 = vmatpush1.xpose.msra.mxu0 %v5382
    %6743 = vmatprep.subr.mxu0 %v5372
    %6744 = vmatpush1.xpose.msra.mxu0 %v5371
    %6745 = vmatprep.subr.mxu0 %v5361
    %6746 = vmatpush1.xpose.msra.mxu0 %v5360
    %6747 = vmatprep.subr.mxu0 %v5350
    %6748 = vmatpush1.xpose.msra.mxu0 %v5349
    %6749 = vmatprep.subr.mxu0 %v5339
    %6750 = vmatpush1.xpose.msra.mxu0 %v5338
    %6751 = vmatprep.subr.mxu0 %v5680
    %6752 = vmatpush2.xpose.msra.mxu0 %v5679
    %6753 = vmatprep.subr.mxu0 %v5669
    %6754 = vmatpush2.xpose.msra.mxu0 %v5668
    %6755 = vmatprep.subr.mxu0 %v5658
    %6756 = vmatpush2.xpose.msra.mxu0 %v5657
    %6757 = vmatprep.subr.mxu0 %v5647
    %6758 = vmatpush2.xpose.msra.mxu0 %v5646
    %6759 = vmatprep.subr.mxu0 %v5636
    %6760 = vmatpush2.xpose.msra.mxu0 %v5635
    %6761 = vmatprep.subr.mxu0 %v5625
    %6762 = vmatpush2.xpose.msra.mxu0 %v5624
    %6763 = vmatprep.subr.mxu0 %v5614
    %6764 = vmatpush2.xpose.msra.mxu0 %v5613
    %6765 = vmatprep.subr.mxu0 %v5603
    %6766 = vmatpush2.xpose.msra.mxu0 %v5602
    %6767 = vmatprep.subr.mxu0 %v5592
    %6768 = vmatpush2.xpose.msra.mxu0 %v5591
    %6769 = vmatprep.subr.mxu0 %v5581
    %6770 = vmatpush2.xpose.msra.mxu0 %v5580
    %6771 = vmatprep.subr.mxu0 %v5570
    %6772 = vmatpush2.xpose.msra.mxu0 %v5569
    %6773 = vmatprep.subr.mxu0 %v5559
    %6774 = vmatpush2.xpose.msra.mxu0 %v5558
    %6775 = vmatprep.subr.mxu0 %v5548
    %6776 = vmatpush2.xpose.msra.mxu0 %v5547
    %6777 = vmatprep.subr.mxu0 %v5537
    %6778 = vmatpush2.xpose.msra.mxu0 %v5536
    %6779 = vmatprep.subr.mxu0 %v5526
    %6780 = vmatpush2.xpose.msra.mxu0 %v5525
    %6781 = vmatprep.subr.mxu0 %v5515
    %6782 = vmatpush2.xpose.msra.mxu0 %v5514
    %6783 = vmatprep.mubr.f32.mxu0 %v5251
    %6784 = vmatmul.mubr.f32.gmra.mxu0 %v5250
    %v6785 = vpop.f32.mrf.mxu0
    %v6786 = vadd.f32 %v6673, %v6785
    %v6787 = vpop.f32.mrf.mxu0
    %v6788 = vadd.f32 %v6675, %v6787
    %6789 = vmatprep.mubr.f32.mxu0 %v5262
    %6790 = vmatmul.mubr.f32.gmra.mxu0 %v5261
    %v6791 = vpop.f32.mrf.mxu0
    %v6792 = vadd.f32 %v6679, %v6791
    %v6793 = vpop.f32.mrf.mxu0
    %v6794 = vadd.f32 %v6681, %v6793
    %6795 = vmatprep.mubr.f32.mxu0 %v5273
    %6796 = vmatmul.mubr.f32.gmra.mxu0 %v5272
    %v6797 = vpop.f32.mrf.mxu0
    %v6798 = vadd.f32 %v6685, %v6797
    %v6799 = vpop.f32.mrf.mxu0
    %v6800 = vadd.f32 %v6687, %v6799
    %6801 = vmatprep.mubr.f32.mxu0 %v5284
    %6802 = vmatmul.mubr.f32.gmra.mxu0 %v5283
    %v6803 = vpop.f32.mrf.mxu0
    %v6804 = vadd.f32 %v6691, %v6803
    %v6805 = vpop.f32.mrf.mxu0
    %v6806 = vadd.f32 %v6693, %v6805
    %6807 = vmatprep.mubr.f32.mxu0 %v5295
    %6808 = vmatmul.mubr.f32.gmra.mxu0 %v5294
    %v6809 = vpop.f32.mrf.mxu0
    %v6810 = vadd.f32 %v6697, %v6809
    %v6811 = vpop.f32.mrf.mxu0
    %v6812 = vadd.f32 %v6699, %v6811
    %6813 = vmatprep.mubr.f32.mxu0 %v5306
    %6814 = vmatmul.mubr.f32.gmra.mxu0 %v5305
    %v6815 = vpop.f32.mrf.mxu0
    %v6816 = vadd.f32 %v6703, %v6815
    %v6817 = vpop.f32.mrf.mxu0
    %v6818 = vadd.f32 %v6705, %v6817
    %6819 = vmatprep.mubr.f32.mxu0 %v5317
    %6820 = vmatmul.mubr.f32.gmra.mxu0 %v5316
    %v6821 = vpop.f32.mrf.mxu0
    %v6822 = vadd.f32 %v6709, %v6821
    %v6823 = vpop.f32.mrf.mxu0
    %v6824 = vadd.f32 %v6711, %v6823
    %6825 = vmatprep.mubr.f32.mxu0 %v5328
    %6826 = vmatmul.mubr.f32.gmra.mxu0 %v5327
    %v6827 = vpop.f32.mrf.mxu0
    %v6828 = vadd.f32 %v6715, %v6827
    %v6829 = vpop.f32.mrf.mxu0
    %v6830 = vadd.f32 %v6717, %v6829
    %6831 = vdwg.mxu0
    %6832 = vmatprep.subr.mxu0 %v5506
    %6833 = vmatpush1.xpose.msra.mxu0 %v5505
    %6834 = vmatprep.subr.mxu0 %v5495
    %6835 = vmatpush1.xpose.msra.mxu0 %v5494
    %6836 = vmatprep.subr.mxu0 %v5484
    %6837 = vmatpush1.xpose.msra.mxu0 %v5483
    %6838 = vmatprep.subr.mxu0 %v5473
    %6839 = vmatpush1.xpose.msra.mxu0 %v5472
    %6840 = vmatprep.subr.mxu0 %v5462
    %6841 = vmatpush1.xpose.msra.mxu0 %v5461
    %6842 = vmatprep.subr.mxu0 %v5451
    %6843 = vmatpush1.xpose.msra.mxu0 %v5450
    %6844 = vmatprep.subr.mxu0 %v5440
    %6845 = vmatpush1.xpose.msra.mxu0 %v5439
    %6846 = vmatprep.subr.mxu0 %v5429
    %6847 = vmatpush1.xpose.msra.mxu0 %v5428
    %6848 = vmatprep.subr.mxu0 %v5418
    %6849 = vmatpush1.xpose.msra.mxu0 %v5417
    %6850 = vmatprep.subr.mxu0 %v5407
    %6851 = vmatpush1.xpose.msra.mxu0 %v5406
    %6852 = vmatprep.subr.mxu0 %v5396
    %6853 = vmatpush1.xpose.msra.mxu0 %v5395
    %6854 = vmatprep.subr.mxu0 %v5385
    %6855 = vmatpush1.xpose.msra.mxu0 %v5384
    %6856 = vmatprep.subr.mxu0 %v5374
    %6857 = vmatpush1.xpose.msra.mxu0 %v5373
    %6858 = vmatprep.subr.mxu0 %v5363
    %6859 = vmatpush1.xpose.msra.mxu0 %v5362
    %6860 = vmatprep.subr.mxu0 %v5352
    %6861 = vmatpush1.xpose.msra.mxu0 %v5351
    %6862 = vmatprep.subr.mxu0 %v5341
    %6863 = vmatpush1.xpose.msra.mxu0 %v5340
    %6864 = vmatprep.subr.mxu0 %v5682
    %6865 = vmatpush2.xpose.msra.mxu0 %v5681
    %6866 = vmatprep.subr.mxu0 %v5671
    %6867 = vmatpush2.xpose.msra.mxu0 %v5670
    %6868 = vmatprep.subr.mxu0 %v5660
    %6869 = vmatpush2.xpose.msra.mxu0 %v5659
    %6870 = vmatprep.subr.mxu0 %v5649
    %6871 = vmatpush2.xpose.msra.mxu0 %v5648
    %6872 = vmatprep.subr.mxu0 %v5638
    %6873 = vmatpush2.xpose.msra.mxu0 %v5637
    %6874 = vmatprep.subr.mxu0 %v5627
    %6875 = vmatpush2.xpose.msra.mxu0 %v5626
    %6876 = vmatprep.subr.mxu0 %v5616
    %6877 = vmatpush2.xpose.msra.mxu0 %v5615
    %6878 = vmatprep.subr.mxu0 %v5605
    %6879 = vmatpush2.xpose.msra.mxu0 %v5604
    %6880 = vmatprep.subr.mxu0 %v5594
    %6881 = vmatpush2.xpose.msra.mxu0 %v5593
    %6882 = vmatprep.subr.mxu0 %v5583
    %6883 = vmatpush2.xpose.msra.mxu0 %v5582
    %6884 = vmatprep.subr.mxu0 %v5572
    %6885 = vmatpush2.xpose.msra.mxu0 %v5571
    %6886 = vmatprep.subr.mxu0 %v5561
    %6887 = vmatpush2.xpose.msra.mxu0 %v5560
    %6888 = vmatprep.subr.mxu0 %v5550
    %6889 = vmatpush2.xpose.msra.mxu0 %v5549
    %6890 = vmatprep.subr.mxu0 %v5539
    %6891 = vmatpush2.xpose.msra.mxu0 %v5538
    %6892 = vmatprep.subr.mxu0 %v5528
    %6893 = vmatpush2.xpose.msra.mxu0 %v5527
    %6894 = vmatprep.subr.mxu0 %v5517
    %6895 = vmatpush2.xpose.msra.mxu0 %v5516
    %6896 = vmatprep.mubr.f32.mxu0 %v5253
    %6897 = vmatmul.mubr.f32.gmra.mxu0 %v5252
    %v6898 = vpop.f32.mrf.mxu0
    %v6899 = vadd.f32 %v6786, %v6898
    %v6900 = vpop.f32.mrf.mxu0
    %v6901 = vadd.f32 %v6788, %v6900
    %6902 = vmatprep.mubr.f32.mxu0 %v5264
    %6903 = vmatmul.mubr.f32.gmra.mxu0 %v5263
    %v6904 = vpop.f32.mrf.mxu0
    %v6905 = vadd.f32 %v6792, %v6904
    %v6906 = vpop.f32.mrf.mxu0
    %v6907 = vadd.f32 %v6794, %v6906
    %6908 = vmatprep.mubr.f32.mxu0 %v5275
    %6909 = vmatmul.mubr.f32.gmra.mxu0 %v5274
    %v6910 = vpop.f32.mrf.mxu0
    %v6911 = vadd.f32 %v6798, %v6910
    %v6912 = vpop.f32.mrf.mxu0
    %v6913 = vadd.f32 %v6800, %v6912
    %6914 = vmatprep.mubr.f32.mxu0 %v5286
    %6915 = vmatmul.mubr.f32.gmra.mxu0 %v5285
    %v6916 = vpop.f32.mrf.mxu0
    %v6917 = vadd.f32 %v6804, %v6916
    %v6918 = vpop.f32.mrf.mxu0
    %v6919 = vadd.f32 %v6806, %v6918
    %6920 = vmatprep.mubr.f32.mxu0 %v5297
    %6921 = vmatmul.mubr.f32.gmra.mxu0 %v5296
    %v6922 = vpop.f32.mrf.mxu0
    %v6923 = vadd.f32 %v6810, %v6922
    %v6924 = vpop.f32.mrf.mxu0
    %v6925 = vadd.f32 %v6812, %v6924
    %6926 = vmatprep.mubr.f32.mxu0 %v5308
    %6927 = vmatmul.mubr.f32.gmra.mxu0 %v5307
    %v6928 = vpop.f32.mrf.mxu0
    %v6929 = vadd.f32 %v6816, %v6928
    %v6930 = vpop.f32.mrf.mxu0
    %v6931 = vadd.f32 %v6818, %v6930
    %6932 = vmatprep.mubr.f32.mxu0 %v5319
    %6933 = vmatmul.mubr.f32.gmra.mxu0 %v5318
    %v6934 = vpop.f32.mrf.mxu0
    %v6935 = vadd.f32 %v6822, %v6934
    %v6936 = vpop.f32.mrf.mxu0
    %v6937 = vadd.f32 %v6824, %v6936
    %6938 = vmatprep.mubr.f32.mxu0 %v5330
    %6939 = vmatmul.mubr.f32.gmra.mxu0 %v5329
    %v6940 = vpop.f32.mrf.mxu0
    %v6941 = vadd.f32 %v6828, %v6940
    %v6942 = vpop.f32.mrf.mxu0
    %v6943 = vadd.f32 %v6830, %v6942
    %6944 = vdwg.mxu0
    %6945 = vmatprep.subr.mxu0 %v5508
    %6946 = vmatpush1.xpose.msra.mxu0 %v5507
    %6947 = vmatprep.subr.mxu0 %v5497
    %6948 = vmatpush1.xpose.msra.mxu0 %v5496
    %6949 = vmatprep.subr.mxu0 %v5486
    %6950 = vmatpush1.xpose.msra.mxu0 %v5485
    %6951 = vmatprep.subr.mxu0 %v5475
    %6952 = vmatpush1.xpose.msra.mxu0 %v5474
    %6953 = vmatprep.subr.mxu0 %v5464
    %6954 = vmatpush1.xpose.msra.mxu0 %v5463
    %6955 = vmatprep.subr.mxu0 %v5453
    %6956 = vmatpush1.xpose.msra.mxu0 %v5452
    %6957 = vmatprep.subr.mxu0 %v5442
    %6958 = vmatpush1.xpose.msra.mxu0 %v5441
    %6959 = vmatprep.subr.mxu0 %v5431
    %6960 = vmatpush1.xpose.msra.mxu0 %v5430
    %6961 = vmatprep.subr.mxu0 %v5420
    %6962 = vmatpush1.xpose.msra.mxu0 %v5419
    %6963 = vmatprep.subr.mxu0 %v5409
    %6964 = vmatpush1.xpose.msra.mxu0 %v5408
    %6965 = vmatprep.subr.mxu0 %v5398
    %6966 = vmatpush1.xpose.msra.mxu0 %v5397
    %6967 = vmatprep.subr.mxu0 %v5387
    %6968 = vmatpush1.xpose.msra.mxu0 %v5386
    %6969 = vmatprep.subr.mxu0 %v5376
    %6970 = vmatpush1.xpose.msra.mxu0 %v5375
    %6971 = vmatprep.subr.mxu0 %v5365
    %6972 = vmatpush1.xpose.msra.mxu0 %v5364
    %6973 = vmatprep.subr.mxu0 %v5354
    %6974 = vmatpush1.xpose.msra.mxu0 %v5353
    %6975 = vmatprep.subr.mxu0 %v5343
    %6976 = vmatpush1.xpose.msra.mxu0 %v5342
    %6977 = vmatprep.subr.mxu0 %v5684
    %6978 = vmatpush2.xpose.msra.mxu0 %v5683
    %6979 = vmatprep.subr.mxu0 %v5673
    %6980 = vmatpush2.xpose.msra.mxu0 %v5672
    %6981 = vmatprep.subr.mxu0 %v5662
    %6982 = vmatpush2.xpose.msra.mxu0 %v5661
    %6983 = vmatprep.subr.mxu0 %v5651
    %6984 = vmatpush2.xpose.msra.mxu0 %v5650
    %6985 = vmatprep.subr.mxu0 %v5640
    %6986 = vmatpush2.xpose.msra.mxu0 %v5639
    %6987 = vmatprep.subr.mxu0 %v5629
    %6988 = vmatpush2.xpose.msra.mxu0 %v5628
    %6989 = vmatprep.subr.mxu0 %v5618
    %6990 = vmatpush2.xpose.msra.mxu0 %v5617
    %6991 = vmatprep.subr.mxu0 %v5607
    %6992 = vmatpush2.xpose.msra.mxu0 %v5606
    %6993 = vmatprep.subr.mxu0 %v5596
    %6994 = vmatpush2.xpose.msra.mxu0 %v5595
    %6995 = vmatprep.subr.mxu0 %v5585
    %6996 = vmatpush2.xpose.msra.mxu0 %v5584
    %6997 = vmatprep.subr.mxu0 %v5574
    %6998 = vmatpush2.xpose.msra.mxu0 %v5573
    %6999 = vmatprep.subr.mxu0 %v5563
    %7000 = vmatpush2.xpose.msra.mxu0 %v5562
    %7001 = vmatprep.subr.mxu0 %v5552
    %7002 = vmatpush2.xpose.msra.mxu0 %v5551
    %7003 = vmatprep.subr.mxu0 %v5541
    %7004 = vmatpush2.xpose.msra.mxu0 %v5540
    %7005 = vmatprep.subr.mxu0 %v5530
    %7006 = vmatpush2.xpose.msra.mxu0 %v5529
    %7007 = vmatprep.subr.mxu0 %v5519
    %7008 = vmatpush2.xpose.msra.mxu0 %v5518
    %7009 = vmatprep.mubr.f32.mxu0 %v5255
    %7010 = vmatmul.mubr.f32.gmra.mxu0 %v5254
    %v7011 = vpop.f32.mrf.mxu0
    %v7012 = vadd.f32 %v6899, %v7011
    %v7013 = vpop.f32.mrf.mxu0
    %v7014 = vadd.f32 %v6901, %v7013
    %7015 = vmatprep.mubr.f32.mxu0 %v5266
    %7016 = vmatmul.mubr.f32.gmra.mxu0 %v5265
    %v7017 = vpop.f32.mrf.mxu0
    %v7018 = vadd.f32 %v6905, %v7017
    %v7019 = vpop.f32.mrf.mxu0
    %v7020 = vadd.f32 %v6907, %v7019
    %7021 = vmatprep.mubr.f32.mxu0 %v5277
    %7022 = vmatmul.mubr.f32.gmra.mxu0 %v5276
    %v7023 = vpop.f32.mrf.mxu0
    %v7024 = vadd.f32 %v6911, %v7023
    %v7025 = vpop.f32.mrf.mxu0
    %v7026 = vadd.f32 %v6913, %v7025
    %7027 = vmatprep.mubr.f32.mxu0 %v5288
    %7028 = vmatmul.mubr.f32.gmra.mxu0 %v5287
    %v7029 = vpop.f32.mrf.mxu0
    %v7030 = vadd.f32 %v6917, %v7029
    %v7031 = vpop.f32.mrf.mxu0
    %v7032 = vadd.f32 %v6919, %v7031
    %7033 = vmatprep.mubr.f32.mxu0 %v5299
    %7034 = vmatmul.mubr.f32.gmra.mxu0 %v5298
    %v7035 = vpop.f32.mrf.mxu0
    %v7036 = vadd.f32 %v6923, %v7035
    %v7037 = vpop.f32.mrf.mxu0
    %v7038 = vadd.f32 %v6925, %v7037
    %7039 = vmatprep.mubr.f32.mxu0 %v5310
    %7040 = vmatmul.mubr.f32.gmra.mxu0 %v5309
    %v7041 = vpop.f32.mrf.mxu0
    %v7042 = vadd.f32 %v6929, %v7041
    %v7043 = vpop.f32.mrf.mxu0
    %v7044 = vadd.f32 %v6931, %v7043
    %7045 = vmatprep.mubr.f32.mxu0 %v5321
    %7046 = vmatmul.mubr.f32.gmra.mxu0 %v5320
    %v7047 = vpop.f32.mrf.mxu0
    %v7048 = vadd.f32 %v6935, %v7047
    %v7049 = vpop.f32.mrf.mxu0
    %v7050 = vadd.f32 %v6937, %v7049
    %7051 = vmatprep.mubr.f32.mxu0 %v5332
    %7052 = vmatmul.mubr.f32.gmra.mxu0 %v5331
    %v7053 = vpop.f32.mrf.mxu0
    %v7054 = vadd.f32 %v6941, %v7053
    %v7055 = vpop.f32.mrf.mxu0
    %v7056 = vadd.f32 %v6943, %v7055
    %7057 = vdwg.mxu0
    %7058 = vmatprep.subr.mxu0 0.0
    %7059 = vmatpush1.xpose.msra.mxu0 %v6296
    %7060 = vmatprep.subr.mxu0 0.0
    %7061 = vmatpush1.xpose.msra.mxu0 %v6293
    %7062 = vmatprep.subr.mxu0 0.0
    %7063 = vmatpush1.xpose.msra.mxu0 %v6290
    %7064 = vmatprep.subr.mxu0 0.0
    %7065 = vmatpush1.xpose.msra.mxu0 %v6287
    %7066 = vmatprep.subr.mxu0 0.0
    %7067 = vmatpush1.xpose.msra.mxu0 %v6284
    %7068 = vmatprep.subr.mxu0 0.0
    %7069 = vmatpush1.xpose.msra.mxu0 %v6281
    %7070 = vmatprep.subr.mxu0 0.0
    %7071 = vmatpush1.xpose.msra.mxu0 %v6278
    %7072 = vmatprep.subr.mxu0 0.0
    %7073 = vmatpush1.xpose.msra.mxu0 %v6275
    %7074 = vmatprep.subr.mxu0 0.0
    %7075 = vmatpush1.xpose.msra.mxu0 %v6272
    %7076 = vmatprep.subr.mxu0 0.0
    %7077 = vmatpush1.xpose.msra.mxu0 %v6269
    %7078 = vmatprep.subr.mxu0 0.0
    %7079 = vmatpush1.xpose.msra.mxu0 %v6266
    %7080 = vmatprep.subr.mxu0 0.0
    %7081 = vmatpush1.xpose.msra.mxu0 %v6263
    %7082 = vmatprep.subr.mxu0 0.0
    %7083 = vmatpush1.xpose.msra.mxu0 %v6260
    %7084 = vmatprep.subr.mxu0 0.0
    %7085 = vmatpush1.xpose.msra.mxu0 %v6257
    %7086 = vmatprep.subr.mxu0 0.0
    %7087 = vmatpush1.xpose.msra.mxu0 %v6254
    %7088 = vmatprep.subr.mxu0 0.0
    %7089 = vmatpush1.xpose.msra.mxu0 %v6251
    %7090 = vmatprep.subr.mxu0 0.0
    %7091 = vmatpush2.xpose.msra.mxu0 %v6344
    %7092 = vmatprep.subr.mxu0 0.0
    %7093 = vmatpush2.xpose.msra.mxu0 %v6341
    %7094 = vmatprep.subr.mxu0 0.0
    %7095 = vmatpush2.xpose.msra.mxu0 %v6338
    %7096 = vmatprep.subr.mxu0 0.0
    %7097 = vmatpush2.xpose.msra.mxu0 %v6335
    %7098 = vmatprep.subr.mxu0 0.0
    %7099 = vmatpush2.xpose.msra.mxu0 %v6332
    %7100 = vmatprep.subr.mxu0 0.0
    %7101 = vmatpush2.xpose.msra.mxu0 %v6329
    %7102 = vmatprep.subr.mxu0 0.0
    %7103 = vmatpush2.xpose.msra.mxu0 %v6326
    %7104 = vmatprep.subr.mxu0 0.0
    %7105 = vmatpush2.xpose.msra.mxu0 %v6323
    %7106 = vmatprep.subr.mxu0 0.0
    %7107 = vmatpush2.xpose.msra.mxu0 %v6320
    %7108 = vmatprep.subr.mxu0 0.0
    %7109 = vmatpush2.xpose.msra.mxu0 %v6317
    %7110 = vmatprep.subr.mxu0 0.0
    %7111 = vmatpush2.xpose.msra.mxu0 %v6314
    %7112 = vmatprep.subr.mxu0 0.0
    %7113 = vmatpush2.xpose.msra.mxu0 %v6311
    %7114 = vmatprep.subr.mxu0 0.0
    %7115 = vmatpush2.xpose.msra.mxu0 %v6308
    %7116 = vmatprep.subr.mxu0 0.0
    %7117 = vmatpush2.xpose.msra.mxu0 %v6305
    %7118 = vmatprep.subr.mxu0 0.0
    %7119 = vmatpush2.xpose.msra.mxu0 %v6302
    %7120 = vmatprep.subr.mxu0 0.0
    %7121 = vmatpush2.xpose.msra.mxu0 %v6299
    %7122 = vmatprep.mubr.f32.mxu0 0.0
    %7123 = vmatmul.mubr.f32.gmra.mxu0 %v6227
    %v7124 = vpop.f32.mrf.mxu0
    %v7125 = vadd.f32 %v7012, %v7124
    %v7126 = vpop.f32.mrf.mxu0
    %v7127 = vadd.f32 %v7014, %v7126
    %7128 = vmatprep.mubr.f32.mxu0 0.0
    %7129 = vmatmul.mubr.f32.gmra.mxu0 %v6230
    %v7130 = vpop.f32.mrf.mxu0
    %v7131 = vadd.f32 %v7018, %v7130
    %v7132 = vpop.f32.mrf.mxu0
    %v7133 = vadd.f32 %v7020, %v7132
    %7134 = vmatprep.mubr.f32.mxu0 0.0
    %7135 = vmatmul.mubr.f32.gmra.mxu0 %v6233
    %v7136 = vpop.f32.mrf.mxu0
    %v7137 = vadd.f32 %v7024, %v7136
    %v7138 = vpop.f32.mrf.mxu0
    %v7139 = vadd.f32 %v7026, %v7138
    %7140 = vmatprep.mubr.f32.mxu0 0.0
    %7141 = vmatmul.mubr.f32.gmra.mxu0 %v6236
    %v7142 = vpop.f32.mrf.mxu0
    %v7143 = vadd.f32 %v7030, %v7142
    %v7144 = vpop.f32.mrf.mxu0
    %v7145 = vadd.f32 %v7032, %v7144
    %7146 = vmatprep.mubr.f32.mxu0 0.0
    %7147 = vmatmul.mubr.f32.gmra.mxu0 %v6239
    %v7148 = vpop.f32.mrf.mxu0
    %v7149 = vadd.f32 %v7036, %v7148
    %v7150 = vpop.f32.mrf.mxu0
    %v7151 = vadd.f32 %v7038, %v7150
    %7152 = vmatprep.mubr.f32.mxu0 0.0
    %7153 = vmatmul.mubr.f32.gmra.mxu0 %v6242
    %v7154 = vpop.f32.mrf.mxu0
    %v7155 = vadd.f32 %v7042, %v7154
    %v7156 = vpop.f32.mrf.mxu0
    %v7157 = vadd.f32 %v7044, %v7156
    %7158 = vmatprep.mubr.f32.mxu0 0.0
    %7159 = vmatmul.mubr.f32.gmra.mxu0 %v6245
    %v7160 = vpop.f32.mrf.mxu0
    %v7161 = vadd.f32 %v7048, %v7160
    %v7162 = vpop.f32.mrf.mxu0
    %v7163 = vadd.f32 %v7050, %v7162
    %7164 = vmatprep.mubr.f32.mxu0 0.0
    %7165 = vmatmul.mubr.f32.gmra.mxu0 %v6248
    %v7166 = vpop.f32.mrf.mxu0
    %v7167 = vadd.f32 %v7054, %v7166
    %v7168 = vpop.f32.mrf.mxu0
    %v7169 = vadd.f32 %v7056, %v7168
    %7170 = vdwg.mxu0
    %7171 = vmatprep.subr.mxu0 %v5852
    %7172 = vmatpush1.xpose.msra.mxu0 %v5851
    %7173 = vmatprep.subr.mxu0 %v5841
    %7174 = vmatpush1.xpose.msra.mxu0 %v5840
    %7175 = vmatprep.subr.mxu0 %v5830
    %7176 = vmatpush1.xpose.msra.mxu0 %v5829
    %7177 = vmatprep.subr.mxu0 %v5819
    %7178 = vmatpush1.xpose.msra.mxu0 %v5818
    %7179 = vmatprep.subr.mxu0 %v5808
    %7180 = vmatpush1.xpose.msra.mxu0 %v5807
    %7181 = vmatprep.subr.mxu0 %v5797
    %7182 = vmatpush1.xpose.msra.mxu0 %v5796
    %7183 = vmatprep.subr.mxu0 %v5786
    %7184 = vmatpush1.xpose.msra.mxu0 %v5785
    %7185 = vmatprep.subr.mxu0 %v5775
    %7186 = vmatpush1.xpose.msra.mxu0 %v5774
    %7187 = vmatprep.subr.mxu0 %v5764
    %7188 = vmatpush1.xpose.msra.mxu0 %v5763
    %7189 = vmatprep.subr.mxu0 %v5753
    %7190 = vmatpush1.xpose.msra.mxu0 %v5752
    %7191 = vmatprep.subr.mxu0 %v5742
    %7192 = vmatpush1.xpose.msra.mxu0 %v5741
    %7193 = vmatprep.subr.mxu0 %v5731
    %7194 = vmatpush1.xpose.msra.mxu0 %v5730
    %7195 = vmatprep.subr.mxu0 %v5720
    %7196 = vmatpush1.xpose.msra.mxu0 %v5719
    %7197 = vmatprep.subr.mxu0 %v5709
    %7198 = vmatpush1.xpose.msra.mxu0 %v5708
    %7199 = vmatprep.subr.mxu0 %v5698
    %7200 = vmatpush1.xpose.msra.mxu0 %v5697
    %7201 = vmatprep.subr.mxu0 %v5687
    %7202 = vmatpush1.xpose.msra.mxu0 %v5686
    %7203 = vmatprep.subr.mxu0 %v6028
    %7204 = vmatpush2.xpose.msra.mxu0 %v6027
    %7205 = vmatprep.subr.mxu0 %v6017
    %7206 = vmatpush2.xpose.msra.mxu0 %v6016
    %7207 = vmatprep.subr.mxu0 %v6006
    %7208 = vmatpush2.xpose.msra.mxu0 %v6005
    %7209 = vmatprep.subr.mxu0 %v5995
    %7210 = vmatpush2.xpose.msra.mxu0 %v5994
    %7211 = vmatprep.subr.mxu0 %v5984
    %7212 = vmatpush2.xpose.msra.mxu0 %v5983
    %7213 = vmatprep.subr.mxu0 %v5973
    %7214 = vmatpush2.xpose.msra.mxu0 %v5972
    %7215 = vmatprep.subr.mxu0 %v5962
    %7216 = vmatpush2.xpose.msra.mxu0 %v5961
    %7217 = vmatprep.subr.mxu0 %v5951
    %7218 = vmatpush2.xpose.msra.mxu0 %v5950
    %7219 = vmatprep.subr.mxu0 %v5940
    %7220 = vmatpush2.xpose.msra.mxu0 %v5939
    %7221 = vmatprep.subr.mxu0 %v5929
    %7222 = vmatpush2.xpose.msra.mxu0 %v5928
    %7223 = vmatprep.subr.mxu0 %v5918
    %7224 = vmatpush2.xpose.msra.mxu0 %v5917
    %7225 = vmatprep.subr.mxu0 %v5907
    %7226 = vmatpush2.xpose.msra.mxu0 %v5906
    %7227 = vmatprep.subr.mxu0 %v5896
    %7228 = vmatpush2.xpose.msra.mxu0 %v5895
    %7229 = vmatprep.subr.mxu0 %v5885
    %7230 = vmatpush2.xpose.msra.mxu0 %v5884
    %7231 = vmatprep.subr.mxu0 %v5874
    %7232 = vmatpush2.xpose.msra.mxu0 %v5873
    %7233 = vmatprep.subr.mxu0 %v5863
    %7234 = vmatpush2.xpose.msra.mxu0 %v5862
    %7235 = vmatprep.mubr.f32.mxu0 %v5247
    %7236 = vmatmul.mubr.f32.gmra.mxu0 %v5246
    %v7237 = vpop.f32.mrf.mxu0
    %v7238 = vadd.f32 0.0, %v7237
    %v7239 = vpop.f32.mrf.mxu0
    %v7240 = vadd.f32 0.0, %v7239
    %7241 = vmatprep.mubr.f32.mxu0 %v5258
    %7242 = vmatmul.mubr.f32.gmra.mxu0 %v5257
    %v7243 = vpop.f32.mrf.mxu0
    %v7244 = vadd.f32 0.0, %v7243
    %v7245 = vpop.f32.mrf.mxu0
    %v7246 = vadd.f32 0.0, %v7245
    %7247 = vmatprep.mubr.f32.mxu0 %v5269
    %7248 = vmatmul.mubr.f32.gmra.mxu0 %v5268
    %v7249 = vpop.f32.mrf.mxu0
    %v7250 = vadd.f32 0.0, %v7249
    %v7251 = vpop.f32.mrf.mxu0
    %v7252 = vadd.f32 0.0, %v7251
    %7253 = vmatprep.mubr.f32.mxu0 %v5280
    %7254 = vmatmul.mubr.f32.gmra.mxu0 %v5279
    %v7255 = vpop.f32.mrf.mxu0
    %v7256 = vadd.f32 0.0, %v7255
    %v7257 = vpop.f32.mrf.mxu0
    %v7258 = vadd.f32 0.0, %v7257
    %7259 = vmatprep.mubr.f32.mxu0 %v5291
    %7260 = vmatmul.mubr.f32.gmra.mxu0 %v5290
    %v7261 = vpop.f32.mrf.mxu0
    %v7262 = vadd.f32 0.0, %v7261
    %v7263 = vpop.f32.mrf.mxu0
    %v7264 = vadd.f32 0.0, %v7263
    %7265 = vmatprep.mubr.f32.mxu0 %v5302
    %7266 = vmatmul.mubr.f32.gmra.mxu0 %v5301
    %v7267 = vpop.f32.mrf.mxu0
    %v7268 = vadd.f32 0.0, %v7267
    %v7269 = vpop.f32.mrf.mxu0
    %v7270 = vadd.f32 0.0, %v7269
    %7271 = vmatprep.mubr.f32.mxu0 %v5313
    %7272 = vmatmul.mubr.f32.gmra.mxu0 %v5312
    %v7273 = vpop.f32.mrf.mxu0
    %v7274 = vadd.f32 0.0, %v7273
    %v7275 = vpop.f32.mrf.mxu0
    %v7276 = vadd.f32 0.0, %v7275
    %7277 = vmatprep.mubr.f32.mxu0 %v5324
    %7278 = vmatmul.mubr.f32.gmra.mxu0 %v5323
    %v7279 = vpop.f32.mrf.mxu0
    %v7280 = vadd.f32 0.0, %v7279
    %v7281 = vpop.f32.mrf.mxu0
    %v7282 = vadd.f32 0.0, %v7281
    %7283 = vdwg.mxu0
    %7284 = vmatprep.subr.mxu0 %v5854
    %7285 = vmatpush1.xpose.msra.mxu0 %v5853
    %7286 = vmatprep.subr.mxu0 %v5843
    %7287 = vmatpush1.xpose.msra.mxu0 %v5842
    %7288 = vmatprep.subr.mxu0 %v5832
    %7289 = vmatpush1.xpose.msra.mxu0 %v5831
    %7290 = vmatprep.subr.mxu0 %v5821
    %7291 = vmatpush1.xpose.msra.mxu0 %v5820
    %7292 = vmatprep.subr.mxu0 %v5810
    %7293 = vmatpush1.xpose.msra.mxu0 %v5809
    %7294 = vmatprep.subr.mxu0 %v5799
    %7295 = vmatpush1.xpose.msra.mxu0 %v5798
    %7296 = vmatprep.subr.mxu0 %v5788
    %7297 = vmatpush1.xpose.msra.mxu0 %v5787
    %7298 = vmatprep.subr.mxu0 %v5777
    %7299 = vmatpush1.xpose.msra.mxu0 %v5776
    %7300 = vmatprep.subr.mxu0 %v5766
    %7301 = vmatpush1.xpose.msra.mxu0 %v5765
    %7302 = vmatprep.subr.mxu0 %v5755
    %7303 = vmatpush1.xpose.msra.mxu0 %v5754
    %7304 = vmatprep.subr.mxu0 %v5744
    %7305 = vmatpush1.xpose.msra.mxu0 %v5743
    %7306 = vmatprep.subr.mxu0 %v5733
    %7307 = vmatpush1.xpose.msra.mxu0 %v5732
    %7308 = vmatprep.subr.mxu0 %v5722
    %7309 = vmatpush1.xpose.msra.mxu0 %v5721
    %7310 = vmatprep.subr.mxu0 %v5711
    %7311 = vmatpush1.xpose.msra.mxu0 %v5710
    %7312 = vmatprep.subr.mxu0 %v5700
    %7313 = vmatpush1.xpose.msra.mxu0 %v5699
    %7314 = vmatprep.subr.mxu0 %v5689
    %7315 = vmatpush1.xpose.msra.mxu0 %v5688
    %7316 = vmatprep.subr.mxu0 %v6030
    %7317 = vmatpush2.xpose.msra.mxu0 %v6029
    %7318 = vmatprep.subr.mxu0 %v6019
    %7319 = vmatpush2.xpose.msra.mxu0 %v6018
    %7320 = vmatprep.subr.mxu0 %v6008
    %7321 = vmatpush2.xpose.msra.mxu0 %v6007
    %7322 = vmatprep.subr.mxu0 %v5997
    %7323 = vmatpush2.xpose.msra.mxu0 %v5996
    %7324 = vmatprep.subr.mxu0 %v5986
    %7325 = vmatpush2.xpose.msra.mxu0 %v5985
    %7326 = vmatprep.subr.mxu0 %v5975
    %7327 = vmatpush2.xpose.msra.mxu0 %v5974
    %7328 = vmatprep.subr.mxu0 %v5964
    %7329 = vmatpush2.xpose.msra.mxu0 %v5963
    %7330 = vmatprep.subr.mxu0 %v5953
    %7331 = vmatpush2.xpose.msra.mxu0 %v5952
    %7332 = vmatprep.subr.mxu0 %v5942
    %7333 = vmatpush2.xpose.msra.mxu0 %v5941
    %7334 = vmatprep.subr.mxu0 %v5931
    %7335 = vmatpush2.xpose.msra.mxu0 %v5930
    %7336 = vmatprep.subr.mxu0 %v5920
    %7337 = vmatpush2.xpose.msra.mxu0 %v5919
    %7338 = vmatprep.subr.mxu0 %v5909
    %7339 = vmatpush2.xpose.msra.mxu0 %v5908
    %7340 = vmatprep.subr.mxu0 %v5898
    %7341 = vmatpush2.xpose.msra.mxu0 %v5897
    %7342 = vmatprep.subr.mxu0 %v5887
    %7343 = vmatpush2.xpose.msra.mxu0 %v5886
    %7344 = vmatprep.subr.mxu0 %v5876
    %7345 = vmatpush2.xpose.msra.mxu0 %v5875
    %7346 = vmatprep.subr.mxu0 %v5865
    %7347 = vmatpush2.xpose.msra.mxu0 %v5864
    %7348 = vmatprep.mubr.f32.mxu0 %v5249
    %7349 = vmatmul.mubr.f32.gmra.mxu0 %v5248
    %v7350 = vpop.f32.mrf.mxu0
    %v7351 = vadd.f32 %v7238, %v7350
    %v7352 = vpop.f32.mrf.mxu0
    %v7353 = vadd.f32 %v7240, %v7352
    %7354 = vmatprep.mubr.f32.mxu0 %v5260
    %7355 = vmatmul.mubr.f32.gmra.mxu0 %v5259
    %v7356 = vpop.f32.mrf.mxu0
    %v7357 = vadd.f32 %v7244, %v7356
    %v7358 = vpop.f32.mrf.mxu0
    %v7359 = vadd.f32 %v7246, %v7358
    %7360 = vmatprep.mubr.f32.mxu0 %v5271
    %7361 = vmatmul.mubr.f32.gmra.mxu0 %v5270
    %v7362 = vpop.f32.mrf.mxu0
    %v7363 = vadd.f32 %v7250, %v7362
    %v7364 = vpop.f32.mrf.mxu0
    %v7365 = vadd.f32 %v7252, %v7364
    %7366 = vmatprep.mubr.f32.mxu0 %v5282
    %7367 = vmatmul.mubr.f32.gmra.mxu0 %v5281
    %v7368 = vpop.f32.mrf.mxu0
    %v7369 = vadd.f32 %v7256, %v7368
    %v7370 = vpop.f32.mrf.mxu0
    %v7371 = vadd.f32 %v7258, %v7370
    %7372 = vmatprep.mubr.f32.mxu0 %v5293
    %7373 = vmatmul.mubr.f32.gmra.mxu0 %v5292
    %v7374 = vpop.f32.mrf.mxu0
    %v7375 = vadd.f32 %v7262, %v7374
    %v7376 = vpop.f32.mrf.mxu0
    %v7377 = vadd.f32 %v7264, %v7376
    %7378 = vmatprep.mubr.f32.mxu0 %v5304
    %7379 = vmatmul.mubr.f32.gmra.mxu0 %v5303
    %v7380 = vpop.f32.mrf.mxu0
    %v7381 = vadd.f32 %v7268, %v7380
    %v7382 = vpop.f32.mrf.mxu0
    %v7383 = vadd.f32 %v7270, %v7382
    %7384 = vmatprep.mubr.f32.mxu0 %v5315
    %7385 = vmatmul.mubr.f32.gmra.mxu0 %v5314
    %v7386 = vpop.f32.mrf.mxu0
    %v7387 = vadd.f32 %v7274, %v7386
    %v7388 = vpop.f32.mrf.mxu0
    %v7389 = vadd.f32 %v7276, %v7388
    %7390 = vmatprep.mubr.f32.mxu0 %v5326
    %7391 = vmatmul.mubr.f32.gmra.mxu0 %v5325
    %v7392 = vpop.f32.mrf.mxu0
    %v7393 = vadd.f32 %v7280, %v7392
    %v7394 = vpop.f32.mrf.mxu0
    %v7395 = vadd.f32 %v7282, %v7394
    %7396 = vdwg.mxu0
    %7397 = vmatprep.subr.mxu0 %v5856
    %7398 = vmatpush1.xpose.msra.mxu0 %v5855
    %7399 = vmatprep.subr.mxu0 %v5845
    %7400 = vmatpush1.xpose.msra.mxu0 %v5844
    %7401 = vmatprep.subr.mxu0 %v5834
    %7402 = vmatpush1.xpose.msra.mxu0 %v5833
    %7403 = vmatprep.subr.mxu0 %v5823
    %7404 = vmatpush1.xpose.msra.mxu0 %v5822
    %7405 = vmatprep.subr.mxu0 %v5812
    %7406 = vmatpush1.xpose.msra.mxu0 %v5811
    %7407 = vmatprep.subr.mxu0 %v5801
    %7408 = vmatpush1.xpose.msra.mxu0 %v5800
    %7409 = vmatprep.subr.mxu0 %v5790
    %7410 = vmatpush1.xpose.msra.mxu0 %v5789
    %7411 = vmatprep.subr.mxu0 %v5779
    %7412 = vmatpush1.xpose.msra.mxu0 %v5778
    %7413 = vmatprep.subr.mxu0 %v5768
    %7414 = vmatpush1.xpose.msra.mxu0 %v5767
    %7415 = vmatprep.subr.mxu0 %v5757
    %7416 = vmatpush1.xpose.msra.mxu0 %v5756
    %7417 = vmatprep.subr.mxu0 %v5746
    %7418 = vmatpush1.xpose.msra.mxu0 %v5745
    %7419 = vmatprep.subr.mxu0 %v5735
    %7420 = vmatpush1.xpose.msra.mxu0 %v5734
    %7421 = vmatprep.subr.mxu0 %v5724
    %7422 = vmatpush1.xpose.msra.mxu0 %v5723
    %7423 = vmatprep.subr.mxu0 %v5713
    %7424 = vmatpush1.xpose.msra.mxu0 %v5712
    %7425 = vmatprep.subr.mxu0 %v5702
    %7426 = vmatpush1.xpose.msra.mxu0 %v5701
    %7427 = vmatprep.subr.mxu0 %v5691
    %7428 = vmatpush1.xpose.msra.mxu0 %v5690
    %7429 = vmatprep.subr.mxu0 %v6032
    %7430 = vmatpush2.xpose.msra.mxu0 %v6031
    %7431 = vmatprep.subr.mxu0 %v6021
    %7432 = vmatpush2.xpose.msra.mxu0 %v6020
    %7433 = vmatprep.subr.mxu0 %v6010
    %7434 = vmatpush2.xpose.msra.mxu0 %v6009
    %7435 = vmatprep.subr.mxu0 %v5999
    %7436 = vmatpush2.xpose.msra.mxu0 %v5998
    %7437 = vmatprep.subr.mxu0 %v5988
    %7438 = vmatpush2.xpose.msra.mxu0 %v5987
    %7439 = vmatprep.subr.mxu0 %v5977
    %7440 = vmatpush2.xpose.msra.mxu0 %v5976
    %7441 = vmatprep.subr.mxu0 %v5966
    %7442 = vmatpush2.xpose.msra.mxu0 %v5965
    %7443 = vmatprep.subr.mxu0 %v5955
    %7444 = vmatpush2.xpose.msra.mxu0 %v5954
    %7445 = vmatprep.subr.mxu0 %v5944
    %7446 = vmatpush2.xpose.msra.mxu0 %v5943
    %7447 = vmatprep.subr.mxu0 %v5933
    %7448 = vmatpush2.xpose.msra.mxu0 %v5932
    %7449 = vmatprep.subr.mxu0 %v5922
    %7450 = vmatpush2.xpose.msra.mxu0 %v5921
    %7451 = vmatprep.subr.mxu0 %v5911
    %7452 = vmatpush2.xpose.msra.mxu0 %v5910
    %7453 = vmatprep.subr.mxu0 %v5900
    %7454 = vmatpush2.xpose.msra.mxu0 %v5899
    %7455 = vmatprep.subr.mxu0 %v5889
    %7456 = vmatpush2.xpose.msra.mxu0 %v5888
    %7457 = vmatprep.subr.mxu0 %v5878
    %7458 = vmatpush2.xpose.msra.mxu0 %v5877
    %7459 = vmatprep.subr.mxu0 %v5867
    %7460 = vmatpush2.xpose.msra.mxu0 %v5866
    %7461 = vmatprep.mubr.f32.mxu0 %v5251
    %7462 = vmatmul.mubr.f32.gmra.mxu0 %v5250
    %v7463 = vpop.f32.mrf.mxu0
    %v7464 = vadd.f32 %v7351, %v7463
    %v7465 = vpop.f32.mrf.mxu0
    %v7466 = vadd.f32 %v7353, %v7465
    %7467 = vmatprep.mubr.f32.mxu0 %v5262
    %7468 = vmatmul.mubr.f32.gmra.mxu0 %v5261
    %v7469 = vpop.f32.mrf.mxu0
    %v7470 = vadd.f32 %v7357, %v7469
    %v7471 = vpop.f32.mrf.mxu0
    %v7472 = vadd.f32 %v7359, %v7471
    %7473 = vmatprep.mubr.f32.mxu0 %v5273
    %7474 = vmatmul.mubr.f32.gmra.mxu0 %v5272
    %v7475 = vpop.f32.mrf.mxu0
    %v7476 = vadd.f32 %v7363, %v7475
    %v7477 = vpop.f32.mrf.mxu0
    %v7478 = vadd.f32 %v7365, %v7477
    %7479 = vmatprep.mubr.f32.mxu0 %v5284
    %7480 = vmatmul.mubr.f32.gmra.mxu0 %v5283
    %v7481 = vpop.f32.mrf.mxu0
    %v7482 = vadd.f32 %v7369, %v7481
    %v7483 = vpop.f32.mrf.mxu0
    %v7484 = vadd.f32 %v7371, %v7483
    %7485 = vmatprep.mubr.f32.mxu0 %v5295
    %7486 = vmatmul.mubr.f32.gmra.mxu0 %v5294
    %v7487 = vpop.f32.mrf.mxu0
    %v7488 = vadd.f32 %v7375, %v7487
    %v7489 = vpop.f32.mrf.mxu0
    %v7490 = vadd.f32 %v7377, %v7489
    %7491 = vmatprep.mubr.f32.mxu0 %v5306
    %7492 = vmatmul.mubr.f32.gmra.mxu0 %v5305
    %v7493 = vpop.f32.mrf.mxu0
    %v7494 = vadd.f32 %v7381, %v7493
    %v7495 = vpop.f32.mrf.mxu0
    %v7496 = vadd.f32 %v7383, %v7495
    %7497 = vmatprep.mubr.f32.mxu0 %v5317
    %7498 = vmatmul.mubr.f32.gmra.mxu0 %v5316
    %v7499 = vpop.f32.mrf.mxu0
    %v7500 = vadd.f32 %v7387, %v7499
    %v7501 = vpop.f32.mrf.mxu0
    %v7502 = vadd.f32 %v7389, %v7501
    %7503 = vmatprep.mubr.f32.mxu0 %v5328
    %7504 = vmatmul.mubr.f32.gmra.mxu0 %v5327
    %v7505 = vpop.f32.mrf.mxu0
    %v7506 = vadd.f32 %v7393, %v7505
    %v7507 = vpop.f32.mrf.mxu0
    %v7508 = vadd.f32 %v7395, %v7507
    %7509 = vdwg.mxu0
    %7510 = vmatprep.subr.mxu0 %v5858
    %7511 = vmatpush1.xpose.msra.mxu0 %v5857
    %7512 = vmatprep.subr.mxu0 %v5847
    %7513 = vmatpush1.xpose.msra.mxu0 %v5846
    %7514 = vmatprep.subr.mxu0 %v5836
    %7515 = vmatpush1.xpose.msra.mxu0 %v5835
    %7516 = vmatprep.subr.mxu0 %v5825
    %7517 = vmatpush1.xpose.msra.mxu0 %v5824
    %7518 = vmatprep.subr.mxu0 %v5814
    %7519 = vmatpush1.xpose.msra.mxu0 %v5813
    %7520 = vmatprep.subr.mxu0 %v5803
    %7521 = vmatpush1.xpose.msra.mxu0 %v5802
    %7522 = vmatprep.subr.mxu0 %v5792
    %7523 = vmatpush1.xpose.msra.mxu0 %v5791
    %7524 = vmatprep.subr.mxu0 %v5781
    %7525 = vmatpush1.xpose.msra.mxu0 %v5780
    %7526 = vmatprep.subr.mxu0 %v5770
    %7527 = vmatpush1.xpose.msra.mxu0 %v5769
    %7528 = vmatprep.subr.mxu0 %v5759
    %7529 = vmatpush1.xpose.msra.mxu0 %v5758
    %7530 = vmatprep.subr.mxu0 %v5748
    %7531 = vmatpush1.xpose.msra.mxu0 %v5747
    %7532 = vmatprep.subr.mxu0 %v5737
    %7533 = vmatpush1.xpose.msra.mxu0 %v5736
    %7534 = vmatprep.subr.mxu0 %v5726
    %7535 = vmatpush1.xpose.msra.mxu0 %v5725
    %7536 = vmatprep.subr.mxu0 %v5715
    %7537 = vmatpush1.xpose.msra.mxu0 %v5714
    %7538 = vmatprep.subr.mxu0 %v5704
    %7539 = vmatpush1.xpose.msra.mxu0 %v5703
    %7540 = vmatprep.subr.mxu0 %v5693
    %7541 = vmatpush1.xpose.msra.mxu0 %v5692
    %7542 = vmatprep.subr.mxu0 %v6034
    %7543 = vmatpush2.xpose.msra.mxu0 %v6033
    %7544 = vmatprep.subr.mxu0 %v6023
    %7545 = vmatpush2.xpose.msra.mxu0 %v6022
    %7546 = vmatprep.subr.mxu0 %v6012
    %7547 = vmatpush2.xpose.msra.mxu0 %v6011
    %7548 = vmatprep.subr.mxu0 %v6001
    %7549 = vmatpush2.xpose.msra.mxu0 %v6000
    %7550 = vmatprep.subr.mxu0 %v5990
    %7551 = vmatpush2.xpose.msra.mxu0 %v5989
    %7552 = vmatprep.subr.mxu0 %v5979
    %7553 = vmatpush2.xpose.msra.mxu0 %v5978
    %7554 = vmatprep.subr.mxu0 %v5968
    %7555 = vmatpush2.xpose.msra.mxu0 %v5967
    %7556 = vmatprep.subr.mxu0 %v5957
    %7557 = vmatpush2.xpose.msra.mxu0 %v5956
    %7558 = vmatprep.subr.mxu0 %v5946
    %7559 = vmatpush2.xpose.msra.mxu0 %v5945
    %7560 = vmatprep.subr.mxu0 %v5935
    %7561 = vmatpush2.xpose.msra.mxu0 %v5934
    %7562 = vmatprep.subr.mxu0 %v5924
    %7563 = vmatpush2.xpose.msra.mxu0 %v5923
    %7564 = vmatprep.subr.mxu0 %v5913
    %7565 = vmatpush2.xpose.msra.mxu0 %v5912
    %7566 = vmatprep.subr.mxu0 %v5902
    %7567 = vmatpush2.xpose.msra.mxu0 %v5901
    %7568 = vmatprep.subr.mxu0 %v5891
    %7569 = vmatpush2.xpose.msra.mxu0 %v5890
    %7570 = vmatprep.subr.mxu0 %v5880
    %7571 = vmatpush2.xpose.msra.mxu0 %v5879
    %7572 = vmatprep.subr.mxu0 %v5869
    %7573 = vmatpush2.xpose.msra.mxu0 %v5868
    %7574 = vmatprep.mubr.f32.mxu0 %v5253
    %7575 = vmatmul.mubr.f32.gmra.mxu0 %v5252
    %v7576 = vpop.f32.mrf.mxu0
    %v7577 = vadd.f32 %v7464, %v7576
    %v7578 = vpop.f32.mrf.mxu0
    %v7579 = vadd.f32 %v7466, %v7578
    %7580 = vmatprep.mubr.f32.mxu0 %v5264
    %7581 = vmatmul.mubr.f32.gmra.mxu0 %v5263
    %v7582 = vpop.f32.mrf.mxu0
    %v7583 = vadd.f32 %v7470, %v7582
    %v7584 = vpop.f32.mrf.mxu0
    %v7585 = vadd.f32 %v7472, %v7584
    %7586 = vmatprep.mubr.f32.mxu0 %v5275
    %7587 = vmatmul.mubr.f32.gmra.mxu0 %v5274
    %v7588 = vpop.f32.mrf.mxu0
    %v7589 = vadd.f32 %v7476, %v7588
    %v7590 = vpop.f32.mrf.mxu0
    %v7591 = vadd.f32 %v7478, %v7590
    %7592 = vmatprep.mubr.f32.mxu0 %v5286
    %7593 = vmatmul.mubr.f32.gmra.mxu0 %v5285
    %v7594 = vpop.f32.mrf.mxu0
    %v7595 = vadd.f32 %v7482, %v7594
    %v7596 = vpop.f32.mrf.mxu0
    %v7597 = vadd.f32 %v7484, %v7596
    %7598 = vmatprep.mubr.f32.mxu0 %v5297
    %7599 = vmatmul.mubr.f32.gmra.mxu0 %v5296
    %v7600 = vpop.f32.mrf.mxu0
    %v7601 = vadd.f32 %v7488, %v7600
    %v7602 = vpop.f32.mrf.mxu0
    %v7603 = vadd.f32 %v7490, %v7602
    %7604 = vmatprep.mubr.f32.mxu0 %v5308
    %7605 = vmatmul.mubr.f32.gmra.mxu0 %v5307
    %v7606 = vpop.f32.mrf.mxu0
    %v7607 = vadd.f32 %v7494, %v7606
    %v7608 = vpop.f32.mrf.mxu0
    %v7609 = vadd.f32 %v7496, %v7608
    %7610 = vmatprep.mubr.f32.mxu0 %v5319
    %7611 = vmatmul.mubr.f32.gmra.mxu0 %v5318
    %v7612 = vpop.f32.mrf.mxu0
    %v7613 = vadd.f32 %v7500, %v7612
    %v7614 = vpop.f32.mrf.mxu0
    %v7615 = vadd.f32 %v7502, %v7614
    %7616 = vmatprep.mubr.f32.mxu0 %v5330
    %7617 = vmatmul.mubr.f32.gmra.mxu0 %v5329
    %v7618 = vpop.f32.mrf.mxu0
    %v7619 = vadd.f32 %v7506, %v7618
    %v7620 = vpop.f32.mrf.mxu0
    %v7621 = vadd.f32 %v7508, %v7620
    %7622 = vdwg.mxu0
    %7623 = vmatprep.subr.mxu0 %v5860
    %7624 = vmatpush1.xpose.msra.mxu0 %v5859
    %7625 = vmatprep.subr.mxu0 %v5849
    %7626 = vmatpush1.xpose.msra.mxu0 %v5848
    %7627 = vmatprep.subr.mxu0 %v5838
    %7628 = vmatpush1.xpose.msra.mxu0 %v5837
    %7629 = vmatprep.subr.mxu0 %v5827
    %7630 = vmatpush1.xpose.msra.mxu0 %v5826
    %7631 = vmatprep.subr.mxu0 %v5816
    %7632 = vmatpush1.xpose.msra.mxu0 %v5815
    %7633 = vmatprep.subr.mxu0 %v5805
    %7634 = vmatpush1.xpose.msra.mxu0 %v5804
    %7635 = vmatprep.subr.mxu0 %v5794
    %7636 = vmatpush1.xpose.msra.mxu0 %v5793
    %7637 = vmatprep.subr.mxu0 %v5783
    %7638 = vmatpush1.xpose.msra.mxu0 %v5782
    %7639 = vmatprep.subr.mxu0 %v5772
    %7640 = vmatpush1.xpose.msra.mxu0 %v5771
    %7641 = vmatprep.subr.mxu0 %v5761
    %7642 = vmatpush1.xpose.msra.mxu0 %v5760
    %7643 = vmatprep.subr.mxu0 %v5750
    %7644 = vmatpush1.xpose.msra.mxu0 %v5749
    %7645 = vmatprep.subr.mxu0 %v5739
    %7646 = vmatpush1.xpose.msra.mxu0 %v5738
    %7647 = vmatprep.subr.mxu0 %v5728
    %7648 = vmatpush1.xpose.msra.mxu0 %v5727
    %7649 = vmatprep.subr.mxu0 %v5717
    %7650 = vmatpush1.xpose.msra.mxu0 %v5716
    %7651 = vmatprep.subr.mxu0 %v5706
    %7652 = vmatpush1.xpose.msra.mxu0 %v5705
    %7653 = vmatprep.subr.mxu0 %v5695
    %7654 = vmatpush1.xpose.msra.mxu0 %v5694
    %7655 = vmatprep.subr.mxu0 %v6036
    %7656 = vmatpush2.xpose.msra.mxu0 %v6035
    %7657 = vmatprep.subr.mxu0 %v6025
    %7658 = vmatpush2.xpose.msra.mxu0 %v6024
    %7659 = vmatprep.subr.mxu0 %v6014
    %7660 = vmatpush2.xpose.msra.mxu0 %v6013
    %7661 = vmatprep.subr.mxu0 %v6003
    %7662 = vmatpush2.xpose.msra.mxu0 %v6002
    %7663 = vmatprep.subr.mxu0 %v5992
    %7664 = vmatpush2.xpose.msra.mxu0 %v5991
    %7665 = vmatprep.subr.mxu0 %v5981
    %7666 = vmatpush2.xpose.msra.mxu0 %v5980
    %7667 = vmatprep.subr.mxu0 %v5970
    %7668 = vmatpush2.xpose.msra.mxu0 %v5969
    %7669 = vmatprep.subr.mxu0 %v5959
    %7670 = vmatpush2.xpose.msra.mxu0 %v5958
    %7671 = vmatprep.subr.mxu0 %v5948
    %7672 = vmatpush2.xpose.msra.mxu0 %v5947
    %7673 = vmatprep.subr.mxu0 %v5937
    %7674 = vmatpush2.xpose.msra.mxu0 %v5936
    %7675 = vmatprep.subr.mxu0 %v5926
    %7676 = vmatpush2.xpose.msra.mxu0 %v5925
    %7677 = vmatprep.subr.mxu0 %v5915
    %7678 = vmatpush2.xpose.msra.mxu0 %v5914
    %7679 = vmatprep.subr.mxu0 %v5904
    %7680 = vmatpush2.xpose.msra.mxu0 %v5903
    %7681 = vmatprep.subr.mxu0 %v5893
    %7682 = vmatpush2.xpose.msra.mxu0 %v5892
    %7683 = vmatprep.subr.mxu0 %v5882
    %7684 = vmatpush2.xpose.msra.mxu0 %v5881
    %7685 = vmatprep.subr.mxu0 %v5871
    %7686 = vmatpush2.xpose.msra.mxu0 %v5870
    %7687 = vmatprep.mubr.f32.mxu0 %v5255
    %7688 = vmatmul.mubr.f32.gmra.mxu0 %v5254
    %v7689 = vpop.f32.mrf.mxu0
    %v7690 = vadd.f32 %v7577, %v7689
    %v7691 = vpop.f32.mrf.mxu0
    %v7692 = vadd.f32 %v7579, %v7691
    %7693 = vmatprep.mubr.f32.mxu0 %v5266
    %7694 = vmatmul.mubr.f32.gmra.mxu0 %v5265
    %v7695 = vpop.f32.mrf.mxu0
    %v7696 = vadd.f32 %v7583, %v7695
    %v7697 = vpop.f32.mrf.mxu0
    %v7698 = vadd.f32 %v7585, %v7697
    %7699 = vmatprep.mubr.f32.mxu0 %v5277
    %7700 = vmatmul.mubr.f32.gmra.mxu0 %v5276
    %v7701 = vpop.f32.mrf.mxu0
    %v7702 = vadd.f32 %v7589, %v7701
    %v7703 = vpop.f32.mrf.mxu0
    %v7704 = vadd.f32 %v7591, %v7703
    %7705 = vmatprep.mubr.f32.mxu0 %v5288
    %7706 = vmatmul.mubr.f32.gmra.mxu0 %v5287
    %v7707 = vpop.f32.mrf.mxu0
    %v7708 = vadd.f32 %v7595, %v7707
    %v7709 = vpop.f32.mrf.mxu0
    %v7710 = vadd.f32 %v7597, %v7709
    %7711 = vmatprep.mubr.f32.mxu0 %v5299
    %7712 = vmatmul.mubr.f32.gmra.mxu0 %v5298
    %v7713 = vpop.f32.mrf.mxu0
    %v7714 = vadd.f32 %v7601, %v7713
    %v7715 = vpop.f32.mrf.mxu0
    %v7716 = vadd.f32 %v7603, %v7715
    %7717 = vmatprep.mubr.f32.mxu0 %v5310
    %7718 = vmatmul.mubr.f32.gmra.mxu0 %v5309
    %v7719 = vpop.f32.mrf.mxu0
    %v7720 = vadd.f32 %v7607, %v7719
    %v7721 = vpop.f32.mrf.mxu0
    %v7722 = vadd.f32 %v7609, %v7721
    %7723 = vmatprep.mubr.f32.mxu0 %v5321
    %7724 = vmatmul.mubr.f32.gmra.mxu0 %v5320
    %v7725 = vpop.f32.mrf.mxu0
    %v7726 = vadd.f32 %v7613, %v7725
    %v7727 = vpop.f32.mrf.mxu0
    %v7728 = vadd.f32 %v7615, %v7727
    %7729 = vmatprep.mubr.f32.mxu0 %v5332
    %7730 = vmatmul.mubr.f32.gmra.mxu0 %v5331
    %v7731 = vpop.f32.mrf.mxu0
    %v7732 = vadd.f32 %v7619, %v7731
    %v7733 = vpop.f32.mrf.mxu0
    %v7734 = vadd.f32 %v7621, %v7733
    %7735 = vdwg.mxu0
    %7736 = vmatprep.subr.mxu0 0.0
    %7737 = vmatpush1.xpose.msra.mxu0 %v6392
    %7738 = vmatprep.subr.mxu0 0.0
    %7739 = vmatpush1.xpose.msra.mxu0 %v6389
    %7740 = vmatprep.subr.mxu0 0.0
    %7741 = vmatpush1.xpose.msra.mxu0 %v6386
    %7742 = vmatprep.subr.mxu0 0.0
    %7743 = vmatpush1.xpose.msra.mxu0 %v6383
    %7744 = vmatprep.subr.mxu0 0.0
    %7745 = vmatpush1.xpose.msra.mxu0 %v6380
    %7746 = vmatprep.subr.mxu0 0.0
    %7747 = vmatpush1.xpose.msra.mxu0 %v6377
    %7748 = vmatprep.subr.mxu0 0.0
    %7749 = vmatpush1.xpose.msra.mxu0 %v6374
    %7750 = vmatprep.subr.mxu0 0.0
    %7751 = vmatpush1.xpose.msra.mxu0 %v6371
    %7752 = vmatprep.subr.mxu0 0.0
    %7753 = vmatpush1.xpose.msra.mxu0 %v6368
    %7754 = vmatprep.subr.mxu0 0.0
    %7755 = vmatpush1.xpose.msra.mxu0 %v6365
    %7756 = vmatprep.subr.mxu0 0.0
    %7757 = vmatpush1.xpose.msra.mxu0 %v6362
    %7758 = vmatprep.subr.mxu0 0.0
    %7759 = vmatpush1.xpose.msra.mxu0 %v6359
    %7760 = vmatprep.subr.mxu0 0.0
    %7761 = vmatpush1.xpose.msra.mxu0 %v6356
    %7762 = vmatprep.subr.mxu0 0.0
    %7763 = vmatpush1.xpose.msra.mxu0 %v6353
    %7764 = vmatprep.subr.mxu0 0.0
    %7765 = vmatpush1.xpose.msra.mxu0 %v6350
    %7766 = vmatprep.subr.mxu0 0.0
    %7767 = vmatpush1.xpose.msra.mxu0 %v6347
    %7768 = vmatprep.subr.mxu0 0.0
    %7769 = vmatpush2.xpose.msra.mxu0 %v6440
    %7770 = vmatprep.subr.mxu0 0.0
    %7771 = vmatpush2.xpose.msra.mxu0 %v6437
    %7772 = vmatprep.subr.mxu0 0.0
    %7773 = vmatpush2.xpose.msra.mxu0 %v6434
    %7774 = vmatprep.subr.mxu0 0.0
    %7775 = vmatpush2.xpose.msra.mxu0 %v6431
    %7776 = vmatprep.subr.mxu0 0.0
    %7777 = vmatpush2.xpose.msra.mxu0 %v6428
    %7778 = vmatprep.subr.mxu0 0.0
    %7779 = vmatpush2.xpose.msra.mxu0 %v6425
    %7780 = vmatprep.subr.mxu0 0.0
    %7781 = vmatpush2.xpose.msra.mxu0 %v6422
    %7782 = vmatprep.subr.mxu0 0.0
    %7783 = vmatpush2.xpose.msra.mxu0 %v6419
    %7784 = vmatprep.subr.mxu0 0.0
    %7785 = vmatpush2.xpose.msra.mxu0 %v6416
    %7786 = vmatprep.subr.mxu0 0.0
    %7787 = vmatpush2.xpose.msra.mxu0 %v6413
    %7788 = vmatprep.subr.mxu0 0.0
    %7789 = vmatpush2.xpose.msra.mxu0 %v6410
    %7790 = vmatprep.subr.mxu0 0.0
    %7791 = vmatpush2.xpose.msra.mxu0 %v6407
    %7792 = vmatprep.subr.mxu0 0.0
    %7793 = vmatpush2.xpose.msra.mxu0 %v6404
    %7794 = vmatprep.subr.mxu0 0.0
    %7795 = vmatpush2.xpose.msra.mxu0 %v6401
    %7796 = vmatprep.subr.mxu0 0.0
    %7797 = vmatpush2.xpose.msra.mxu0 %v6398
    %7798 = vmatprep.subr.mxu0 0.0
    %7799 = vmatpush2.xpose.msra.mxu0 %v6395
    %7800 = vmatprep.mubr.f32.mxu0 0.0
    %7801 = vmatmul.mubr.f32.gmra.mxu0 %v6227
    %v7802 = vpop.f32.mrf.mxu0
    %v7803 = vadd.f32 %v7690, %v7802
    %v7804 = vpop.f32.mrf.mxu0
    %v7805 = vadd.f32 %v7692, %v7804
    %7806 = vmatprep.mubr.f32.mxu0 0.0
    %7807 = vmatmul.mubr.f32.gmra.mxu0 %v6230
    %v7808 = vpop.f32.mrf.mxu0
    %v7809 = vadd.f32 %v7696, %v7808
    %v7810 = vpop.f32.mrf.mxu0
    %v7811 = vadd.f32 %v7698, %v7810
    %7812 = vmatprep.mubr.f32.mxu0 0.0
    %7813 = vmatmul.mubr.f32.gmra.mxu0 %v6233
    %v7814 = vpop.f32.mrf.mxu0
    %v7815 = vadd.f32 %v7702, %v7814
    %v7816 = vpop.f32.mrf.mxu0
    %v7817 = vadd.f32 %v7704, %v7816
    %7818 = vmatprep.mubr.f32.mxu0 0.0
    %7819 = vmatmul.mubr.f32.gmra.mxu0 %v6236
    %v7820 = vpop.f32.mrf.mxu0
    %v7821 = vadd.f32 %v7708, %v7820
    %v7822 = vpop.f32.mrf.mxu0
    %v7823 = vadd.f32 %v7710, %v7822
    %7824 = vmatprep.mubr.f32.mxu0 0.0
    %7825 = vmatmul.mubr.f32.gmra.mxu0 %v6239
    %v7826 = vpop.f32.mrf.mxu0
    %v7827 = vadd.f32 %v7714, %v7826
    %v7828 = vpop.f32.mrf.mxu0
    %v7829 = vadd.f32 %v7716, %v7828
    %7830 = vmatprep.mubr.f32.mxu0 0.0
    %7831 = vmatmul.mubr.f32.gmra.mxu0 %v6242
    %v7832 = vpop.f32.mrf.mxu0
    %v7833 = vadd.f32 %v7720, %v7832
    %v7834 = vpop.f32.mrf.mxu0
    %v7835 = vadd.f32 %v7722, %v7834
    %7836 = vmatprep.mubr.f32.mxu0 0.0
    %7837 = vmatmul.mubr.f32.gmra.mxu0 %v6245
    %v7838 = vpop.f32.mrf.mxu0
    %v7839 = vadd.f32 %v7726, %v7838
    %v7840 = vpop.f32.mrf.mxu0
    %v7841 = vadd.f32 %v7728, %v7840
    %7842 = vmatprep.mubr.f32.mxu0 0.0
    %7843 = vmatmul.mubr.f32.gmra.mxu0 %v6248
    %v7844 = vpop.f32.mrf.mxu0
    %v7845 = vadd.f32 %v7732, %v7844
    %v7846 = vpop.f32.mrf.mxu0
    %v7847 = vadd.f32 %v7734, %v7846
    %7848 = vdwg.mxu0
    %7849 = vmatprep.subr.mxu0 %v6204
    %7850 = vmatpush1.xpose.msra.mxu0 %v6203
    %7851 = vmatprep.subr.mxu0 %v6193
    %7852 = vmatpush1.xpose.msra.mxu0 %v6192
    %7853 = vmatprep.subr.mxu0 %v6182
    %7854 = vmatpush1.xpose.msra.mxu0 %v6181
    %7855 = vmatprep.subr.mxu0 %v6171
    %7856 = vmatpush1.xpose.msra.mxu0 %v6170
    %7857 = vmatprep.subr.mxu0 %v6160
    %7858 = vmatpush1.xpose.msra.mxu0 %v6159
    %7859 = vmatprep.subr.mxu0 %v6149
    %7860 = vmatpush1.xpose.msra.mxu0 %v6148
    %7861 = vmatprep.subr.mxu0 %v6138
    %7862 = vmatpush1.xpose.msra.mxu0 %v6137
    %7863 = vmatprep.subr.mxu0 %v6127
    %7864 = vmatpush1.xpose.msra.mxu0 %v6126
    %7865 = vmatprep.subr.mxu0 %v6116
    %7866 = vmatpush1.xpose.msra.mxu0 %v6115
    %7867 = vmatprep.subr.mxu0 %v6105
    %7868 = vmatpush1.xpose.msra.mxu0 %v6104
    %7869 = vmatprep.subr.mxu0 %v6094
    %7870 = vmatpush1.xpose.msra.mxu0 %v6093
    %7871 = vmatprep.subr.mxu0 %v6083
    %7872 = vmatpush1.xpose.msra.mxu0 %v6082
    %7873 = vmatprep.subr.mxu0 %v6072
    %7874 = vmatpush1.xpose.msra.mxu0 %v6071
    %7875 = vmatprep.subr.mxu0 %v6061
    %7876 = vmatpush1.xpose.msra.mxu0 %v6060
    %7877 = vmatprep.subr.mxu0 %v6050
    %7878 = vmatpush1.xpose.msra.mxu0 %v6049
    %7879 = vmatprep.subr.mxu0 %v6039
    %7880 = vmatpush1.xpose.msra.mxu0 %v6038
    %7881 = vmatprep.subr.mxu0 0.0
    %7882 = vmatpush2.xpose.msra.mxu0 0.0
    %7883 = vmatprep.subr.mxu0 0.0
    %7884 = vmatpush2.xpose.msra.mxu0 0.0
    %7885 = vmatprep.subr.mxu0 0.0
    %7886 = vmatpush2.xpose.msra.mxu0 0.0
    %7887 = vmatprep.subr.mxu0 0.0
    %7888 = vmatpush2.xpose.msra.mxu0 0.0
    %7889 = vmatprep.subr.mxu0 0.0
    %7890 = vmatpush2.xpose.msra.mxu0 0.0
    %7891 = vmatprep.subr.mxu0 0.0
    %7892 = vmatpush2.xpose.msra.mxu0 0.0
    %7893 = vmatprep.subr.mxu0 0.0
    %7894 = vmatpush2.xpose.msra.mxu0 0.0
    %7895 = vmatprep.subr.mxu0 0.0
    %7896 = vmatpush2.xpose.msra.mxu0 0.0
    %7897 = vmatprep.subr.mxu0 0.0
    %7898 = vmatpush2.xpose.msra.mxu0 0.0
    %7899 = vmatprep.subr.mxu0 0.0
    %7900 = vmatpush2.xpose.msra.mxu0 0.0
    %7901 = vmatprep.subr.mxu0 0.0
    %7902 = vmatpush2.xpose.msra.mxu0 0.0
    %7903 = vmatprep.subr.mxu0 0.0
    %7904 = vmatpush2.xpose.msra.mxu0 0.0
    %7905 = vmatprep.subr.mxu0 0.0
    %7906 = vmatpush2.xpose.msra.mxu0 0.0
    %7907 = vmatprep.subr.mxu0 0.0
    %7908 = vmatpush2.xpose.msra.mxu0 0.0
    %7909 = vmatprep.subr.mxu0 0.0
    %7910 = vmatpush2.xpose.msra.mxu0 0.0
    %7911 = vmatprep.subr.mxu0 %v6215
    %7912 = vmatpush2.xpose.msra.mxu0 %v6214
    %7913 = vmatprep.mubr.f32.mxu0 %v5247
    %7914 = vmatmul.mubr.f32.gmra.mxu0 %v5246
    %v7915 = vpop.f32.mrf.mxu0
    %v7916 = vadd.f32 0.0, %v7915
    %v7917 = vpop.f32.mrf.mxu0
    %v7918 = vadd.f32 0.0, %v7917
    %7919 = vmatprep.mubr.f32.mxu0 %v5258
    %7920 = vmatmul.mubr.f32.gmra.mxu0 %v5257
    %v7921 = vpop.f32.mrf.mxu0
    %v7922 = vadd.f32 0.0, %v7921
    %v7923 = vpop.f32.mrf.mxu0
    %v7924 = vadd.f32 0.0, %v7923
    %7925 = vmatprep.mubr.f32.mxu0 %v5269
    %7926 = vmatmul.mubr.f32.gmra.mxu0 %v5268
    %v7927 = vpop.f32.mrf.mxu0
    %v7928 = vadd.f32 0.0, %v7927
    %v7929 = vpop.f32.mrf.mxu0
    %v7930 = vadd.f32 0.0, %v7929
    %7931 = vmatprep.mubr.f32.mxu0 %v5280
    %7932 = vmatmul.mubr.f32.gmra.mxu0 %v5279
    %v7933 = vpop.f32.mrf.mxu0
    %v7934 = vadd.f32 0.0, %v7933
    %v7935 = vpop.f32.mrf.mxu0
    %v7936 = vadd.f32 0.0, %v7935
    %7937 = vmatprep.mubr.f32.mxu0 %v5291
    %7938 = vmatmul.mubr.f32.gmra.mxu0 %v5290
    %v7939 = vpop.f32.mrf.mxu0
    %v7940 = vadd.f32 0.0, %v7939
    %v7941 = vpop.f32.mrf.mxu0
    %v7942 = vadd.f32 0.0, %v7941
    %7943 = vmatprep.mubr.f32.mxu0 %v5302
    %7944 = vmatmul.mubr.f32.gmra.mxu0 %v5301
    %v7945 = vpop.f32.mrf.mxu0
    %v7946 = vadd.f32 0.0, %v7945
    %v7947 = vpop.f32.mrf.mxu0
    %v7948 = vadd.f32 0.0, %v7947
    %7949 = vmatprep.mubr.f32.mxu0 %v5313
    %7950 = vmatmul.mubr.f32.gmra.mxu0 %v5312
    %v7951 = vpop.f32.mrf.mxu0
    %v7952 = vadd.f32 0.0, %v7951
    %v7953 = vpop.f32.mrf.mxu0
    %v7954 = vadd.f32 0.0, %v7953
    %7955 = vmatprep.mubr.f32.mxu0 %v5324
    %7956 = vmatmul.mubr.f32.gmra.mxu0 %v5323
    %v7957 = vpop.f32.mrf.mxu0
    %v7958 = vadd.f32 0.0, %v7957
    %v7959 = vpop.f32.mrf.mxu0
    %v7960 = vadd.f32 0.0, %v7959
    %7961 = vdwg.mxu0
    %7962 = vmatprep.subr.mxu0 %v6206
    %7963 = vmatpush1.xpose.msra.mxu0 %v6205
    %7964 = vmatprep.subr.mxu0 %v6195
    %7965 = vmatpush1.xpose.msra.mxu0 %v6194
    %7966 = vmatprep.subr.mxu0 %v6184
    %7967 = vmatpush1.xpose.msra.mxu0 %v6183
    %7968 = vmatprep.subr.mxu0 %v6173
    %7969 = vmatpush1.xpose.msra.mxu0 %v6172
    %7970 = vmatprep.subr.mxu0 %v6162
    %7971 = vmatpush1.xpose.msra.mxu0 %v6161
    %7972 = vmatprep.subr.mxu0 %v6151
    %7973 = vmatpush1.xpose.msra.mxu0 %v6150
    %7974 = vmatprep.subr.mxu0 %v6140
    %7975 = vmatpush1.xpose.msra.mxu0 %v6139
    %7976 = vmatprep.subr.mxu0 %v6129
    %7977 = vmatpush1.xpose.msra.mxu0 %v6128
    %7978 = vmatprep.subr.mxu0 %v6118
    %7979 = vmatpush1.xpose.msra.mxu0 %v6117
    %7980 = vmatprep.subr.mxu0 %v6107
    %7981 = vmatpush1.xpose.msra.mxu0 %v6106
    %7982 = vmatprep.subr.mxu0 %v6096
    %7983 = vmatpush1.xpose.msra.mxu0 %v6095
    %7984 = vmatprep.subr.mxu0 %v6085
    %7985 = vmatpush1.xpose.msra.mxu0 %v6084
    %7986 = vmatprep.subr.mxu0 %v6074
    %7987 = vmatpush1.xpose.msra.mxu0 %v6073
    %7988 = vmatprep.subr.mxu0 %v6063
    %7989 = vmatpush1.xpose.msra.mxu0 %v6062
    %7990 = vmatprep.subr.mxu0 %v6052
    %7991 = vmatpush1.xpose.msra.mxu0 %v6051
    %7992 = vmatprep.subr.mxu0 %v6041
    %7993 = vmatpush1.xpose.msra.mxu0 %v6040
    %7994 = vmatprep.subr.mxu0 0.0
    %7995 = vmatpush2.xpose.msra.mxu0 0.0
    %7996 = vmatprep.subr.mxu0 0.0
    %7997 = vmatpush2.xpose.msra.mxu0 0.0
    %7998 = vmatprep.subr.mxu0 0.0
    %7999 = vmatpush2.xpose.msra.mxu0 0.0
    %8000 = vmatprep.subr.mxu0 0.0
    %8001 = vmatpush2.xpose.msra.mxu0 0.0
    %8002 = vmatprep.subr.mxu0 0.0
    %8003 = vmatpush2.xpose.msra.mxu0 0.0
    %8004 = vmatprep.subr.mxu0 0.0
    %8005 = vmatpush2.xpose.msra.mxu0 0.0
    %8006 = vmatprep.subr.mxu0 0.0
    %8007 = vmatpush2.xpose.msra.mxu0 0.0
    %8008 = vmatprep.subr.mxu0 0.0
    %8009 = vmatpush2.xpose.msra.mxu0 0.0
    %8010 = vmatprep.subr.mxu0 0.0
    %8011 = vmatpush2.xpose.msra.mxu0 0.0
    %8012 = vmatprep.subr.mxu0 0.0
    %8013 = vmatpush2.xpose.msra.mxu0 0.0
    %8014 = vmatprep.subr.mxu0 0.0
    %8015 = vmatpush2.xpose.msra.mxu0 0.0
    %8016 = vmatprep.subr.mxu0 0.0
    %8017 = vmatpush2.xpose.msra.mxu0 0.0
    %8018 = vmatprep.subr.mxu0 0.0
    %8019 = vmatpush2.xpose.msra.mxu0 0.0
    %8020 = vmatprep.subr.mxu0 0.0
    %8021 = vmatpush2.xpose.msra.mxu0 0.0
    %8022 = vmatprep.subr.mxu0 0.0
    %8023 = vmatpush2.xpose.msra.mxu0 0.0
    %8024 = vmatprep.subr.mxu0 %v6217
    %8025 = vmatpush2.xpose.msra.mxu0 %v6216
    %8026 = vmatprep.mubr.f32.mxu0 %v5249
    %8027 = vmatmul.mubr.f32.gmra.mxu0 %v5248
    %v8028 = vpop.f32.mrf.mxu0
    %v8029 = vadd.f32 %v7916, %v8028
    %v8030 = vpop.f32.mrf.mxu0
    %v8031 = vadd.f32 %v7918, %v8030
    %8032 = vmatprep.mubr.f32.mxu0 %v5260
    %8033 = vmatmul.mubr.f32.gmra.mxu0 %v5259
    %v8034 = vpop.f32.mrf.mxu0
    %v8035 = vadd.f32 %v7922, %v8034
    %v8036 = vpop.f32.mrf.mxu0
    %v8037 = vadd.f32 %v7924, %v8036
    %8038 = vmatprep.mubr.f32.mxu0 %v5271
    %8039 = vmatmul.mubr.f32.gmra.mxu0 %v5270
    %v8040 = vpop.f32.mrf.mxu0
    %v8041 = vadd.f32 %v7928, %v8040
    %v8042 = vpop.f32.mrf.mxu0
    %v8043 = vadd.f32 %v7930, %v8042
    %8044 = vmatprep.mubr.f32.mxu0 %v5282
    %8045 = vmatmul.mubr.f32.gmra.mxu0 %v5281
    %v8046 = vpop.f32.mrf.mxu0
    %v8047 = vadd.f32 %v7934, %v8046
    %v8048 = vpop.f32.mrf.mxu0
    %v8049 = vadd.f32 %v7936, %v8048
    %8050 = vmatprep.mubr.f32.mxu0 %v5293
    %8051 = vmatmul.mubr.f32.gmra.mxu0 %v5292
    %v8052 = vpop.f32.mrf.mxu0
    %v8053 = vadd.f32 %v7940, %v8052
    %v8054 = vpop.f32.mrf.mxu0
    %v8055 = vadd.f32 %v7942, %v8054
    %8056 = vmatprep.mubr.f32.mxu0 %v5304
    %8057 = vmatmul.mubr.f32.gmra.mxu0 %v5303
    %v8058 = vpop.f32.mrf.mxu0
    %v8059 = vadd.f32 %v7946, %v8058
    %v8060 = vpop.f32.mrf.mxu0
    %v8061 = vadd.f32 %v7948, %v8060
    %8062 = vmatprep.mubr.f32.mxu0 %v5315
    %8063 = vmatmul.mubr.f32.gmra.mxu0 %v5314
    %v8064 = vpop.f32.mrf.mxu0
    %v8065 = vadd.f32 %v7952, %v8064
    %v8066 = vpop.f32.mrf.mxu0
    %v8067 = vadd.f32 %v7954, %v8066
    %8068 = vmatprep.mubr.f32.mxu0 %v5326
    %8069 = vmatmul.mubr.f32.gmra.mxu0 %v5325
    %v8070 = vpop.f32.mrf.mxu0
    %v8071 = vadd.f32 %v7958, %v8070
    %v8072 = vpop.f32.mrf.mxu0
    %v8073 = vadd.f32 %v7960, %v8072
    %8074 = vdwg.mxu0
    %8075 = vmatprep.subr.mxu0 %v6208
    %8076 = vmatpush1.xpose.msra.mxu0 %v6207
    %8077 = vmatprep.subr.mxu0 %v6197
    %8078 = vmatpush1.xpose.msra.mxu0 %v6196
    %8079 = vmatprep.subr.mxu0 %v6186
    %8080 = vmatpush1.xpose.msra.mxu0 %v6185
    %8081 = vmatprep.subr.mxu0 %v6175
    %8082 = vmatpush1.xpose.msra.mxu0 %v6174
    %8083 = vmatprep.subr.mxu0 %v6164
    %8084 = vmatpush1.xpose.msra.mxu0 %v6163
    %8085 = vmatprep.subr.mxu0 %v6153
    %8086 = vmatpush1.xpose.msra.mxu0 %v6152
    %8087 = vmatprep.subr.mxu0 %v6142
    %8088 = vmatpush1.xpose.msra.mxu0 %v6141
    %8089 = vmatprep.subr.mxu0 %v6131
    %8090 = vmatpush1.xpose.msra.mxu0 %v6130
    %8091 = vmatprep.subr.mxu0 %v6120
    %8092 = vmatpush1.xpose.msra.mxu0 %v6119
    %8093 = vmatprep.subr.mxu0 %v6109
    %8094 = vmatpush1.xpose.msra.mxu0 %v6108
    %8095 = vmatprep.subr.mxu0 %v6098
    %8096 = vmatpush1.xpose.msra.mxu0 %v6097
    %8097 = vmatprep.subr.mxu0 %v6087
    %8098 = vmatpush1.xpose.msra.mxu0 %v6086
    %8099 = vmatprep.subr.mxu0 %v6076
    %8100 = vmatpush1.xpose.msra.mxu0 %v6075
    %8101 = vmatprep.subr.mxu0 %v6065
    %8102 = vmatpush1.xpose.msra.mxu0 %v6064
    %8103 = vmatprep.subr.mxu0 %v6054
    %8104 = vmatpush1.xpose.msra.mxu0 %v6053
    %8105 = vmatprep.subr.mxu0 %v6043
    %8106 = vmatpush1.xpose.msra.mxu0 %v6042
    %8107 = vmatprep.subr.mxu0 0.0
    %8108 = vmatpush2.xpose.msra.mxu0 0.0
    %8109 = vmatprep.subr.mxu0 0.0
    %8110 = vmatpush2.xpose.msra.mxu0 0.0
    %8111 = vmatprep.subr.mxu0 0.0
    %8112 = vmatpush2.xpose.msra.mxu0 0.0
    %8113 = vmatprep.subr.mxu0 0.0
    %8114 = vmatpush2.xpose.msra.mxu0 0.0
    %8115 = vmatprep.subr.mxu0 0.0
    %8116 = vmatpush2.xpose.msra.mxu0 0.0
    %8117 = vmatprep.subr.mxu0 0.0
    %8118 = vmatpush2.xpose.msra.mxu0 0.0
    %8119 = vmatprep.subr.mxu0 0.0
    %8120 = vmatpush2.xpose.msra.mxu0 0.0
    %8121 = vmatprep.subr.mxu0 0.0
    %8122 = vmatpush2.xpose.msra.mxu0 0.0
    %8123 = vmatprep.subr.mxu0 0.0
    %8124 = vmatpush2.xpose.msra.mxu0 0.0
    %8125 = vmatprep.subr.mxu0 0.0
    %8126 = vmatpush2.xpose.msra.mxu0 0.0
    %8127 = vmatprep.subr.mxu0 0.0
    %8128 = vmatpush2.xpose.msra.mxu0 0.0
    %8129 = vmatprep.subr.mxu0 0.0
    %8130 = vmatpush2.xpose.msra.mxu0 0.0
    %8131 = vmatprep.subr.mxu0 0.0
    %8132 = vmatpush2.xpose.msra.mxu0 0.0
    %8133 = vmatprep.subr.mxu0 0.0
    %8134 = vmatpush2.xpose.msra.mxu0 0.0
    %8135 = vmatprep.subr.mxu0 0.0
    %8136 = vmatpush2.xpose.msra.mxu0 0.0
    %8137 = vmatprep.subr.mxu0 %v6219
    %8138 = vmatpush2.xpose.msra.mxu0 %v6218
    %8139 = vmatprep.mubr.f32.mxu0 %v5251
    %8140 = vmatmul.mubr.f32.gmra.mxu0 %v5250
    %v8141 = vpop.f32.mrf.mxu0
    %v8142 = vadd.f32 %v8029, %v8141
    %v8143 = vpop.f32.mrf.mxu0
    %v8144 = vadd.f32 %v8031, %v8143
    %8145 = vmatprep.mubr.f32.mxu0 %v5262
    %8146 = vmatmul.mubr.f32.gmra.mxu0 %v5261
    %v8147 = vpop.f32.mrf.mxu0
    %v8148 = vadd.f32 %v8035, %v8147
    %v8149 = vpop.f32.mrf.mxu0
    %v8150 = vadd.f32 %v8037, %v8149
    %8151 = vmatprep.mubr.f32.mxu0 %v5273
    %8152 = vmatmul.mubr.f32.gmra.mxu0 %v5272
    %v8153 = vpop.f32.mrf.mxu0
    %v8154 = vadd.f32 %v8041, %v8153
    %v8155 = vpop.f32.mrf.mxu0
    %v8156 = vadd.f32 %v8043, %v8155
    %8157 = vmatprep.mubr.f32.mxu0 %v5284
    %8158 = vmatmul.mubr.f32.gmra.mxu0 %v5283
    %v8159 = vpop.f32.mrf.mxu0
    %v8160 = vadd.f32 %v8047, %v8159
    %v8161 = vpop.f32.mrf.mxu0
    %v8162 = vadd.f32 %v8049, %v8161
    %8163 = vmatprep.mubr.f32.mxu0 %v5295
    %8164 = vmatmul.mubr.f32.gmra.mxu0 %v5294
    %v8165 = vpop.f32.mrf.mxu0
    %v8166 = vadd.f32 %v8053, %v8165
    %v8167 = vpop.f32.mrf.mxu0
    %v8168 = vadd.f32 %v8055, %v8167
    %8169 = vmatprep.mubr.f32.mxu0 %v5306
    %8170 = vmatmul.mubr.f32.gmra.mxu0 %v5305
    %v8171 = vpop.f32.mrf.mxu0
    %v8172 = vadd.f32 %v8059, %v8171
    %v8173 = vpop.f32.mrf.mxu0
    %v8174 = vadd.f32 %v8061, %v8173
    %8175 = vmatprep.mubr.f32.mxu0 %v5317
    %8176 = vmatmul.mubr.f32.gmra.mxu0 %v5316
    %v8177 = vpop.f32.mrf.mxu0
    %v8178 = vadd.f32 %v8065, %v8177
    %v8179 = vpop.f32.mrf.mxu0
    %v8180 = vadd.f32 %v8067, %v8179
    %8181 = vmatprep.mubr.f32.mxu0 %v5328
    %8182 = vmatmul.mubr.f32.gmra.mxu0 %v5327
    %v8183 = vpop.f32.mrf.mxu0
    %v8184 = vadd.f32 %v8071, %v8183
    %v8185 = vpop.f32.mrf.mxu0
    %v8186 = vadd.f32 %v8073, %v8185
    %8187 = vdwg.mxu0
    %8188 = vmatprep.subr.mxu0 %v6210
    %8189 = vmatpush1.xpose.msra.mxu0 %v6209
    %8190 = vmatprep.subr.mxu0 %v6199
    %8191 = vmatpush1.xpose.msra.mxu0 %v6198
    %8192 = vmatprep.subr.mxu0 %v6188
    %8193 = vmatpush1.xpose.msra.mxu0 %v6187
    %8194 = vmatprep.subr.mxu0 %v6177
    %8195 = vmatpush1.xpose.msra.mxu0 %v6176
    %8196 = vmatprep.subr.mxu0 %v6166
    %8197 = vmatpush1.xpose.msra.mxu0 %v6165
    %8198 = vmatprep.subr.mxu0 %v6155
    %8199 = vmatpush1.xpose.msra.mxu0 %v6154
    %8200 = vmatprep.subr.mxu0 %v6144
    %8201 = vmatpush1.xpose.msra.mxu0 %v6143
    %8202 = vmatprep.subr.mxu0 %v6133
    %8203 = vmatpush1.xpose.msra.mxu0 %v6132
    %8204 = vmatprep.subr.mxu0 %v6122
    %8205 = vmatpush1.xpose.msra.mxu0 %v6121
    %8206 = vmatprep.subr.mxu0 %v6111
    %8207 = vmatpush1.xpose.msra.mxu0 %v6110
    %8208 = vmatprep.subr.mxu0 %v6100
    %8209 = vmatpush1.xpose.msra.mxu0 %v6099
    %8210 = vmatprep.subr.mxu0 %v6089
    %8211 = vmatpush1.xpose.msra.mxu0 %v6088
    %8212 = vmatprep.subr.mxu0 %v6078
    %8213 = vmatpush1.xpose.msra.mxu0 %v6077
    %8214 = vmatprep.subr.mxu0 %v6067
    %8215 = vmatpush1.xpose.msra.mxu0 %v6066
    %8216 = vmatprep.subr.mxu0 %v6056
    %8217 = vmatpush1.xpose.msra.mxu0 %v6055
    %8218 = vmatprep.subr.mxu0 %v6045
    %8219 = vmatpush1.xpose.msra.mxu0 %v6044
    %8220 = vmatprep.subr.mxu0 0.0
    %8221 = vmatpush2.xpose.msra.mxu0 0.0
    %8222 = vmatprep.subr.mxu0 0.0
    %8223 = vmatpush2.xpose.msra.mxu0 0.0
    %8224 = vmatprep.subr.mxu0 0.0
    %8225 = vmatpush2.xpose.msra.mxu0 0.0
    %8226 = vmatprep.subr.mxu0 0.0
    %8227 = vmatpush2.xpose.msra.mxu0 0.0
    %8228 = vmatprep.subr.mxu0 0.0
    %8229 = vmatpush2.xpose.msra.mxu0 0.0
    %8230 = vmatprep.subr.mxu0 0.0
    %8231 = vmatpush2.xpose.msra.mxu0 0.0
    %8232 = vmatprep.subr.mxu0 0.0
    %8233 = vmatpush2.xpose.msra.mxu0 0.0
    %8234 = vmatprep.subr.mxu0 0.0
    %8235 = vmatpush2.xpose.msra.mxu0 0.0
    %8236 = vmatprep.subr.mxu0 0.0
    %8237 = vmatpush2.xpose.msra.mxu0 0.0
    %8238 = vmatprep.subr.mxu0 0.0
    %8239 = vmatpush2.xpose.msra.mxu0 0.0
    %8240 = vmatprep.subr.mxu0 0.0
    %8241 = vmatpush2.xpose.msra.mxu0 0.0
    %8242 = vmatprep.subr.mxu0 0.0
    %8243 = vmatpush2.xpose.msra.mxu0 0.0
    %8244 = vmatprep.subr.mxu0 0.0
    %8245 = vmatpush2.xpose.msra.mxu0 0.0
    %8246 = vmatprep.subr.mxu0 0.0
    %8247 = vmatpush2.xpose.msra.mxu0 0.0
    %8248 = vmatprep.subr.mxu0 0.0
    %8249 = vmatpush2.xpose.msra.mxu0 0.0
    %8250 = vmatprep.subr.mxu0 %v6221
    %8251 = vmatpush2.xpose.msra.mxu0 %v6220
    %8252 = vmatprep.mubr.f32.mxu0 %v5253
    %8253 = vmatmul.mubr.f32.gmra.mxu0 %v5252
    %v8254 = vpop.f32.mrf.mxu0
    %v8255 = vadd.f32 %v8142, %v8254
    %v8256 = vpop.f32.mrf.mxu0
    %v8257 = vadd.f32 %v8144, %v8256
    %8258 = vmatprep.mubr.f32.mxu0 %v5264
    %8259 = vmatmul.mubr.f32.gmra.mxu0 %v5263
    %v8260 = vpop.f32.mrf.mxu0
    %v8261 = vadd.f32 %v8148, %v8260
    %v8262 = vpop.f32.mrf.mxu0
    %v8263 = vadd.f32 %v8150, %v8262
    %8264 = vmatprep.mubr.f32.mxu0 %v5275
    %8265 = vmatmul.mubr.f32.gmra.mxu0 %v5274
    %v8266 = vpop.f32.mrf.mxu0
    %v8267 = vadd.f32 %v8154, %v8266
    %v8268 = vpop.f32.mrf.mxu0
    %v8269 = vadd.f32 %v8156, %v8268
    %8270 = vmatprep.mubr.f32.mxu0 %v5286
    %8271 = vmatmul.mubr.f32.gmra.mxu0 %v5285
    %v8272 = vpop.f32.mrf.mxu0
    %v8273 = vadd.f32 %v8160, %v8272
    %v8274 = vpop.f32.mrf.mxu0
    %v8275 = vadd.f32 %v8162, %v8274
    %8276 = vmatprep.mubr.f32.mxu0 %v5297
    %8277 = vmatmul.mubr.f32.gmra.mxu0 %v5296
    %v8278 = vpop.f32.mrf.mxu0
    %v8279 = vadd.f32 %v8166, %v8278
    %v8280 = vpop.f32.mrf.mxu0
    %v8281 = vadd.f32 %v8168, %v8280
    %8282 = vmatprep.mubr.f32.mxu0 %v5308
    %8283 = vmatmul.mubr.f32.gmra.mxu0 %v5307
    %v8284 = vpop.f32.mrf.mxu0
    %v8285 = vadd.f32 %v8172, %v8284
    %v8286 = vpop.f32.mrf.mxu0
    %v8287 = vadd.f32 %v8174, %v8286
    %8288 = vmatprep.mubr.f32.mxu0 %v5319
    %8289 = vmatmul.mubr.f32.gmra.mxu0 %v5318
    %v8290 = vpop.f32.mrf.mxu0
    %v8291 = vadd.f32 %v8178, %v8290
    %v8292 = vpop.f32.mrf.mxu0
    %v8293 = vadd.f32 %v8180, %v8292
    %8294 = vmatprep.mubr.f32.mxu0 %v5330
    %8295 = vmatmul.mubr.f32.gmra.mxu0 %v5329
    %v8296 = vpop.f32.mrf.mxu0
    %v8297 = vadd.f32 %v8184, %v8296
    %v8298 = vpop.f32.mrf.mxu0
    %v8299 = vadd.f32 %v8186, %v8298
    %8300 = vdwg.mxu0
    %8301 = vmatprep.subr.mxu0 %v6212
    %8302 = vmatpush1.xpose.msra.mxu0 %v6211
    %8303 = vmatprep.subr.mxu0 %v6201
    %8304 = vmatpush1.xpose.msra.mxu0 %v6200
    %8305 = vmatprep.subr.mxu0 %v6190
    %8306 = vmatpush1.xpose.msra.mxu0 %v6189
    %8307 = vmatprep.subr.mxu0 %v6179
    %8308 = vmatpush1.xpose.msra.mxu0 %v6178
    %8309 = vmatprep.subr.mxu0 %v6168
    %8310 = vmatpush1.xpose.msra.mxu0 %v6167
    %8311 = vmatprep.subr.mxu0 %v6157
    %8312 = vmatpush1.xpose.msra.mxu0 %v6156
    %8313 = vmatprep.subr.mxu0 %v6146
    %8314 = vmatpush1.xpose.msra.mxu0 %v6145
    %8315 = vmatprep.subr.mxu0 %v6135
    %8316 = vmatpush1.xpose.msra.mxu0 %v6134
    %8317 = vmatprep.subr.mxu0 %v6124
    %8318 = vmatpush1.xpose.msra.mxu0 %v6123
    %8319 = vmatprep.subr.mxu0 %v6113
    %8320 = vmatpush1.xpose.msra.mxu0 %v6112
    %8321 = vmatprep.subr.mxu0 %v6102
    %8322 = vmatpush1.xpose.msra.mxu0 %v6101
    %8323 = vmatprep.subr.mxu0 %v6091
    %8324 = vmatpush1.xpose.msra.mxu0 %v6090
    %8325 = vmatprep.subr.mxu0 %v6080
    %8326 = vmatpush1.xpose.msra.mxu0 %v6079
    %8327 = vmatprep.subr.mxu0 %v6069
    %8328 = vmatpush1.xpose.msra.mxu0 %v6068
    %8329 = vmatprep.subr.mxu0 %v6058
    %8330 = vmatpush1.xpose.msra.mxu0 %v6057
    %8331 = vmatprep.subr.mxu0 %v6047
    %8332 = vmatpush1.xpose.msra.mxu0 %v6046
    %8333 = vmatprep.subr.mxu0 0.0
    %8334 = vmatpush2.xpose.msra.mxu0 0.0
    %8335 = vmatprep.subr.mxu0 0.0
    %8336 = vmatpush2.xpose.msra.mxu0 0.0
    %8337 = vmatprep.subr.mxu0 0.0
    %8338 = vmatpush2.xpose.msra.mxu0 0.0
    %8339 = vmatprep.subr.mxu0 0.0
    %8340 = vmatpush2.xpose.msra.mxu0 0.0
    %8341 = vmatprep.subr.mxu0 0.0
    %8342 = vmatpush2.xpose.msra.mxu0 0.0
    %8343 = vmatprep.subr.mxu0 0.0
    %8344 = vmatpush2.xpose.msra.mxu0 0.0
    %8345 = vmatprep.subr.mxu0 0.0
    %8346 = vmatpush2.xpose.msra.mxu0 0.0
    %8347 = vmatprep.subr.mxu0 0.0
    %8348 = vmatpush2.xpose.msra.mxu0 0.0
    %8349 = vmatprep.subr.mxu0 0.0
    %8350 = vmatpush2.xpose.msra.mxu0 0.0
    %8351 = vmatprep.subr.mxu0 0.0
    %8352 = vmatpush2.xpose.msra.mxu0 0.0
    %8353 = vmatprep.subr.mxu0 0.0
    %8354 = vmatpush2.xpose.msra.mxu0 0.0
    %8355 = vmatprep.subr.mxu0 0.0
    %8356 = vmatpush2.xpose.msra.mxu0 0.0
    %8357 = vmatprep.subr.mxu0 0.0
    %8358 = vmatpush2.xpose.msra.mxu0 0.0
    %8359 = vmatprep.subr.mxu0 0.0
    %8360 = vmatpush2.xpose.msra.mxu0 0.0
    %8361 = vmatprep.subr.mxu0 0.0
    %8362 = vmatpush2.xpose.msra.mxu0 0.0
    %8363 = vmatprep.subr.mxu0 %v6223
    %8364 = vmatpush2.xpose.msra.mxu0 %v6222
    %8365 = vmatprep.mubr.f32.mxu0 %v5255
    %8366 = vmatmul.mubr.f32.gmra.mxu0 %v5254
    %v8367 = vpop.f32.mrf.mxu0
    %v8368 = vadd.f32 %v8255, %v8367
    %v8369 = vpop.f32.mrf.mxu0
    %v8370 = vadd.f32 %v8257, %v8369
    %8371 = vmatprep.mubr.f32.mxu0 %v5266
    %8372 = vmatmul.mubr.f32.gmra.mxu0 %v5265
    %v8373 = vpop.f32.mrf.mxu0
    %v8374 = vadd.f32 %v8261, %v8373
    %v8375 = vpop.f32.mrf.mxu0
    %v8376 = vadd.f32 %v8263, %v8375
    %8377 = vmatprep.mubr.f32.mxu0 %v5277
    %8378 = vmatmul.mubr.f32.gmra.mxu0 %v5276
    %v8379 = vpop.f32.mrf.mxu0
    %v8380 = vadd.f32 %v8267, %v8379
    %v8381 = vpop.f32.mrf.mxu0
    %v8382 = vadd.f32 %v8269, %v8381
    %8383 = vmatprep.mubr.f32.mxu0 %v5288
    %8384 = vmatmul.mubr.f32.gmra.mxu0 %v5287
    %v8385 = vpop.f32.mrf.mxu0
    %v8386 = vadd.f32 %v8273, %v8385
    %v8387 = vpop.f32.mrf.mxu0
    %v8388 = vadd.f32 %v8275, %v8387
    %8389 = vmatprep.mubr.f32.mxu0 %v5299
    %8390 = vmatmul.mubr.f32.gmra.mxu0 %v5298
    %v8391 = vpop.f32.mrf.mxu0
    %v8392 = vadd.f32 %v8279, %v8391
    %v8393 = vpop.f32.mrf.mxu0
    %v8394 = vadd.f32 %v8281, %v8393
    %8395 = vmatprep.mubr.f32.mxu0 %v5310
    %8396 = vmatmul.mubr.f32.gmra.mxu0 %v5309
    %v8397 = vpop.f32.mrf.mxu0
    %v8398 = vadd.f32 %v8285, %v8397
    %v8399 = vpop.f32.mrf.mxu0
    %v8400 = vadd.f32 %v8287, %v8399
    %8401 = vmatprep.mubr.f32.mxu0 %v5321
    %8402 = vmatmul.mubr.f32.gmra.mxu0 %v5320
    %v8403 = vpop.f32.mrf.mxu0
    %v8404 = vadd.f32 %v8291, %v8403
    %v8405 = vpop.f32.mrf.mxu0
    %v8406 = vadd.f32 %v8293, %v8405
    %8407 = vmatprep.mubr.f32.mxu0 %v5332
    %8408 = vmatmul.mubr.f32.gmra.mxu0 %v5331
    %v8409 = vpop.f32.mrf.mxu0
    %v8410 = vadd.f32 %v8297, %v8409
    %v8411 = vpop.f32.mrf.mxu0
    %v8412 = vadd.f32 %v8299, %v8411
    %8413 = vdwg.mxu0
    %8414 = vmatprep.subr.mxu0 0.0
    %8415 = vmatpush1.xpose.msra.mxu0 %v6488
    %8416 = vmatprep.subr.mxu0 0.0
    %8417 = vmatpush1.xpose.msra.mxu0 %v6485
    %8418 = vmatprep.subr.mxu0 0.0
    %8419 = vmatpush1.xpose.msra.mxu0 %v6482
    %8420 = vmatprep.subr.mxu0 0.0
    %8421 = vmatpush1.xpose.msra.mxu0 %v6479
    %8422 = vmatprep.subr.mxu0 0.0
    %8423 = vmatpush1.xpose.msra.mxu0 %v6476
    %8424 = vmatprep.subr.mxu0 0.0
    %8425 = vmatpush1.xpose.msra.mxu0 %v6473
    %8426 = vmatprep.subr.mxu0 0.0
    %8427 = vmatpush1.xpose.msra.mxu0 %v6470
    %8428 = vmatprep.subr.mxu0 0.0
    %8429 = vmatpush1.xpose.msra.mxu0 %v6467
    %8430 = vmatprep.subr.mxu0 0.0
    %8431 = vmatpush1.xpose.msra.mxu0 %v6464
    %8432 = vmatprep.subr.mxu0 0.0
    %8433 = vmatpush1.xpose.msra.mxu0 %v6461
    %8434 = vmatprep.subr.mxu0 0.0
    %8435 = vmatpush1.xpose.msra.mxu0 %v6458
    %8436 = vmatprep.subr.mxu0 0.0
    %8437 = vmatpush1.xpose.msra.mxu0 %v6455
    %8438 = vmatprep.subr.mxu0 0.0
    %8439 = vmatpush1.xpose.msra.mxu0 %v6452
    %8440 = vmatprep.subr.mxu0 0.0
    %8441 = vmatpush1.xpose.msra.mxu0 %v6449
    %8442 = vmatprep.subr.mxu0 0.0
    %8443 = vmatpush1.xpose.msra.mxu0 %v6446
    %8444 = vmatprep.subr.mxu0 0.0
    %8445 = vmatpush1.xpose.msra.mxu0 %v6443
    %8446 = vmatprep.subr.mxu0 0.0
    %8447 = vmatpush2.xpose.msra.mxu0 0.0
    %8448 = vmatprep.subr.mxu0 0.0
    %8449 = vmatpush2.xpose.msra.mxu0 0.0
    %8450 = vmatprep.subr.mxu0 0.0
    %8451 = vmatpush2.xpose.msra.mxu0 0.0
    %8452 = vmatprep.subr.mxu0 0.0
    %8453 = vmatpush2.xpose.msra.mxu0 0.0
    %8454 = vmatprep.subr.mxu0 0.0
    %8455 = vmatpush2.xpose.msra.mxu0 0.0
    %8456 = vmatprep.subr.mxu0 0.0
    %8457 = vmatpush2.xpose.msra.mxu0 0.0
    %8458 = vmatprep.subr.mxu0 0.0
    %8459 = vmatpush2.xpose.msra.mxu0 0.0
    %8460 = vmatprep.subr.mxu0 0.0
    %8461 = vmatpush2.xpose.msra.mxu0 0.0
    %8462 = vmatprep.subr.mxu0 0.0
    %8463 = vmatpush2.xpose.msra.mxu0 0.0
    %8464 = vmatprep.subr.mxu0 0.0
    %8465 = vmatpush2.xpose.msra.mxu0 0.0
    %8466 = vmatprep.subr.mxu0 0.0
    %8467 = vmatpush2.xpose.msra.mxu0 0.0
    %8468 = vmatprep.subr.mxu0 0.0
    %8469 = vmatpush2.xpose.msra.mxu0 0.0
    %8470 = vmatprep.subr.mxu0 0.0
    %8471 = vmatpush2.xpose.msra.mxu0 0.0
    %8472 = vmatprep.subr.mxu0 0.0
    %8473 = vmatpush2.xpose.msra.mxu0 0.0
    %8474 = vmatprep.subr.mxu0 0.0
    %8475 = vmatpush2.xpose.msra.mxu0 0.0
    %8476 = vmatprep.subr.mxu0 0.0
    %8477 = vmatpush2.xpose.msra.mxu0 %v6491
    %8478 = vmatprep.mubr.f32.mxu0 0.0
    %8479 = vmatmul.mubr.f32.gmra.mxu0 %v6227
    %v8480 = vpop.f32.mrf.mxu0
    %v8481 = vadd.f32 %v8368, %v8480
    %v8482 = vpop.f32.mrf.mxu0
    %v8483 = vadd.f32 %v8370, %v8482
    %8484 = vmatprep.mubr.f32.mxu0 0.0
    %8485 = vmatmul.mubr.f32.gmra.mxu0 %v6230
    %v8486 = vpop.f32.mrf.mxu0
    %v8487 = vadd.f32 %v8374, %v8486
    %v8488 = vpop.f32.mrf.mxu0
    %v8489 = vadd.f32 %v8376, %v8488
    %8490 = vmatprep.mubr.f32.mxu0 0.0
    %8491 = vmatmul.mubr.f32.gmra.mxu0 %v6233
    %v8492 = vpop.f32.mrf.mxu0
    %v8493 = vadd.f32 %v8380, %v8492
    %v8494 = vpop.f32.mrf.mxu0
    %v8495 = vadd.f32 %v8382, %v8494
    %8496 = vmatprep.mubr.f32.mxu0 0.0
    %8497 = vmatmul.mubr.f32.gmra.mxu0 %v6236
    %v8498 = vpop.f32.mrf.mxu0
    %v8499 = vadd.f32 %v8386, %v8498
    %v8500 = vpop.f32.mrf.mxu0
    %v8501 = vadd.f32 %v8388, %v8500
    %8502 = vmatprep.mubr.f32.mxu0 0.0
    %8503 = vmatmul.mubr.f32.gmra.mxu0 %v6239
    %v8504 = vpop.f32.mrf.mxu0
    %v8505 = vadd.f32 %v8392, %v8504
    %v8506 = vpop.f32.mrf.mxu0
    %v8507 = vadd.f32 %v8394, %v8506
    %8508 = vmatprep.mubr.f32.mxu0 0.0
    %8509 = vmatmul.mubr.f32.gmra.mxu0 %v6242
    %v8510 = vpop.f32.mrf.mxu0
    %v8511 = vadd.f32 %v8398, %v8510
    %v8512 = vpop.f32.mrf.mxu0
    %v8513 = vadd.f32 %v8400, %v8512
    %8514 = vmatprep.mubr.f32.mxu0 0.0
    %8515 = vmatmul.mubr.f32.gmra.mxu0 %v6245
    %v8516 = vpop.f32.mrf.mxu0
    %v8517 = vadd.f32 %v8404, %v8516
    %v8518 = vpop.f32.mrf.mxu0
    %v8519 = vadd.f32 %v8406, %v8518
    %8520 = vmatprep.mubr.f32.mxu0 0.0
    %8521 = vmatmul.mubr.f32.gmra.mxu0 %v6248
    %v8522 = vpop.f32.mrf.mxu0
    %v8523 = vadd.f32 %v8410, %v8522
    %v8524 = vpop.f32.mrf.mxu0
    %v8525 = vadd.f32 %v8412, %v8524
    %8526 = vdwg.mxu0
    %v8527 = vadd.f32 %v736, %v7125
    %v8528 = vadd.f32 %v738, %v7127
    %v8529 = vadd.f32 %v962, %v7803
    %v8530 = vadd.f32 %v964, %v7805
    %v8531 = vadd.f32 %v1188, %v8481
    %v8532 = vadd.f32 %v1190, %v8483
    %v8533 = vadd.f32 %v742, %v7131
    %v8534 = vadd.f32 %v744, %v7133
    %v8535 = vadd.f32 %v968, %v7809
    %v8536 = vadd.f32 %v970, %v7811
    %v8537 = vadd.f32 %v1194, %v8487
    %v8538 = vadd.f32 %v1196, %v8489
    %v8539 = vadd.f32 %v748, %v7137
    %v8540 = vadd.f32 %v750, %v7139
    %v8541 = vadd.f32 %v974, %v7815
    %v8542 = vadd.f32 %v976, %v7817
    %v8543 = vadd.f32 %v1200, %v8493
    %v8544 = vadd.f32 %v1202, %v8495
    %v8545 = vadd.f32 %v754, %v7143
    %v8546 = vadd.f32 %v756, %v7145
    %v8547 = vadd.f32 %v980, %v7821
    %v8548 = vadd.f32 %v982, %v7823
    %v8549 = vadd.f32 %v1206, %v8499
    %v8550 = vadd.f32 %v1208, %v8501
    %v8551 = vadd.f32 %v760, %v7149
    %v8552 = vadd.f32 %v762, %v7151
    %v8553 = vadd.f32 %v986, %v7827
    %v8554 = vadd.f32 %v988, %v7829
    %v8555 = vadd.f32 %v1212, %v8505
    %v8556 = vadd.f32 %v1214, %v8507
    %v8557 = vadd.f32 %v766, %v7155
    %v8558 = vadd.f32 %v768, %v7157
    %v8559 = vadd.f32 %v992, %v7833
    %v8560 = vadd.f32 %v994, %v7835
    %v8561 = vadd.f32 %v1218, %v8511
    %v8562 = vadd.f32 %v1220, %v8513
    %v8563 = vadd.f32 %v772, %v7161
    %v8564 = vadd.f32 %v774, %v7163
    %v8565 = vadd.f32 %v998, %v7839
    %v8566 = vadd.f32 %v1000, %v7841
    %v8567 = vadd.f32 %v1224, %v8517
    %v8568 = vadd.f32 %v1226, %v8519
    %v8569 = vadd.f32 %v778, %v7167
    %v8570 = vadd.f32 %v780, %v7169
    %v8571 = vadd.f32 %v1004, %v7845
    %v8572 = vadd.f32 %v1006, %v7847
    %v8573 = vadd.f32 %v1230, %v8523
    %v8574 = vadd.f32 %v1232, %v8525
    %v8575 = vxor.u32 %v8527, 2147483648
    %v8576 = vxor.u32 %v8528, 2147483648
    %v8577 = vxor.u32 %v8529, 2147483648
    %v8578 = vxor.u32 %v8530, 2147483648
    %v8579 = vxor.u32 %v8531, 2147483648
    %v8580 = vxor.u32 %v8532, 2147483648
    %v8581 = vxor.u32 %v8533, 2147483648
    %v8582 = vxor.u32 %v8534, 2147483648
    %v8583 = vxor.u32 %v8535, 2147483648
    %v8584 = vxor.u32 %v8536, 2147483648
    %v8585 = vxor.u32 %v8537, 2147483648
    %v8586 = vxor.u32 %v8538, 2147483648
    %v8587 = vxor.u32 %v8539, 2147483648
    %v8588 = vxor.u32 %v8540, 2147483648
    %v8589 = vxor.u32 %v8541, 2147483648
    %v8590 = vxor.u32 %v8542, 2147483648
    %v8591 = vxor.u32 %v8543, 2147483648
    %v8592 = vxor.u32 %v8544, 2147483648
    %v8593 = vxor.u32 %v8545, 2147483648
    %v8594 = vxor.u32 %v8546, 2147483648
    %v8595 = vxor.u32 %v8547, 2147483648
    %v8596 = vxor.u32 %v8548, 2147483648
    %v8597 = vxor.u32 %v8549, 2147483648
    %v8598 = vxor.u32 %v8550, 2147483648
    %v8599 = vxor.u32 %v8551, 2147483648
    %v8600 = vxor.u32 %v8552, 2147483648
    %v8601 = vxor.u32 %v8553, 2147483648
    %v8602 = vxor.u32 %v8554, 2147483648
    %v8603 = vxor.u32 %v8555, 2147483648
    %v8604 = vxor.u32 %v8556, 2147483648
    %v8605 = vxor.u32 %v8557, 2147483648
    %v8606 = vxor.u32 %v8558, 2147483648
    %v8607 = vxor.u32 %v8559, 2147483648
    %v8608 = vxor.u32 %v8560, 2147483648
    %v8609 = vxor.u32 %v8561, 2147483648
    %v8610 = vxor.u32 %v8562, 2147483648
    %v8611 = vxor.u32 %v8563, 2147483648
    %v8612 = vxor.u32 %v8564, 2147483648
    %v8613 = vxor.u32 %v8565, 2147483648
    %v8614 = vxor.u32 %v8566, 2147483648
    %v8615 = vxor.u32 %v8567, 2147483648
    %v8616 = vxor.u32 %v8568, 2147483648
    %v8617 = vxor.u32 %v8569, 2147483648
    %v8618 = vxor.u32 %v8570, 2147483648
    %v8619 = vxor.u32 %v8571, 2147483648
    %v8620 = vxor.u32 %v8572, 2147483648
    %v8621 = vxor.u32 %v8573, 2147483648
    %v8622 = vxor.u32 %v8574, 2147483648
    %v8623 = vmul.f32 %v8575, 1.442695
    %v8624 = vpow.pop %v8623
    %v8625 = vmul.f32 %v8576, 1.442695
    %v8626 = vpow.pop %v8625
    %v8627 = vmul.f32 %v8577, 1.442695
    %v8628 = vpow.pop %v8627
    %v8629 = vmul.f32 %v8578, 1.442695
    %v8630 = vpow.pop %v8629
    %v8631 = vmul.f32 %v8579, 1.442695
    %v8632 = vpow.pop %v8631
    %v8633 = vmul.f32 %v8580, 1.442695
    %v8634 = vpow.pop %v8633
    %v8635 = vmul.f32 %v8581, 1.442695
    %v8636 = vpow.pop %v8635
    %v8637 = vmul.f32 %v8582, 1.442695
    %v8638 = vpow.pop %v8637
    %v8639 = vmul.f32 %v8583, 1.442695
    %v8640 = vpow.pop %v8639
    %v8641 = vmul.f32 %v8584, 1.442695
    %v8642 = vpow.pop %v8641
    %v8643 = vmul.f32 %v8585, 1.442695
    %v8644 = vpow.pop %v8643
    %v8645 = vmul.f32 %v8586, 1.442695
    %v8646 = vpow.pop %v8645
    %v8647 = vmul.f32 %v8587, 1.442695
    %v8648 = vpow.pop %v8647
    %v8649 = vmul.f32 %v8588, 1.442695
    %v8650 = vpow.pop %v8649
    %v8651 = vmul.f32 %v8589, 1.442695
    %v8652 = vpow.pop %v8651
    %v8653 = vmul.f32 %v8590, 1.442695
    %v8654 = vpow.pop %v8653
    %v8655 = vmul.f32 %v8591, 1.442695
    %v8656 = vpow.pop %v8655
    %v8657 = vmul.f32 %v8592, 1.442695
    %v8658 = vpow.pop %v8657
    %v8659 = vmul.f32 %v8593, 1.442695
    %v8660 = vpow.pop %v8659
    %v8661 = vmul.f32 %v8594, 1.442695
    %v8662 = vpow.pop %v8661
    %v8663 = vmul.f32 %v8595, 1.442695
    %v8664 = vpow.pop %v8663
    %v8665 = vmul.f32 %v8596, 1.442695
    %v8666 = vpow.pop %v8665
    %v8667 = vmul.f32 %v8597, 1.442695
    %v8668 = vpow.pop %v8667
    %v8669 = vmul.f32 %v8598, 1.442695
    %v8670 = vpow.pop %v8669
    %v8671 = vmul.f32 %v8599, 1.442695
    %v8672 = vpow.pop %v8671
    %v8673 = vmul.f32 %v8600, 1.442695
    %v8674 = vpow.pop %v8673
    %v8675 = vmul.f32 %v8601, 1.442695
    %v8676 = vpow.pop %v8675
    %v8677 = vmul.f32 %v8602, 1.442695
    %v8678 = vpow.pop %v8677
    %v8679 = vmul.f32 %v8603, 1.442695
    %v8680 = vpow.pop %v8679
    %v8681 = vmul.f32 %v8604, 1.442695
    %v8682 = vpow.pop %v8681
    %v8683 = vmul.f32 %v8605, 1.442695
    %v8684 = vpow.pop %v8683
    %v8685 = vmul.f32 %v8606, 1.442695
    %v8686 = vpow.pop %v8685
    %v8687 = vmul.f32 %v8607, 1.442695
    %v8688 = vpow.pop %v8687
    %v8689 = vmul.f32 %v8608, 1.442695
    %v8690 = vpow.pop %v8689
    %v8691 = vmul.f32 %v8609, 1.442695
    %v8692 = vpow.pop %v8691
    %v8693 = vmul.f32 %v8610, 1.442695
    %v8694 = vpow.pop %v8693
    %v8695 = vmul.f32 %v8611, 1.442695
    %v8696 = vpow.pop %v8695
    %v8697 = vmul.f32 %v8612, 1.442695
    %v8698 = vpow.pop %v8697
    %v8699 = vmul.f32 %v8613, 1.442695
    %v8700 = vpow.pop %v8699
    %v8701 = vmul.f32 %v8614, 1.442695
    %v8702 = vpow.pop %v8701
    %v8703 = vmul.f32 %v8615, 1.442695
    %v8704 = vpow.pop %v8703
    %v8705 = vmul.f32 %v8616, 1.442695
    %v8706 = vpow.pop %v8705
    %v8707 = vmul.f32 %v8617, 1.442695
    %v8708 = vpow.pop %v8707
    %v8709 = vmul.f32 %v8618, 1.442695
    %v8710 = vpow.pop %v8709
    %v8711 = vmul.f32 %v8619, 1.442695
    %v8712 = vpow.pop %v8711
    %v8713 = vmul.f32 %v8620, 1.442695
    %v8714 = vpow.pop %v8713
    %v8715 = vmul.f32 %v8621, 1.442695
    %v8716 = vpow.pop %v8715
    %v8717 = vmul.f32 %v8622, 1.442695
    %v8718 = vpow.pop %v8717
    %v8719 = vadd.f32 %v8624, 1.0
    %v8720 = vadd.f32 %v8626, 1.0
    %v8721 = vadd.f32 %v8628, 1.0
    %v8722 = vadd.f32 %v8630, 1.0
    %v8723 = vadd.f32 %v8632, 1.0
    %v8724 = vadd.f32 %v8634, 1.0
    %v8725 = vadd.f32 %v8636, 1.0
    %v8726 = vadd.f32 %v8638, 1.0
    %v8727 = vadd.f32 %v8640, 1.0
    %v8728 = vadd.f32 %v8642, 1.0
    %v8729 = vadd.f32 %v8644, 1.0
    %v8730 = vadd.f32 %v8646, 1.0
    %v8731 = vadd.f32 %v8648, 1.0
    %v8732 = vadd.f32 %v8650, 1.0
    %v8733 = vadd.f32 %v8652, 1.0
    %v8734 = vadd.f32 %v8654, 1.0
    %v8735 = vadd.f32 %v8656, 1.0
    %v8736 = vadd.f32 %v8658, 1.0
    %v8737 = vadd.f32 %v8660, 1.0
    %v8738 = vadd.f32 %v8662, 1.0
    %v8739 = vadd.f32 %v8664, 1.0
    %v8740 = vadd.f32 %v8666, 1.0
    %v8741 = vadd.f32 %v8668, 1.0
    %v8742 = vadd.f32 %v8670, 1.0
    %v8743 = vadd.f32 %v8672, 1.0
    %v8744 = vadd.f32 %v8674, 1.0
    %v8745 = vadd.f32 %v8676, 1.0
    %v8746 = vadd.f32 %v8678, 1.0
    %v8747 = vadd.f32 %v8680, 1.0
    %v8748 = vadd.f32 %v8682, 1.0
    %v8749 = vadd.f32 %v8684, 1.0
    %v8750 = vadd.f32 %v8686, 1.0
    %v8751 = vadd.f32 %v8688, 1.0
    %v8752 = vadd.f32 %v8690, 1.0
    %v8753 = vadd.f32 %v8692, 1.0
    %v8754 = vadd.f32 %v8694, 1.0
    %v8755 = vadd.f32 %v8696, 1.0
    %v8756 = vadd.f32 %v8698, 1.0
    %v8757 = vadd.f32 %v8700, 1.0
    %v8758 = vadd.f32 %v8702, 1.0
    %v8759 = vadd.f32 %v8704, 1.0
    %v8760 = vadd.f32 %v8706, 1.0
    %v8761 = vadd.f32 %v8708, 1.0
    %v8762 = vadd.f32 %v8710, 1.0
    %v8763 = vadd.f32 %v8712, 1.0
    %v8764 = vadd.f32 %v8714, 1.0
    %v8765 = vadd.f32 %v8716, 1.0
    %v8766 = vadd.f32 %v8718, 1.0
    %v8767 = vrcp.pop %v8719
    %v8768 = vmul.f32 1.0, %v8767
    %v8769 = vrcp.pop %v8720
    %v8770 = vmul.f32 1.0, %v8769
    %v8771 = vrcp.pop %v8721
    %v8772 = vmul.f32 1.0, %v8771
    %v8773 = vrcp.pop %v8722
    %v8774 = vmul.f32 1.0, %v8773
    %v8775 = vrcp.pop %v8723
    %v8776 = vmul.f32 1.0, %v8775
    %v8777 = vrcp.pop %v8724
    %v8778 = vmul.f32 1.0, %v8777
    %v8779 = vrcp.pop %v8725
    %v8780 = vmul.f32 1.0, %v8779
    %v8781 = vrcp.pop %v8726
    %v8782 = vmul.f32 1.0, %v8781
    %v8783 = vrcp.pop %v8727
    %v8784 = vmul.f32 1.0, %v8783
    %v8785 = vrcp.pop %v8728
    %v8786 = vmul.f32 1.0, %v8785
    %v8787 = vrcp.pop %v8729
    %v8788 = vmul.f32 1.0, %v8787
    %v8789 = vrcp.pop %v8730
    %v8790 = vmul.f32 1.0, %v8789
    %v8791 = vrcp.pop %v8731
    %v8792 = vmul.f32 1.0, %v8791
    %v8793 = vrcp.pop %v8732
    %v8794 = vmul.f32 1.0, %v8793
    %v8795 = vrcp.pop %v8733
    %v8796 = vmul.f32 1.0, %v8795
    %v8797 = vrcp.pop %v8734
    %v8798 = vmul.f32 1.0, %v8797
    %v8799 = vrcp.pop %v8735
    %v8800 = vmul.f32 1.0, %v8799
    %v8801 = vrcp.pop %v8736
    %v8802 = vmul.f32 1.0, %v8801
    %v8803 = vrcp.pop %v8737
    %v8804 = vmul.f32 1.0, %v8803
    %v8805 = vrcp.pop %v8738
    %v8806 = vmul.f32 1.0, %v8805
    %v8807 = vrcp.pop %v8739
    %v8808 = vmul.f32 1.0, %v8807
    %v8809 = vrcp.pop %v8740
    %v8810 = vmul.f32 1.0, %v8809
    %v8811 = vrcp.pop %v8741
    %v8812 = vmul.f32 1.0, %v8811
    %v8813 = vrcp.pop %v8742
    %v8814 = vmul.f32 1.0, %v8813
    %v8815 = vrcp.pop %v8743
    %v8816 = vmul.f32 1.0, %v8815
    %v8817 = vrcp.pop %v8744
    %v8818 = vmul.f32 1.0, %v8817
    %v8819 = vrcp.pop %v8745
    %v8820 = vmul.f32 1.0, %v8819
    %v8821 = vrcp.pop %v8746
    %v8822 = vmul.f32 1.0, %v8821
    %v8823 = vrcp.pop %v8747
    %v8824 = vmul.f32 1.0, %v8823
    %v8825 = vrcp.pop %v8748
    %v8826 = vmul.f32 1.0, %v8825
    %v8827 = vrcp.pop %v8749
    %v8828 = vmul.f32 1.0, %v8827
    %v8829 = vrcp.pop %v8750
    %v8830 = vmul.f32 1.0, %v8829
    %v8831 = vrcp.pop %v8751
    %v8832 = vmul.f32 1.0, %v8831
    %v8833 = vrcp.pop %v8752
    %v8834 = vmul.f32 1.0, %v8833
    %v8835 = vrcp.pop %v8753
    %v8836 = vmul.f32 1.0, %v8835
    %v8837 = vrcp.pop %v8754
    %v8838 = vmul.f32 1.0, %v8837
    %v8839 = vrcp.pop %v8755
    %v8840 = vmul.f32 1.0, %v8839
    %v8841 = vrcp.pop %v8756
    %v8842 = vmul.f32 1.0, %v8841
    %v8843 = vrcp.pop %v8757
    %v8844 = vmul.f32 1.0, %v8843
    %v8845 = vrcp.pop %v8758
    %v8846 = vmul.f32 1.0, %v8845
    %v8847 = vrcp.pop %v8759
    %v8848 = vmul.f32 1.0, %v8847
    %v8849 = vrcp.pop %v8760
    %v8850 = vmul.f32 1.0, %v8849
    %v8851 = vrcp.pop %v8761
    %v8852 = vmul.f32 1.0, %v8851
    %v8853 = vrcp.pop %v8762
    %v8854 = vmul.f32 1.0, %v8853
    %v8855 = vrcp.pop %v8763
    %v8856 = vmul.f32 1.0, %v8855
    %v8857 = vrcp.pop %v8764
    %v8858 = vmul.f32 1.0, %v8857
    %v8859 = vrcp.pop %v8765
    %v8860 = vmul.f32 1.0, %v8859
    %v8861 = vrcp.pop %v8766
    %v8862 = vmul.f32 1.0, %v8861
    %v8863 = vmul.f32 %v8527, %v8768
    %v8864 = vmul.f32 %v8528, %v8770
    %v8865 = vmul.f32 %v8529, %v8772
    %v8866 = vmul.f32 %v8530, %v8774
    %v8867 = vmul.f32 %v8531, %v8776
    %v8868 = vmul.f32 %v8532, %v8778
    %v8869 = vmul.f32 %v8533, %v8780
    %v8870 = vmul.f32 %v8534, %v8782
    %v8871 = vmul.f32 %v8535, %v8784
    %v8872 = vmul.f32 %v8536, %v8786
    %v8873 = vmul.f32 %v8537, %v8788
    %v8874 = vmul.f32 %v8538, %v8790
    %v8875 = vmul.f32 %v8539, %v8792
    %v8876 = vmul.f32 %v8540, %v8794
    %v8877 = vmul.f32 %v8541, %v8796
    %v8878 = vmul.f32 %v8542, %v8798
    %v8879 = vmul.f32 %v8543, %v8800
    %v8880 = vmul.f32 %v8544, %v8802
    %v8881 = vmul.f32 %v8545, %v8804
    %v8882 = vmul.f32 %v8546, %v8806
    %v8883 = vmul.f32 %v8547, %v8808
    %v8884 = vmul.f32 %v8548, %v8810
    %v8885 = vmul.f32 %v8549, %v8812
    %v8886 = vmul.f32 %v8550, %v8814
    %v8887 = vmul.f32 %v8551, %v8816
    %v8888 = vmul.f32 %v8552, %v8818
    %v8889 = vmul.f32 %v8553, %v8820
    %v8890 = vmul.f32 %v8554, %v8822
    %v8891 = vmul.f32 %v8555, %v8824
    %v8892 = vmul.f32 %v8556, %v8826
    %v8893 = vmul.f32 %v8557, %v8828
    %v8894 = vmul.f32 %v8558, %v8830
    %v8895 = vmul.f32 %v8559, %v8832
    %v8896 = vmul.f32 %v8560, %v8834
    %v8897 = vmul.f32 %v8561, %v8836
    %v8898 = vmul.f32 %v8562, %v8838
    %v8899 = vmul.f32 %v8563, %v8840
    %v8900 = vmul.f32 %v8564, %v8842
    %v8901 = vmul.f32 %v8565, %v8844
    %v8902 = vmul.f32 %v8566, %v8846
    %v8903 = vmul.f32 %v8567, %v8848
    %v8904 = vmul.f32 %v8568, %v8850
    %v8905 = vmul.f32 %v8569, %v8852
    %v8906 = vmul.f32 %v8570, %v8854
    %v8907 = vmul.f32 %v8571, %v8856
    %v8908 = vmul.f32 %v8572, %v8858
    %v8909 = vmul.f32 %v8573, %v8860
    %v8910 = vmul.f32 %v8574, %v8862
    %v8911 = vld [vmem:[%s4] sm:$0xff]
    %v8912 = vld [vmem:[%s4 + $0x8] sm:$0xff]
    %v8913 = vld [vmem:[%s4 + $0x10] sm:$0xff]
    %v8914 = vld [vmem:[%s4 + $0x18] sm:$0xff]
    %v8915 = vld [vmem:[%s4 + $0x20] sm:$0xff]
    %v8916 = vld [vmem:[%s4 + $0x28] sm:$0xff]
    %v8917 = vld [vmem:[%s4 + $0x30] sm:$0xff]
    %v8918 = vld [vmem:[%s4 + $0x38] sm:$0xff]
    %v8919 = vld [vmem:[%s4 + $0x40] sm:$0xff]
    %v8920 = vld [vmem:[%s4 + $0x48] sm:$0xff]
    %v8921 = vld [vmem:[%s4 + $0x50] sm:$0xff]
    %v8922 = vld [vmem:[%s4 + $0x58] sm:$0xff]
    %v8923 = vld [vmem:[%s4 + $0x60] sm:$0xff]
    %v8924 = vld [vmem:[%s4 + $0x68] sm:$0xff]
    %v8925 = vld [vmem:[%s4 + $0x70] sm:$0xff]
    %v8926 = vld [vmem:[%s4 + $0x78] sm:$0xff]
    %v8927 = vld [vmem:[%s4 + $0x80] sm:$0xff]
    %v8928 = vld [vmem:[%s4 + $0x88] sm:$0xff]
    %v8929 = vld [vmem:[%s4 + $0x90] sm:$0xff]
    %v8930 = vld [vmem:[%s4 + $0x98] sm:$0xff]
    %v8931 = vld [vmem:[%s4 + $0xa0] sm:$0xff]
    %v8932 = vld [vmem:[%s4 + $0xa8] sm:$0xff]
    %v8933 = vld [vmem:[%s4 + $0xb0] sm:$0xff]
    %v8934 = vld [vmem:[%s4 + $0xb8] sm:$0xff]
    %v8935 = vld [vmem:[%s4 + $0xc0] sm:$0xff]
    %v8936 = vld [vmem:[%s4 + $0xc8] sm:$0xff]
    %v8937 = vld [vmem:[%s4 + $0xd0] sm:$0xff]
    %v8938 = vld [vmem:[%s4 + $0xd8] sm:$0xff]
    %v8939 = vld [vmem:[%s4 + $0xe0] sm:$0xff]
    %v8940 = vld [vmem:[%s4 + $0xe8] sm:$0xff]
    %v8941 = vld [vmem:[%s4 + $0xf0] sm:$0xff]
    %v8942 = vld [vmem:[%s4 + $0xf8] sm:$0xff]
    %v8943 = vld [vmem:[%s4 + $0x100] sm:$0xff]
    %v8944 = vld [vmem:[%s4 + $0x108] sm:$0xff]
    %v8945 = vld [vmem:[%s4 + $0x110] sm:$0xff]
    %v8946 = vld [vmem:[%s4 + $0x118] sm:$0xff]
    %v8947 = vld [vmem:[%s4 + $0x120] sm:$0xff]
    %v8948 = vld [vmem:[%s4 + $0x128] sm:$0xff]
    %v8949 = vld [vmem:[%s4 + $0x130] sm:$0xff]
    %v8950 = vld [vmem:[%s4 + $0x138] sm:$0xff]
    %v8951 = vld [vmem:[%s4 + $0x140] sm:$0xff]
    %v8952 = vld [vmem:[%s4 + $0x148] sm:$0xff]
    %v8953 = vld [vmem:[%s4 + $0x150] sm:$0xff]
    %v8954 = vld [vmem:[%s4 + $0x158] sm:$0xff]
    %v8955 = vld [vmem:[%s4 + $0x160] sm:$0xff]
    %v8956 = vld [vmem:[%s4 + $0x168] sm:$0xff]
    %v8957 = vld [vmem:[%s4 + $0x170] sm:$0xff]
    %v8958 = vld [vmem:[%s4 + $0x178] sm:$0xff]
    %v8959 = vld [vmem:[%s4 + $0x180] sm:$0xff]
    %v8960 = vld [vmem:[%s4 + $0x188] sm:$0xff]
    %v8961 = vld [vmem:[%s4 + $0x190] sm:$0xff]
    %v8962 = vld [vmem:[%s4 + $0x198] sm:$0xff]
    %v8963 = vld [vmem:[%s4 + $0x1a0] sm:$0xff]
    %v8964 = vld [vmem:[%s4 + $0x1a8] sm:$0xff]
    %v8965 = vld [vmem:[%s4 + $0x1b0] sm:$0xff]
    %v8966 = vld [vmem:[%s4 + $0x1b8] sm:$0xff]
    %v8967 = vld [vmem:[%s4 + $0x1c0] sm:$0xff]
    %v8968 = vld [vmem:[%s4 + $0x1c8] sm:$0xff]
    %v8969 = vld [vmem:[%s4 + $0x1d0] sm:$0xff]
    %v8970 = vld [vmem:[%s4 + $0x1d8] sm:$0xff]
    %v8971 = vld [vmem:[%s4 + $0x1e0] sm:$0xff]
    %v8972 = vld [vmem:[%s4 + $0x1e8] sm:$0xff]
    %v8973 = vld [vmem:[%s4 + $0x1f0] sm:$0xff]
    %v8974 = vld [vmem:[%s4 + $0x1f8] sm:$0xff]
    %v8975 = vld [vmem:[%s4 + $0x200] sm:$0xff]
    %v8976 = vld [vmem:[%s4 + $0x208] sm:$0xff]
    %v8977 = vld [vmem:[%s4 + $0x210] sm:$0xff]
    %v8978 = vld [vmem:[%s4 + $0x218] sm:$0xff]
    %v8979 = vld [vmem:[%s4 + $0x220] sm:$0xff]
    %v8980 = vld [vmem:[%s4 + $0x228] sm:$0xff]
    %v8981 = vld [vmem:[%s4 + $0x230] sm:$0xff]
    %v8982 = vld [vmem:[%s4 + $0x238] sm:$0xff]
    %v8983 = vld [vmem:[%s4 + $0x240] sm:$0xff]
    %v8984 = vld [vmem:[%s4 + $0x248] sm:$0xff]
    %v8985 = vld [vmem:[%s4 + $0x250] sm:$0xff]
    %v8986 = vld [vmem:[%s4 + $0x258] sm:$0xff]
    %v8987 = vld [vmem:[%s4 + $0x260] sm:$0xff]
    %v8988 = vld [vmem:[%s4 + $0x268] sm:$0xff]
    %v8989 = vld [vmem:[%s4 + $0x270] sm:$0xff]
    %v8990 = vld [vmem:[%s4 + $0x278] sm:$0xff]
    %v8991 = vld [vmem:[%s4 + $0x280] sm:$0xff]
    %v8992 = vld [vmem:[%s4 + $0x288] sm:$0xff]
    %v8993 = vld [vmem:[%s4 + $0x290] sm:$0xff]
    %v8994 = vld [vmem:[%s4 + $0x298] sm:$0xff]
    %v8995 = vld [vmem:[%s4 + $0x2a0] sm:$0xff]
    %v8996 = vld [vmem:[%s4 + $0x2a8] sm:$0xff]
    %v8997 = vld [vmem:[%s4 + $0x2b0] sm:$0xff]
    %v8998 = vld [vmem:[%s4 + $0x2b8] sm:$0xff]
    %v8999 = vld [vmem:[%s4 + $0x2c0] sm:$0xff]
    %v9000 = vld [vmem:[%s4 + $0x2c8] sm:$0xff]
    %v9001 = vld [vmem:[%s4 + $0x2d0] sm:$0xff]
    %v9002 = vld [vmem:[%s4 + $0x2d8] sm:$0xff]
    %v9003 = vld [vmem:[%s4 + $0x2e0] sm:$0xff]
    %v9004 = vld [vmem:[%s4 + $0x2e8] sm:$0xff]
    %v9005 = vld [vmem:[%s4 + $0x2f0] sm:$0xff]
    %v9006 = vld [vmem:[%s4 + $0x2f8] sm:$0xff]
    %v9007 = vld [vmem:[%s4 + $0x300] sm:$0xff]
    %v9008 = vld [vmem:[%s4 + $0x308] sm:$0xff]
    %v9009 = vld [vmem:[%s4 + $0x310] sm:$0xff]
    %v9010 = vld [vmem:[%s4 + $0x318] sm:$0xff]
    %v9011 = vld [vmem:[%s4 + $0x320] sm:$0xff]
    %v9012 = vld [vmem:[%s4 + $0x328] sm:$0xff]
    %v9013 = vld [vmem:[%s4 + $0x330] sm:$0xff]
    %v9014 = vld [vmem:[%s4 + $0x338] sm:$0xff]
    %v9015 = vld [vmem:[%s4 + $0x340] sm:$0xff]
    %v9016 = vld [vmem:[%s4 + $0x348] sm:$0xff]
    %v9017 = vld [vmem:[%s4 + $0x350] sm:$0xff]
    %v9018 = vld [vmem:[%s4 + $0x358] sm:$0xff]
    %v9019 = vld [vmem:[%s4 + $0x360] sm:$0xff]
    %v9020 = vld [vmem:[%s4 + $0x368] sm:$0xff]
    %v9021 = vld [vmem:[%s4 + $0x370] sm:$0xff]
    %v9022 = vld [vmem:[%s4 + $0x378] sm:$0xff]
    %v9023 = vld [vmem:[%s4 + $0x380] sm:$0xff]
    %v9024 = vld [vmem:[%s4 + $0x388] sm:$0xff]
    %v9025 = vld [vmem:[%s4 + $0x390] sm:$0xff]
    %v9026 = vld [vmem:[%s4 + $0x398] sm:$0xff]
    %v9027 = vld [vmem:[%s4 + $0x3a0] sm:$0xff]
    %v9028 = vld [vmem:[%s4 + $0x3a8] sm:$0xff]
    %v9029 = vld [vmem:[%s4 + $0x3b0] sm:$0xff]
    %v9030 = vld [vmem:[%s4 + $0x3b8] sm:$0xff]
    %v9031 = vld [vmem:[%s4 + $0x3c0] sm:$0xff]
    %v9032 = vld [vmem:[%s4 + $0x3c8] sm:$0xff]
    %v9033 = vld [vmem:[%s4 + $0x3d0] sm:$0xff]
    %v9034 = vld [vmem:[%s4 + $0x3d8] sm:$0xff]
    %v9035 = vld [vmem:[%s4 + $0x3e0] sm:$0xff]
    %v9036 = vld [vmem:[%s4 + $0x3e8] sm:$0xff]
    %v9037 = vld [vmem:[%s4 + $0x3f0] sm:$0xff]
    %v9038 = vld [vmem:[%s4 + $0x3f8] sm:$0xff]
    %v9039 = vld [vmem:[%s4 + $0x400] sm:$0xff]
    %v9040 = vld [vmem:[%s4 + $0x408] sm:$0xff]
    %v9041 = vld [vmem:[%s4 + $0x410] sm:$0xff]
    %v9042 = vld [vmem:[%s4 + $0x418] sm:$0xff]
    %v9043 = vld [vmem:[%s4 + $0x420] sm:$0xff]
    %v9044 = vld [vmem:[%s4 + $0x428] sm:$0xff]
    %v9045 = vld [vmem:[%s4 + $0x430] sm:$0xff]
    %v9046 = vld [vmem:[%s4 + $0x438] sm:$0xff]
    %v9047 = vld [vmem:[%s4 + $0x440] sm:$0xff]
    %v9048 = vld [vmem:[%s4 + $0x448] sm:$0xff]
    %v9049 = vld [vmem:[%s4 + $0x450] sm:$0xff]
    %v9050 = vld [vmem:[%s4 + $0x458] sm:$0xff]
    %v9051 = vld [vmem:[%s4 + $0x460] sm:$0xff]
    %v9052 = vld [vmem:[%s4 + $0x468] sm:$0xff]
    %v9053 = vld [vmem:[%s4 + $0x470] sm:$0xff]
    %v9054 = vld [vmem:[%s4 + $0x478] sm:$0xff]
    %v9055 = vld [vmem:[%s4 + $0x480] sm:$0xff]
    %v9056 = vld [vmem:[%s4 + $0x488] sm:$0xff]
    %v9057 = vld [vmem:[%s4 + $0x490] sm:$0xff]
    %v9058 = vld [vmem:[%s4 + $0x498] sm:$0xff]
    %v9059 = vld [vmem:[%s4 + $0x4a0] sm:$0xff]
    %v9060 = vld [vmem:[%s4 + $0x4a8] sm:$0xff]
    %v9061 = vld [vmem:[%s4 + $0x4b0] sm:$0xff]
    %v9062 = vld [vmem:[%s4 + $0x4b8] sm:$0xff]
    %v9063 = vld [vmem:[%s4 + $0x4c0] sm:$0xff]
    %v9064 = vld [vmem:[%s4 + $0x4c8] sm:$0xff]
    %v9065 = vld [vmem:[%s4 + $0x4d0] sm:$0xff]
    %v9066 = vld [vmem:[%s4 + $0x4d8] sm:$0xff]
    %v9067 = vld [vmem:[%s4 + $0x4e0] sm:$0xff]
    %v9068 = vld [vmem:[%s4 + $0x4e8] sm:$0xff]
    %v9069 = vld [vmem:[%s4 + $0x4f0] sm:$0xff]
    %v9070 = vld [vmem:[%s4 + $0x4f8] sm:$0xff]
    %v9071 = vld [vmem:[%s4 + $0x500] sm:$0xff]
    %v9072 = vld [vmem:[%s4 + $0x508] sm:$0xff]
    %v9073 = vld [vmem:[%s4 + $0x510] sm:$0xff]
    %v9074 = vld [vmem:[%s4 + $0x518] sm:$0xff]
    %v9075 = vld [vmem:[%s4 + $0x520] sm:$0xff]
    %v9076 = vld [vmem:[%s4 + $0x528] sm:$0xff]
    %v9077 = vld [vmem:[%s4 + $0x530] sm:$0xff]
    %v9078 = vld [vmem:[%s4 + $0x538] sm:$0xff]
    %v9079 = vld [vmem:[%s4 + $0x540] sm:$0xff]
    %v9080 = vld [vmem:[%s4 + $0x548] sm:$0xff]
    %v9081 = vld [vmem:[%s4 + $0x550] sm:$0xff]
    %v9082 = vld [vmem:[%s4 + $0x558] sm:$0xff]
    %v9083 = vld [vmem:[%s4 + $0x560] sm:$0xff]
    %v9084 = vld [vmem:[%s4 + $0x568] sm:$0xff]
    %v9085 = vld [vmem:[%s4 + $0x570] sm:$0xff]
    %v9086 = vld [vmem:[%s4 + $0x578] sm:$0xff]
    %v9087 = vld [vmem:[%s4 + $0x580] sm:$0xff]
    %v9088 = vld [vmem:[%s4 + $0x588] sm:$0xff]
    %v9089 = vld [vmem:[%s4 + $0x590] sm:$0xff]
    %v9090 = vld [vmem:[%s4 + $0x598] sm:$0xff]
    %v9091 = vld [vmem:[%s4 + $0x5a0] sm:$0xff]
    %v9092 = vld [vmem:[%s4 + $0x5a8] sm:$0xff]
    %v9093 = vld [vmem:[%s4 + $0x5b0] sm:$0xff]
    %v9094 = vld [vmem:[%s4 + $0x5b8] sm:$0xff]
    %v9095 = vld [vmem:[%s4 + $0x5c0] sm:$0xff]
    %v9096 = vld [vmem:[%s4 + $0x5c8] sm:$0xff]
    %v9097 = vld [vmem:[%s4 + $0x5d0] sm:$0xff]
    %v9098 = vld [vmem:[%s4 + $0x5d8] sm:$0xff]
    %v9099 = vld [vmem:[%s4 + $0x5e0] sm:$0xff]
    %v9100 = vld [vmem:[%s4 + $0x5e8] sm:$0xff]
    %v9101 = vld [vmem:[%s4 + $0x5f0] sm:$0xff]
    %v9102 = vld [vmem:[%s4 + $0x5f8] sm:$0xff]
    %v9103 = vld [vmem:[%s4 + $0x600] sm:$0xff]
    %v9104 = vld [vmem:[%s4 + $0x608] sm:$0xff]
    %v9105 = vld [vmem:[%s4 + $0x610] sm:$0xff]
    %v9106 = vld [vmem:[%s4 + $0x618] sm:$0xff]
    %v9107 = vld [vmem:[%s4 + $0x620] sm:$0xff]
    %v9108 = vld [vmem:[%s4 + $0x628] sm:$0xff]
    %v9109 = vld [vmem:[%s4 + $0x630] sm:$0xff]
    %v9110 = vld [vmem:[%s4 + $0x638] sm:$0xff]
    %v9111 = vld [vmem:[%s4 + $0x640] sm:$0xff]
    %v9112 = vld [vmem:[%s4 + $0x648] sm:$0xff]
    %v9113 = vld [vmem:[%s4 + $0x650] sm:$0xff]
    %v9114 = vld [vmem:[%s4 + $0x658] sm:$0xff]
    %v9115 = vld [vmem:[%s4 + $0x660] sm:$0xff]
    %v9116 = vld [vmem:[%s4 + $0x668] sm:$0xff]
    %v9117 = vld [vmem:[%s4 + $0x670] sm:$0xff]
    %v9118 = vld [vmem:[%s4 + $0x678] sm:$0xff]
    %v9119 = vld [vmem:[%s4 + $0x680] sm:$0xff]
    %v9120 = vld [vmem:[%s4 + $0x688] sm:$0xff]
    %v9121 = vld [vmem:[%s4 + $0x690] sm:$0xff]
    %v9122 = vld [vmem:[%s4 + $0x698] sm:$0xff]
    %v9123 = vld [vmem:[%s4 + $0x6a0] sm:$0xff]
    %v9124 = vld [vmem:[%s4 + $0x6a8] sm:$0xff]
    %v9125 = vld [vmem:[%s4 + $0x6b0] sm:$0xff]
    %v9126 = vld [vmem:[%s4 + $0x6b8] sm:$0xff]
    %v9127 = vld [vmem:[%s4 + $0x6c0] sm:$0xff]
    %v9128 = vld [vmem:[%s4 + $0x6c8] sm:$0xff]
    %v9129 = vld [vmem:[%s4 + $0x6d0] sm:$0xff]
    %v9130 = vld [vmem:[%s4 + $0x6d8] sm:$0xff]
    %v9131 = vld [vmem:[%s4 + $0x6e0] sm:$0xff]
    %v9132 = vld [vmem:[%s4 + $0x6e8] sm:$0xff]
    %v9133 = vld [vmem:[%s4 + $0x6f0] sm:$0xff]
    %v9134 = vld [vmem:[%s4 + $0x6f8] sm:$0xff]
    %v9135 = vld [vmem:[%s4 + $0x700] sm:$0xff]
    %v9136 = vld [vmem:[%s4 + $0x708] sm:$0xff]
    %v9137 = vld [vmem:[%s4 + $0x710] sm:$0xff]
    %v9138 = vld [vmem:[%s4 + $0x718] sm:$0xff]
    %v9139 = vld [vmem:[%s4 + $0x720] sm:$0xff]
    %v9140 = vld [vmem:[%s4 + $0x728] sm:$0xff]
    %v9141 = vld [vmem:[%s4 + $0x730] sm:$0xff]
    %v9142 = vld [vmem:[%s4 + $0x738] sm:$0xff]
    %v9143 = vld [vmem:[%s4 + $0x740] sm:$0xff]
    %v9144 = vld [vmem:[%s4 + $0x748] sm:$0xff]
    %v9145 = vld [vmem:[%s4 + $0x750] sm:$0xff]
    %v9146 = vld [vmem:[%s4 + $0x758] sm:$0xff]
    %v9147 = vld [vmem:[%s4 + $0x760] sm:$0xff]
    %v9148 = vld [vmem:[%s4 + $0x768] sm:$0xff]
    %v9149 = vld [vmem:[%s4 + $0x770] sm:$0xff]
    %v9150 = vld [vmem:[%s4 + $0x778] sm:$0xff]
    %v9151 = vld [vmem:[%s4 + $0x780] sm:$0x1]
    %v9152 = vld [vmem:[%s4 + $0x788] sm:$0x1]
    %v9153 = vld [vmem:[%s4 + $0x790] sm:$0x1]
    %v9154 = vld [vmem:[%s4 + $0x798] sm:$0x1]
    %v9155 = vld [vmem:[%s4 + $0x7a0] sm:$0x1]
    %v9156 = vld [vmem:[%s4 + $0x7a8] sm:$0x1]
    %v9158 = vsel %vm2200, %v8868, 0
    %v9161 = vsel %vm2200, %v8874, 0
    %v9164 = vsel %vm2200, %v8880, 0
    %v9167 = vsel %vm2200, %v8886, 0
    %v9170 = vsel %vm2200, %v8892, 0
    %v9173 = vsel %vm2200, %v8898, 0
    %v9176 = vsel %vm2200, %v8904, 0
    %v9179 = vsel %vm2200, %v8910, 0
    %v9182 = vsel %vm2200, %v8916, 0
    %v9185 = vsel %vm2200, %v8922, 0
    %v9188 = vsel %vm2200, %v8928, 0
    %v9191 = vsel %vm2200, %v8934, 0
    %v9194 = vsel %vm2200, %v8940, 0
    %v9197 = vsel %vm2200, %v8946, 0
    %v9200 = vsel %vm2200, %v8952, 0
    %v9203 = vsel %vm2200, %v8958, 0
    %v9206 = vsel %vm2200, %v8964, 0
    %v9209 = vsel %vm2200, %v8970, 0
    %v9212 = vsel %vm2200, %v8976, 0
    %v9215 = vsel %vm2200, %v8982, 0
    %v9218 = vsel %vm2200, %v8988, 0
    %v9221 = vsel %vm2200, %v8994, 0
    %v9224 = vsel %vm2200, %v9000, 0
    %v9227 = vsel %vm2200, %v9006, 0
    %v9230 = vsel %vm2200, %v9012, 0
    %v9233 = vsel %vm2200, %v9018, 0
    %v9236 = vsel %vm2200, %v9024, 0
    %v9239 = vsel %vm2200, %v9030, 0
    %v9242 = vsel %vm2200, %v9036, 0
    %v9245 = vsel %vm2200, %v9042, 0
    %v9248 = vsel %vm2200, %v9048, 0
    %v9251 = vsel %vm2200, %v9054, 0
    %v9254 = vsel %vm2200, %v9060, 0
    %v9257 = vsel %vm2200, %v9066, 0
    %v9260 = vsel %vm2200, %v9072, 0
    %v9263 = vsel %vm2200, %v9078, 0
    %v9266 = vsel %vm2200, %v9084, 0
    %v9269 = vsel %vm2200, %v9090, 0
    %v9272 = vsel %vm2200, %v9096, 0
    %v9275 = vsel %vm2200, %v9102, 0
    %v9278 = vsel %vm2200, %v9108, 0
    %v9281 = vsel %vm2200, %v9114, 0
    %v9284 = vsel %vm2200, %v9120, 0
    %v9287 = vsel %vm2200, %v9126, 0
    %v9290 = vsel %vm2200, %v9132, 0
    %v9293 = vsel %vm2200, %v9138, 0
    %v9296 = vsel %vm2200, %v9144, 0
    %v9299 = vsel %vm2200, %v9150, 0
    %v9302 = vsel %vm2200, %v9156, 0
    %9304 = vmatprep.subr.mxu0 %v9002
    %9305 = vmatpush1.xpose.msra.mxu0 %v9001
    %9306 = vmatprep.subr.mxu0 %v8996
    %9307 = vmatpush1.xpose.msra.mxu0 %v8995
    %9308 = vmatprep.subr.mxu0 %v8990
    %9309 = vmatpush1.xpose.msra.mxu0 %v8989
    %9310 = vmatprep.subr.mxu0 %v8984
    %9311 = vmatpush1.xpose.msra.mxu0 %v8983
    %9312 = vmatprep.subr.mxu0 %v8978
    %9313 = vmatpush1.xpose.msra.mxu0 %v8977
    %9314 = vmatprep.subr.mxu0 %v8972
    %9315 = vmatpush1.xpose.msra.mxu0 %v8971
    %9316 = vmatprep.subr.mxu0 %v8966
    %9317 = vmatpush1.xpose.msra.mxu0 %v8965
    %9318 = vmatprep.subr.mxu0 %v8960
    %9319 = vmatpush1.xpose.msra.mxu0 %v8959
    %9320 = vmatprep.subr.mxu0 %v8954
    %9321 = vmatpush1.xpose.msra.mxu0 %v8953
    %9322 = vmatprep.subr.mxu0 %v8948
    %9323 = vmatpush1.xpose.msra.mxu0 %v8947
    %9324 = vmatprep.subr.mxu0 %v8942
    %9325 = vmatpush1.xpose.msra.mxu0 %v8941
    %9326 = vmatprep.subr.mxu0 %v8936
    %9327 = vmatpush1.xpose.msra.mxu0 %v8935
    %9328 = vmatprep.subr.mxu0 %v8930
    %9329 = vmatpush1.xpose.msra.mxu0 %v8929
    %9330 = vmatprep.subr.mxu0 %v8924
    %9331 = vmatpush1.xpose.msra.mxu0 %v8923
    %9332 = vmatprep.subr.mxu0 %v8918
    %9333 = vmatpush1.xpose.msra.mxu0 %v8917
    %9334 = vmatprep.subr.mxu0 %v8912
    %9335 = vmatpush1.xpose.msra.mxu0 %v8911
    %9336 = vmatprep.subr.mxu0 %v9098
    %9337 = vmatpush2.xpose.msra.mxu0 %v9097
    %9338 = vmatprep.subr.mxu0 %v9092
    %9339 = vmatpush2.xpose.msra.mxu0 %v9091
    %9340 = vmatprep.subr.mxu0 %v9086
    %9341 = vmatpush2.xpose.msra.mxu0 %v9085
    %9342 = vmatprep.subr.mxu0 %v9080
    %9343 = vmatpush2.xpose.msra.mxu0 %v9079
    %9344 = vmatprep.subr.mxu0 %v9074
    %9345 = vmatpush2.xpose.msra.mxu0 %v9073
    %9346 = vmatprep.subr.mxu0 %v9068
    %9347 = vmatpush2.xpose.msra.mxu0 %v9067
    %9348 = vmatprep.subr.mxu0 %v9062
    %9349 = vmatpush2.xpose.msra.mxu0 %v9061
    %9350 = vmatprep.subr.mxu0 %v9056
    %9351 = vmatpush2.xpose.msra.mxu0 %v9055
    %9352 = vmatprep.subr.mxu0 %v9050
    %9353 = vmatpush2.xpose.msra.mxu0 %v9049
    %9354 = vmatprep.subr.mxu0 %v9044
    %9355 = vmatpush2.xpose.msra.mxu0 %v9043
    %9356 = vmatprep.subr.mxu0 %v9038
    %9357 = vmatpush2.xpose.msra.mxu0 %v9037
    %9358 = vmatprep.subr.mxu0 %v9032
    %9359 = vmatpush2.xpose.msra.mxu0 %v9031
    %9360 = vmatprep.subr.mxu0 %v9026
    %9361 = vmatpush2.xpose.msra.mxu0 %v9025
    %9362 = vmatprep.subr.mxu0 %v9020
    %9363 = vmatpush2.xpose.msra.mxu0 %v9019
    %9364 = vmatprep.subr.mxu0 %v9014
    %9365 = vmatpush2.xpose.msra.mxu0 %v9013
    %9366 = vmatprep.subr.mxu0 %v9008
    %9367 = vmatpush2.xpose.msra.mxu0 %v9007
    %9368 = vmatprep.mubr.f32.mxu0 %v8864
    %9369 = vmatmul.mubr.f32.gmra.mxu0 %v8863
    %v9370 = vpop.f32.mrf.mxu0
    %v9371 = vadd.f32 0.0, %v9370
    %v9372 = vpop.f32.mrf.mxu0
    %v9373 = vadd.f32 0.0, %v9372
    %9374 = vmatprep.mubr.f32.mxu0 %v8870
    %9375 = vmatmul.mubr.f32.gmra.mxu0 %v8869
    %v9376 = vpop.f32.mrf.mxu0
    %v9377 = vadd.f32 0.0, %v9376
    %v9378 = vpop.f32.mrf.mxu0
    %v9379 = vadd.f32 0.0, %v9378
    %9380 = vmatprep.mubr.f32.mxu0 %v8876
    %9381 = vmatmul.mubr.f32.gmra.mxu0 %v8875
    %v9382 = vpop.f32.mrf.mxu0
    %v9383 = vadd.f32 0.0, %v9382
    %v9384 = vpop.f32.mrf.mxu0
    %v9385 = vadd.f32 0.0, %v9384
    %9386 = vmatprep.mubr.f32.mxu0 %v8882
    %9387 = vmatmul.mubr.f32.gmra.mxu0 %v8881
    %v9388 = vpop.f32.mrf.mxu0
    %v9389 = vadd.f32 0.0, %v9388
    %v9390 = vpop.f32.mrf.mxu0
    %v9391 = vadd.f32 0.0, %v9390
    %9392 = vmatprep.mubr.f32.mxu0 %v8888
    %9393 = vmatmul.mubr.f32.gmra.mxu0 %v8887
    %v9394 = vpop.f32.mrf.mxu0
    %v9395 = vadd.f32 0.0, %v9394
    %v9396 = vpop.f32.mrf.mxu0
    %v9397 = vadd.f32 0.0, %v9396
    %9398 = vmatprep.mubr.f32.mxu0 %v8894
    %9399 = vmatmul.mubr.f32.gmra.mxu0 %v8893
    %v9400 = vpop.f32.mrf.mxu0
    %v9401 = vadd.f32 0.0, %v9400
    %v9402 = vpop.f32.mrf.mxu0
    %v9403 = vadd.f32 0.0, %v9402
    %9404 = vmatprep.mubr.f32.mxu0 %v8900
    %9405 = vmatmul.mubr.f32.gmra.mxu0 %v8899
    %v9406 = vpop.f32.mrf.mxu0
    %v9407 = vadd.f32 0.0, %v9406
    %v9408 = vpop.f32.mrf.mxu0
    %v9409 = vadd.f32 0.0, %v9408
    %9410 = vmatprep.mubr.f32.mxu0 %v8906
    %9411 = vmatmul.mubr.f32.gmra.mxu0 %v8905
    %v9412 = vpop.f32.mrf.mxu0
    %v9413 = vadd.f32 0.0, %v9412
    %v9414 = vpop.f32.mrf.mxu0
    %v9415 = vadd.f32 0.0, %v9414
    %9416 = vdwg.mxu0
    %9417 = vmatprep.subr.mxu0 %v9004
    %9418 = vmatpush1.xpose.msra.mxu0 %v9003
    %9419 = vmatprep.subr.mxu0 %v8998
    %9420 = vmatpush1.xpose.msra.mxu0 %v8997
    %9421 = vmatprep.subr.mxu0 %v8992
    %9422 = vmatpush1.xpose.msra.mxu0 %v8991
    %9423 = vmatprep.subr.mxu0 %v8986
    %9424 = vmatpush1.xpose.msra.mxu0 %v8985
    %9425 = vmatprep.subr.mxu0 %v8980
    %9426 = vmatpush1.xpose.msra.mxu0 %v8979
    %9427 = vmatprep.subr.mxu0 %v8974
    %9428 = vmatpush1.xpose.msra.mxu0 %v8973
    %9429 = vmatprep.subr.mxu0 %v8968
    %9430 = vmatpush1.xpose.msra.mxu0 %v8967
    %9431 = vmatprep.subr.mxu0 %v8962
    %9432 = vmatpush1.xpose.msra.mxu0 %v8961
    %9433 = vmatprep.subr.mxu0 %v8956
    %9434 = vmatpush1.xpose.msra.mxu0 %v8955
    %9435 = vmatprep.subr.mxu0 %v8950
    %9436 = vmatpush1.xpose.msra.mxu0 %v8949
    %9437 = vmatprep.subr.mxu0 %v8944
    %9438 = vmatpush1.xpose.msra.mxu0 %v8943
    %9439 = vmatprep.subr.mxu0 %v8938
    %9440 = vmatpush1.xpose.msra.mxu0 %v8937
    %9441 = vmatprep.subr.mxu0 %v8932
    %9442 = vmatpush1.xpose.msra.mxu0 %v8931
    %9443 = vmatprep.subr.mxu0 %v8926
    %9444 = vmatpush1.xpose.msra.mxu0 %v8925
    %9445 = vmatprep.subr.mxu0 %v8920
    %9446 = vmatpush1.xpose.msra.mxu0 %v8919
    %9447 = vmatprep.subr.mxu0 %v8914
    %9448 = vmatpush1.xpose.msra.mxu0 %v8913
    %9449 = vmatprep.subr.mxu0 %v9100
    %9450 = vmatpush2.xpose.msra.mxu0 %v9099
    %9451 = vmatprep.subr.mxu0 %v9094
    %9452 = vmatpush2.xpose.msra.mxu0 %v9093
    %9453 = vmatprep.subr.mxu0 %v9088
    %9454 = vmatpush2.xpose.msra.mxu0 %v9087
    %9455 = vmatprep.subr.mxu0 %v9082
    %9456 = vmatpush2.xpose.msra.mxu0 %v9081
    %9457 = vmatprep.subr.mxu0 %v9076
    %9458 = vmatpush2.xpose.msra.mxu0 %v9075
    %9459 = vmatprep.subr.mxu0 %v9070
    %9460 = vmatpush2.xpose.msra.mxu0 %v9069
    %9461 = vmatprep.subr.mxu0 %v9064
    %9462 = vmatpush2.xpose.msra.mxu0 %v9063
    %9463 = vmatprep.subr.mxu0 %v9058
    %9464 = vmatpush2.xpose.msra.mxu0 %v9057
    %9465 = vmatprep.subr.mxu0 %v9052
    %9466 = vmatpush2.xpose.msra.mxu0 %v9051
    %9467 = vmatprep.subr.mxu0 %v9046
    %9468 = vmatpush2.xpose.msra.mxu0 %v9045
    %9469 = vmatprep.subr.mxu0 %v9040
    %9470 = vmatpush2.xpose.msra.mxu0 %v9039
    %9471 = vmatprep.subr.mxu0 %v9034
    %9472 = vmatpush2.xpose.msra.mxu0 %v9033
    %9473 = vmatprep.subr.mxu0 %v9028
    %9474 = vmatpush2.xpose.msra.mxu0 %v9027
    %9475 = vmatprep.subr.mxu0 %v9022
    %9476 = vmatpush2.xpose.msra.mxu0 %v9021
    %9477 = vmatprep.subr.mxu0 %v9016
    %9478 = vmatpush2.xpose.msra.mxu0 %v9015
    %9479 = vmatprep.subr.mxu0 %v9010
    %9480 = vmatpush2.xpose.msra.mxu0 %v9009
    %9481 = vmatprep.mubr.f32.mxu0 %v8866
    %9482 = vmatmul.mubr.f32.gmra.mxu0 %v8865
    %v9483 = vpop.f32.mrf.mxu0
    %v9484 = vadd.f32 %v9371, %v9483
    %v9485 = vpop.f32.mrf.mxu0
    %v9486 = vadd.f32 %v9373, %v9485
    %9487 = vmatprep.mubr.f32.mxu0 %v8872
    %9488 = vmatmul.mubr.f32.gmra.mxu0 %v8871
    %v9489 = vpop.f32.mrf.mxu0
    %v9490 = vadd.f32 %v9377, %v9489
    %v9491 = vpop.f32.mrf.mxu0
    %v9492 = vadd.f32 %v9379, %v9491
    %9493 = vmatprep.mubr.f32.mxu0 %v8878
    %9494 = vmatmul.mubr.f32.gmra.mxu0 %v8877
    %v9495 = vpop.f32.mrf.mxu0
    %v9496 = vadd.f32 %v9383, %v9495
    %v9497 = vpop.f32.mrf.mxu0
    %v9498 = vadd.f32 %v9385, %v9497
    %9499 = vmatprep.mubr.f32.mxu0 %v8884
    %9500 = vmatmul.mubr.f32.gmra.mxu0 %v8883
    %v9501 = vpop.f32.mrf.mxu0
    %v9502 = vadd.f32 %v9389, %v9501
    %v9503 = vpop.f32.mrf.mxu0
    %v9504 = vadd.f32 %v9391, %v9503
    %9505 = vmatprep.mubr.f32.mxu0 %v8890
    %9506 = vmatmul.mubr.f32.gmra.mxu0 %v8889
    %v9507 = vpop.f32.mrf.mxu0
    %v9508 = vadd.f32 %v9395, %v9507
    %v9509 = vpop.f32.mrf.mxu0
    %v9510 = vadd.f32 %v9397, %v9509
    %9511 = vmatprep.mubr.f32.mxu0 %v8896
    %9512 = vmatmul.mubr.f32.gmra.mxu0 %v8895
    %v9513 = vpop.f32.mrf.mxu0
    %v9514 = vadd.f32 %v9401, %v9513
    %v9515 = vpop.f32.mrf.mxu0
    %v9516 = vadd.f32 %v9403, %v9515
    %9517 = vmatprep.mubr.f32.mxu0 %v8902
    %9518 = vmatmul.mubr.f32.gmra.mxu0 %v8901
    %v9519 = vpop.f32.mrf.mxu0
    %v9520 = vadd.f32 %v9407, %v9519
    %v9521 = vpop.f32.mrf.mxu0
    %v9522 = vadd.f32 %v9409, %v9521
    %9523 = vmatprep.mubr.f32.mxu0 %v8908
    %9524 = vmatmul.mubr.f32.gmra.mxu0 %v8907
    %v9525 = vpop.f32.mrf.mxu0
    %v9526 = vadd.f32 %v9413, %v9525
    %v9527 = vpop.f32.mrf.mxu0
    %v9528 = vadd.f32 %v9415, %v9527
    %9529 = vdwg.mxu0
    %9530 = vmatprep.subr.mxu0 %v9227
    %9531 = vmatpush1.xpose.msra.mxu0 %v9005
    %9532 = vmatprep.subr.mxu0 %v9224
    %9533 = vmatpush1.xpose.msra.mxu0 %v8999
    %9534 = vmatprep.subr.mxu0 %v9221
    %9535 = vmatpush1.xpose.msra.mxu0 %v8993
    %9536 = vmatprep.subr.mxu0 %v9218
    %9537 = vmatpush1.xpose.msra.mxu0 %v8987
    %9538 = vmatprep.subr.mxu0 %v9215
    %9539 = vmatpush1.xpose.msra.mxu0 %v8981
    %9540 = vmatprep.subr.mxu0 %v9212
    %9541 = vmatpush1.xpose.msra.mxu0 %v8975
    %9542 = vmatprep.subr.mxu0 %v9209
    %9543 = vmatpush1.xpose.msra.mxu0 %v8969
    %9544 = vmatprep.subr.mxu0 %v9206
    %9545 = vmatpush1.xpose.msra.mxu0 %v8963
    %9546 = vmatprep.subr.mxu0 %v9203
    %9547 = vmatpush1.xpose.msra.mxu0 %v8957
    %9548 = vmatprep.subr.mxu0 %v9200
    %9549 = vmatpush1.xpose.msra.mxu0 %v8951
    %9550 = vmatprep.subr.mxu0 %v9197
    %9551 = vmatpush1.xpose.msra.mxu0 %v8945
    %9552 = vmatprep.subr.mxu0 %v9194
    %9553 = vmatpush1.xpose.msra.mxu0 %v8939
    %9554 = vmatprep.subr.mxu0 %v9191
    %9555 = vmatpush1.xpose.msra.mxu0 %v8933
    %9556 = vmatprep.subr.mxu0 %v9188
    %9557 = vmatpush1.xpose.msra.mxu0 %v8927
    %9558 = vmatprep.subr.mxu0 %v9185
    %9559 = vmatpush1.xpose.msra.mxu0 %v8921
    %9560 = vmatprep.subr.mxu0 %v9182
    %9561 = vmatpush1.xpose.msra.mxu0 %v8915
    %9562 = vmatprep.subr.mxu0 %v9275
    %9563 = vmatpush2.xpose.msra.mxu0 %v9101
    %9564 = vmatprep.subr.mxu0 %v9272
    %9565 = vmatpush2.xpose.msra.mxu0 %v9095
    %9566 = vmatprep.subr.mxu0 %v9269
    %9567 = vmatpush2.xpose.msra.mxu0 %v9089
    %9568 = vmatprep.subr.mxu0 %v9266
    %9569 = vmatpush2.xpose.msra.mxu0 %v9083
    %9570 = vmatprep.subr.mxu0 %v9263
    %9571 = vmatpush2.xpose.msra.mxu0 %v9077
    %9572 = vmatprep.subr.mxu0 %v9260
    %9573 = vmatpush2.xpose.msra.mxu0 %v9071
    %9574 = vmatprep.subr.mxu0 %v9257
    %9575 = vmatpush2.xpose.msra.mxu0 %v9065
    %9576 = vmatprep.subr.mxu0 %v9254
    %9577 = vmatpush2.xpose.msra.mxu0 %v9059
    %9578 = vmatprep.subr.mxu0 %v9251
    %9579 = vmatpush2.xpose.msra.mxu0 %v9053
    %9580 = vmatprep.subr.mxu0 %v9248
    %9581 = vmatpush2.xpose.msra.mxu0 %v9047
    %9582 = vmatprep.subr.mxu0 %v9245
    %9583 = vmatpush2.xpose.msra.mxu0 %v9041
    %9584 = vmatprep.subr.mxu0 %v9242
    %9585 = vmatpush2.xpose.msra.mxu0 %v9035
    %9586 = vmatprep.subr.mxu0 %v9239
    %9587 = vmatpush2.xpose.msra.mxu0 %v9029
    %9588 = vmatprep.subr.mxu0 %v9236
    %9589 = vmatpush2.xpose.msra.mxu0 %v9023
    %9590 = vmatprep.subr.mxu0 %v9233
    %9591 = vmatpush2.xpose.msra.mxu0 %v9017
    %9592 = vmatprep.subr.mxu0 %v9230
    %9593 = vmatpush2.xpose.msra.mxu0 %v9011
    %9594 = vmatprep.mubr.f32.mxu0 %v9158
    %9595 = vmatmul.mubr.f32.gmra.mxu0 %v8867
    %v9596 = vpop.f32.mrf.mxu0
    %v9597 = vadd.f32 %v9484, %v9596
    %v9598 = vpop.f32.mrf.mxu0
    %v9599 = vadd.f32 %v9486, %v9598
    %9600 = vmatprep.mubr.f32.mxu0 %v9161
    %9601 = vmatmul.mubr.f32.gmra.mxu0 %v8873
    %v9602 = vpop.f32.mrf.mxu0
    %v9603 = vadd.f32 %v9490, %v9602
    %v9604 = vpop.f32.mrf.mxu0
    %v9605 = vadd.f32 %v9492, %v9604
    %9606 = vmatprep.mubr.f32.mxu0 %v9164
    %9607 = vmatmul.mubr.f32.gmra.mxu0 %v8879
    %v9608 = vpop.f32.mrf.mxu0
    %v9609 = vadd.f32 %v9496, %v9608
    %v9610 = vpop.f32.mrf.mxu0
    %v9611 = vadd.f32 %v9498, %v9610
    %9612 = vmatprep.mubr.f32.mxu0 %v9167
    %9613 = vmatmul.mubr.f32.gmra.mxu0 %v8885
    %v9614 = vpop.f32.mrf.mxu0
    %v9615 = vadd.f32 %v9502, %v9614
    %v9616 = vpop.f32.mrf.mxu0
    %v9617 = vadd.f32 %v9504, %v9616
    %9618 = vmatprep.mubr.f32.mxu0 %v9170
    %9619 = vmatmul.mubr.f32.gmra.mxu0 %v8891
    %v9620 = vpop.f32.mrf.mxu0
    %v9621 = vadd.f32 %v9508, %v9620
    %v9622 = vpop.f32.mrf.mxu0
    %v9623 = vadd.f32 %v9510, %v9622
    %9624 = vmatprep.mubr.f32.mxu0 %v9173
    %9625 = vmatmul.mubr.f32.gmra.mxu0 %v8897
    %v9626 = vpop.f32.mrf.mxu0
    %v9627 = vadd.f32 %v9514, %v9626
    %v9628 = vpop.f32.mrf.mxu0
    %v9629 = vadd.f32 %v9516, %v9628
    %9630 = vmatprep.mubr.f32.mxu0 %v9176
    %9631 = vmatmul.mubr.f32.gmra.mxu0 %v8903
    %v9632 = vpop.f32.mrf.mxu0
    %v9633 = vadd.f32 %v9520, %v9632
    %v9634 = vpop.f32.mrf.mxu0
    %v9635 = vadd.f32 %v9522, %v9634
    %9636 = vmatprep.mubr.f32.mxu0 %v9179
    %9637 = vmatmul.mubr.f32.gmra.mxu0 %v8909
    %v9638 = vpop.f32.mrf.mxu0
    %v9639 = vadd.f32 %v9526, %v9638
    %v9640 = vpop.f32.mrf.mxu0
    %v9641 = vadd.f32 %v9528, %v9640
    %9642 = vdwg.mxu0
    %9643 = vmatprep.subr.mxu0 0.0
    %9644 = vmatpush1.xpose.msra.mxu0 0.0
    %9645 = vmatprep.subr.mxu0 0.0
    %9646 = vmatpush1.xpose.msra.mxu0 0.0
    %9647 = vmatprep.subr.mxu0 0.0
    %9648 = vmatpush1.xpose.msra.mxu0 0.0
    %9649 = vmatprep.subr.mxu0 0.0
    %9650 = vmatpush1.xpose.msra.mxu0 0.0
    %9651 = vmatprep.subr.mxu0 0.0
    %9652 = vmatpush1.xpose.msra.mxu0 0.0
    %9653 = vmatprep.subr.mxu0 0.0
    %9654 = vmatpush1.xpose.msra.mxu0 0.0
    %9655 = vmatprep.subr.mxu0 0.0
    %9656 = vmatpush1.xpose.msra.mxu0 0.0
    %9657 = vmatprep.subr.mxu0 %v9152
    %9658 = vmatpush1.xpose.msra.mxu0 %v9151
    %9659 = vmatprep.subr.mxu0 %v9146
    %9660 = vmatpush1.xpose.msra.mxu0 %v9145
    %9661 = vmatprep.subr.mxu0 %v9140
    %9662 = vmatpush1.xpose.msra.mxu0 %v9139
    %9663 = vmatprep.subr.mxu0 %v9134
    %9664 = vmatpush1.xpose.msra.mxu0 %v9133
    %9665 = vmatprep.subr.mxu0 %v9128
    %9666 = vmatpush1.xpose.msra.mxu0 %v9127
    %9667 = vmatprep.subr.mxu0 %v9122
    %9668 = vmatpush1.xpose.msra.mxu0 %v9121
    %9669 = vmatprep.subr.mxu0 %v9116
    %9670 = vmatpush1.xpose.msra.mxu0 %v9115
    %9671 = vmatprep.subr.mxu0 %v9110
    %9672 = vmatpush1.xpose.msra.mxu0 %v9109
    %9673 = vmatprep.subr.mxu0 %v9104
    %9674 = vmatpush1.xpose.msra.mxu0 %v9103
    %9675 = vmatprep.subr.mxu0 0.0
    %9676 = vmatpush2.xpose.msra.mxu0 0.0
    %9677 = vmatprep.subr.mxu0 0.0
    %9678 = vmatpush2.xpose.msra.mxu0 0.0
    %9679 = vmatprep.subr.mxu0 0.0
    %9680 = vmatpush2.xpose.msra.mxu0 0.0
    %9681 = vmatprep.subr.mxu0 0.0
    %9682 = vmatpush2.xpose.msra.mxu0 0.0
    %9683 = vmatprep.subr.mxu0 0.0
    %9684 = vmatpush2.xpose.msra.mxu0 0.0
    %9685 = vmatprep.subr.mxu0 0.0
    %9686 = vmatpush2.xpose.msra.mxu0 0.0
    %9687 = vmatprep.subr.mxu0 0.0
    %9688 = vmatpush2.xpose.msra.mxu0 0.0
    %9689 = vmatprep.subr.mxu0 0.0
    %9690 = vmatpush2.xpose.msra.mxu0 0.0
    %9691 = vmatprep.subr.mxu0 0.0
    %9692 = vmatpush2.xpose.msra.mxu0 0.0
    %9693 = vmatprep.subr.mxu0 0.0
    %9694 = vmatpush2.xpose.msra.mxu0 0.0
    %9695 = vmatprep.subr.mxu0 0.0
    %9696 = vmatpush2.xpose.msra.mxu0 0.0
    %9697 = vmatprep.subr.mxu0 0.0
    %9698 = vmatpush2.xpose.msra.mxu0 0.0
    %9699 = vmatprep.subr.mxu0 0.0
    %9700 = vmatpush2.xpose.msra.mxu0 0.0
    %9701 = vmatprep.subr.mxu0 0.0
    %9702 = vmatpush2.xpose.msra.mxu0 0.0
    %9703 = vmatprep.subr.mxu0 0.0
    %9704 = vmatpush2.xpose.msra.mxu0 0.0
    %9705 = vmatprep.subr.mxu0 0.0
    %9706 = vmatpush2.xpose.msra.mxu0 0.0
    %9707 = vmatprep.mubr.f32.mxu0 %v8864
    %9708 = vmatmul.mubr.f32.gmra.mxu0 %v8863
    %v9709 = vpop.f32.mrf.mxu0
    %v9710 = vadd.f32 0.0, %v9709
    %v9711 = vpop.f32.mrf.mxu0
    %9712 = vmatprep.mubr.f32.mxu0 %v8870
    %9713 = vmatmul.mubr.f32.gmra.mxu0 %v8869
    %v9714 = vpop.f32.mrf.mxu0
    %v9715 = vadd.f32 0.0, %v9714
    %v9716 = vpop.f32.mrf.mxu0
    %9717 = vmatprep.mubr.f32.mxu0 %v8876
    %9718 = vmatmul.mubr.f32.gmra.mxu0 %v8875
    %v9719 = vpop.f32.mrf.mxu0
    %v9720 = vadd.f32 0.0, %v9719
    %v9721 = vpop.f32.mrf.mxu0
    %9722 = vmatprep.mubr.f32.mxu0 %v8882
    %9723 = vmatmul.mubr.f32.gmra.mxu0 %v8881
    %v9724 = vpop.f32.mrf.mxu0
    %v9725 = vadd.f32 0.0, %v9724
    %v9726 = vpop.f32.mrf.mxu0
    %9727 = vmatprep.mubr.f32.mxu0 %v8888
    %9728 = vmatmul.mubr.f32.gmra.mxu0 %v8887
    %v9729 = vpop.f32.mrf.mxu0
    %v9730 = vadd.f32 0.0, %v9729
    %v9731 = vpop.f32.mrf.mxu0
    %9732 = vmatprep.mubr.f32.mxu0 %v8894
    %9733 = vmatmul.mubr.f32.gmra.mxu0 %v8893
    %v9734 = vpop.f32.mrf.mxu0
    %v9735 = vadd.f32 0.0, %v9734
    %v9736 = vpop.f32.mrf.mxu0
    %9737 = vmatprep.mubr.f32.mxu0 %v8900
    %9738 = vmatmul.mubr.f32.gmra.mxu0 %v8899
    %v9739 = vpop.f32.mrf.mxu0
    %v9740 = vadd.f32 0.0, %v9739
    %v9741 = vpop.f32.mrf.mxu0
    %9742 = vmatprep.mubr.f32.mxu0 %v8906
    %9743 = vmatmul.mubr.f32.gmra.mxu0 %v8905
    %v9744 = vpop.f32.mrf.mxu0
    %v9745 = vadd.f32 0.0, %v9744
    %v9746 = vpop.f32.mrf.mxu0
    %9747 = vdwg.mxu0
    %9748 = vmatprep.subr.mxu0 0.0
    %9749 = vmatpush1.xpose.msra.mxu0 0.0
    %9750 = vmatprep.subr.mxu0 0.0
    %9751 = vmatpush1.xpose.msra.mxu0 0.0
    %9752 = vmatprep.subr.mxu0 0.0
    %9753 = vmatpush1.xpose.msra.mxu0 0.0
    %9754 = vmatprep.subr.mxu0 0.0
    %9755 = vmatpush1.xpose.msra.mxu0 0.0
    %9756 = vmatprep.subr.mxu0 0.0
    %9757 = vmatpush1.xpose.msra.mxu0 0.0
    %9758 = vmatprep.subr.mxu0 0.0
    %9759 = vmatpush1.xpose.msra.mxu0 0.0
    %9760 = vmatprep.subr.mxu0 0.0
    %9761 = vmatpush1.xpose.msra.mxu0 0.0
    %9762 = vmatprep.subr.mxu0 %v9154
    %9763 = vmatpush1.xpose.msra.mxu0 %v9153
    %9764 = vmatprep.subr.mxu0 %v9148
    %9765 = vmatpush1.xpose.msra.mxu0 %v9147
    %9766 = vmatprep.subr.mxu0 %v9142
    %9767 = vmatpush1.xpose.msra.mxu0 %v9141
    %9768 = vmatprep.subr.mxu0 %v9136
    %9769 = vmatpush1.xpose.msra.mxu0 %v9135
    %9770 = vmatprep.subr.mxu0 %v9130
    %9771 = vmatpush1.xpose.msra.mxu0 %v9129
    %9772 = vmatprep.subr.mxu0 %v9124
    %9773 = vmatpush1.xpose.msra.mxu0 %v9123
    %9774 = vmatprep.subr.mxu0 %v9118
    %9775 = vmatpush1.xpose.msra.mxu0 %v9117
    %9776 = vmatprep.subr.mxu0 %v9112
    %9777 = vmatpush1.xpose.msra.mxu0 %v9111
    %9778 = vmatprep.subr.mxu0 %v9106
    %9779 = vmatpush1.xpose.msra.mxu0 %v9105
    %9780 = vmatprep.subr.mxu0 0.0
    %9781 = vmatpush2.xpose.msra.mxu0 0.0
    %9782 = vmatprep.subr.mxu0 0.0
    %9783 = vmatpush2.xpose.msra.mxu0 0.0
    %9784 = vmatprep.subr.mxu0 0.0
    %9785 = vmatpush2.xpose.msra.mxu0 0.0
    %9786 = vmatprep.subr.mxu0 0.0
    %9787 = vmatpush2.xpose.msra.mxu0 0.0
    %9788 = vmatprep.subr.mxu0 0.0
    %9789 = vmatpush2.xpose.msra.mxu0 0.0
    %9790 = vmatprep.subr.mxu0 0.0
    %9791 = vmatpush2.xpose.msra.mxu0 0.0
    %9792 = vmatprep.subr.mxu0 0.0
    %9793 = vmatpush2.xpose.msra.mxu0 0.0
    %9794 = vmatprep.subr.mxu0 0.0
    %9795 = vmatpush2.xpose.msra.mxu0 0.0
    %9796 = vmatprep.subr.mxu0 0.0
    %9797 = vmatpush2.xpose.msra.mxu0 0.0
    %9798 = vmatprep.subr.mxu0 0.0
    %9799 = vmatpush2.xpose.msra.mxu0 0.0
    %9800 = vmatprep.subr.mxu0 0.0
    %9801 = vmatpush2.xpose.msra.mxu0 0.0
    %9802 = vmatprep.subr.mxu0 0.0
    %9803 = vmatpush2.xpose.msra.mxu0 0.0
    %9804 = vmatprep.subr.mxu0 0.0
    %9805 = vmatpush2.xpose.msra.mxu0 0.0
    %9806 = vmatprep.subr.mxu0 0.0
    %9807 = vmatpush2.xpose.msra.mxu0 0.0
    %9808 = vmatprep.subr.mxu0 0.0
    %9809 = vmatpush2.xpose.msra.mxu0 0.0
    %9810 = vmatprep.subr.mxu0 0.0
    %9811 = vmatpush2.xpose.msra.mxu0 0.0
    %9812 = vmatprep.mubr.f32.mxu0 %v8866
    %9813 = vmatmul.mubr.f32.gmra.mxu0 %v8865
    %v9814 = vpop.f32.mrf.mxu0
    %v9815 = vadd.f32 %v9710, %v9814
    %v9816 = vpop.f32.mrf.mxu0
    %9817 = vmatprep.mubr.f32.mxu0 %v8872
    %9818 = vmatmul.mubr.f32.gmra.mxu0 %v8871
    %v9819 = vpop.f32.mrf.mxu0
    %v9820 = vadd.f32 %v9715, %v9819
    %v9821 = vpop.f32.mrf.mxu0
    %9822 = vmatprep.mubr.f32.mxu0 %v8878
    %9823 = vmatmul.mubr.f32.gmra.mxu0 %v8877
    %v9824 = vpop.f32.mrf.mxu0
    %v9825 = vadd.f32 %v9720, %v9824
    %v9826 = vpop.f32.mrf.mxu0
    %9827 = vmatprep.mubr.f32.mxu0 %v8884
    %9828 = vmatmul.mubr.f32.gmra.mxu0 %v8883
    %v9829 = vpop.f32.mrf.mxu0
    %v9830 = vadd.f32 %v9725, %v9829
    %v9831 = vpop.f32.mrf.mxu0
    %9832 = vmatprep.mubr.f32.mxu0 %v8890
    %9833 = vmatmul.mubr.f32.gmra.mxu0 %v8889
    %v9834 = vpop.f32.mrf.mxu0
    %v9835 = vadd.f32 %v9730, %v9834
    %v9836 = vpop.f32.mrf.mxu0
    %9837 = vmatprep.mubr.f32.mxu0 %v8896
    %9838 = vmatmul.mubr.f32.gmra.mxu0 %v8895
    %v9839 = vpop.f32.mrf.mxu0
    %v9840 = vadd.f32 %v9735, %v9839
    %v9841 = vpop.f32.mrf.mxu0
    %9842 = vmatprep.mubr.f32.mxu0 %v8902
    %9843 = vmatmul.mubr.f32.gmra.mxu0 %v8901
    %v9844 = vpop.f32.mrf.mxu0
    %v9845 = vadd.f32 %v9740, %v9844
    %v9846 = vpop.f32.mrf.mxu0
    %9847 = vmatprep.mubr.f32.mxu0 %v8908
    %9848 = vmatmul.mubr.f32.gmra.mxu0 %v8907
    %v9849 = vpop.f32.mrf.mxu0
    %v9850 = vadd.f32 %v9745, %v9849
    %v9851 = vpop.f32.mrf.mxu0
    %9852 = vdwg.mxu0
    %9853 = vmatprep.subr.mxu0 0.0
    %9854 = vmatpush1.xpose.msra.mxu0 0.0
    %9855 = vmatprep.subr.mxu0 0.0
    %9856 = vmatpush1.xpose.msra.mxu0 0.0
    %9857 = vmatprep.subr.mxu0 0.0
    %9858 = vmatpush1.xpose.msra.mxu0 0.0
    %9859 = vmatprep.subr.mxu0 0.0
    %9860 = vmatpush1.xpose.msra.mxu0 0.0
    %9861 = vmatprep.subr.mxu0 0.0
    %9862 = vmatpush1.xpose.msra.mxu0 0.0
    %9863 = vmatprep.subr.mxu0 0.0
    %9864 = vmatpush1.xpose.msra.mxu0 0.0
    %9865 = vmatprep.subr.mxu0 0.0
    %9866 = vmatpush1.xpose.msra.mxu0 0.0
    %9867 = vmatprep.subr.mxu0 %v9302
    %9868 = vmatpush1.xpose.msra.mxu0 %v9155
    %9869 = vmatprep.subr.mxu0 %v9299
    %9870 = vmatpush1.xpose.msra.mxu0 %v9149
    %9871 = vmatprep.subr.mxu0 %v9296
    %9872 = vmatpush1.xpose.msra.mxu0 %v9143
    %9873 = vmatprep.subr.mxu0 %v9293
    %9874 = vmatpush1.xpose.msra.mxu0 %v9137
    %9875 = vmatprep.subr.mxu0 %v9290
    %9876 = vmatpush1.xpose.msra.mxu0 %v9131
    %9877 = vmatprep.subr.mxu0 %v9287
    %9878 = vmatpush1.xpose.msra.mxu0 %v9125
    %9879 = vmatprep.subr.mxu0 %v9284
    %9880 = vmatpush1.xpose.msra.mxu0 %v9119
    %9881 = vmatprep.subr.mxu0 %v9281
    %9882 = vmatpush1.xpose.msra.mxu0 %v9113
    %9883 = vmatprep.subr.mxu0 %v9278
    %9884 = vmatpush1.xpose.msra.mxu0 %v9107
    %9885 = vmatprep.subr.mxu0 0.0
    %9886 = vmatpush2.xpose.msra.mxu0 0.0
    %9887 = vmatprep.subr.mxu0 0.0
    %9888 = vmatpush2.xpose.msra.mxu0 0.0
    %9889 = vmatprep.subr.mxu0 0.0
    %9890 = vmatpush2.xpose.msra.mxu0 0.0
    %9891 = vmatprep.subr.mxu0 0.0
    %9892 = vmatpush2.xpose.msra.mxu0 0.0
    %9893 = vmatprep.subr.mxu0 0.0
    %9894 = vmatpush2.xpose.msra.mxu0 0.0
    %9895 = vmatprep.subr.mxu0 0.0
    %9896 = vmatpush2.xpose.msra.mxu0 0.0
    %9897 = vmatprep.subr.mxu0 0.0
    %9898 = vmatpush2.xpose.msra.mxu0 0.0
    %9899 = vmatprep.subr.mxu0 0.0
    %9900 = vmatpush2.xpose.msra.mxu0 0.0
    %9901 = vmatprep.subr.mxu0 0.0
    %9902 = vmatpush2.xpose.msra.mxu0 0.0
    %9903 = vmatprep.subr.mxu0 0.0
    %9904 = vmatpush2.xpose.msra.mxu0 0.0
    %9905 = vmatprep.subr.mxu0 0.0
    %9906 = vmatpush2.xpose.msra.mxu0 0.0
    %9907 = vmatprep.subr.mxu0 0.0
    %9908 = vmatpush2.xpose.msra.mxu0 0.0
    %9909 = vmatprep.subr.mxu0 0.0
    %9910 = vmatpush2.xpose.msra.mxu0 0.0
    %9911 = vmatprep.subr.mxu0 0.0
    %9912 = vmatpush2.xpose.msra.mxu0 0.0
    %9913 = vmatprep.subr.mxu0 0.0
    %9914 = vmatpush2.xpose.msra.mxu0 0.0
    %9915 = vmatprep.subr.mxu0 0.0
    %9916 = vmatpush2.xpose.msra.mxu0 0.0
    %9917 = vmatprep.mubr.f32.mxu0 %v9158
    %9918 = vmatmul.mubr.f32.gmra.mxu0 %v8867
    %v9919 = vpop.f32.mrf.mxu0
    %v9920 = vadd.f32 %v9815, %v9919
    %v9921 = vpop.f32.mrf.mxu0
    %9922 = vmatprep.mubr.f32.mxu0 %v9161
    %9923 = vmatmul.mubr.f32.gmra.mxu0 %v8873
    %v9924 = vpop.f32.mrf.mxu0
    %v9925 = vadd.f32 %v9820, %v9924
    %v9926 = vpop.f32.mrf.mxu0
    %9927 = vmatprep.mubr.f32.mxu0 %v9164
    %9928 = vmatmul.mubr.f32.gmra.mxu0 %v8879
    %v9929 = vpop.f32.mrf.mxu0
    %v9930 = vadd.f32 %v9825, %v9929
    %v9931 = vpop.f32.mrf.mxu0
    %9932 = vmatprep.mubr.f32.mxu0 %v9167
    %9933 = vmatmul.mubr.f32.gmra.mxu0 %v8885
    %v9934 = vpop.f32.mrf.mxu0
    %v9935 = vadd.f32 %v9830, %v9934
    %v9936 = vpop.f32.mrf.mxu0
    %9937 = vmatprep.mubr.f32.mxu0 %v9170
    %9938 = vmatmul.mubr.f32.gmra.mxu0 %v8891
    %v9939 = vpop.f32.mrf.mxu0
    %v9940 = vadd.f32 %v9835, %v9939
    %v9941 = vpop.f32.mrf.mxu0
    %9942 = vmatprep.mubr.f32.mxu0 %v9173
    %9943 = vmatmul.mubr.f32.gmra.mxu0 %v8897
    %v9944 = vpop.f32.mrf.mxu0
    %v9945 = vadd.f32 %v9840, %v9944
    %v9946 = vpop.f32.mrf.mxu0
    %9947 = vmatprep.mubr.f32.mxu0 %v9176
    %9948 = vmatmul.mubr.f32.gmra.mxu0 %v8903
    %v9949 = vpop.f32.mrf.mxu0
    %v9950 = vadd.f32 %v9845, %v9949
    %v9951 = vpop.f32.mrf.mxu0
    %9952 = vmatprep.mubr.f32.mxu0 %v9179
    %9953 = vmatmul.mubr.f32.gmra.mxu0 %v8909
    %v9954 = vpop.f32.mrf.mxu0
    %v9955 = vadd.f32 %v9850, %v9954
    %v9956 = vpop.f32.mrf.mxu0
    %9957 = vdwg.mxu0
    %9958 = vst [vmem:[#allocation2] sm:$0xff] %v9597
    %9959 = vst [vmem:[#allocation2 + $0x8] sm:$0xff] %v9599
    %9960 = vst.msk [vmem:[#allocation2 + $0x10] sm:$0xff] %vm288, %v9920
    %9961 = vst [vmem:[#allocation2 + $0x18] sm:$0xff] %v9603
    %9962 = vst [vmem:[#allocation2 + $0x20] sm:$0xff] %v9605
    %9963 = vst.msk [vmem:[#allocation2 + $0x28] sm:$0xff] %vm288, %v9925
    %9964 = vst [vmem:[#allocation2 + $0x30] sm:$0xff] %v9609
    %9965 = vst [vmem:[#allocation2 + $0x38] sm:$0xff] %v9611
    %9966 = vst.msk [vmem:[#allocation2 + $0x40] sm:$0xff] %vm288, %v9930
    %9967 = vst [vmem:[#allocation2 + $0x48] sm:$0xff] %v9615
    %9968 = vst [vmem:[#allocation2 + $0x50] sm:$0xff] %v9617
    %9969 = vst.msk [vmem:[#allocation2 + $0x58] sm:$0xff] %vm288, %v9935
    %9970 = vst [vmem:[#allocation2 + $0x60] sm:$0xff] %v9621
    %9971 = vst [vmem:[#allocation2 + $0x68] sm:$0xff] %v9623
    %9972 = vst.msk [vmem:[#allocation2 + $0x70] sm:$0xff] %vm288, %v9940
    %9973 = vst [vmem:[#allocation2 + $0x78] sm:$0xff] %v9627
    %9974 = vst [vmem:[#allocation2 + $0x80] sm:$0xff] %v9629
    %9975 = vst.msk [vmem:[#allocation2 + $0x88] sm:$0xff] %vm288, %v9945
    %9976 = vst [vmem:[#allocation2 + $0x90] sm:$0xff] %v9633
    %9977 = vst [vmem:[#allocation2 + $0x98] sm:$0xff] %v9635
    %9978 = vst.msk [vmem:[#allocation2 + $0xa0] sm:$0xff] %vm288, %v9950
    %9979 = vst [vmem:[#allocation2 + $0xa8] sm:$0xff] %v9639
    %9980 = vst [vmem:[#allocation2 + $0xb0] sm:$0xff] %v9641
    %9981 = vst.msk [vmem:[#allocation2 + $0xb8] sm:$0xff] %vm288, %v9955
    // Predicated region
    $region22: #{tpu_custom_call.1} parent=1 // pred_check
      _
    $region23: #{tpu_custom_call.1} parent=1 // pred_check_branch
      %9983 = sbr.rel (0) target = $region25
    $region24: #{tpu_custom_call.1} parent=1 // pred_region
      %s9985 = ssub.s32 3072, 3072
      %9986 = vsyncadd [#allocation3], %s9985
      %s9987 = sshll.u32 [#allocation2], 4
      %s9988 = int_to_ptr.vmem [resolvable:$true] %s9987
      %9993 = dma.vmem_to_hbm [thread:$0]  %s9988, 3072, %s5, [#allocation3], 384, 384, 24
    $region25: #{tpu_custom_call.1} parent=1 // pred_fallthru
      _
    // Predicated region
    $region26: #{tpu_custom_call.1} parent=1 // pred_check
      _
    $region27: #{tpu_custom_call.1} parent=1 // pred_check_branch
      %9995 = sbr.rel (0) target = $region29
    $region28: #{tpu_custom_call.1} parent=1 // pred_region
      %9996 = dma.done [#allocation3], 3072
    $region29: #{tpu_custom_call.1} parent=1 // pred_fallthru
      _
    %9997 = vsyncpa [#allocation3], 1

</llo_original>
